<compile_context>
chip_gen: v6e
topology: v6e:2x2x1
jax: 0.10.0
libtpu: 0.0.40
codegen_flags: <defaults>
</compile_context>

<pallas_src>
import functools

import jax
import jax.numpy as jnp
from jax import lax
from jax.experimental import pallas as pl
from jax.experimental.pallas import tpu as pltpu


# ---------------------------------------------------------------------------
# Pallas kernel (one grid step per batch element):
#   Y = P (SW*OH, KH*Cin) @ W2 (KH*Cin, KW*Cout)     [MXU, f32 accumulation]
#   out[r, co] = silu( bias[co] + sum_kw Y[OH*kw + r, Cout*kw + co] )
# ---------------------------------------------------------------------------
def _make_conv_silu_kernel(OH, OW, KW, Cout):
    M = OH * OW

    def kernel(p_ref, w_ref, b_ref, o_ref, y_ref):
        # Stage 1: MXU-native matmul, K on sublanes of the stationary operand,
        # wide (KW*Cout) lane dim -> no operand transposes needed by Mosaic.
        y_ref[...] = jnp.dot(
            p_ref[0], w_ref[...], preferred_element_type=jnp.float32
        )

        # Stage 2: combine the KW taps.  With Y rows ordered (w, oh) and columns
        # ordered (kw, cout), the terms for output row r = ow*OH + oh are exactly
        # the contiguous (M, Cout) block of Y at offset (OH*kw, Cout*kw).
        acc = jnp.zeros((M, Cout), jnp.float32)
        for kw in range(KW):  # static unroll: KW small shifted-block adds
            acc = acc + y_ref[OH * kw: OH * kw + M, Cout * kw: Cout * kw + Cout]

        z = acc + b_ref[...]                 # (M, Cout) + (1, Cout) broadcast
        o_ref[0] = z * jax.nn.sigmoid(z)     # y * sigmoid(y)

    return kernel


def _conv_silu_pallas(p2, w2, bias, *, OH, OW, KW, Cout):
    """p2: (N, SW*OH, KH*Cin) bf16, w2: (KH*Cin, KW*Cout) bf16, bias: (Cout,) f32."""
    N, Mrows, K = p2.shape
    Ncols = w2.shape[1]
    kernel = _make_conv_silu_kernel(OH, OW, KW, Cout)

    return pl.pallas_call(
        kernel,
        out_shape=jax.ShapeDtypeStruct((N, OH * OW, Cout), jnp.float32),
        grid_spec=pltpu.PrefetchScalarGridSpec(
            num_scalar_prefetch=0,
            grid=(N,),
            in_specs=[
                # Full-dim blocks everywhere: no (8,128) divisibility issues, no pads.
                pl.BlockSpec((1, Mrows, K), lambda n: (n, 0, 0)),   # patches (bf16)
                pl.BlockSpec((K, Ncols), lambda n: (0, 0)),          # weights (bf16, resident)
                pl.BlockSpec((1, Cout), lambda n: (0, 0)),           # bias (f32, resident)
            ],
            out_specs=pl.BlockSpec((1, OH * OW, Cout), lambda n: (n, 0, 0)),
            scratch_shapes=[pltpu.VMEM((Mrows, Ncols), jnp.float32)],  # Y scratch
        ),
        compiler_params=pltpu.CompilerParams(
            # Batch axis shards across TensorCores (v7x) when N > 1.
            dimension_semantics=("parallel",),
        ),
    )(p2, w2, bias.reshape(1, Cout).astype(jnp.float32))


# ---------------------------------------------------------------------------
# Wrapper: NCHW conv(39->19, k=45, s=10, p=17, d=10) + y*sigmoid(y)
# ---------------------------------------------------------------------------
def model_forward(x, weight, bias, *, stride=10, padding=17, dilation=10):
    N, Cin, H, W = x.shape
    Cout, Cin_w, KH, KW = weight.shape
    assert Cin == Cin_w
    s, p, d = stride, padding, dilation

    OH = (H + 2 * p - d * (KH - 1) - 1) // s + 1
    OW = (W + 2 * p - d * (KW - 1) - 1) // s + 1
    assert OH > 0 and OW > 0, "input too small for this conv config"
    # The subsampling trick below relies on stride == dilation.
    assert s == d  # TODO(synk): generalize (full im2col path) for stride != dilation

    SH = OH + KH - 1
    SW = OW + KW - 1

    # ---- subsample BEFORE padding (review item 2) --------------------------
    # u[n, ci, a, b] = x[n, ci, s*a - p, s*b - p] (zero outside), a,b in [0, SH/SW)
    def axis_params(L, S):
        lead = (p + s - 1) // s                       # samples that land in padding
        last = min(S - 1, (L - 1 + p) // s)           # last in-range sample
        n_in = last - lead + 1
        trail = S - 1 - last
        first = s * lead - p                          # first in-range original index
        assert n_in > 0
        return first, n_in, lead, trail

    fh, nh, lead_h, trail_h = axis_params(H, SH)
    fw, nw, lead_w, trail_w = axis_params(W, SW)

    u = x[:, :, fh: fh + (nh - 1) * s + 1: s, fw: fw + (nw - 1) * s + 1: s]
    u = u.astype(jnp.bfloat16)
    u = jnp.pad(u, ((0, 0), (0, 0), (lead_h, trail_h), (lead_w, trail_w)))
    # u: (N, Cin, SH, SW) bf16, ~190 KB

    # ---- partial im2col over H only, emitted directly in final layout ------
    # P[(n, w, oh), (kh, cin)] = u[n, cin, oh+kh, w]   (one gather, no transpose)
    x_t = jnp.transpose(u, (0, 3, 2, 1))                      # (N, SW, SH, Cin), tiny
    oh_kh = jnp.arange(OH)[:, None] + jnp.arange(KH)[None, :]  # (OH, KH)
    p2 = x_t[:, :, oh_kh, :].reshape(N, SW * OH, KH * Cin)     # (N, 245, 1755) bf16

    # Weight -> (KH*Cin, KW*Cout) bf16: rows match p2 columns, K on sublanes,
    # wide lane dim => MXU-native orientation (no A·Bᵀ, review item 8).
    w2 = jnp.transpose(weight, (2, 1, 3, 0)).reshape(
        KH * Cin, KW * Cout).astype(jnp.bfloat16)

    out = _conv_silu_pallas(p2, w2, bias, OH=OH, OW=OW, KW=KW, Cout=Cout)
    # Kernel output rows are ordered r = ow*OH + oh.
    out = out.reshape(N, OW, OH, Cout).transpose(0, 3, 2, 1)   # -> (N, Cout, OH, OW)
    return out


if __name__ == "__main__":
    # Problem sizes implied by the module; the original (1,39,64,64) input is
    # invalid for this conv, so we use the smallest "nice" valid spatial size.
    N, Cin, H, W = 1, 39, 448, 448
    Cout, KH, KW = 19, 45, 45
    stride, padding, dilation = 10, 17, 10

    key = jax.random.PRNGKey(0)
    kx, kw, kb = jax.random.split(key, 3)

    x = jax.random.normal(kx, (N, Cin, H, W), dtype=jnp.float32)

    # Deterministic PyTorch-style init: U(-1/sqrt(fan_in), 1/sqrt(fan_in))
    fan_in = Cin * KH * KW
    bound = 1.0 / jnp.sqrt(jnp.float32(fan_in))
    weight = jax.random.uniform(kw, (Cout, Cin, KH, KW), jnp.float32, -bound, bound)
    bias = jax.random.uniform(kb, (Cout,), jnp.float32, -bound, bound)

    fwd = jax.jit(functools.partial(
        model_forward, stride=stride, padding=padding, dilation=dilation))
    out = fwd(x, weight, bias)
    out = jax.block_until_ready(out)

    # Sanity check against XLA's dilated conv reference (f32).
    ref = lax.conv_general_dilated(
        x, weight,
        window_strides=(stride, stride),
        padding=((padding, padding), (padding, padding)),
        rhs_dilation=(dilation, dilation),
        dimension_numbers=("NCHW", "OIHW", "NCHW"),
    ) + bias[None, :, None, None]
    ref = ref * jax.nn.sigmoid(ref)

    assert out.shape == ref.shape, (out.shape, ref.shape)
    # bf16 operands with f32 MXU accumulation: abs error ~1e-3, well inside tol.
    assert jnp.allclose(out, ref, rtol=2e-2, atol=2e-2), "mismatch vs reference conv"

    print("KERNEL_OK")
</pallas_src>

<mosaic_0001>
module attributes {stable_mosaic.version = 11 : i64} {
  func.func @kernel(%arg0: i32, %arg1: memref<1x245x1755xbf16, #tpu.memory_space<vmem>>, %arg2: memref<1755x855xbf16, #tpu.memory_space<vmem>>, %arg3: memref<1x19xf32, #tpu.memory_space<vmem>>, %arg4: memref<1x25x19xf32, #tpu.memory_space<vmem>>, %arg5: memref<245x855xf32, #tpu.memory_space<vmem>>) attributes {dimension_semantics = [#tpu.dimension_semantics<parallel>], iteration_bounds = array<i64: 1>, scalar_prefetch = 0 : i64, scratch_operands = 1 : i64, tpu.core_type = #tpu.core_type<tc>, window_params = [{transform_indices = @transform_0, window_bounds = array<i64: 1, 245, 1755>}, {pipeline_mode = #tpu.pipeline_mode<synchronous>, transform_indices = @transform_1, window_bounds = array<i64: 1755, 855>}, {pipeline_mode = #tpu.pipeline_mode<synchronous>, transform_indices = @transform_2, window_bounds = array<i64: 1, 19>}, {transform_indices = @transform_3, window_bounds = array<i64: 1, 25, 19>}]} {
    %c0 = arith.constant 0 : index
    %c0_0 = arith.constant 0 : index
    %c0_1 = arith.constant 0 : index
    %0 = vector.load %arg1[%c0, %c0_0, %c0_1] : memref<1x245x1755xbf16, #tpu.memory_space<vmem>>, vector<1x245x1755xbf16>
    %1 = vector.shape_cast %0 : vector<1x245x1755xbf16> to vector<245x1755xbf16>
    %c0_2 = arith.constant 0 : index
    %c0_3 = arith.constant 0 : index
    %2 = vector.load %arg2[%c0_2, %c0_3] : memref<1755x855xbf16, #tpu.memory_space<vmem>>, vector<1755x855xbf16>
    %cst = arith.constant dense<0.000000e+00> : vector<245x855xf32>
    %3 = tpu.matmul %1, %2, %cst {dimension_numbers = #tpu.dot_dimension_numbers<[1], [0], [0], [1], [0, 0, 1, 1], [], []>} : vector<245x1755xbf16>, vector<1755x855xbf16>, vector<245x855xf32> -> vector<245x855xf32>
    %c0_4 = arith.constant 0 : index
    %c0_5 = arith.constant 0 : index
    %4 = vector.load %arg5[%c0_4, %c0_5] : memref<245x855xf32, #tpu.memory_space<vmem>>, vector<245x855xf32>
    tpu.vector_store %arg5[%c0_4, %c0_5], %3 {strides = array<i32>} : memref<245x855xf32, #tpu.memory_space<vmem>>, vector<245x855xf32>,
    %cst_6 = arith.constant 0.000000e+00 : f32
    %5 = vector.broadcast %cst_6 : f32 to vector<25x19xf32>
    %c0_7 = arith.constant 0 : index
    %c0_8 = arith.constant 0 : index
    %6 = vector.load %arg5[%c0_7, %c0_8] : memref<245x855xf32, #tpu.memory_space<vmem>>, vector<25x19xf32>
    %7 = arith.addf %5, %6 : vector<25x19xf32>
    %c5 = arith.constant 5 : index
    %c19 = arith.constant 19 : index
    %8 = vector.load %arg5[%c5, %c19] : memref<245x855xf32, #tpu.memory_space<vmem>>, vector<25x19xf32>
    %9 = arith.addf %7, %8 : vector<25x19xf32>
    %c10 = arith.constant 10 : index
    %c38 = arith.constant 38 : index
    %10 = vector.load %arg5[%c10, %c38] : memref<245x855xf32, #tpu.memory_space<vmem>>, vector<25x19xf32>
    %11 = arith.addf %9, %10 : vector<25x19xf32>
    %c15 = arith.constant 15 : index
    %c57 = arith.constant 57 : index
    %12 = vector.load %arg5[%c15, %c57] : memref<245x855xf32, #tpu.memory_space<vmem>>, vector<25x19xf32>
    %13 = arith.addf %11, %12 : vector<25x19xf32>
    %c20 = arith.constant 20 : index
    %c76 = arith.constant 76 : index
    %14 = vector.load %arg5[%c20, %c76] : memref<245x855xf32, #tpu.memory_space<vmem>>, vector<25x19xf32>
    %15 = arith.addf %13, %14 : vector<25x19xf32>
    %c25 = arith.constant 25 : index
    %c95 = arith.constant 95 : index
    %16 = vector.load %arg5[%c25, %c95] : memref<245x855xf32, #tpu.memory_space<vmem>>, vector<25x19xf32>
    %17 = arith.addf %15, %16 : vector<25x19xf32>
    %c30 = arith.constant 30 : index
    %c114 = arith.constant 114 : index
    %18 = vector.load %arg5[%c30, %c114] : memref<245x855xf32, #tpu.memory_space<vmem>>, vector<25x19xf32>
    %19 = arith.addf %17, %18 : vector<25x19xf32>
    %c35 = arith.constant 35 : index
    %c133 = arith.constant 133 : index
    %20 = vector.load %arg5[%c35, %c133] : memref<245x855xf32, #tpu.memory_space<vmem>>, vector<25x19xf32>
    %21 = arith.addf %19, %20 : vector<25x19xf32>
    %c40 = arith.constant 40 : index
    %c152 = arith.constant 152 : index
    %22 = vector.load %arg5[%c40, %c152] : memref<245x855xf32, #tpu.memory_space<vmem>>, vector<25x19xf32>
    %23 = arith.addf %21, %22 : vector<25x19xf32>
    %c45 = arith.constant 45 : index
    %c171 = arith.constant 171 : index
    %24 = vector.load %arg5[%c45, %c171] : memref<245x855xf32, #tpu.memory_space<vmem>>, vector<25x19xf32>
    %25 = arith.addf %23, %24 : vector<25x19xf32>
    %c50 = arith.constant 50 : index
    %c190 = arith.constant 190 : index
    %26 = vector.load %arg5[%c50, %c190] : memref<245x855xf32, #tpu.memory_space<vmem>>, vector<25x19xf32>
    %27 = arith.addf %25, %26 : vector<25x19xf32>
    %c55 = arith.constant 55 : index
    %c209 = arith.constant 209 : index
    %28 = vector.load %arg5[%c55, %c209] : memref<245x855xf32, #tpu.memory_space<vmem>>, vector<25x19xf32>
    %29 = arith.addf %27, %28 : vector<25x19xf32>
    %c60 = arith.constant 60 : index
    %c228 = arith.constant 228 : index
    %30 = vector.load %arg5[%c60, %c228] : memref<245x855xf32, #tpu.memory_space<vmem>>, vector<25x19xf32>
    %31 = arith.addf %29, %30 : vector<25x19xf32>
    %c65 = arith.constant 65 : index
    %c247 = arith.constant 247 : index
    %32 = vector.load %arg5[%c65, %c247] : memref<245x855xf32, #tpu.memory_space<vmem>>, vector<25x19xf32>
    %33 = arith.addf %31, %32 : vector<25x19xf32>
    %c70 = arith.constant 70 : index
    %c266 = arith.constant 266 : index
    %34 = vector.load %arg5[%c70, %c266] : memref<245x855xf32, #tpu.memory_space<vmem>>, vector<25x19xf32>
    %35 = arith.addf %33, %34 : vector<25x19xf32>
    %c75 = arith.constant 75 : index
    %c285 = arith.constant 285 : index
    %36 = vector.load %arg5[%c75, %c285] : memref<245x855xf32, #tpu.memory_space<vmem>>, vector<25x19xf32>
    %37 = arith.addf %35, %36 : vector<25x19xf32>
    %c80 = arith.constant 80 : index
    %c304 = arith.constant 304 : index
    %38 = vector.load %arg5[%c80, %c304] : memref<245x855xf32, #tpu.memory_space<vmem>>, vector<25x19xf32>
    %39 = arith.addf %37, %38 : vector<25x19xf32>
    %c85 = arith.constant 85 : index
    %c323 = arith.constant 323 : index
    %40 = vector.load %arg5[%c85, %c323] : memref<245x855xf32, #tpu.memory_space<vmem>>, vector<25x19xf32>
    %41 = arith.addf %39, %40 : vector<25x19xf32>
    %c90 = arith.constant 90 : index
    %c342 = arith.constant 342 : index
    %42 = vector.load %arg5[%c90, %c342] : memref<245x855xf32, #tpu.memory_space<vmem>>, vector<25x19xf32>
    %43 = arith.addf %41, %42 : vector<25x19xf32>
    %c95_9 = arith.constant 95 : index
    %c361 = arith.constant 361 : index
    %44 = vector.load %arg5[%c95_9, %c361] : memref<245x855xf32, #tpu.memory_space<vmem>>, vector<25x19xf32>
    %45 = arith.addf %43, %44 : vector<25x19xf32>
    %c100 = arith.constant 100 : index
    %c380 = arith.constant 380 : index
    %46 = vector.load %arg5[%c100, %c380] : memref<245x855xf32, #tpu.memory_space<vmem>>, vector<25x19xf32>
    %47 = arith.addf %45, %46 : vector<25x19xf32>
    %c105 = arith.constant 105 : index
    %c399 = arith.constant 399 : index
    %48 = vector.load %arg5[%c105, %c399] : memref<245x855xf32, #tpu.memory_space<vmem>>, vector<25x19xf32>
    %49 = arith.addf %47, %48 : vector<25x19xf32>
    %c110 = arith.constant 110 : index
    %c418 = arith.constant 418 : index
    %50 = vector.load %arg5[%c110, %c418] : memref<245x855xf32, #tpu.memory_space<vmem>>, vector<25x19xf32>
    %51 = arith.addf %49, %50 : vector<25x19xf32>
    %c115 = arith.constant 115 : index
    %c437 = arith.constant 437 : index
    %52 = vector.load %arg5[%c115, %c437] : memref<245x855xf32, #tpu.memory_space<vmem>>, vector<25x19xf32>
    %53 = arith.addf %51, %52 : vector<25x19xf32>
    %c120 = arith.constant 120 : index
    %c456 = arith.constant 456 : index
    %54 = vector.load %arg5[%c120, %c456] : memref<245x855xf32, #tpu.memory_space<vmem>>, vector<25x19xf32>
    %55 = arith.addf %53, %54 : vector<25x19xf32>
    %c125 = arith.constant 125 : index
    %c475 = arith.constant 475 : index
    %56 = vector.load %arg5[%c125, %c475] : memref<245x855xf32, #tpu.memory_space<vmem>>, vector<25x19xf32>
    %57 = arith.addf %55, %56 : vector<25x19xf32>
    %c130 = arith.constant 130 : index
    %c494 = arith.constant 494 : index
    %58 = vector.load %arg5[%c130, %c494] : memref<245x855xf32, #tpu.memory_space<vmem>>, vector<25x19xf32>
    %59 = arith.addf %57, %58 : vector<25x19xf32>
    %c135 = arith.constant 135 : index
    %c513 = arith.constant 513 : index
    %60 = vector.load %arg5[%c135, %c513] : memref<245x855xf32, #tpu.memory_space<vmem>>, vector<25x19xf32>
    %61 = arith.addf %59, %60 : vector<25x19xf32>
    %c140 = arith.constant 140 : index
    %c532 = arith.constant 532 : index
    %62 = vector.load %arg5[%c140, %c532] : memref<245x855xf32, #tpu.memory_space<vmem>>, vector<25x19xf32>
    %63 = arith.addf %61, %62 : vector<25x19xf32>
    %c145 = arith.constant 145 : index
    %c551 = arith.constant 551 : index
    %64 = vector.load %arg5[%c145, %c551] : memref<245x855xf32, #tpu.memory_space<vmem>>, vector<25x19xf32>
    %65 = arith.addf %63, %64 : vector<25x19xf32>
    %c150 = arith.constant 150 : index
    %c570 = arith.constant 570 : index
    %66 = vector.load %arg5[%c150, %c570] : memref<245x855xf32, #tpu.memory_space<vmem>>, vector<25x19xf32>
    %67 = arith.addf %65, %66 : vector<25x19xf32>
    %c155 = arith.constant 155 : index
    %c589 = arith.constant 589 : index
    %68 = vector.load %arg5[%c155, %c589] : memref<245x855xf32, #tpu.memory_space<vmem>>, vector<25x19xf32>
    %69 = arith.addf %67, %68 : vector<25x19xf32>
    %c160 = arith.constant 160 : index
    %c608 = arith.constant 608 : index
    %70 = vector.load %arg5[%c160, %c608] : memref<245x855xf32, #tpu.memory_space<vmem>>, vector<25x19xf32>
    %71 = arith.addf %69, %70 : vector<25x19xf32>
    %c165 = arith.constant 165 : index
    %c627 = arith.constant 627 : index
    %72 = vector.load %arg5[%c165, %c627] : memref<245x855xf32, #tpu.memory_space<vmem>>, vector<25x19xf32>
    %73 = arith.addf %71, %72 : vector<25x19xf32>
    %c170 = arith.constant 170 : index
    %c646 = arith.constant 646 : index
    %74 = vector.load %arg5[%c170, %c646] : memref<245x855xf32, #tpu.memory_space<vmem>>, vector<25x19xf32>
    %75 = arith.addf %73, %74 : vector<25x19xf32>
    %c175 = arith.constant 175 : index
    %c665 = arith.constant 665 : index
    %76 = vector.load %arg5[%c175, %c665] : memref<245x855xf32, #tpu.memory_space<vmem>>, vector<25x19xf32>
    %77 = arith.addf %75, %76 : vector<25x19xf32>
    %c180 = arith.constant 180 : index
    %c684 = arith.constant 684 : index
    %78 = vector.load %arg5[%c180, %c684] : memref<245x855xf32, #tpu.memory_space<vmem>>, vector<25x19xf32>
    %79 = arith.addf %77, %78 : vector<25x19xf32>
    %c185 = arith.constant 185 : index
    %c703 = arith.constant 703 : index
    %80 = vector.load %arg5[%c185, %c703] : memref<245x855xf32, #tpu.memory_space<vmem>>, vector<25x19xf32>
    %81 = arith.addf %79, %80 : vector<25x19xf32>
    %c190_10 = arith.constant 190 : index
    %c722 = arith.constant 722 : index
    %82 = vector.load %arg5[%c190_10, %c722] : memref<245x855xf32, #tpu.memory_space<vmem>>, vector<25x19xf32>
    %83 = arith.addf %81, %82 : vector<25x19xf32>
    %c195 = arith.constant 195 : index
    %c741 = arith.constant 741 : index
    %84 = vector.load %arg5[%c195, %c741] : memref<245x855xf32, #tpu.memory_space<vmem>>, vector<25x19xf32>
    %85 = arith.addf %83, %84 : vector<25x19xf32>
    %c200 = arith.constant 200 : index
    %c760 = arith.constant 760 : index
    %86 = vector.load %arg5[%c200, %c760] : memref<245x855xf32, #tpu.memory_space<vmem>>, vector<25x19xf32>
    %87 = arith.addf %85, %86 : vector<25x19xf32>
    %c205 = arith.constant 205 : index
    %c779 = arith.constant 779 : index
    %88 = vector.load %arg5[%c205, %c779] : memref<245x855xf32, #tpu.memory_space<vmem>>, vector<25x19xf32>
    %89 = arith.addf %87, %88 : vector<25x19xf32>
    %c210 = arith.constant 210 : index
    %c798 = arith.constant 798 : index
    %90 = vector.load %arg5[%c210, %c798] : memref<245x855xf32, #tpu.memory_space<vmem>>, vector<25x19xf32>
    %91 = arith.addf %89, %90 : vector<25x19xf32>
    %c215 = arith.constant 215 : index
    %c817 = arith.constant 817 : index
    %92 = vector.load %arg5[%c215, %c817] : memref<245x855xf32, #tpu.memory_space<vmem>>, vector<25x19xf32>
    %93 = arith.addf %91, %92 : vector<25x19xf32>
    %c220 = arith.constant 220 : index
    %c836 = arith.constant 836 : index
    %94 = vector.load %arg5[%c220, %c836] : memref<245x855xf32, #tpu.memory_space<vmem>>, vector<25x19xf32>
    %95 = arith.addf %93, %94 : vector<25x19xf32>
    %c0_11 = arith.constant 0 : index
    %c0_12 = arith.constant 0 : index
    %96 = vector.load %arg3[%c0_11, %c0_12] : memref<1x19xf32, #tpu.memory_space<vmem>>, vector<1x19xf32>
    %97 = vector.broadcast %96 : vector<1x19xf32> to vector<25x19xf32>
    %98 = arith.addf %95, %97 : vector<25x19xf32>
    %99 = arith.negf %98 : vector<25x19xf32>
    %100 = math.exp %99 : vector<25x19xf32>
    %cst_13 = arith.constant 1.000000e+00 : f32
    %101 = vector.broadcast %cst_13 : f32 to vector<25x19xf32>
    %102 = arith.addf %101, %100 : vector<25x19xf32>
    %103 = arith.divf %101, %102 : vector<25x19xf32>
    %104 = arith.mulf %98, %103 : vector<25x19xf32>
    %c0_14 = arith.constant 0 : index
    %c0_15 = arith.constant 0 : index
    %c0_16 = arith.constant 0 : index
    %105 = vector.load %arg4[%c0_14, %c0_15, %c0_16] : memref<1x25x19xf32, #tpu.memory_space<vmem>>, vector<1x25x19xf32>
    %106 = vector.shape_cast %105 : vector<1x25x19xf32> to vector<25x19xf32>
    %107 = vector.shape_cast %104 : vector<25x19xf32> to vector<1x25x19xf32>
    tpu.vector_store %arg4[%c0_14, %c0_15, %c0_16], %107 {strides = array<i32>} : memref<1x25x19xf32, #tpu.memory_space<vmem>>, vector<1x25x19xf32>,
    return
  }
  func.func @transform_0(%arg0: i32) -> (i32, i32, i32) {
    %c0_i32 = arith.constant 0 : i32
    %c0_i32_0 = arith.constant 0 : i32
    %c0_i32_1 = arith.constant 0 : i32
    return %arg0, %c0_i32, %c0_i32_0 : i32, i32, i32
  }
  func.func @transform_1(%arg0: i32) -> (i32, i32) {
    %c0_i32 = arith.constant 0 : i32
    %c0_i32_0 = arith.constant 0 : i32
    %c0_i32_1 = arith.constant 0 : i32
    return %c0_i32, %c0_i32_0 : i32, i32
  }
  func.func @transform_2(%arg0: i32) -> (i32, i32) {
    %c0_i32 = arith.constant 0 : i32
    %c0_i32_0 = arith.constant 0 : i32
    %c0_i32_1 = arith.constant 0 : i32
    return %c0_i32, %c0_i32_0 : i32, i32
  }
  func.func @transform_3(%arg0: i32) -> (i32, i32, i32) {
    %c0_i32 = arith.constant 0 : i32
    %c0_i32_0 = arith.constant 0 : i32
    %c0_i32_1 = arith.constant 0 : i32
    return %arg0, %c0_i32, %c0_i32_0 : i32, i32, i32
  }
}

</mosaic_0001>

<llo_original>
// kernel: model_forward.1
$region0: #{model_forward.1}
  #allocation0 [shape = 'u32[]', space=smem, size = 0x4, offset = 0x4, fixed_abs, tag = 'smem constant byte address 0x4 - core index']
  #allocation1 [shape = 'u32[144,128]{1,0:T(1,128)}', space=vmem, size = 0x12000, scoped, tag = 'internal scratch']
  #allocation2 [shape = 'f32[245,855]{1,0:T(8,128)}', space=vmem, size = 0xd9000, scoped, tag = 'scratch operand']
  %s0 = inlined_call_operand.vmem [shape: bf16[1,245,1755], index: 0, kind: input, shape index: {}]
  %s1 = inlined_call_operand.vmem [shape: bf16[1755,855], index: 1, kind: input, shape index: {}]
  %s2 = inlined_call_operand.vmem [shape: f32[1,19], index: 2, kind: input, shape index: {}]
  %s3 = inlined_call_operand.vmem [shape: f32[1,25,19], index: 3, kind: output, shape index: {}]
  %s4 = sld [smem:[#allocation0]]
  $region22: #{model_forward.1} parent=0
    _
  %s6 = ssub.s32 1, %s4
  %s7 = scalar_select 0, %s6, %s4
  // Predicated region
  $region2: #{model_forward.1} parent=0 // pred_check
    _
  $region3: #{model_forward.1} parent=0 // pred_check_branch
    %9 = sbr.rel (0) target = $region5
  $region4: #{model_forward.1} parent=0 // pred_region
    _
  $region5: #{model_forward.1} parent=0 // pred_fallthru
    _
  // Predicated region
  $region6: #{model_forward.1} parent=0 // pred_check
    _
  $region7: #{model_forward.1} parent=0 // pred_check_branch
    %11 = sbr.rel (0) target = $region9
  $region8: #{model_forward.1} parent=0 // pred_region
    _
  $region9: #{model_forward.1} parent=0 // pred_fallthru
    _
  // Predicated region
  $region10: #{model_forward.1} parent=0 // pred_check
    _
  $region11: #{model_forward.1} parent=0 // pred_check_branch
    %13 = sbr.rel (0) target = $region13
  $region12: #{model_forward.1} parent=0 // pred_region
    _
  $region13: #{model_forward.1} parent=0 // pred_fallthru
    _
  %v15 = vld [vmem:[%s0] sm:$0xff]
  %v16 = vld [vmem:[%s0 + $0x8] sm:$0xff]
  %v17 = vld [vmem:[%s0 + $0x10] sm:$0xff]
  %v18 = vld [vmem:[%s0 + $0x18] sm:$0xff]
  %v19 = vld [vmem:[%s0 + $0x20] sm:$0xff]
  %v20 = vld [vmem:[%s0 + $0x28] sm:$0xff]
  %v21 = vld [vmem:[%s0 + $0x30] sm:$0xff]
  %v22 = vld [vmem:[%s0 + $0x38] sm:$0xff]
  %v23 = vld [vmem:[%s0 + $0x40] sm:$0xff]
  %v24 = vld [vmem:[%s0 + $0x48] sm:$0xff]
  %v25 = vld [vmem:[%s0 + $0x50] sm:$0xff]
  %v26 = vld [vmem:[%s0 + $0x58] sm:$0xff]
  %v27 = vld [vmem:[%s0 + $0x60] sm:$0xff]
  %v28 = vld [vmem:[%s0 + $0x68] sm:$0xff]
  %v29 = vld [vmem:[%s0 + $0x70] sm:$0xff]
  %v30 = vld [vmem:[%s0 + $0x78] sm:$0xff]
  %v31 = vld [vmem:[%s0 + $0x80] sm:$0xff]
  %v32 = vld [vmem:[%s0 + $0x88] sm:$0xff]
  %v33 = vld [vmem:[%s0 + $0x90] sm:$0xff]
  %v34 = vld [vmem:[%s0 + $0x98] sm:$0xff]
  %v35 = vld [vmem:[%s0 + $0xa0] sm:$0xff]
  %v36 = vld [vmem:[%s0 + $0xa8] sm:$0xff]
  %v37 = vld [vmem:[%s0 + $0xb0] sm:$0xff]
  %v38 = vld [vmem:[%s0 + $0xb8] sm:$0xff]
  %v39 = vld [vmem:[%s0 + $0xc0] sm:$0xff]
  %v40 = vld [vmem:[%s0 + $0xc8] sm:$0xff]
  %v41 = vld [vmem:[%s0 + $0xd0] sm:$0xff]
  %v42 = vld [vmem:[%s0 + $0xd8] sm:$0xff]
  %v43 = vld [vmem:[%s0 + $0xe0] sm:$0xff]
  %v44 = vld [vmem:[%s0 + $0xe8] sm:$0xff]
  %v45 = vld [vmem:[%s0 + $0xf0] sm:$0xff]
  %v46 = vld [vmem:[%s0 + $0xf8] sm:$0xff]
  %v47 = vld [vmem:[%s0 + $0x100] sm:$0xff]
  %v48 = vld [vmem:[%s0 + $0x108] sm:$0xff]
  %v49 = vld [vmem:[%s0 + $0x110] sm:$0xff]
  %v50 = vld [vmem:[%s0 + $0x118] sm:$0xff]
  %v51 = vld [vmem:[%s0 + $0x120] sm:$0xff]
  %v52 = vld [vmem:[%s0 + $0x128] sm:$0xff]
  %v53 = vld [vmem:[%s0 + $0x130] sm:$0xff]
  %v54 = vld [vmem:[%s0 + $0x138] sm:$0xff]
  %v55 = vld [vmem:[%s0 + $0x140] sm:$0xff]
  %v56 = vld [vmem:[%s0 + $0x148] sm:$0xff]
  %v57 = vld [vmem:[%s0 + $0x150] sm:$0xff]
  %v58 = vld [vmem:[%s0 + $0x158] sm:$0xff]
  %v59 = vld [vmem:[%s0 + $0x160] sm:$0xff]
  %v60 = vld [vmem:[%s0 + $0x168] sm:$0xff]
  %v61 = vld [vmem:[%s0 + $0x170] sm:$0xff]
  %v62 = vld [vmem:[%s0 + $0x178] sm:$0xff]
  %v63 = vld [vmem:[%s0 + $0x180] sm:$0xff]
  %v64 = vld [vmem:[%s0 + $0x188] sm:$0xff]
  %v65 = vld [vmem:[%s0 + $0x190] sm:$0xff]
  %v66 = vld [vmem:[%s0 + $0x198] sm:$0xff]
  %v67 = vld [vmem:[%s0 + $0x1a0] sm:$0xff]
  %v68 = vld [vmem:[%s0 + $0x1a8] sm:$0xff]
  %v69 = vld [vmem:[%s0 + $0x1b0] sm:$0xff]
  %v70 = vld [vmem:[%s0 + $0x1b8] sm:$0xff]
  %v71 = vld [vmem:[%s0 + $0x1c0] sm:$0xff]
  %v72 = vld [vmem:[%s0 + $0x1c8] sm:$0xff]
  %v73 = vld [vmem:[%s0 + $0x1d0] sm:$0xff]
  %v74 = vld [vmem:[%s0 + $0x1d8] sm:$0xff]
  %v75 = vld [vmem:[%s0 + $0x1e0] sm:$0xff]
  %v76 = vld [vmem:[%s0 + $0x1e8] sm:$0xff]
  %v77 = vld [vmem:[%s0 + $0x1f0] sm:$0xff]
  %v78 = vld [vmem:[%s0 + $0x1f8] sm:$0xff]
  %v79 = vld [vmem:[%s0 + $0x200] sm:$0xff]
  %v80 = vld [vmem:[%s0 + $0x208] sm:$0xff]
  %v81 = vld [vmem:[%s0 + $0x210] sm:$0xff]
  %v82 = vld [vmem:[%s0 + $0x218] sm:$0xff]
  %v83 = vld [vmem:[%s0 + $0x220] sm:$0xff]
  %v84 = vld [vmem:[%s0 + $0x228] sm:$0xff]
  %v85 = vld [vmem:[%s0 + $0x230] sm:$0xff]
  %v86 = vld [vmem:[%s0 + $0x238] sm:$0xff]
  %v87 = vld [vmem:[%s0 + $0x240] sm:$0xff]
  %v88 = vld [vmem:[%s0 + $0x248] sm:$0xff]
  %v89 = vld [vmem:[%s0 + $0x250] sm:$0xff]
  %v90 = vld [vmem:[%s0 + $0x258] sm:$0xff]
  %v91 = vld [vmem:[%s0 + $0x260] sm:$0xff]
  %v92 = vld [vmem:[%s0 + $0x268] sm:$0xff]
  %v93 = vld [vmem:[%s0 + $0x270] sm:$0xff]
  %v94 = vld [vmem:[%s0 + $0x278] sm:$0xff]
  %v95 = vld [vmem:[%s0 + $0x280] sm:$0xff]
  %v96 = vld [vmem:[%s0 + $0x288] sm:$0xff]
  %v97 = vld [vmem:[%s0 + $0x290] sm:$0xff]
  %v98 = vld [vmem:[%s0 + $0x298] sm:$0xff]
  %v99 = vld [vmem:[%s0 + $0x2a0] sm:$0xff]
  %v100 = vld [vmem:[%s0 + $0x2a8] sm:$0xff]
  %v101 = vld [vmem:[%s0 + $0x2b0] sm:$0xff]
  %v102 = vld [vmem:[%s0 + $0x2b8] sm:$0xff]
  %v103 = vld [vmem:[%s0 + $0x2c0] sm:$0xff]
  %v104 = vld [vmem:[%s0 + $0x2c8] sm:$0xff]
  %v105 = vld [vmem:[%s0 + $0x2d0] sm:$0xff]
  %v106 = vld [vmem:[%s0 + $0x2d8] sm:$0xff]
  %v107 = vld [vmem:[%s0 + $0x2e0] sm:$0xff]
  %v108 = vld [vmem:[%s0 + $0x2e8] sm:$0xff]
  %v109 = vld [vmem:[%s0 + $0x2f0] sm:$0xff]
  %v110 = vld [vmem:[%s0 + $0x2f8] sm:$0xff]
  %v111 = vld [vmem:[%s0 + $0x300] sm:$0xff]
  %v112 = vld [vmem:[%s0 + $0x308] sm:$0xff]
  %v113 = vld [vmem:[%s0 + $0x310] sm:$0xff]
  %v114 = vld [vmem:[%s0 + $0x318] sm:$0xff]
  %v115 = vld [vmem:[%s0 + $0x320] sm:$0xff]
  %v116 = vld [vmem:[%s0 + $0x328] sm:$0xff]
  %v117 = vld [vmem:[%s0 + $0x330] sm:$0xff]
  %v118 = vld [vmem:[%s0 + $0x338] sm:$0xff]
  %v119 = vld [vmem:[%s0 + $0x340] sm:$0xff]
  %v120 = vld [vmem:[%s0 + $0x348] sm:$0xff]
  %v121 = vld [vmem:[%s0 + $0x350] sm:$0xff]
  %v122 = vld [vmem:[%s0 + $0x358] sm:$0xff]
  %v123 = vld [vmem:[%s0 + $0x360] sm:$0xff]
  %v124 = vld [vmem:[%s0 + $0x368] sm:$0xff]
  %v125 = vld [vmem:[%s0 + $0x370] sm:$0xff]
  %v126 = vld [vmem:[%s0 + $0x378] sm:$0xff]
  %v127 = vld [vmem:[%s0 + $0x380] sm:$0xff]
  %v128 = vld [vmem:[%s0 + $0x388] sm:$0xff]
  %v129 = vld [vmem:[%s0 + $0x390] sm:$0xff]
  %v130 = vld [vmem:[%s0 + $0x398] sm:$0xff]
  %v131 = vld [vmem:[%s0 + $0x3a0] sm:$0xff]
  %v132 = vld [vmem:[%s0 + $0x3a8] sm:$0xff]
  %v133 = vld [vmem:[%s0 + $0x3b0] sm:$0xff]
  %v134 = vld [vmem:[%s0 + $0x3b8] sm:$0xff]
  %v135 = vld [vmem:[%s0 + $0x3c0] sm:$0xff]
  %v136 = vld [vmem:[%s0 + $0x3c8] sm:$0xff]
  %v137 = vld [vmem:[%s0 + $0x3d0] sm:$0xff]
  %v138 = vld [vmem:[%s0 + $0x3d8] sm:$0xff]
  %v139 = vld [vmem:[%s0 + $0x3e0] sm:$0xff]
  %v140 = vld [vmem:[%s0 + $0x3e8] sm:$0xff]
  %v141 = vld [vmem:[%s0 + $0x3f0] sm:$0xff]
  %v142 = vld [vmem:[%s0 + $0x3f8] sm:$0xff]
  %v143 = vld [vmem:[%s0 + $0x400] sm:$0xff]
  %v144 = vld [vmem:[%s0 + $0x408] sm:$0xff]
  %v145 = vld [vmem:[%s0 + $0x410] sm:$0xff]
  %v146 = vld [vmem:[%s0 + $0x418] sm:$0xff]
  %v147 = vld [vmem:[%s0 + $0x420] sm:$0xff]
  %v148 = vld [vmem:[%s0 + $0x428] sm:$0xff]
  %v149 = vld [vmem:[%s0 + $0x430] sm:$0xff]
  %v150 = vld [vmem:[%s0 + $0x438] sm:$0xff]
  %v151 = vld [vmem:[%s0 + $0x440] sm:$0xff]
  %v152 = vld [vmem:[%s0 + $0x448] sm:$0xff]
  %v153 = vld [vmem:[%s0 + $0x450] sm:$0xff]
  %v154 = vld [vmem:[%s0 + $0x458] sm:$0xff]
  %v155 = vld [vmem:[%s0 + $0x460] sm:$0xff]
  %v156 = vld [vmem:[%s0 + $0x468] sm:$0xff]
  %v157 = vld [vmem:[%s0 + $0x470] sm:$0xff]
  %v158 = vld [vmem:[%s0 + $0x478] sm:$0xff]
  %v159 = vld [vmem:[%s0 + $0x480] sm:$0xff]
  %v160 = vld [vmem:[%s0 + $0x488] sm:$0xff]
  %v161 = vld [vmem:[%s0 + $0x490] sm:$0xff]
  %v162 = vld [vmem:[%s0 + $0x498] sm:$0xff]
  %v163 = vld [vmem:[%s0 + $0x4a0] sm:$0xff]
  %v164 = vld [vmem:[%s0 + $0x4a8] sm:$0xff]
  %v165 = vld [vmem:[%s0 + $0x4b0] sm:$0xff]
  %v166 = vld [vmem:[%s0 + $0x4b8] sm:$0xff]
  %v167 = vld [vmem:[%s0 + $0x4c0] sm:$0xff]
  %v168 = vld [vmem:[%s0 + $0x4c8] sm:$0xff]
  %v169 = vld [vmem:[%s0 + $0x4d0] sm:$0xff]
  %v170 = vld [vmem:[%s0 + $0x4d8] sm:$0xff]
  %v171 = vld [vmem:[%s0 + $0x4e0] sm:$0xff]
  %v172 = vld [vmem:[%s0 + $0x4e8] sm:$0xff]
  %v173 = vld [vmem:[%s0 + $0x4f0] sm:$0xff]
  %v174 = vld [vmem:[%s0 + $0x4f8] sm:$0xff]
  %v175 = vld [vmem:[%s0 + $0x500] sm:$0xff]
  %v176 = vld [vmem:[%s0 + $0x508] sm:$0xff]
  %v177 = vld [vmem:[%s0 + $0x510] sm:$0xff]
  %v178 = vld [vmem:[%s0 + $0x518] sm:$0xff]
  %v179 = vld [vmem:[%s0 + $0x520] sm:$0xff]
  %v180 = vld [vmem:[%s0 + $0x528] sm:$0xff]
  %v181 = vld [vmem:[%s0 + $0x530] sm:$0xff]
  %v182 = vld [vmem:[%s0 + $0x538] sm:$0xff]
  %v183 = vld [vmem:[%s0 + $0x540] sm:$0xff]
  %v184 = vld [vmem:[%s0 + $0x548] sm:$0xff]
  %v185 = vld [vmem:[%s0 + $0x550] sm:$0xff]
  %v186 = vld [vmem:[%s0 + $0x558] sm:$0xff]
  %v187 = vld [vmem:[%s0 + $0x560] sm:$0xff]
  %v188 = vld [vmem:[%s0 + $0x568] sm:$0xff]
  %v189 = vld [vmem:[%s0 + $0x570] sm:$0xff]
  %v190 = vld [vmem:[%s0 + $0x578] sm:$0xff]
  %v191 = vld [vmem:[%s0 + $0x580] sm:$0xff]
  %v192 = vld [vmem:[%s0 + $0x588] sm:$0xff]
  %v193 = vld [vmem:[%s0 + $0x590] sm:$0xff]
  %v194 = vld [vmem:[%s0 + $0x598] sm:$0xff]
  %v195 = vld [vmem:[%s0 + $0x5a0] sm:$0xff]
  %v196 = vld [vmem:[%s0 + $0x5a8] sm:$0xff]
  %v197 = vld [vmem:[%s0 + $0x5b0] sm:$0xff]
  %v198 = vld [vmem:[%s0 + $0x5b8] sm:$0xff]
  %v199 = vld [vmem:[%s0 + $0x5c0] sm:$0xff]
  %v200 = vld [vmem:[%s0 + $0x5c8] sm:$0xff]
  %v201 = vld [vmem:[%s0 + $0x5d0] sm:$0xff]
  %v202 = vld [vmem:[%s0 + $0x5d8] sm:$0xff]
  %v203 = vld [vmem:[%s0 + $0x5e0] sm:$0xff]
  %v204 = vld [vmem:[%s0 + $0x5e8] sm:$0xff]
  %v205 = vld [vmem:[%s0 + $0x5f0] sm:$0xff]
  %v206 = vld [vmem:[%s0 + $0x5f8] sm:$0xff]
  %v207 = vld [vmem:[%s0 + $0x600] sm:$0xff]
  %v208 = vld [vmem:[%s0 + $0x608] sm:$0xff]
  %v209 = vld [vmem:[%s0 + $0x610] sm:$0xff]
  %v210 = vld [vmem:[%s0 + $0x618] sm:$0xff]
  %v211 = vld [vmem:[%s0 + $0x620] sm:$0xff]
  %v212 = vld [vmem:[%s0 + $0x628] sm:$0xff]
  %v213 = vld [vmem:[%s0 + $0x630] sm:$0xff]
  %v214 = vld [vmem:[%s0 + $0x638] sm:$0xff]
  %v215 = vld [vmem:[%s0 + $0x640] sm:$0xff]
  %v216 = vld [vmem:[%s0 + $0x648] sm:$0xff]
  %v217 = vld [vmem:[%s0 + $0x650] sm:$0xff]
  %v218 = vld [vmem:[%s0 + $0x658] sm:$0xff]
  %v219 = vld [vmem:[%s0 + $0x660] sm:$0xff]
  %v220 = vld [vmem:[%s0 + $0x668] sm:$0xff]
  %v221 = vld [vmem:[%s0 + $0x670] sm:$0xff]
  %v222 = vld [vmem:[%s0 + $0x678] sm:$0xff]
  %v223 = vld [vmem:[%s0 + $0x680] sm:$0xff]
  %v224 = vld [vmem:[%s0 + $0x688] sm:$0xff]
  %v225 = vld [vmem:[%s0 + $0x690] sm:$0x77]
  %v226 = vld [vmem:[%s0 + $0x698] sm:$0x77]
  %v227 = vld [vmem:[%s0 + $0x6a0] sm:$0x77]
  %v228 = vld [vmem:[%s0 + $0x6a8] sm:$0x77]
  %v229 = vld [vmem:[%s0 + $0x6b0] sm:$0x77]
  %v230 = vld [vmem:[%s0 + $0x6b8] sm:$0x77]
  %v231 = vld [vmem:[%s0 + $0x6c0] sm:$0x77]
  %v232 = vld [vmem:[%s1] sm:$0xff]
  %v233 = vld [vmem:[%s1 + $0x8] sm:$0xff]
  %v234 = vld [vmem:[%s1 + $0x10] sm:$0xff]
  %v235 = vld [vmem:[%s1 + $0x18] sm:$0xf]
  %v236 = vld [vmem:[%s1 + $0x1c] sm:$0xff]
  %v237 = vld [vmem:[%s1 + $0x24] sm:$0xff]
  %v238 = vld [vmem:[%s1 + $0x2c] sm:$0xff]
  %v239 = vld [vmem:[%s1 + $0x34] sm:$0xf]
  %v240 = vld [vmem:[%s1 + $0x38] sm:$0xff]
  %v241 = vld [vmem:[%s1 + $0x40] sm:$0xff]
  %v242 = vld [vmem:[%s1 + $0x48] sm:$0xff]
  %v243 = vld [vmem:[%s1 + $0x50] sm:$0xf]
  %v244 = vld [vmem:[%s1 + $0x54] sm:$0xff]
  %v245 = vld [vmem:[%s1 + $0x5c] sm:$0xff]
  %v246 = vld [vmem:[%s1 + $0x64] sm:$0xff]
  %v247 = vld [vmem:[%s1 + $0x6c] sm:$0xf]
  %v248 = vld [vmem:[%s1 + $0x70] sm:$0xff]
  %v249 = vld [vmem:[%s1 + $0x78] sm:$0xff]
  %v250 = vld [vmem:[%s1 + $0x80] sm:$0xff]
  %v251 = vld [vmem:[%s1 + $0x88] sm:$0xf]
  %v252 = vld [vmem:[%s1 + $0x8c] sm:$0xff]
  %v253 = vld [vmem:[%s1 + $0x94] sm:$0xff]
  %v254 = vld [vmem:[%s1 + $0x9c] sm:$0xff]
  %v255 = vld [vmem:[%s1 + $0xa4] sm:$0xf]
  %v256 = vld [vmem:[%s1 + $0xa8] sm:$0xff]
  %v257 = vld [vmem:[%s1 + $0xb0] sm:$0xff]
  %v258 = vld [vmem:[%s1 + $0xb8] sm:$0xff]
  %v259 = vld [vmem:[%s1 + $0xc0] sm:$0xf]
  %v260 = vld [vmem:[%s1 + $0xc4] sm:$0xff]
  %v261 = vld [vmem:[%s1 + $0xcc] sm:$0xff]
  %v262 = vld [vmem:[%s1 + $0xd4] sm:$0xff]
  %v263 = vld [vmem:[%s1 + $0xdc] sm:$0xf]
  %v264 = vld [vmem:[%s1 + $0xe0] sm:$0xff]
  %v265 = vld [vmem:[%s1 + $0xe8] sm:$0xff]
  %v266 = vld [vmem:[%s1 + $0xf0] sm:$0xff]
  %v267 = vld [vmem:[%s1 + $0xf8] sm:$0xf]
  %v268 = vld [vmem:[%s1 + $0xfc] sm:$0xff]
  %v269 = vld [vmem:[%s1 + $0x104] sm:$0xff]
  %v270 = vld [vmem:[%s1 + $0x10c] sm:$0xff]
  %v271 = vld [vmem:[%s1 + $0x114] sm:$0xf]
  %v272 = vld [vmem:[%s1 + $0x118] sm:$0xff]
  %v273 = vld [vmem:[%s1 + $0x120] sm:$0xff]
  %v274 = vld [vmem:[%s1 + $0x128] sm:$0xff]
  %v275 = vld [vmem:[%s1 + $0x130] sm:$0xf]
  %v276 = vld [vmem:[%s1 + $0x134] sm:$0xff]
  %v277 = vld [vmem:[%s1 + $0x13c] sm:$0xff]
  %v278 = vld [vmem:[%s1 + $0x144] sm:$0xff]
  %v279 = vld [vmem:[%s1 + $0x14c] sm:$0xf]
  %v280 = vld [vmem:[%s1 + $0x150] sm:$0xff]
  %v281 = vld [vmem:[%s1 + $0x158] sm:$0xff]
  %v282 = vld [vmem:[%s1 + $0x160] sm:$0xff]
  %v283 = vld [vmem:[%s1 + $0x168] sm:$0xf]
  %v284 = vld [vmem:[%s1 + $0x16c] sm:$0xff]
  %v285 = vld [vmem:[%s1 + $0x174] sm:$0xff]
  %v286 = vld [vmem:[%s1 + $0x17c] sm:$0xff]
  %v287 = vld [vmem:[%s1 + $0x184] sm:$0xf]
  %v288 = vld [vmem:[%s1 + $0x188] sm:$0xff]
  %v289 = vld [vmem:[%s1 + $0x190] sm:$0xff]
  %v290 = vld [vmem:[%s1 + $0x198] sm:$0xff]
  %v291 = vld [vmem:[%s1 + $0x1a0] sm:$0xf]
  %v292 = vld [vmem:[%s1 + $0x1a4] sm:$0xff]
  %v293 = vld [vmem:[%s1 + $0x1ac] sm:$0xff]
  %v294 = vld [vmem:[%s1 + $0x1b4] sm:$0xff]
  %v295 = vld [vmem:[%s1 + $0x1bc] sm:$0xf]
  %v296 = vld [vmem:[%s1 + $0x1c0] sm:$0xff]
  %v297 = vld [vmem:[%s1 + $0x1c8] sm:$0xff]
  %v298 = vld [vmem:[%s1 + $0x1d0] sm:$0xff]
  %v299 = vld [vmem:[%s1 + $0x1d8] sm:$0xf]
  %v300 = vld [vmem:[%s1 + $0x1dc] sm:$0xff]
  %v301 = vld [vmem:[%s1 + $0x1e4] sm:$0xff]
  %v302 = vld [vmem:[%s1 + $0x1ec] sm:$0xff]
  %v303 = vld [vmem:[%s1 + $0x1f4] sm:$0xf]
  %v304 = vld [vmem:[%s1 + $0x1f8] sm:$0xff]
  %v305 = vld [vmem:[%s1 + $0x200] sm:$0xff]
  %v306 = vld [vmem:[%s1 + $0x208] sm:$0xff]
  %v307 = vld [vmem:[%s1 + $0x210] sm:$0xf]
  %v308 = vld [vmem:[%s1 + $0x214] sm:$0xff]
  %v309 = vld [vmem:[%s1 + $0x21c] sm:$0xff]
  %v310 = vld [vmem:[%s1 + $0x224] sm:$0xff]
  %v311 = vld [vmem:[%s1 + $0x22c] sm:$0xf]
  %v312 = vld [vmem:[%s1 + $0x230] sm:$0xff]
  %v313 = vld [vmem:[%s1 + $0x238] sm:$0xff]
  %v314 = vld [vmem:[%s1 + $0x240] sm:$0xff]
  %v315 = vld [vmem:[%s1 + $0x248] sm:$0xf]
  %v316 = vld [vmem:[%s1 + $0x24c] sm:$0xff]
  %v317 = vld [vmem:[%s1 + $0x254] sm:$0xff]
  %v318 = vld [vmem:[%s1 + $0x25c] sm:$0xff]
  %v319 = vld [vmem:[%s1 + $0x264] sm:$0xf]
  %v320 = vld [vmem:[%s1 + $0x268] sm:$0xff]
  %v321 = vld [vmem:[%s1 + $0x270] sm:$0xff]
  %v322 = vld [vmem:[%s1 + $0x278] sm:$0xff]
  %v323 = vld [vmem:[%s1 + $0x280] sm:$0xf]
  %v324 = vld [vmem:[%s1 + $0x284] sm:$0xff]
  %v325 = vld [vmem:[%s1 + $0x28c] sm:$0xff]
  %v326 = vld [vmem:[%s1 + $0x294] sm:$0xff]
  %v327 = vld [vmem:[%s1 + $0x29c] sm:$0xf]
  %v328 = vld [vmem:[%s1 + $0x2a0] sm:$0xff]
  %v329 = vld [vmem:[%s1 + $0x2a8] sm:$0xff]
  %v330 = vld [vmem:[%s1 + $0x2b0] sm:$0xff]
  %v331 = vld [vmem:[%s1 + $0x2b8] sm:$0xf]
  %v332 = vld [vmem:[%s1 + $0x2bc] sm:$0xff]
  %v333 = vld [vmem:[%s1 + $0x2c4] sm:$0xff]
  %v334 = vld [vmem:[%s1 + $0x2cc] sm:$0xff]
  %v335 = vld [vmem:[%s1 + $0x2d4] sm:$0xf]
  %v336 = vld [vmem:[%s1 + $0x2d8] sm:$0xff]
  %v337 = vld [vmem:[%s1 + $0x2e0] sm:$0xff]
  %v338 = vld [vmem:[%s1 + $0x2e8] sm:$0xff]
  %v339 = vld [vmem:[%s1 + $0x2f0] sm:$0xf]
  %v340 = vld [vmem:[%s1 + $0x2f4] sm:$0xff]
  %v341 = vld [vmem:[%s1 + $0x2fc] sm:$0xff]
  %v342 = vld [vmem:[%s1 + $0x304] sm:$0xff]
  %v343 = vld [vmem:[%s1 + $0x30c] sm:$0xf]
  %v344 = vld [vmem:[%s1 + $0x310] sm:$0xff]
  %v345 = vld [vmem:[%s1 + $0x318] sm:$0xff]
  %v346 = vld [vmem:[%s1 + $0x320] sm:$0xff]
  %v347 = vld [vmem:[%s1 + $0x328] sm:$0xf]
  %v348 = vld [vmem:[%s1 + $0x32c] sm:$0xff]
  %v349 = vld [vmem:[%s1 + $0x334] sm:$0xff]
  %v350 = vld [vmem:[%s1 + $0x33c] sm:$0xff]
  %v351 = vld [vmem:[%s1 + $0x344] sm:$0xf]
  %v352 = vld [vmem:[%s1 + $0x348] sm:$0xff]
  %v353 = vld [vmem:[%s1 + $0x350] sm:$0xff]
  %v354 = vld [vmem:[%s1 + $0x358] sm:$0xff]
  %v355 = vld [vmem:[%s1 + $0x360] sm:$0xf]
  %v356 = vld [vmem:[%s1 + $0x364] sm:$0xff]
  %v357 = vld [vmem:[%s1 + $0x36c] sm:$0xff]
  %v358 = vld [vmem:[%s1 + $0x374] sm:$0xff]
  %v359 = vld [vmem:[%s1 + $0x37c] sm:$0xf]
  %v360 = vld [vmem:[%s1 + $0x380] sm:$0xff]
  %v361 = vld [vmem:[%s1 + $0x388] sm:$0xff]
  %v362 = vld [vmem:[%s1 + $0x390] sm:$0xff]
  %v363 = vld [vmem:[%s1 + $0x398] sm:$0xf]
  %v364 = vld [vmem:[%s1 + $0x39c] sm:$0xff]
  %v365 = vld [vmem:[%s1 + $0x3a4] sm:$0xff]
  %v366 = vld [vmem:[%s1 + $0x3ac] sm:$0xff]
  %v367 = vld [vmem:[%s1 + $0x3b4] sm:$0xf]
  %v368 = vld [vmem:[%s1 + $0x3b8] sm:$0xff]
  %v369 = vld [vmem:[%s1 + $0x3c0] sm:$0xff]
  %v370 = vld [vmem:[%s1 + $0x3c8] sm:$0xff]
  %v371 = vld [vmem:[%s1 + $0x3d0] sm:$0xf]
  %v372 = vld [vmem:[%s1 + $0x3d4] sm:$0xff]
  %v373 = vld [vmem:[%s1 + $0x3dc] sm:$0xff]
  %v374 = vld [vmem:[%s1 + $0x3e4] sm:$0xff]
  %v375 = vld [vmem:[%s1 + $0x3ec] sm:$0xf]
  %v376 = vld [vmem:[%s1 + $0x3f0] sm:$0xff]
  %v377 = vld [vmem:[%s1 + $0x3f8] sm:$0xff]
  %v378 = vld [vmem:[%s1 + $0x400] sm:$0xff]
  %v379 = vld [vmem:[%s1 + $0x408] sm:$0xf]
  %v380 = vld [vmem:[%s1 + $0x40c] sm:$0xff]
  %v381 = vld [vmem:[%s1 + $0x414] sm:$0xff]
  %v382 = vld [vmem:[%s1 + $0x41c] sm:$0xff]
  %v383 = vld [vmem:[%s1 + $0x424] sm:$0xf]
  %v384 = vld [vmem:[%s1 + $0x428] sm:$0xff]
  %v385 = vld [vmem:[%s1 + $0x430] sm:$0xff]
  %v386 = vld [vmem:[%s1 + $0x438] sm:$0xff]
  %v387 = vld [vmem:[%s1 + $0x440] sm:$0xf]
  %v388 = vld [vmem:[%s1 + $0x444] sm:$0xff]
  %v389 = vld [vmem:[%s1 + $0x44c] sm:$0xff]
  %v390 = vld [vmem:[%s1 + $0x454] sm:$0xff]
  %v391 = vld [vmem:[%s1 + $0x45c] sm:$0xf]
  %v392 = vld [vmem:[%s1 + $0x460] sm:$0xff]
  %v393 = vld [vmem:[%s1 + $0x468] sm:$0xff]
  %v394 = vld [vmem:[%s1 + $0x470] sm:$0xff]
  %v395 = vld [vmem:[%s1 + $0x478] sm:$0xf]
  %v396 = vld [vmem:[%s1 + $0x47c] sm:$0xff]
  %v397 = vld [vmem:[%s1 + $0x484] sm:$0xff]
  %v398 = vld [vmem:[%s1 + $0x48c] sm:$0xff]
  %v399 = vld [vmem:[%s1 + $0x494] sm:$0xf]
  %v400 = vld [vmem:[%s1 + $0x498] sm:$0xff]
  %v401 = vld [vmem:[%s1 + $0x4a0] sm:$0xff]
  %v402 = vld [vmem:[%s1 + $0x4a8] sm:$0xff]
  %v403 = vld [vmem:[%s1 + $0x4b0] sm:$0xf]
  %v404 = vld [vmem:[%s1 + $0x4b4] sm:$0xff]
  %v405 = vld [vmem:[%s1 + $0x4bc] sm:$0xff]
  %v406 = vld [vmem:[%s1 + $0x4c4] sm:$0xff]
  %v407 = vld [vmem:[%s1 + $0x4cc] sm:$0xf]
  %v408 = vld [vmem:[%s1 + $0x4d0] sm:$0xff]
  %v409 = vld [vmem:[%s1 + $0x4d8] sm:$0xff]
  %v410 = vld [vmem:[%s1 + $0x4e0] sm:$0xff]
  %v411 = vld [vmem:[%s1 + $0x4e8] sm:$0xf]
  %v412 = vld [vmem:[%s1 + $0x4ec] sm:$0xff]
  %v413 = vld [vmem:[%s1 + $0x4f4] sm:$0xff]
  %v414 = vld [vmem:[%s1 + $0x4fc] sm:$0xff]
  %v415 = vld [vmem:[%s1 + $0x504] sm:$0xf]
  %v416 = vld [vmem:[%s1 + $0x508] sm:$0xff]
  %v417 = vld [vmem:[%s1 + $0x510] sm:$0xff]
  %v418 = vld [vmem:[%s1 + $0x518] sm:$0xff]
  %v419 = vld [vmem:[%s1 + $0x520] sm:$0xf]
  %v420 = vld [vmem:[%s1 + $0x524] sm:$0xff]
  %v421 = vld [vmem:[%s1 + $0x52c] sm:$0xff]
  %v422 = vld [vmem:[%s1 + $0x534] sm:$0xff]
  %v423 = vld [vmem:[%s1 + $0x53c] sm:$0xf]
  %v424 = vld [vmem:[%s1 + $0x540] sm:$0xff]
  %v425 = vld [vmem:[%s1 + $0x548] sm:$0xff]
  %v426 = vld [vmem:[%s1 + $0x550] sm:$0xff]
  %v427 = vld [vmem:[%s1 + $0x558] sm:$0xf]
  %v428 = vld [vmem:[%s1 + $0x55c] sm:$0xff]
  %v429 = vld [vmem:[%s1 + $0x564] sm:$0xff]
  %v430 = vld [vmem:[%s1 + $0x56c] sm:$0xff]
  %v431 = vld [vmem:[%s1 + $0x574] sm:$0xf]
  %v432 = vld [vmem:[%s1 + $0x578] sm:$0xff]
  %v433 = vld [vmem:[%s1 + $0x580] sm:$0xff]
  %v434 = vld [vmem:[%s1 + $0x588] sm:$0xff]
  %v435 = vld [vmem:[%s1 + $0x590] sm:$0xf]
  %v436 = vld [vmem:[%s1 + $0x594] sm:$0xff]
  %v437 = vld [vmem:[%s1 + $0x59c] sm:$0xff]
  %v438 = vld [vmem:[%s1 + $0x5a4] sm:$0xff]
  %v439 = vld [vmem:[%s1 + $0x5ac] sm:$0xf]
  %v440 = vld [vmem:[%s1 + $0x5b0] sm:$0xff]
  %v441 = vld [vmem:[%s1 + $0x5b8] sm:$0xff]
  %v442 = vld [vmem:[%s1 + $0x5c0] sm:$0xff]
  %v443 = vld [vmem:[%s1 + $0x5c8] sm:$0xf]
  %v444 = vld [vmem:[%s1 + $0x5cc] sm:$0xff]
  %v445 = vld [vmem:[%s1 + $0x5d4] sm:$0xff]
  %v446 = vld [vmem:[%s1 + $0x5dc] sm:$0xff]
  %v447 = vld [vmem:[%s1 + $0x5e4] sm:$0xf]
  %v448 = vld [vmem:[%s1 + $0x5e8] sm:$0xff]
  %v449 = vld [vmem:[%s1 + $0x5f0] sm:$0xff]
  %v450 = vld [vmem:[%s1 + $0x5f8] sm:$0xff]
  %v451 = vld [vmem:[%s1 + $0x600] sm:$0xf]
  %v452 = vld [vmem:[%s1 + $0x604] sm:$0xff]
  %v453 = vld [vmem:[%s1 + $0x60c] sm:$0xff]
  %v454 = vld [vmem:[%s1 + $0x614] sm:$0xff]
  %v455 = vld [vmem:[%s1 + $0x61c] sm:$0xf]
  %v456 = vld [vmem:[%s1 + $0x620] sm:$0xff]
  %v457 = vld [vmem:[%s1 + $0x628] sm:$0xff]
  %v458 = vld [vmem:[%s1 + $0x630] sm:$0xff]
  %v459 = vld [vmem:[%s1 + $0x638] sm:$0xf]
  %v460 = vld [vmem:[%s1 + $0x63c] sm:$0xff]
  %v461 = vld [vmem:[%s1 + $0x644] sm:$0xff]
  %v462 = vld [vmem:[%s1 + $0x64c] sm:$0xff]
  %v463 = vld [vmem:[%s1 + $0x654] sm:$0xf]
  %v464 = vld [vmem:[%s1 + $0x658] sm:$0xff]
  %v465 = vld [vmem:[%s1 + $0x660] sm:$0xff]
  %v466 = vld [vmem:[%s1 + $0x668] sm:$0xff]
  %v467 = vld [vmem:[%s1 + $0x670] sm:$0xf]
  %v468 = vld [vmem:[%s1 + $0x674] sm:$0xff]
  %v469 = vld [vmem:[%s1 + $0x67c] sm:$0xff]
  %v470 = vld [vmem:[%s1 + $0x684] sm:$0xff]
  %v471 = vld [vmem:[%s1 + $0x68c] sm:$0xf]
  %v472 = vld [vmem:[%s1 + $0x690] sm:$0xff]
  %v473 = vld [vmem:[%s1 + $0x698] sm:$0xff]
  %v474 = vld [vmem:[%s1 + $0x6a0] sm:$0xff]
  %v475 = vld [vmem:[%s1 + $0x6a8] sm:$0xf]
  %v476 = vld [vmem:[%s1 + $0x6ac] sm:$0xff]
  %v477 = vld [vmem:[%s1 + $0x6b4] sm:$0xff]
  %v478 = vld [vmem:[%s1 + $0x6bc] sm:$0xff]
  %v479 = vld [vmem:[%s1 + $0x6c4] sm:$0xf]
  %v480 = vld [vmem:[%s1 + $0x6c8] sm:$0xff]
  %v481 = vld [vmem:[%s1 + $0x6d0] sm:$0xff]
  %v482 = vld [vmem:[%s1 + $0x6d8] sm:$0xff]
  %v483 = vld [vmem:[%s1 + $0x6e0] sm:$0xf]
  %v484 = vld [vmem:[%s1 + $0x6e4] sm:$0xff]
  %v485 = vld [vmem:[%s1 + $0x6ec] sm:$0xff]
  %v486 = vld [vmem:[%s1 + $0x6f4] sm:$0xff]
  %v487 = vld [vmem:[%s1 + $0x6fc] sm:$0xf]
  %v488 = vld [vmem:[%s1 + $0x700] sm:$0xff]
  %v489 = vld [vmem:[%s1 + $0x708] sm:$0xff]
  %v490 = vld [vmem:[%s1 + $0x710] sm:$0xff]
  %v491 = vld [vmem:[%s1 + $0x718] sm:$0xf]
  %v492 = vld [vmem:[%s1 + $0x71c] sm:$0xff]
  %v493 = vld [vmem:[%s1 + $0x724] sm:$0xff]
  %v494 = vld [vmem:[%s1 + $0x72c] sm:$0xff]
  %v495 = vld [vmem:[%s1 + $0x734] sm:$0xf]
  %v496 = vld [vmem:[%s1 + $0x738] sm:$0xff]
  %v497 = vld [vmem:[%s1 + $0x740] sm:$0xff]
  %v498 = vld [vmem:[%s1 + $0x748] sm:$0xff]
  %v499 = vld [vmem:[%s1 + $0x750] sm:$0xf]
  %v500 = vld [vmem:[%s1 + $0x754] sm:$0xff]
  %v501 = vld [vmem:[%s1 + $0x75c] sm:$0xff]
  %v502 = vld [vmem:[%s1 + $0x764] sm:$0xff]
  %v503 = vld [vmem:[%s1 + $0x76c] sm:$0xf]
  %v504 = vld [vmem:[%s1 + $0x770] sm:$0xff]
  %v505 = vld [vmem:[%s1 + $0x778] sm:$0xff]
  %v506 = vld [vmem:[%s1 + $0x780] sm:$0xff]
  %v507 = vld [vmem:[%s1 + $0x788] sm:$0xf]
  %v508 = vld [vmem:[%s1 + $0x78c] sm:$0xff]
  %v509 = vld [vmem:[%s1 + $0x794] sm:$0xff]
  %v510 = vld [vmem:[%s1 + $0x79c] sm:$0xff]
  %v511 = vld [vmem:[%s1 + $0x7a4] sm:$0xf]
  %v512 = vld [vmem:[%s1 + $0x7a8] sm:$0xff]
  %v513 = vld [vmem:[%s1 + $0x7b0] sm:$0xff]
  %v514 = vld [vmem:[%s1 + $0x7b8] sm:$0xff]
  %v515 = vld [vmem:[%s1 + $0x7c0] sm:$0xf]
  %v516 = vld [vmem:[%s1 + $0x7c4] sm:$0xff]
  %v517 = vld [vmem:[%s1 + $0x7cc] sm:$0xff]
  %v518 = vld [vmem:[%s1 + $0x7d4] sm:$0xff]
  %v519 = vld [vmem:[%s1 + $0x7dc] sm:$0xf]
  %v520 = vld [vmem:[%s1 + $0x7e0] sm:$0xff]
  %v521 = vld [vmem:[%s1 + $0x7e8] sm:$0xff]
  %v522 = vld [vmem:[%s1 + $0x7f0] sm:$0xff]
  %v523 = vld [vmem:[%s1 + $0x7f8] sm:$0xf]
  %v524 = vld [vmem:[%s1 + $0x7fc] sm:$0xff]
  %v525 = vld [vmem:[%s1 + $0x804] sm:$0xff]
  %v526 = vld [vmem:[%s1 + $0x80c] sm:$0xff]
  %v527 = vld [vmem:[%s1 + $0x814] sm:$0xf]
  %v528 = vld [vmem:[%s1 + $0x818] sm:$0xff]
  %v529 = vld [vmem:[%s1 + $0x820] sm:$0xff]
  %v530 = vld [vmem:[%s1 + $0x828] sm:$0xff]
  %v531 = vld [vmem:[%s1 + $0x830] sm:$0xf]
  %v532 = vld [vmem:[%s1 + $0x834] sm:$0xff]
  %v533 = vld [vmem:[%s1 + $0x83c] sm:$0xff]
  %v534 = vld [vmem:[%s1 + $0x844] sm:$0xff]
  %v535 = vld [vmem:[%s1 + $0x84c] sm:$0xf]
  %v536 = vld [vmem:[%s1 + $0x850] sm:$0xff]
  %v537 = vld [vmem:[%s1 + $0x858] sm:$0xff]
  %v538 = vld [vmem:[%s1 + $0x860] sm:$0xff]
  %v539 = vld [vmem:[%s1 + $0x868] sm:$0xf]
  %v540 = vld [vmem:[%s1 + $0x86c] sm:$0xff]
  %v541 = vld [vmem:[%s1 + $0x874] sm:$0xff]
  %v542 = vld [vmem:[%s1 + $0x87c] sm:$0xff]
  %v543 = vld [vmem:[%s1 + $0x884] sm:$0xf]
  %v544 = vld [vmem:[%s1 + $0x888] sm:$0xff]
  %v545 = vld [vmem:[%s1 + $0x890] sm:$0xff]
  %v546 = vld [vmem:[%s1 + $0x898] sm:$0xff]
  %v547 = vld [vmem:[%s1 + $0x8a0] sm:$0xf]
  %v548 = vld [vmem:[%s1 + $0x8a4] sm:$0xff]
  %v549 = vld [vmem:[%s1 + $0x8ac] sm:$0xff]
  %v550 = vld [vmem:[%s1 + $0x8b4] sm:$0xff]
  %v551 = vld [vmem:[%s1 + $0x8bc] sm:$0xf]
  %v552 = vld [vmem:[%s1 + $0x8c0] sm:$0xff]
  %v553 = vld [vmem:[%s1 + $0x8c8] sm:$0xff]
  %v554 = vld [vmem:[%s1 + $0x8d0] sm:$0xff]
  %v555 = vld [vmem:[%s1 + $0x8d8] sm:$0xf]
  %v556 = vld [vmem:[%s1 + $0x8dc] sm:$0xff]
  %v557 = vld [vmem:[%s1 + $0x8e4] sm:$0xff]
  %v558 = vld [vmem:[%s1 + $0x8ec] sm:$0xff]
  %v559 = vld [vmem:[%s1 + $0x8f4] sm:$0xf]
  %v560 = vld [vmem:[%s1 + $0x8f8] sm:$0xff]
  %v561 = vld [vmem:[%s1 + $0x900] sm:$0xff]
  %v562 = vld [vmem:[%s1 + $0x908] sm:$0xff]
  %v563 = vld [vmem:[%s1 + $0x910] sm:$0xf]
  %v564 = vld [vmem:[%s1 + $0x914] sm:$0xff]
  %v565 = vld [vmem:[%s1 + $0x91c] sm:$0xff]
  %v566 = vld [vmem:[%s1 + $0x924] sm:$0xff]
  %v567 = vld [vmem:[%s1 + $0x92c] sm:$0xf]
  %v568 = vld [vmem:[%s1 + $0x930] sm:$0xff]
  %v569 = vld [vmem:[%s1 + $0x938] sm:$0xff]
  %v570 = vld [vmem:[%s1 + $0x940] sm:$0xff]
  %v571 = vld [vmem:[%s1 + $0x948] sm:$0xf]
  %v572 = vld [vmem:[%s1 + $0x94c] sm:$0xff]
  %v573 = vld [vmem:[%s1 + $0x954] sm:$0xff]
  %v574 = vld [vmem:[%s1 + $0x95c] sm:$0xff]
  %v575 = vld [vmem:[%s1 + $0x964] sm:$0xf]
  %v576 = vld [vmem:[%s1 + $0x968] sm:$0xff]
  %v577 = vld [vmem:[%s1 + $0x970] sm:$0xff]
  %v578 = vld [vmem:[%s1 + $0x978] sm:$0xff]
  %v579 = vld [vmem:[%s1 + $0x980] sm:$0xf]
  %v580 = vld [vmem:[%s1 + $0x984] sm:$0xff]
  %v581 = vld [vmem:[%s1 + $0x98c] sm:$0xff]
  %v582 = vld [vmem:[%s1 + $0x994] sm:$0xff]
  %v583 = vld [vmem:[%s1 + $0x99c] sm:$0xf]
  %v584 = vld [vmem:[%s1 + $0x9a0] sm:$0xff]
  %v585 = vld [vmem:[%s1 + $0x9a8] sm:$0xff]
  %v586 = vld [vmem:[%s1 + $0x9b0] sm:$0xff]
  %v587 = vld [vmem:[%s1 + $0x9b8] sm:$0xf]
  %v588 = vld [vmem:[%s1 + $0x9bc] sm:$0xff]
  %v589 = vld [vmem:[%s1 + $0x9c4] sm:$0xff]
  %v590 = vld [vmem:[%s1 + $0x9cc] sm:$0xff]
  %v591 = vld [vmem:[%s1 + $0x9d4] sm:$0xf]
  %v592 = vld [vmem:[%s1 + $0x9d8] sm:$0xff]
  %v593 = vld [vmem:[%s1 + $0x9e0] sm:$0xff]
  %v594 = vld [vmem:[%s1 + $0x9e8] sm:$0xff]
  %v595 = vld [vmem:[%s1 + $0x9f0] sm:$0xf]
  %v596 = vld [vmem:[%s1 + $0x9f4] sm:$0xff]
  %v597 = vld [vmem:[%s1 + $0x9fc] sm:$0xff]
  %v598 = vld [vmem:[%s1 + $0xa04] sm:$0xff]
  %v599 = vld [vmem:[%s1 + $0xa0c] sm:$0xf]
  %v600 = vld [vmem:[%s1 + $0xa10] sm:$0xff]
  %v601 = vld [vmem:[%s1 + $0xa18] sm:$0xff]
  %v602 = vld [vmem:[%s1 + $0xa20] sm:$0xff]
  %v603 = vld [vmem:[%s1 + $0xa28] sm:$0xf]
  %v604 = vld [vmem:[%s1 + $0xa2c] sm:$0xff]
  %v605 = vld [vmem:[%s1 + $0xa34] sm:$0xff]
  %v606 = vld [vmem:[%s1 + $0xa3c] sm:$0xff]
  %v607 = vld [vmem:[%s1 + $0xa44] sm:$0xf]
  %v608 = vld [vmem:[%s1 + $0xa48] sm:$0xff]
  %v609 = vld [vmem:[%s1 + $0xa50] sm:$0xff]
  %v610 = vld [vmem:[%s1 + $0xa58] sm:$0xff]
  %v611 = vld [vmem:[%s1 + $0xa60] sm:$0xf]
  %v612 = vld [vmem:[%s1 + $0xa64] sm:$0xff]
  %v613 = vld [vmem:[%s1 + $0xa6c] sm:$0xff]
  %v614 = vld [vmem:[%s1 + $0xa74] sm:$0xff]
  %v615 = vld [vmem:[%s1 + $0xa7c] sm:$0xf]
  %v616 = vld [vmem:[%s1 + $0xa80] sm:$0xff]
  %v617 = vld [vmem:[%s1 + $0xa88] sm:$0xff]
  %v618 = vld [vmem:[%s1 + $0xa90] sm:$0xff]
  %v619 = vld [vmem:[%s1 + $0xa98] sm:$0xf]
  %v620 = vld [vmem:[%s1 + $0xa9c] sm:$0xff]
  %v621 = vld [vmem:[%s1 + $0xaa4] sm:$0xff]
  %v622 = vld [vmem:[%s1 + $0xaac] sm:$0xff]
  %v623 = vld [vmem:[%s1 + $0xab4] sm:$0xf]
  %v624 = vld [vmem:[%s1 + $0xab8] sm:$0xff]
  %v625 = vld [vmem:[%s1 + $0xac0] sm:$0xff]
  %v626 = vld [vmem:[%s1 + $0xac8] sm:$0xff]
  %v627 = vld [vmem:[%s1 + $0xad0] sm:$0xf]
  %v628 = vld [vmem:[%s1 + $0xad4] sm:$0xff]
  %v629 = vld [vmem:[%s1 + $0xadc] sm:$0xff]
  %v630 = vld [vmem:[%s1 + $0xae4] sm:$0xff]
  %v631 = vld [vmem:[%s1 + $0xaec] sm:$0xf]
  %v632 = vld [vmem:[%s1 + $0xaf0] sm:$0xff]
  %v633 = vld [vmem:[%s1 + $0xaf8] sm:$0xff]
  %v634 = vld [vmem:[%s1 + $0xb00] sm:$0xff]
  %v635 = vld [vmem:[%s1 + $0xb08] sm:$0xf]
  %v636 = vld [vmem:[%s1 + $0xb0c] sm:$0xff]
  %v637 = vld [vmem:[%s1 + $0xb14] sm:$0xff]
  %v638 = vld [vmem:[%s1 + $0xb1c] sm:$0xff]
  %v639 = vld [vmem:[%s1 + $0xb24] sm:$0xf]
  %v640 = vld [vmem:[%s1 + $0xb28] sm:$0xff]
  %v641 = vld [vmem:[%s1 + $0xb30] sm:$0xff]
  %v642 = vld [vmem:[%s1 + $0xb38] sm:$0xff]
  %v643 = vld [vmem:[%s1 + $0xb40] sm:$0xf]
  %v644 = vld [vmem:[%s1 + $0xb44] sm:$0xff]
  %v645 = vld [vmem:[%s1 + $0xb4c] sm:$0xff]
  %v646 = vld [vmem:[%s1 + $0xb54] sm:$0xff]
  %v647 = vld [vmem:[%s1 + $0xb5c] sm:$0xf]
  %v648 = vld [vmem:[%s1 + $0xb60] sm:$0xff]
  %v649 = vld [vmem:[%s1 + $0xb68] sm:$0xff]
  %v650 = vld [vmem:[%s1 + $0xb70] sm:$0xff]
  %v651 = vld [vmem:[%s1 + $0xb78] sm:$0xf]
  %v652 = vld [vmem:[%s1 + $0xb7c] sm:$0xff]
  %v653 = vld [vmem:[%s1 + $0xb84] sm:$0xff]
  %v654 = vld [vmem:[%s1 + $0xb8c] sm:$0xff]
  %v655 = vld [vmem:[%s1 + $0xb94] sm:$0xf]
  %v656 = vld [vmem:[%s1 + $0xb98] sm:$0xff]
  %v657 = vld [vmem:[%s1 + $0xba0] sm:$0xff]
  %v658 = vld [vmem:[%s1 + $0xba8] sm:$0xff]
  %v659 = vld [vmem:[%s1 + $0xbb0] sm:$0xf]
  %v660 = vld [vmem:[%s1 + $0xbb4] sm:$0xff]
  %v661 = vld [vmem:[%s1 + $0xbbc] sm:$0xff]
  %v662 = vld [vmem:[%s1 + $0xbc4] sm:$0xff]
  %v663 = vld [vmem:[%s1 + $0xbcc] sm:$0xf]
  %v664 = vld [vmem:[%s1 + $0xbd0] sm:$0xff]
  %v665 = vld [vmem:[%s1 + $0xbd8] sm:$0xff]
  %v666 = vld [vmem:[%s1 + $0xbe0] sm:$0xff]
  %v667 = vld [vmem:[%s1 + $0xbe8] sm:$0xf]
  %v668 = vld [vmem:[%s1 + $0xbec] sm:$0xff]
  %v669 = vld [vmem:[%s1 + $0xbf4] sm:$0xff]
  %v670 = vld [vmem:[%s1 + $0xbfc] sm:$0xff]
  %v671 = vld [vmem:[%s1 + $0xc04] sm:$0xf]
  %v672 = vld [vmem:[%s1 + $0xc08] sm:$0xff]
  %v673 = vld [vmem:[%s1 + $0xc10] sm:$0xff]
  %v674 = vld [vmem:[%s1 + $0xc18] sm:$0xff]
  %v675 = vld [vmem:[%s1 + $0xc20] sm:$0xf]
  %v676 = vld [vmem:[%s1 + $0xc24] sm:$0xff]
  %v677 = vld [vmem:[%s1 + $0xc2c] sm:$0xff]
  %v678 = vld [vmem:[%s1 + $0xc34] sm:$0xff]
  %v679 = vld [vmem:[%s1 + $0xc3c] sm:$0xf]
  %v680 = vld [vmem:[%s1 + $0xc40] sm:$0xff]
  %v681 = vld [vmem:[%s1 + $0xc48] sm:$0xff]
  %v682 = vld [vmem:[%s1 + $0xc50] sm:$0xff]
  %v683 = vld [vmem:[%s1 + $0xc58] sm:$0xf]
  %v684 = vld [vmem:[%s1 + $0xc5c] sm:$0xff]
  %v685 = vld [vmem:[%s1 + $0xc64] sm:$0xff]
  %v686 = vld [vmem:[%s1 + $0xc6c] sm:$0xff]
  %v687 = vld [vmem:[%s1 + $0xc74] sm:$0xf]
  %v688 = vld [vmem:[%s1 + $0xc78] sm:$0xff]
  %v689 = vld [vmem:[%s1 + $0xc80] sm:$0xff]
  %v690 = vld [vmem:[%s1 + $0xc88] sm:$0xff]
  %v691 = vld [vmem:[%s1 + $0xc90] sm:$0xf]
  %v692 = vld [vmem:[%s1 + $0xc94] sm:$0xff]
  %v693 = vld [vmem:[%s1 + $0xc9c] sm:$0xff]
  %v694 = vld [vmem:[%s1 + $0xca4] sm:$0xff]
  %v695 = vld [vmem:[%s1 + $0xcac] sm:$0xf]
  %v696 = vld [vmem:[%s1 + $0xcb0] sm:$0xff]
  %v697 = vld [vmem:[%s1 + $0xcb8] sm:$0xff]
  %v698 = vld [vmem:[%s1 + $0xcc0] sm:$0xff]
  %v699 = vld [vmem:[%s1 + $0xcc8] sm:$0xf]
  %v700 = vld [vmem:[%s1 + $0xccc] sm:$0xff]
  %v701 = vld [vmem:[%s1 + $0xcd4] sm:$0xff]
  %v702 = vld [vmem:[%s1 + $0xcdc] sm:$0xff]
  %v703 = vld [vmem:[%s1 + $0xce4] sm:$0xf]
  %v704 = vld [vmem:[%s1 + $0xce8] sm:$0xff]
  %v705 = vld [vmem:[%s1 + $0xcf0] sm:$0xff]
  %v706 = vld [vmem:[%s1 + $0xcf8] sm:$0xff]
  %v707 = vld [vmem:[%s1 + $0xd00] sm:$0xf]
  %v708 = vld [vmem:[%s1 + $0xd04] sm:$0xff]
  %v709 = vld [vmem:[%s1 + $0xd0c] sm:$0xff]
  %v710 = vld [vmem:[%s1 + $0xd14] sm:$0xff]
  %v711 = vld [vmem:[%s1 + $0xd1c] sm:$0xf]
  %v712 = vld [vmem:[%s1 + $0xd20] sm:$0xff]
  %v713 = vld [vmem:[%s1 + $0xd28] sm:$0xff]
  %v714 = vld [vmem:[%s1 + $0xd30] sm:$0xff]
  %v715 = vld [vmem:[%s1 + $0xd38] sm:$0xf]
  %v716 = vld [vmem:[%s1 + $0xd3c] sm:$0xff]
  %v717 = vld [vmem:[%s1 + $0xd44] sm:$0xff]
  %v718 = vld [vmem:[%s1 + $0xd4c] sm:$0xff]
  %v719 = vld [vmem:[%s1 + $0xd54] sm:$0xf]
  %v720 = vld [vmem:[%s1 + $0xd58] sm:$0xff]
  %v721 = vld [vmem:[%s1 + $0xd60] sm:$0xff]
  %v722 = vld [vmem:[%s1 + $0xd68] sm:$0xff]
  %v723 = vld [vmem:[%s1 + $0xd70] sm:$0xf]
  %v724 = vld [vmem:[%s1 + $0xd74] sm:$0xff]
  %v725 = vld [vmem:[%s1 + $0xd7c] sm:$0xff]
  %v726 = vld [vmem:[%s1 + $0xd84] sm:$0xff]
  %v727 = vld [vmem:[%s1 + $0xd8c] sm:$0xf]
  %v728 = vld [vmem:[%s1 + $0xd90] sm:$0xff]
  %v729 = vld [vmem:[%s1 + $0xd98] sm:$0xff]
  %v730 = vld [vmem:[%s1 + $0xda0] sm:$0xff]
  %v731 = vld [vmem:[%s1 + $0xda8] sm:$0xf]
  %v732 = vld [vmem:[%s1 + $0xdac] sm:$0xff]
  %v733 = vld [vmem:[%s1 + $0xdb4] sm:$0xff]
  %v734 = vld [vmem:[%s1 + $0xdbc] sm:$0xff]
  %v735 = vld [vmem:[%s1 + $0xdc4] sm:$0xf]
  %v736 = vld [vmem:[%s1 + $0xdc8] sm:$0xff]
  %v737 = vld [vmem:[%s1 + $0xdd0] sm:$0xff]
  %v738 = vld [vmem:[%s1 + $0xdd8] sm:$0xff]
  %v739 = vld [vmem:[%s1 + $0xde0] sm:$0xf]
  %v740 = vld [vmem:[%s1 + $0xde4] sm:$0xff]
  %v741 = vld [vmem:[%s1 + $0xdec] sm:$0xff]
  %v742 = vld [vmem:[%s1 + $0xdf4] sm:$0xff]
  %v743 = vld [vmem:[%s1 + $0xdfc] sm:$0xf]
  %v744 = vld [vmem:[%s1 + $0xe00] sm:$0xff]
  %v745 = vld [vmem:[%s1 + $0xe08] sm:$0xff]
  %v746 = vld [vmem:[%s1 + $0xe10] sm:$0xff]
  %v747 = vld [vmem:[%s1 + $0xe18] sm:$0xf]
  %v748 = vld [vmem:[%s1 + $0xe1c] sm:$0xff]
  %v749 = vld [vmem:[%s1 + $0xe24] sm:$0xff]
  %v750 = vld [vmem:[%s1 + $0xe2c] sm:$0xff]
  %v751 = vld [vmem:[%s1 + $0xe34] sm:$0xf]
  %v752 = vld [vmem:[%s1 + $0xe38] sm:$0xff]
  %v753 = vld [vmem:[%s1 + $0xe40] sm:$0xff]
  %v754 = vld [vmem:[%s1 + $0xe48] sm:$0xff]
  %v755 = vld [vmem:[%s1 + $0xe50] sm:$0xf]
  %v756 = vld [vmem:[%s1 + $0xe54] sm:$0xff]
  %v757 = vld [vmem:[%s1 + $0xe5c] sm:$0xff]
  %v758 = vld [vmem:[%s1 + $0xe64] sm:$0xff]
  %v759 = vld [vmem:[%s1 + $0xe6c] sm:$0xf]
  %v760 = vld [vmem:[%s1 + $0xe70] sm:$0xff]
  %v761 = vld [vmem:[%s1 + $0xe78] sm:$0xff]
  %v762 = vld [vmem:[%s1 + $0xe80] sm:$0xff]
  %v763 = vld [vmem:[%s1 + $0xe88] sm:$0xf]
  %v764 = vld [vmem:[%s1 + $0xe8c] sm:$0xff]
  %v765 = vld [vmem:[%s1 + $0xe94] sm:$0xff]
  %v766 = vld [vmem:[%s1 + $0xe9c] sm:$0xff]
  %v767 = vld [vmem:[%s1 + $0xea4] sm:$0xf]
  %v768 = vld [vmem:[%s1 + $0xea8] sm:$0xff]
  %v769 = vld [vmem:[%s1 + $0xeb0] sm:$0xff]
  %v770 = vld [vmem:[%s1 + $0xeb8] sm:$0xff]
  %v771 = vld [vmem:[%s1 + $0xec0] sm:$0xf]
  %v772 = vld [vmem:[%s1 + $0xec4] sm:$0xff]
  %v773 = vld [vmem:[%s1 + $0xecc] sm:$0xff]
  %v774 = vld [vmem:[%s1 + $0xed4] sm:$0xff]
  %v775 = vld [vmem:[%s1 + $0xedc] sm:$0xf]
  %v776 = vld [vmem:[%s1 + $0xee0] sm:$0xff]
  %v777 = vld [vmem:[%s1 + $0xee8] sm:$0xff]
  %v778 = vld [vmem:[%s1 + $0xef0] sm:$0xff]
  %v779 = vld [vmem:[%s1 + $0xef8] sm:$0xf]
  %v780 = vld [vmem:[%s1 + $0xefc] sm:$0xff]
  %v781 = vld [vmem:[%s1 + $0xf04] sm:$0xff]
  %v782 = vld [vmem:[%s1 + $0xf0c] sm:$0xff]
  %v783 = vld [vmem:[%s1 + $0xf14] sm:$0xf]
  %v784 = vld [vmem:[%s1 + $0xf18] sm:$0xff]
  %v785 = vld [vmem:[%s1 + $0xf20] sm:$0xff]
  %v786 = vld [vmem:[%s1 + $0xf28] sm:$0xff]
  %v787 = vld [vmem:[%s1 + $0xf30] sm:$0xf]
  %v788 = vld [vmem:[%s1 + $0xf34] sm:$0xff]
  %v789 = vld [vmem:[%s1 + $0xf3c] sm:$0xff]
  %v790 = vld [vmem:[%s1 + $0xf44] sm:$0xff]
  %v791 = vld [vmem:[%s1 + $0xf4c] sm:$0xf]
  %v792 = vld [vmem:[%s1 + $0xf50] sm:$0xff]
  %v793 = vld [vmem:[%s1 + $0xf58] sm:$0xff]
  %v794 = vld [vmem:[%s1 + $0xf60] sm:$0xff]
  %v795 = vld [vmem:[%s1 + $0xf68] sm:$0xf]
  %v796 = vld [vmem:[%s1 + $0xf6c] sm:$0xff]
  %v797 = vld [vmem:[%s1 + $0xf74] sm:$0xff]
  %v798 = vld [vmem:[%s1 + $0xf7c] sm:$0xff]
  %v799 = vld [vmem:[%s1 + $0xf84] sm:$0xf]
  %v800 = vld [vmem:[%s1 + $0xf88] sm:$0xff]
  %v801 = vld [vmem:[%s1 + $0xf90] sm:$0xff]
  %v802 = vld [vmem:[%s1 + $0xf98] sm:$0xff]
  %v803 = vld [vmem:[%s1 + $0xfa0] sm:$0xf]
  %v804 = vld [vmem:[%s1 + $0xfa4] sm:$0xff]
  %v805 = vld [vmem:[%s1 + $0xfac] sm:$0xff]
  %v806 = vld [vmem:[%s1 + $0xfb4] sm:$0xff]
  %v807 = vld [vmem:[%s1 + $0xfbc] sm:$0xf]
  %v808 = vld [vmem:[%s1 + $0xfc0] sm:$0xff]
  %v809 = vld [vmem:[%s1 + $0xfc8] sm:$0xff]
  %v810 = vld [vmem:[%s1 + $0xfd0] sm:$0xff]
  %v811 = vld [vmem:[%s1 + $0xfd8] sm:$0xf]
  %v812 = vld [vmem:[%s1 + $0xfdc] sm:$0xff]
  %v813 = vld [vmem:[%s1 + $0xfe4] sm:$0xff]
  %v814 = vld [vmem:[%s1 + $0xfec] sm:$0xff]
  %v815 = vld [vmem:[%s1 + $0xff4] sm:$0xf]
  %v816 = vld [vmem:[%s1 + $0xff8] sm:$0xff]
  %v817 = vld [vmem:[%s1 + $0x1000] sm:$0xff]
  %v818 = vld [vmem:[%s1 + $0x1008] sm:$0xff]
  %v819 = vld [vmem:[%s1 + $0x1010] sm:$0xf]
  %v820 = vld [vmem:[%s1 + $0x1014] sm:$0xff]
  %v821 = vld [vmem:[%s1 + $0x101c] sm:$0xff]
  %v822 = vld [vmem:[%s1 + $0x1024] sm:$0xff]
  %v823 = vld [vmem:[%s1 + $0x102c] sm:$0xf]
  %v824 = vld [vmem:[%s1 + $0x1030] sm:$0xff]
  %v825 = vld [vmem:[%s1 + $0x1038] sm:$0xff]
  %v826 = vld [vmem:[%s1 + $0x1040] sm:$0xff]
  %v827 = vld [vmem:[%s1 + $0x1048] sm:$0xf]
  %v828 = vld [vmem:[%s1 + $0x104c] sm:$0xff]
  %v829 = vld [vmem:[%s1 + $0x1054] sm:$0xff]
  %v830 = vld [vmem:[%s1 + $0x105c] sm:$0xff]
  %v831 = vld [vmem:[%s1 + $0x1064] sm:$0xf]
  %v832 = vld [vmem:[%s1 + $0x1068] sm:$0xff]
  %v833 = vld [vmem:[%s1 + $0x1070] sm:$0xff]
  %v834 = vld [vmem:[%s1 + $0x1078] sm:$0xff]
  %v835 = vld [vmem:[%s1 + $0x1080] sm:$0xf]
  %v836 = vld [vmem:[%s1 + $0x1084] sm:$0xff]
  %v837 = vld [vmem:[%s1 + $0x108c] sm:$0xff]
  %v838 = vld [vmem:[%s1 + $0x1094] sm:$0xff]
  %v839 = vld [vmem:[%s1 + $0x109c] sm:$0xf]
  %v840 = vld [vmem:[%s1 + $0x10a0] sm:$0xff]
  %v841 = vld [vmem:[%s1 + $0x10a8] sm:$0xff]
  %v842 = vld [vmem:[%s1 + $0x10b0] sm:$0xff]
  %v843 = vld [vmem:[%s1 + $0x10b8] sm:$0xf]
  %v844 = vld [vmem:[%s1 + $0x10bc] sm:$0xff]
  %v845 = vld [vmem:[%s1 + $0x10c4] sm:$0xff]
  %v846 = vld [vmem:[%s1 + $0x10cc] sm:$0xff]
  %v847 = vld [vmem:[%s1 + $0x10d4] sm:$0xf]
  %v848 = vld [vmem:[%s1 + $0x10d8] sm:$0xff]
  %v849 = vld [vmem:[%s1 + $0x10e0] sm:$0xff]
  %v850 = vld [vmem:[%s1 + $0x10e8] sm:$0xff]
  %v851 = vld [vmem:[%s1 + $0x10f0] sm:$0xf]
  %v852 = vld [vmem:[%s1 + $0x10f4] sm:$0xff]
  %v853 = vld [vmem:[%s1 + $0x10fc] sm:$0xff]
  %v854 = vld [vmem:[%s1 + $0x1104] sm:$0xff]
  %v855 = vld [vmem:[%s1 + $0x110c] sm:$0xf]
  %v856 = vld [vmem:[%s1 + $0x1110] sm:$0xff]
  %v857 = vld [vmem:[%s1 + $0x1118] sm:$0xff]
  %v858 = vld [vmem:[%s1 + $0x1120] sm:$0xff]
  %v859 = vld [vmem:[%s1 + $0x1128] sm:$0xf]
  %v860 = vld [vmem:[%s1 + $0x112c] sm:$0xff]
  %v861 = vld [vmem:[%s1 + $0x1134] sm:$0xff]
  %v862 = vld [vmem:[%s1 + $0x113c] sm:$0xff]
  %v863 = vld [vmem:[%s1 + $0x1144] sm:$0xf]
  %v864 = vld [vmem:[%s1 + $0x1148] sm:$0xff]
  %v865 = vld [vmem:[%s1 + $0x1150] sm:$0xff]
  %v866 = vld [vmem:[%s1 + $0x1158] sm:$0xff]
  %v867 = vld [vmem:[%s1 + $0x1160] sm:$0xf]
  %v868 = vld [vmem:[%s1 + $0x1164] sm:$0xff]
  %v869 = vld [vmem:[%s1 + $0x116c] sm:$0xff]
  %v870 = vld [vmem:[%s1 + $0x1174] sm:$0xff]
  %v871 = vld [vmem:[%s1 + $0x117c] sm:$0xf]
  %v872 = vld [vmem:[%s1 + $0x1180] sm:$0xff]
  %v873 = vld [vmem:[%s1 + $0x1188] sm:$0xff]
  %v874 = vld [vmem:[%s1 + $0x1190] sm:$0xff]
  %v875 = vld [vmem:[%s1 + $0x1198] sm:$0xf]
  %v876 = vld [vmem:[%s1 + $0x119c] sm:$0xff]
  %v877 = vld [vmem:[%s1 + $0x11a4] sm:$0xff]
  %v878 = vld [vmem:[%s1 + $0x11ac] sm:$0xff]
  %v879 = vld [vmem:[%s1 + $0x11b4] sm:$0xf]
  %v880 = vld [vmem:[%s1 + $0x11b8] sm:$0xff]
  %v881 = vld [vmem:[%s1 + $0x11c0] sm:$0xff]
  %v882 = vld [vmem:[%s1 + $0x11c8] sm:$0xff]
  %v883 = vld [vmem:[%s1 + $0x11d0] sm:$0xf]
  %v884 = vld [vmem:[%s1 + $0x11d4] sm:$0xff]
  %v885 = vld [vmem:[%s1 + $0x11dc] sm:$0xff]
  %v886 = vld [vmem:[%s1 + $0x11e4] sm:$0xff]
  %v887 = vld [vmem:[%s1 + $0x11ec] sm:$0xf]
  %v888 = vld [vmem:[%s1 + $0x11f0] sm:$0xff]
  %v889 = vld [vmem:[%s1 + $0x11f8] sm:$0xff]
  %v890 = vld [vmem:[%s1 + $0x1200] sm:$0xff]
  %v891 = vld [vmem:[%s1 + $0x1208] sm:$0xf]
  %v892 = vld [vmem:[%s1 + $0x120c] sm:$0xff]
  %v893 = vld [vmem:[%s1 + $0x1214] sm:$0xff]
  %v894 = vld [vmem:[%s1 + $0x121c] sm:$0xff]
  %v895 = vld [vmem:[%s1 + $0x1224] sm:$0xf]
  %v896 = vld [vmem:[%s1 + $0x1228] sm:$0xff]
  %v897 = vld [vmem:[%s1 + $0x1230] sm:$0xff]
  %v898 = vld [vmem:[%s1 + $0x1238] sm:$0xff]
  %v899 = vld [vmem:[%s1 + $0x1240] sm:$0xf]
  %v900 = vld [vmem:[%s1 + $0x1244] sm:$0xff]
  %v901 = vld [vmem:[%s1 + $0x124c] sm:$0xff]
  %v902 = vld [vmem:[%s1 + $0x1254] sm:$0xff]
  %v903 = vld [vmem:[%s1 + $0x125c] sm:$0xf]
  %v904 = vld [vmem:[%s1 + $0x1260] sm:$0xff]
  %v905 = vld [vmem:[%s1 + $0x1268] sm:$0xff]
  %v906 = vld [vmem:[%s1 + $0x1270] sm:$0xff]
  %v907 = vld [vmem:[%s1 + $0x1278] sm:$0xf]
  %v908 = vld [vmem:[%s1 + $0x127c] sm:$0xff]
  %v909 = vld [vmem:[%s1 + $0x1284] sm:$0xff]
  %v910 = vld [vmem:[%s1 + $0x128c] sm:$0xff]
  %v911 = vld [vmem:[%s1 + $0x1294] sm:$0xf]
  %v912 = vld [vmem:[%s1 + $0x1298] sm:$0xff]
  %v913 = vld [vmem:[%s1 + $0x12a0] sm:$0xff]
  %v914 = vld [vmem:[%s1 + $0x12a8] sm:$0xff]
  %v915 = vld [vmem:[%s1 + $0x12b0] sm:$0xf]
  %v916 = vld [vmem:[%s1 + $0x12b4] sm:$0xff]
  %v917 = vld [vmem:[%s1 + $0x12bc] sm:$0xff]
  %v918 = vld [vmem:[%s1 + $0x12c4] sm:$0xff]
  %v919 = vld [vmem:[%s1 + $0x12cc] sm:$0xf]
  %v920 = vld [vmem:[%s1 + $0x12d0] sm:$0xff]
  %v921 = vld [vmem:[%s1 + $0x12d8] sm:$0xff]
  %v922 = vld [vmem:[%s1 + $0x12e0] sm:$0xff]
  %v923 = vld [vmem:[%s1 + $0x12e8] sm:$0xf]
  %v924 = vld [vmem:[%s1 + $0x12ec] sm:$0xff]
  %v925 = vld [vmem:[%s1 + $0x12f4] sm:$0xff]
  %v926 = vld [vmem:[%s1 + $0x12fc] sm:$0xff]
  %v927 = vld [vmem:[%s1 + $0x1304] sm:$0xf]
  %v928 = vld [vmem:[%s1 + $0x1308] sm:$0xff]
  %v929 = vld [vmem:[%s1 + $0x1310] sm:$0xff]
  %v930 = vld [vmem:[%s1 + $0x1318] sm:$0xff]
  %v931 = vld [vmem:[%s1 + $0x1320] sm:$0xf]
  %v932 = vld [vmem:[%s1 + $0x1324] sm:$0xff]
  %v933 = vld [vmem:[%s1 + $0x132c] sm:$0xff]
  %v934 = vld [vmem:[%s1 + $0x1334] sm:$0xff]
  %v935 = vld [vmem:[%s1 + $0x133c] sm:$0xf]
  %v936 = vld [vmem:[%s1 + $0x1340] sm:$0xff]
  %v937 = vld [vmem:[%s1 + $0x1348] sm:$0xff]
  %v938 = vld [vmem:[%s1 + $0x1350] sm:$0xff]
  %v939 = vld [vmem:[%s1 + $0x1358] sm:$0xf]
  %v940 = vld [vmem:[%s1 + $0x135c] sm:$0xff]
  %v941 = vld [vmem:[%s1 + $0x1364] sm:$0xff]
  %v942 = vld [vmem:[%s1 + $0x136c] sm:$0xff]
  %v943 = vld [vmem:[%s1 + $0x1374] sm:$0xf]
  %v944 = vld [vmem:[%s1 + $0x1378] sm:$0xff]
  %v945 = vld [vmem:[%s1 + $0x1380] sm:$0xff]
  %v946 = vld [vmem:[%s1 + $0x1388] sm:$0xff]
  %v947 = vld [vmem:[%s1 + $0x1390] sm:$0xf]
  %v948 = vld [vmem:[%s1 + $0x1394] sm:$0xff]
  %v949 = vld [vmem:[%s1 + $0x139c] sm:$0xff]
  %v950 = vld [vmem:[%s1 + $0x13a4] sm:$0xff]
  %v951 = vld [vmem:[%s1 + $0x13ac] sm:$0xf]
  %v952 = vld [vmem:[%s1 + $0x13b0] sm:$0xff]
  %v953 = vld [vmem:[%s1 + $0x13b8] sm:$0xff]
  %v954 = vld [vmem:[%s1 + $0x13c0] sm:$0xff]
  %v955 = vld [vmem:[%s1 + $0x13c8] sm:$0xf]
  %v956 = vld [vmem:[%s1 + $0x13cc] sm:$0xff]
  %v957 = vld [vmem:[%s1 + $0x13d4] sm:$0xff]
  %v958 = vld [vmem:[%s1 + $0x13dc] sm:$0xff]
  %v959 = vld [vmem:[%s1 + $0x13e4] sm:$0xf]
  %v960 = vld [vmem:[%s1 + $0x13e8] sm:$0xff]
  %v961 = vld [vmem:[%s1 + $0x13f0] sm:$0xff]
  %v962 = vld [vmem:[%s1 + $0x13f8] sm:$0xff]
  %v963 = vld [vmem:[%s1 + $0x1400] sm:$0xf]
  %v964 = vld [vmem:[%s1 + $0x1404] sm:$0xff]
  %v965 = vld [vmem:[%s1 + $0x140c] sm:$0xff]
  %v966 = vld [vmem:[%s1 + $0x1414] sm:$0xff]
  %v967 = vld [vmem:[%s1 + $0x141c] sm:$0xf]
  %v968 = vld [vmem:[%s1 + $0x1420] sm:$0xff]
  %v969 = vld [vmem:[%s1 + $0x1428] sm:$0xff]
  %v970 = vld [vmem:[%s1 + $0x1430] sm:$0xff]
  %v971 = vld [vmem:[%s1 + $0x1438] sm:$0xf]
  %v972 = vld [vmem:[%s1 + $0x143c] sm:$0xff]
  %v973 = vld [vmem:[%s1 + $0x1444] sm:$0xff]
  %v974 = vld [vmem:[%s1 + $0x144c] sm:$0xff]
  %v975 = vld [vmem:[%s1 + $0x1454] sm:$0xf]
  %v976 = vld [vmem:[%s1 + $0x1458] sm:$0xff]
  %v977 = vld [vmem:[%s1 + $0x1460] sm:$0xff]
  %v978 = vld [vmem:[%s1 + $0x1468] sm:$0xff]
  %v979 = vld [vmem:[%s1 + $0x1470] sm:$0xf]
  %v980 = vld [vmem:[%s1 + $0x1474] sm:$0xff]
  %v981 = vld [vmem:[%s1 + $0x147c] sm:$0xff]
  %v982 = vld [vmem:[%s1 + $0x1484] sm:$0xff]
  %v983 = vld [vmem:[%s1 + $0x148c] sm:$0xf]
  %v984 = vld [vmem:[%s1 + $0x1490] sm:$0xff]
  %v985 = vld [vmem:[%s1 + $0x1498] sm:$0xff]
  %v986 = vld [vmem:[%s1 + $0x14a0] sm:$0xff]
  %v987 = vld [vmem:[%s1 + $0x14a8] sm:$0xf]
  %v988 = vld [vmem:[%s1 + $0x14ac] sm:$0xff]
  %v989 = vld [vmem:[%s1 + $0x14b4] sm:$0xff]
  %v990 = vld [vmem:[%s1 + $0x14bc] sm:$0xff]
  %v991 = vld [vmem:[%s1 + $0x14c4] sm:$0xf]
  %v992 = vld [vmem:[%s1 + $0x14c8] sm:$0xff]
  %v993 = vld [vmem:[%s1 + $0x14d0] sm:$0xff]
  %v994 = vld [vmem:[%s1 + $0x14d8] sm:$0xff]
  %v995 = vld [vmem:[%s1 + $0x14e0] sm:$0xf]
  %v996 = vld [vmem:[%s1 + $0x14e4] sm:$0xff]
  %v997 = vld [vmem:[%s1 + $0x14ec] sm:$0xff]
  %v998 = vld [vmem:[%s1 + $0x14f4] sm:$0xff]
  %v999 = vld [vmem:[%s1 + $0x14fc] sm:$0xf]
  %v1000 = vld [vmem:[%s1 + $0x1500] sm:$0xff]
  %v1001 = vld [vmem:[%s1 + $0x1508] sm:$0xff]
  %v1002 = vld [vmem:[%s1 + $0x1510] sm:$0xff]
  %v1003 = vld [vmem:[%s1 + $0x1518] sm:$0xf]
  %v1004 = vld [vmem:[%s1 + $0x151c] sm:$0xff]
  %v1005 = vld [vmem:[%s1 + $0x1524] sm:$0xff]
  %v1006 = vld [vmem:[%s1 + $0x152c] sm:$0xff]
  %v1007 = vld [vmem:[%s1 + $0x1534] sm:$0xf]
  %v1008 = vld [vmem:[%s1 + $0x1538] sm:$0xff]
  %v1009 = vld [vmem:[%s1 + $0x1540] sm:$0xff]
  %v1010 = vld [vmem:[%s1 + $0x1548] sm:$0xff]
  %v1011 = vld [vmem:[%s1 + $0x1550] sm:$0xf]
  %v1012 = vld [vmem:[%s1 + $0x1554] sm:$0xff]
  %v1013 = vld [vmem:[%s1 + $0x155c] sm:$0xff]
  %v1014 = vld [vmem:[%s1 + $0x1564] sm:$0xff]
  %v1015 = vld [vmem:[%s1 + $0x156c] sm:$0xf]
  %v1016 = vld [vmem:[%s1 + $0x1570] sm:$0xff]
  %v1017 = vld [vmem:[%s1 + $0x1578] sm:$0xff]
  %v1018 = vld [vmem:[%s1 + $0x1580] sm:$0xff]
  %v1019 = vld [vmem:[%s1 + $0x1588] sm:$0xf]
  %v1020 = vld [vmem:[%s1 + $0x158c] sm:$0xff]
  %v1021 = vld [vmem:[%s1 + $0x1594] sm:$0xff]
  %v1022 = vld [vmem:[%s1 + $0x159c] sm:$0xff]
  %v1023 = vld [vmem:[%s1 + $0x15a4] sm:$0xf]
  %v1024 = vld [vmem:[%s1 + $0x15a8] sm:$0xff]
  %v1025 = vld [vmem:[%s1 + $0x15b0] sm:$0xff]
  %v1026 = vld [vmem:[%s1 + $0x15b8] sm:$0xff]
  %v1027 = vld [vmem:[%s1 + $0x15c0] sm:$0xf]
  %v1028 = vld [vmem:[%s1 + $0x15c4] sm:$0xff]
  %v1029 = vld [vmem:[%s1 + $0x15cc] sm:$0xff]
  %v1030 = vld [vmem:[%s1 + $0x15d4] sm:$0xff]
  %v1031 = vld [vmem:[%s1 + $0x15dc] sm:$0xf]
  %v1032 = vld [vmem:[%s1 + $0x15e0] sm:$0xff]
  %v1033 = vld [vmem:[%s1 + $0x15e8] sm:$0xff]
  %v1034 = vld [vmem:[%s1 + $0x15f0] sm:$0xff]
  %v1035 = vld [vmem:[%s1 + $0x15f8] sm:$0xf]
  %v1036 = vld [vmem:[%s1 + $0x15fc] sm:$0xff]
  %v1037 = vld [vmem:[%s1 + $0x1604] sm:$0xff]
  %v1038 = vld [vmem:[%s1 + $0x160c] sm:$0xff]
  %v1039 = vld [vmem:[%s1 + $0x1614] sm:$0xf]
  %v1040 = vld [vmem:[%s1 + $0x1618] sm:$0xff]
  %v1041 = vld [vmem:[%s1 + $0x1620] sm:$0xff]
  %v1042 = vld [vmem:[%s1 + $0x1628] sm:$0xff]
  %v1043 = vld [vmem:[%s1 + $0x1630] sm:$0xf]
  %v1044 = vld [vmem:[%s1 + $0x1634] sm:$0xff]
  %v1045 = vld [vmem:[%s1 + $0x163c] sm:$0xff]
  %v1046 = vld [vmem:[%s1 + $0x1644] sm:$0xff]
  %v1047 = vld [vmem:[%s1 + $0x164c] sm:$0xf]
  %v1048 = vld [vmem:[%s1 + $0x1650] sm:$0xff]
  %v1049 = vld [vmem:[%s1 + $0x1658] sm:$0xff]
  %v1050 = vld [vmem:[%s1 + $0x1660] sm:$0xff]
  %v1051 = vld [vmem:[%s1 + $0x1668] sm:$0xf]
  %v1052 = vld [vmem:[%s1 + $0x166c] sm:$0xff]
  %v1053 = vld [vmem:[%s1 + $0x1674] sm:$0xff]
  %v1054 = vld [vmem:[%s1 + $0x167c] sm:$0xff]
  %v1055 = vld [vmem:[%s1 + $0x1684] sm:$0xf]
  %v1056 = vld [vmem:[%s1 + $0x1688] sm:$0xff]
  %v1057 = vld [vmem:[%s1 + $0x1690] sm:$0xff]
  %v1058 = vld [vmem:[%s1 + $0x1698] sm:$0xff]
  %v1059 = vld [vmem:[%s1 + $0x16a0] sm:$0xf]
  %v1060 = vld [vmem:[%s1 + $0x16a4] sm:$0xff]
  %v1061 = vld [vmem:[%s1 + $0x16ac] sm:$0xff]
  %v1062 = vld [vmem:[%s1 + $0x16b4] sm:$0xff]
  %v1063 = vld [vmem:[%s1 + $0x16bc] sm:$0xf]
  %v1064 = vld [vmem:[%s1 + $0x16c0] sm:$0xff]
  %v1065 = vld [vmem:[%s1 + $0x16c8] sm:$0xff]
  %v1066 = vld [vmem:[%s1 + $0x16d0] sm:$0xff]
  %v1067 = vld [vmem:[%s1 + $0x16d8] sm:$0xf]
  %v1068 = vld [vmem:[%s1 + $0x16dc] sm:$0xff]
  %v1069 = vld [vmem:[%s1 + $0x16e4] sm:$0xff]
  %v1070 = vld [vmem:[%s1 + $0x16ec] sm:$0xff]
  %v1071 = vld [vmem:[%s1 + $0x16f4] sm:$0xf]
  %v1072 = vld [vmem:[%s1 + $0x16f8] sm:$0xff]
  %v1073 = vld [vmem:[%s1 + $0x1700] sm:$0xff]
  %v1074 = vld [vmem:[%s1 + $0x1708] sm:$0xff]
  %v1075 = vld [vmem:[%s1 + $0x1710] sm:$0xf]
  %v1076 = vld [vmem:[%s1 + $0x1714] sm:$0xff]
  %v1077 = vld [vmem:[%s1 + $0x171c] sm:$0xff]
  %v1078 = vld [vmem:[%s1 + $0x1724] sm:$0xff]
  %v1079 = vld [vmem:[%s1 + $0x172c] sm:$0xf]
  %v1080 = vld [vmem:[%s1 + $0x1730] sm:$0xff]
  %v1081 = vld [vmem:[%s1 + $0x1738] sm:$0xff]
  %v1082 = vld [vmem:[%s1 + $0x1740] sm:$0xff]
  %v1083 = vld [vmem:[%s1 + $0x1748] sm:$0xf]
  %v1084 = vld [vmem:[%s1 + $0x174c] sm:$0xff]
  %v1085 = vld [vmem:[%s1 + $0x1754] sm:$0xff]
  %v1086 = vld [vmem:[%s1 + $0x175c] sm:$0xff]
  %v1087 = vld [vmem:[%s1 + $0x1764] sm:$0xf]
  %v1088 = vld [vmem:[%s1 + $0x1768] sm:$0xff]
  %v1089 = vld [vmem:[%s1 + $0x1770] sm:$0xff]
  %v1090 = vld [vmem:[%s1 + $0x1778] sm:$0xff]
  %v1091 = vld [vmem:[%s1 + $0x1780] sm:$0xf]
  %v1092 = vld [vmem:[%s1 + $0x1784] sm:$0xff]
  %v1093 = vld [vmem:[%s1 + $0x178c] sm:$0xff]
  %v1094 = vld [vmem:[%s1 + $0x1794] sm:$0xff]
  %v1095 = vld [vmem:[%s1 + $0x179c] sm:$0xf]
  %v1096 = vld [vmem:[%s1 + $0x17a0] sm:$0xff]
  %v1097 = vld [vmem:[%s1 + $0x17a8] sm:$0xff]
  %v1098 = vld [vmem:[%s1 + $0x17b0] sm:$0xff]
  %v1099 = vld [vmem:[%s1 + $0x17b8] sm:$0xf]
  %v1100 = vld [vmem:[%s1 + $0x17bc] sm:$0xff]
  %v1101 = vld [vmem:[%s1 + $0x17c4] sm:$0xff]
  %v1102 = vld [vmem:[%s1 + $0x17cc] sm:$0xff]
  %v1103 = vld [vmem:[%s1 + $0x17d4] sm:$0xf]
  %v1104 = vld [vmem:[%s1 + $0x17d8] sm:$0xff]
  %v1105 = vld [vmem:[%s1 + $0x17e0] sm:$0xff]
  %v1106 = vld [vmem:[%s1 + $0x17e8] sm:$0xff]
  %v1107 = vld [vmem:[%s1 + $0x17f0] sm:$0xf]
  %v1108 = vld [vmem:[%s1 + $0x17f4] sm:$0x33]
  %v1109 = vld [vmem:[%s1 + $0x17fc] sm:$0x33]
  %v1110 = vld [vmem:[%s1 + $0x1804] sm:$0x33]
  %v1111 = vld [vmem:[%s1 + $0x180c] sm:$0x3]
  %v1329 = vunpack.c.l.b16 %v15
  %v1330 = vunpack.c.h.b16 %v15
  %v1331 = vunpack.c.l.b16 %v16
  %v1332 = vunpack.c.h.b16 %v16
  %v1333 = vunpack.c.l.b16 %v17
  %v1334 = vunpack.c.h.b16 %v17
  %v1335 = vunpack.c.l.b16 %v18
  %v1336 = vunpack.c.h.b16 %v18
  %v1337 = vunpack.c.l.b16 %v19
  %v1338 = vunpack.c.h.b16 %v19
  %v1339 = vunpack.c.l.b16 %v20
  %v1340 = vunpack.c.h.b16 %v20
  %v1341 = vunpack.c.l.b16 %v21
  %v1342 = vunpack.c.h.b16 %v21
  %v1343 = vunpack.c.l.b16 %v22
  %v1344 = vunpack.c.h.b16 %v22
  %v1345 = vunpack.c.l.b16 %v23
  %v1346 = vunpack.c.h.b16 %v23
  %v1347 = vunpack.c.l.b16 %v24
  %v1348 = vunpack.c.h.b16 %v24
  %v1349 = vunpack.c.l.b16 %v25
  %v1350 = vunpack.c.h.b16 %v25
  %v1351 = vunpack.c.l.b16 %v26
  %v1352 = vunpack.c.h.b16 %v26
  %v1353 = vunpack.c.l.b16 %v27
  %v1354 = vunpack.c.h.b16 %v27
  %v1355 = vunpack.c.l.b16 %v28
  %v1356 = vunpack.c.h.b16 %v28
  %v1357 = vunpack.c.l.b16 %v29
  %v1358 = vunpack.c.h.b16 %v29
  %v1359 = vunpack.c.l.b16 %v30
  %v1360 = vunpack.c.h.b16 %v30
  %v1361 = vunpack.c.l.b16 %v31
  %v1362 = vunpack.c.h.b16 %v31
  %v1363 = vunpack.c.l.b16 %v32
  %v1364 = vunpack.c.h.b16 %v32
  %v1365 = vunpack.c.l.b16 %v33
  %v1366 = vunpack.c.h.b16 %v33
  %v1367 = vunpack.c.l.b16 %v34
  %v1368 = vunpack.c.h.b16 %v34
  %v1369 = vunpack.c.l.b16 %v35
  %v1370 = vunpack.c.h.b16 %v35
  %v1371 = vunpack.c.l.b16 %v36
  %v1372 = vunpack.c.h.b16 %v36
  %v1373 = vunpack.c.l.b16 %v37
  %v1374 = vunpack.c.h.b16 %v37
  %v1375 = vunpack.c.l.b16 %v38
  %v1376 = vunpack.c.h.b16 %v38
  %v1377 = vunpack.c.l.b16 %v39
  %v1378 = vunpack.c.h.b16 %v39
  %v1379 = vunpack.c.l.b16 %v40
  %v1380 = vunpack.c.h.b16 %v40
  %v1381 = vunpack.c.l.b16 %v41
  %v1382 = vunpack.c.h.b16 %v41
  %v1383 = vunpack.c.l.b16 %v42
  %v1384 = vunpack.c.h.b16 %v42
  %v1385 = vunpack.c.l.b16 %v43
  %v1386 = vunpack.c.h.b16 %v43
  %v1387 = vunpack.c.l.b16 %v44
  %v1388 = vunpack.c.h.b16 %v44
  %v1389 = vunpack.c.l.b16 %v45
  %v1390 = vunpack.c.h.b16 %v45
  %v1391 = vunpack.c.l.b16 %v46
  %v1392 = vunpack.c.h.b16 %v46
  %v1393 = vunpack.c.l.b16 %v47
  %v1394 = vunpack.c.h.b16 %v47
  %v1395 = vunpack.c.l.b16 %v48
  %v1396 = vunpack.c.h.b16 %v48
  %v1397 = vunpack.c.l.b16 %v49
  %v1398 = vunpack.c.h.b16 %v49
  %v1399 = vunpack.c.l.b16 %v50
  %v1400 = vunpack.c.h.b16 %v50
  %v1401 = vunpack.c.l.b16 %v51
  %v1402 = vunpack.c.h.b16 %v51
  %v1403 = vunpack.c.l.b16 %v52
  %v1404 = vunpack.c.h.b16 %v52
  %v1405 = vunpack.c.l.b16 %v53
  %v1406 = vunpack.c.h.b16 %v53
  %v1407 = vunpack.c.l.b16 %v54
  %v1408 = vunpack.c.h.b16 %v54
  %v1409 = vunpack.c.l.b16 %v55
  %v1410 = vunpack.c.h.b16 %v55
  %v1411 = vunpack.c.l.b16 %v56
  %v1412 = vunpack.c.h.b16 %v56
  %v1413 = vunpack.c.l.b16 %v57
  %v1414 = vunpack.c.h.b16 %v57
  %v1415 = vunpack.c.l.b16 %v58
  %v1416 = vunpack.c.h.b16 %v58
  %v1417 = vunpack.c.l.b16 %v59
  %v1418 = vunpack.c.h.b16 %v59
  %v1419 = vunpack.c.l.b16 %v60
  %v1420 = vunpack.c.h.b16 %v60
  %v1421 = vunpack.c.l.b16 %v61
  %v1422 = vunpack.c.h.b16 %v61
  %v1423 = vunpack.c.l.b16 %v62
  %v1424 = vunpack.c.h.b16 %v62
  %v1425 = vunpack.c.l.b16 %v63
  %v1426 = vunpack.c.h.b16 %v63
  %v1427 = vunpack.c.l.b16 %v64
  %v1428 = vunpack.c.h.b16 %v64
  %v1429 = vunpack.c.l.b16 %v65
  %v1430 = vunpack.c.h.b16 %v65
  %v1431 = vunpack.c.l.b16 %v66
  %v1432 = vunpack.c.h.b16 %v66
  %v1433 = vunpack.c.l.b16 %v67
  %v1434 = vunpack.c.h.b16 %v67
  %v1435 = vunpack.c.l.b16 %v68
  %v1436 = vunpack.c.h.b16 %v68
  %v1437 = vunpack.c.l.b16 %v69
  %v1438 = vunpack.c.h.b16 %v69
  %v1439 = vunpack.c.l.b16 %v70
  %v1440 = vunpack.c.h.b16 %v70
  %v1441 = vunpack.c.l.b16 %v71
  %v1442 = vunpack.c.h.b16 %v71
  %v1443 = vunpack.c.l.b16 %v72
  %v1444 = vunpack.c.h.b16 %v72
  %v1445 = vunpack.c.l.b16 %v73
  %v1446 = vunpack.c.h.b16 %v73
  %v1447 = vunpack.c.l.b16 %v74
  %v1448 = vunpack.c.h.b16 %v74
  %v1449 = vunpack.c.l.b16 %v75
  %v1450 = vunpack.c.h.b16 %v75
  %v1451 = vunpack.c.l.b16 %v76
  %v1452 = vunpack.c.h.b16 %v76
  %v1453 = vunpack.c.l.b16 %v77
  %v1454 = vunpack.c.h.b16 %v77
  %v1455 = vunpack.c.l.b16 %v78
  %v1456 = vunpack.c.h.b16 %v78
  %v1457 = vunpack.c.l.b16 %v79
  %v1458 = vunpack.c.h.b16 %v79
  %v1459 = vunpack.c.l.b16 %v80
  %v1460 = vunpack.c.h.b16 %v80
  %v1461 = vunpack.c.l.b16 %v81
  %v1462 = vunpack.c.h.b16 %v81
  %v1463 = vunpack.c.l.b16 %v82
  %v1464 = vunpack.c.h.b16 %v82
  %v1465 = vunpack.c.l.b16 %v83
  %v1466 = vunpack.c.h.b16 %v83
  %v1467 = vunpack.c.l.b16 %v84
  %v1468 = vunpack.c.h.b16 %v84
  %v1469 = vunpack.c.l.b16 %v85
  %v1470 = vunpack.c.h.b16 %v85
  %v1471 = vunpack.c.l.b16 %v86
  %v1472 = vunpack.c.h.b16 %v86
  %v1473 = vunpack.c.l.b16 %v87
  %v1474 = vunpack.c.h.b16 %v87
  %v1475 = vunpack.c.l.b16 %v88
  %v1476 = vunpack.c.h.b16 %v88
  %v1477 = vunpack.c.l.b16 %v89
  %v1478 = vunpack.c.h.b16 %v89
  %v1479 = vunpack.c.l.b16 %v90
  %v1480 = vunpack.c.h.b16 %v90
  %v1481 = vunpack.c.l.b16 %v91
  %v1482 = vunpack.c.h.b16 %v91
  %v1483 = vunpack.c.l.b16 %v92
  %v1484 = vunpack.c.h.b16 %v92
  %v1485 = vunpack.c.l.b16 %v93
  %v1486 = vunpack.c.h.b16 %v93
  %v1487 = vunpack.c.l.b16 %v94
  %v1488 = vunpack.c.h.b16 %v94
  %v1489 = vunpack.c.l.b16 %v95
  %v1490 = vunpack.c.h.b16 %v95
  %v1491 = vunpack.c.l.b16 %v96
  %v1492 = vunpack.c.h.b16 %v96
  %v1493 = vunpack.c.l.b16 %v97
  %v1494 = vunpack.c.h.b16 %v97
  %v1495 = vunpack.c.l.b16 %v98
  %v1496 = vunpack.c.h.b16 %v98
  %v1497 = vunpack.c.l.b16 %v99
  %v1498 = vunpack.c.h.b16 %v99
  %v1499 = vunpack.c.l.b16 %v100
  %v1500 = vunpack.c.h.b16 %v100
  %v1501 = vunpack.c.l.b16 %v101
  %v1502 = vunpack.c.h.b16 %v101
  %v1503 = vunpack.c.l.b16 %v102
  %v1504 = vunpack.c.h.b16 %v102
  %v1505 = vunpack.c.l.b16 %v103
  %v1506 = vunpack.c.h.b16 %v103
  %v1507 = vunpack.c.l.b16 %v104
  %v1508 = vunpack.c.h.b16 %v104
  %v1509 = vunpack.c.l.b16 %v105
  %v1510 = vunpack.c.h.b16 %v105
  %v1511 = vunpack.c.l.b16 %v106
  %v1512 = vunpack.c.h.b16 %v106
  %v1513 = vunpack.c.l.b16 %v107
  %v1514 = vunpack.c.h.b16 %v107
  %v1515 = vunpack.c.l.b16 %v108
  %v1516 = vunpack.c.h.b16 %v108
  %v1517 = vunpack.c.l.b16 %v109
  %v1518 = vunpack.c.h.b16 %v109
  %v1519 = vunpack.c.l.b16 %v110
  %v1520 = vunpack.c.h.b16 %v110
  %v1521 = vunpack.c.l.b16 %v111
  %v1522 = vunpack.c.h.b16 %v111
  %v1523 = vunpack.c.l.b16 %v112
  %v1524 = vunpack.c.h.b16 %v112
  %v1525 = vunpack.c.l.b16 %v113
  %v1526 = vunpack.c.h.b16 %v113
  %v1527 = vunpack.c.l.b16 %v114
  %v1528 = vunpack.c.h.b16 %v114
  %v1529 = vunpack.c.l.b16 %v115
  %v1530 = vunpack.c.h.b16 %v115
  %v1531 = vunpack.c.l.b16 %v116
  %v1532 = vunpack.c.h.b16 %v116
  %v1533 = vunpack.c.l.b16 %v117
  %v1534 = vunpack.c.h.b16 %v117
  %v1535 = vunpack.c.l.b16 %v118
  %v1536 = vunpack.c.h.b16 %v118
  %v1537 = vunpack.c.l.b16 %v119
  %v1538 = vunpack.c.h.b16 %v119
  %v1539 = vunpack.c.l.b16 %v120
  %v1540 = vunpack.c.h.b16 %v120
  %v1541 = vunpack.c.l.b16 %v121
  %v1542 = vunpack.c.h.b16 %v121
  %v1543 = vunpack.c.l.b16 %v122
  %v1544 = vunpack.c.h.b16 %v122
  %v1545 = vunpack.c.l.b16 %v123
  %v1546 = vunpack.c.h.b16 %v123
  %v1547 = vunpack.c.l.b16 %v124
  %v1548 = vunpack.c.h.b16 %v124
  %v1549 = vunpack.c.l.b16 %v125
  %v1550 = vunpack.c.h.b16 %v125
  %v1551 = vunpack.c.l.b16 %v126
  %v1552 = vunpack.c.h.b16 %v126
  %v1553 = vunpack.c.l.b16 %v127
  %v1554 = vunpack.c.h.b16 %v127
  %v1555 = vunpack.c.l.b16 %v128
  %v1556 = vunpack.c.h.b16 %v128
  %v1557 = vunpack.c.l.b16 %v129
  %v1558 = vunpack.c.h.b16 %v129
  %v1559 = vunpack.c.l.b16 %v130
  %v1560 = vunpack.c.h.b16 %v130
  %v1561 = vunpack.c.l.b16 %v131
  %v1562 = vunpack.c.h.b16 %v131
  %v1563 = vunpack.c.l.b16 %v132
  %v1564 = vunpack.c.h.b16 %v132
  %v1565 = vunpack.c.l.b16 %v133
  %v1566 = vunpack.c.h.b16 %v133
  %v1567 = vunpack.c.l.b16 %v134
  %v1568 = vunpack.c.h.b16 %v134
  %v1569 = vunpack.c.l.b16 %v135
  %v1570 = vunpack.c.h.b16 %v135
  %v1571 = vunpack.c.l.b16 %v136
  %v1572 = vunpack.c.h.b16 %v136
  %v1573 = vunpack.c.l.b16 %v137
  %v1574 = vunpack.c.h.b16 %v137
  %v1575 = vunpack.c.l.b16 %v138
  %v1576 = vunpack.c.h.b16 %v138
  %v1577 = vunpack.c.l.b16 %v139
  %v1578 = vunpack.c.h.b16 %v139
  %v1579 = vunpack.c.l.b16 %v140
  %v1580 = vunpack.c.h.b16 %v140
  %v1581 = vunpack.c.l.b16 %v141
  %v1582 = vunpack.c.h.b16 %v141
  %v1583 = vunpack.c.l.b16 %v142
  %v1584 = vunpack.c.h.b16 %v142
  %v1585 = vunpack.c.l.b16 %v143
  %v1586 = vunpack.c.h.b16 %v143
  %v1587 = vunpack.c.l.b16 %v144
  %v1588 = vunpack.c.h.b16 %v144
  %v1589 = vunpack.c.l.b16 %v145
  %v1590 = vunpack.c.h.b16 %v145
  %v1591 = vunpack.c.l.b16 %v146
  %v1592 = vunpack.c.h.b16 %v146
  %v1593 = vunpack.c.l.b16 %v147
  %v1594 = vunpack.c.h.b16 %v147
  %v1595 = vunpack.c.l.b16 %v148
  %v1596 = vunpack.c.h.b16 %v148
  %v1597 = vunpack.c.l.b16 %v149
  %v1598 = vunpack.c.h.b16 %v149
  %v1599 = vunpack.c.l.b16 %v150
  %v1600 = vunpack.c.h.b16 %v150
  %v1601 = vunpack.c.l.b16 %v151
  %v1602 = vunpack.c.h.b16 %v151
  %v1603 = vunpack.c.l.b16 %v152
  %v1604 = vunpack.c.h.b16 %v152
  %v1605 = vunpack.c.l.b16 %v153
  %v1606 = vunpack.c.h.b16 %v153
  %v1607 = vunpack.c.l.b16 %v154
  %v1608 = vunpack.c.h.b16 %v154
  %v1609 = vunpack.c.l.b16 %v155
  %v1610 = vunpack.c.h.b16 %v155
  %v1611 = vunpack.c.l.b16 %v156
  %v1612 = vunpack.c.h.b16 %v156
  %v1613 = vunpack.c.l.b16 %v157
  %v1614 = vunpack.c.h.b16 %v157
  %v1615 = vunpack.c.l.b16 %v158
  %v1616 = vunpack.c.h.b16 %v158
  %v1617 = vunpack.c.l.b16 %v159
  %v1618 = vunpack.c.h.b16 %v159
  %v1619 = vunpack.c.l.b16 %v160
  %v1620 = vunpack.c.h.b16 %v160
  %v1621 = vunpack.c.l.b16 %v161
  %v1622 = vunpack.c.h.b16 %v161
  %v1623 = vunpack.c.l.b16 %v162
  %v1624 = vunpack.c.h.b16 %v162
  %v1625 = vunpack.c.l.b16 %v163
  %v1626 = vunpack.c.h.b16 %v163
  %v1627 = vunpack.c.l.b16 %v164
  %v1628 = vunpack.c.h.b16 %v164
  %v1629 = vunpack.c.l.b16 %v165
  %v1630 = vunpack.c.h.b16 %v165
  %v1631 = vunpack.c.l.b16 %v166
  %v1632 = vunpack.c.h.b16 %v166
  %v1633 = vunpack.c.l.b16 %v167
  %v1634 = vunpack.c.h.b16 %v167
  %v1635 = vunpack.c.l.b16 %v168
  %v1636 = vunpack.c.h.b16 %v168
  %v1637 = vunpack.c.l.b16 %v169
  %v1638 = vunpack.c.h.b16 %v169
  %v1639 = vunpack.c.l.b16 %v170
  %v1640 = vunpack.c.h.b16 %v170
  %v1641 = vunpack.c.l.b16 %v171
  %v1642 = vunpack.c.h.b16 %v171
  %v1643 = vunpack.c.l.b16 %v172
  %v1644 = vunpack.c.h.b16 %v172
  %v1645 = vunpack.c.l.b16 %v173
  %v1646 = vunpack.c.h.b16 %v173
  %v1647 = vunpack.c.l.b16 %v174
  %v1648 = vunpack.c.h.b16 %v174
  %v1649 = vunpack.c.l.b16 %v175
  %v1650 = vunpack.c.h.b16 %v175
  %v1651 = vunpack.c.l.b16 %v176
  %v1652 = vunpack.c.h.b16 %v176
  %v1653 = vunpack.c.l.b16 %v177
  %v1654 = vunpack.c.h.b16 %v177
  %v1655 = vunpack.c.l.b16 %v178
  %v1656 = vunpack.c.h.b16 %v178
  %v1657 = vunpack.c.l.b16 %v179
  %v1658 = vunpack.c.h.b16 %v179
  %v1659 = vunpack.c.l.b16 %v180
  %v1660 = vunpack.c.h.b16 %v180
  %v1661 = vunpack.c.l.b16 %v181
  %v1662 = vunpack.c.h.b16 %v181
  %v1663 = vunpack.c.l.b16 %v182
  %v1664 = vunpack.c.h.b16 %v182
  %v1665 = vunpack.c.l.b16 %v183
  %v1666 = vunpack.c.h.b16 %v183
  %v1667 = vunpack.c.l.b16 %v184
  %v1668 = vunpack.c.h.b16 %v184
  %v1669 = vunpack.c.l.b16 %v185
  %v1670 = vunpack.c.h.b16 %v185
  %v1671 = vunpack.c.l.b16 %v186
  %v1672 = vunpack.c.h.b16 %v186
  %v1673 = vunpack.c.l.b16 %v187
  %v1674 = vunpack.c.h.b16 %v187
  %v1675 = vunpack.c.l.b16 %v188
  %v1676 = vunpack.c.h.b16 %v188
  %v1677 = vunpack.c.l.b16 %v189
  %v1678 = vunpack.c.h.b16 %v189
  %v1679 = vunpack.c.l.b16 %v190
  %v1680 = vunpack.c.h.b16 %v190
  %v1681 = vunpack.c.l.b16 %v191
  %v1682 = vunpack.c.h.b16 %v191
  %v1683 = vunpack.c.l.b16 %v192
  %v1684 = vunpack.c.h.b16 %v192
  %v1685 = vunpack.c.l.b16 %v193
  %v1686 = vunpack.c.h.b16 %v193
  %v1687 = vunpack.c.l.b16 %v194
  %v1688 = vunpack.c.h.b16 %v194
  %v1689 = vunpack.c.l.b16 %v195
  %v1690 = vunpack.c.h.b16 %v195
  %v1691 = vunpack.c.l.b16 %v196
  %v1692 = vunpack.c.h.b16 %v196
  %v1693 = vunpack.c.l.b16 %v197
  %v1694 = vunpack.c.h.b16 %v197
  %v1695 = vunpack.c.l.b16 %v198
  %v1696 = vunpack.c.h.b16 %v198
  %v1697 = vunpack.c.l.b16 %v199
  %v1698 = vunpack.c.h.b16 %v199
  %v1699 = vunpack.c.l.b16 %v200
  %v1700 = vunpack.c.h.b16 %v200
  %v1701 = vunpack.c.l.b16 %v201
  %v1702 = vunpack.c.h.b16 %v201
  %v1703 = vunpack.c.l.b16 %v202
  %v1704 = vunpack.c.h.b16 %v202
  %v1705 = vunpack.c.l.b16 %v203
  %v1706 = vunpack.c.h.b16 %v203
  %v1707 = vunpack.c.l.b16 %v204
  %v1708 = vunpack.c.h.b16 %v204
  %v1709 = vunpack.c.l.b16 %v205
  %v1710 = vunpack.c.h.b16 %v205
  %v1711 = vunpack.c.l.b16 %v206
  %v1712 = vunpack.c.h.b16 %v206
  %v1713 = vunpack.c.l.b16 %v207
  %v1714 = vunpack.c.h.b16 %v207
  %v1715 = vunpack.c.l.b16 %v208
  %v1716 = vunpack.c.h.b16 %v208
  %v1717 = vunpack.c.l.b16 %v209
  %v1718 = vunpack.c.h.b16 %v209
  %v1719 = vunpack.c.l.b16 %v210
  %v1720 = vunpack.c.h.b16 %v210
  %v1721 = vunpack.c.l.b16 %v211
  %v1722 = vunpack.c.h.b16 %v211
  %v1723 = vunpack.c.l.b16 %v212
  %v1724 = vunpack.c.h.b16 %v212
  %v1725 = vunpack.c.l.b16 %v213
  %v1726 = vunpack.c.h.b16 %v213
  %v1727 = vunpack.c.l.b16 %v214
  %v1728 = vunpack.c.h.b16 %v214
  %v1729 = vunpack.c.l.b16 %v215
  %v1730 = vunpack.c.h.b16 %v215
  %v1731 = vunpack.c.l.b16 %v216
  %v1732 = vunpack.c.h.b16 %v216
  %v1733 = vunpack.c.l.b16 %v217
  %v1734 = vunpack.c.h.b16 %v217
  %v1735 = vunpack.c.l.b16 %v218
  %v1736 = vunpack.c.h.b16 %v218
  %v1737 = vunpack.c.l.b16 %v219
  %v1738 = vunpack.c.h.b16 %v219
  %v1739 = vunpack.c.l.b16 %v220
  %v1740 = vunpack.c.h.b16 %v220
  %v1741 = vunpack.c.l.b16 %v221
  %v1742 = vunpack.c.h.b16 %v221
  %v1743 = vunpack.c.l.b16 %v222
  %v1744 = vunpack.c.h.b16 %v222
  %v1745 = vunpack.c.l.b16 %v223
  %v1746 = vunpack.c.h.b16 %v223
  %v1747 = vunpack.c.l.b16 %v224
  %v1748 = vunpack.c.h.b16 %v224
  %v1749 = vunpack.c.l.b16 %v225
  %v1750 = vunpack.c.h.b16 %v225
  %v1751 = vunpack.c.l.b16 %v226
  %v1752 = vunpack.c.h.b16 %v226
  %v1753 = vunpack.c.l.b16 %v227
  %v1754 = vunpack.c.h.b16 %v227
  %v1755 = vunpack.c.l.b16 %v228
  %v1756 = vunpack.c.h.b16 %v228
  %v1757 = vunpack.c.l.b16 %v229
  %v1758 = vunpack.c.h.b16 %v229
  %v1759 = vunpack.c.l.b16 %v230
  %v1760 = vunpack.c.h.b16 %v230
  %v1761 = vunpack.c.l.b16 %v231
  %v1762 = vunpack.c.h.b16 %v231
  %v1763 = vpack.c.b16 %v1343, %v1329
  %v1764 = vpack.c.b16 %v1344, %v1330
  %v1765 = vpack.c.b16 %v1345, %v1331
  %v1766 = vpack.c.b16 %v1346, %v1332
  %v1767 = vpack.c.b16 %v1347, %v1333
  %v1768 = vpack.c.b16 %v1348, %v1334
  %v1769 = vpack.c.b16 %v1349, %v1335
  %v1770 = vpack.c.b16 %v1350, %v1336
  %v1771 = vpack.c.b16 %v1351, %v1337
  %v1772 = vpack.c.b16 %v1352, %v1338
  %v1773 = vpack.c.b16 %v1353, %v1339
  %v1774 = vpack.c.b16 %v1354, %v1340
  %v1775 = vpack.c.b16 %v1355, %v1341
  %v1776 = vpack.c.b16 %v1356, %v1342
  %v1777 = vpack.c.b16 %v1371, %v1357
  %v1778 = vpack.c.b16 %v1372, %v1358
  %v1779 = vpack.c.b16 %v1373, %v1359
  %v1780 = vpack.c.b16 %v1374, %v1360
  %v1781 = vpack.c.b16 %v1375, %v1361
  %v1782 = vpack.c.b16 %v1376, %v1362
  %v1783 = vpack.c.b16 %v1377, %v1363
  %v1784 = vpack.c.b16 %v1378, %v1364
  %v1785 = vpack.c.b16 %v1379, %v1365
  %v1786 = vpack.c.b16 %v1380, %v1366
  %v1787 = vpack.c.b16 %v1381, %v1367
  %v1788 = vpack.c.b16 %v1382, %v1368
  %v1789 = vpack.c.b16 %v1383, %v1369
  %v1790 = vpack.c.b16 %v1384, %v1370
  %v1791 = vpack.c.b16 %v1399, %v1385
  %v1792 = vpack.c.b16 %v1400, %v1386
  %v1793 = vpack.c.b16 %v1401, %v1387
  %v1794 = vpack.c.b16 %v1402, %v1388
  %v1795 = vpack.c.b16 %v1403, %v1389
  %v1796 = vpack.c.b16 %v1404, %v1390
  %v1797 = vpack.c.b16 %v1405, %v1391
  %v1798 = vpack.c.b16 %v1406, %v1392
  %v1799 = vpack.c.b16 %v1407, %v1393
  %v1800 = vpack.c.b16 %v1408, %v1394
  %v1801 = vpack.c.b16 %v1409, %v1395
  %v1802 = vpack.c.b16 %v1410, %v1396
  %v1803 = vpack.c.b16 %v1411, %v1397
  %v1804 = vpack.c.b16 %v1412, %v1398
  %v1805 = vpack.c.b16 %v1427, %v1413
  %v1806 = vpack.c.b16 %v1428, %v1414
  %v1807 = vpack.c.b16 %v1429, %v1415
  %v1808 = vpack.c.b16 %v1430, %v1416
  %v1809 = vpack.c.b16 %v1431, %v1417
  %v1810 = vpack.c.b16 %v1432, %v1418
  %v1811 = vpack.c.b16 %v1433, %v1419
  %v1812 = vpack.c.b16 %v1434, %v1420
  %v1813 = vpack.c.b16 %v1435, %v1421
  %v1814 = vpack.c.b16 %v1436, %v1422
  %v1815 = vpack.c.b16 %v1437, %v1423
  %v1816 = vpack.c.b16 %v1438, %v1424
  %v1817 = vpack.c.b16 %v1439, %v1425
  %v1818 = vpack.c.b16 %v1440, %v1426
  %v1819 = vpack.c.b16 %v1455, %v1441
  %v1820 = vpack.c.b16 %v1456, %v1442
  %v1821 = vpack.c.b16 %v1457, %v1443
  %v1822 = vpack.c.b16 %v1458, %v1444
  %v1823 = vpack.c.b16 %v1459, %v1445
  %v1824 = vpack.c.b16 %v1460, %v1446
  %v1825 = vpack.c.b16 %v1461, %v1447
  %v1826 = vpack.c.b16 %v1462, %v1448
  %v1827 = vpack.c.b16 %v1463, %v1449
  %v1828 = vpack.c.b16 %v1464, %v1450
  %v1829 = vpack.c.b16 %v1465, %v1451
  %v1830 = vpack.c.b16 %v1466, %v1452
  %v1831 = vpack.c.b16 %v1467, %v1453
  %v1832 = vpack.c.b16 %v1468, %v1454
  %v1833 = vpack.c.b16 %v1483, %v1469
  %v1834 = vpack.c.b16 %v1484, %v1470
  %v1835 = vpack.c.b16 %v1485, %v1471
  %v1836 = vpack.c.b16 %v1486, %v1472
  %v1837 = vpack.c.b16 %v1487, %v1473
  %v1838 = vpack.c.b16 %v1488, %v1474
  %v1839 = vpack.c.b16 %v1489, %v1475
  %v1840 = vpack.c.b16 %v1490, %v1476
  %v1841 = vpack.c.b16 %v1491, %v1477
  %v1842 = vpack.c.b16 %v1492, %v1478
  %v1843 = vpack.c.b16 %v1493, %v1479
  %v1844 = vpack.c.b16 %v1494, %v1480
  %v1845 = vpack.c.b16 %v1495, %v1481
  %v1846 = vpack.c.b16 %v1496, %v1482
  %v1847 = vpack.c.b16 %v1511, %v1497
  %v1848 = vpack.c.b16 %v1512, %v1498
  %v1849 = vpack.c.b16 %v1513, %v1499
  %v1850 = vpack.c.b16 %v1514, %v1500
  %v1851 = vpack.c.b16 %v1515, %v1501
  %v1852 = vpack.c.b16 %v1516, %v1502
  %v1853 = vpack.c.b16 %v1517, %v1503
  %v1854 = vpack.c.b16 %v1518, %v1504
  %v1855 = vpack.c.b16 %v1519, %v1505
  %v1856 = vpack.c.b16 %v1520, %v1506
  %v1857 = vpack.c.b16 %v1521, %v1507
  %v1858 = vpack.c.b16 %v1522, %v1508
  %v1859 = vpack.c.b16 %v1523, %v1509
  %v1860 = vpack.c.b16 %v1524, %v1510
  %v1861 = vpack.c.b16 %v1539, %v1525
  %v1862 = vpack.c.b16 %v1540, %v1526
  %v1863 = vpack.c.b16 %v1541, %v1527
  %v1864 = vpack.c.b16 %v1542, %v1528
  %v1865 = vpack.c.b16 %v1543, %v1529
  %v1866 = vpack.c.b16 %v1544, %v1530
  %v1867 = vpack.c.b16 %v1545, %v1531
  %v1868 = vpack.c.b16 %v1546, %v1532
  %v1869 = vpack.c.b16 %v1547, %v1533
  %v1870 = vpack.c.b16 %v1548, %v1534
  %v1871 = vpack.c.b16 %v1549, %v1535
  %v1872 = vpack.c.b16 %v1550, %v1536
  %v1873 = vpack.c.b16 %v1551, %v1537
  %v1874 = vpack.c.b16 %v1552, %v1538
  %v1875 = vpack.c.b16 %v1567, %v1553
  %v1876 = vpack.c.b16 %v1568, %v1554
  %v1877 = vpack.c.b16 %v1569, %v1555
  %v1878 = vpack.c.b16 %v1570, %v1556
  %v1879 = vpack.c.b16 %v1571, %v1557
  %v1880 = vpack.c.b16 %v1572, %v1558
  %v1881 = vpack.c.b16 %v1573, %v1559
  %v1882 = vpack.c.b16 %v1574, %v1560
  %v1883 = vpack.c.b16 %v1575, %v1561
  %v1884 = vpack.c.b16 %v1576, %v1562
  %v1885 = vpack.c.b16 %v1577, %v1563
  %v1886 = vpack.c.b16 %v1578, %v1564
  %v1887 = vpack.c.b16 %v1579, %v1565
  %v1888 = vpack.c.b16 %v1580, %v1566
  %v1889 = vpack.c.b16 %v1595, %v1581
  %v1890 = vpack.c.b16 %v1596, %v1582
  %v1891 = vpack.c.b16 %v1597, %v1583
  %v1892 = vpack.c.b16 %v1598, %v1584
  %v1893 = vpack.c.b16 %v1599, %v1585
  %v1894 = vpack.c.b16 %v1600, %v1586
  %v1895 = vpack.c.b16 %v1601, %v1587
  %v1896 = vpack.c.b16 %v1602, %v1588
  %v1897 = vpack.c.b16 %v1603, %v1589
  %v1898 = vpack.c.b16 %v1604, %v1590
  %v1899 = vpack.c.b16 %v1605, %v1591
  %v1900 = vpack.c.b16 %v1606, %v1592
  %v1901 = vpack.c.b16 %v1607, %v1593
  %v1902 = vpack.c.b16 %v1608, %v1594
  %v1903 = vpack.c.b16 %v1623, %v1609
  %v1904 = vpack.c.b16 %v1624, %v1610
  %v1905 = vpack.c.b16 %v1625, %v1611
  %v1906 = vpack.c.b16 %v1626, %v1612
  %v1907 = vpack.c.b16 %v1627, %v1613
  %v1908 = vpack.c.b16 %v1628, %v1614
  %v1909 = vpack.c.b16 %v1629, %v1615
  %v1910 = vpack.c.b16 %v1630, %v1616
  %v1911 = vpack.c.b16 %v1631, %v1617
  %v1912 = vpack.c.b16 %v1632, %v1618
  %v1913 = vpack.c.b16 %v1633, %v1619
  %v1914 = vpack.c.b16 %v1634, %v1620
  %v1915 = vpack.c.b16 %v1635, %v1621
  %v1916 = vpack.c.b16 %v1636, %v1622
  %v1917 = vpack.c.b16 %v1651, %v1637
  %v1918 = vpack.c.b16 %v1652, %v1638
  %v1919 = vpack.c.b16 %v1653, %v1639
  %v1920 = vpack.c.b16 %v1654, %v1640
  %v1921 = vpack.c.b16 %v1655, %v1641
  %v1922 = vpack.c.b16 %v1656, %v1642
  %v1923 = vpack.c.b16 %v1657, %v1643
  %v1924 = vpack.c.b16 %v1658, %v1644
  %v1925 = vpack.c.b16 %v1659, %v1645
  %v1926 = vpack.c.b16 %v1660, %v1646
  %v1927 = vpack.c.b16 %v1661, %v1647
  %v1928 = vpack.c.b16 %v1662, %v1648
  %v1929 = vpack.c.b16 %v1663, %v1649
  %v1930 = vpack.c.b16 %v1664, %v1650
  %v1931 = vpack.c.b16 %v1679, %v1665
  %v1932 = vpack.c.b16 %v1680, %v1666
  %v1933 = vpack.c.b16 %v1681, %v1667
  %v1934 = vpack.c.b16 %v1682, %v1668
  %v1935 = vpack.c.b16 %v1683, %v1669
  %v1936 = vpack.c.b16 %v1684, %v1670
  %v1937 = vpack.c.b16 %v1685, %v1671
  %v1938 = vpack.c.b16 %v1686, %v1672
  %v1939 = vpack.c.b16 %v1687, %v1673
  %v1940 = vpack.c.b16 %v1688, %v1674
  %v1941 = vpack.c.b16 %v1689, %v1675
  %v1942 = vpack.c.b16 %v1690, %v1676
  %v1943 = vpack.c.b16 %v1691, %v1677
  %v1944 = vpack.c.b16 %v1692, %v1678
  %v1945 = vpack.c.b16 %v1707, %v1693
  %v1946 = vpack.c.b16 %v1708, %v1694
  %v1947 = vpack.c.b16 %v1709, %v1695
  %v1948 = vpack.c.b16 %v1710, %v1696
  %v1949 = vpack.c.b16 %v1711, %v1697
  %v1950 = vpack.c.b16 %v1712, %v1698
  %v1951 = vpack.c.b16 %v1713, %v1699
  %v1952 = vpack.c.b16 %v1714, %v1700
  %v1953 = vpack.c.b16 %v1715, %v1701
  %v1954 = vpack.c.b16 %v1716, %v1702
  %v1955 = vpack.c.b16 %v1717, %v1703
  %v1956 = vpack.c.b16 %v1718, %v1704
  %v1957 = vpack.c.b16 %v1719, %v1705
  %v1958 = vpack.c.b16 %v1720, %v1706
  %v1959 = vpack.c.b16 %v1735, %v1721
  %v1960 = vpack.c.b16 %v1736, %v1722
  %v1961 = vpack.c.b16 %v1737, %v1723
  %v1962 = vpack.c.b16 %v1738, %v1724
  %v1963 = vpack.c.b16 %v1739, %v1725
  %v1964 = vpack.c.b16 %v1740, %v1726
  %v1965 = vpack.c.b16 %v1741, %v1727
  %v1966 = vpack.c.b16 %v1742, %v1728
  %v1967 = vpack.c.b16 %v1743, %v1729
  %v1968 = vpack.c.b16 %v1744, %v1730
  %v1969 = vpack.c.b16 %v1745, %v1731
  %v1970 = vpack.c.b16 %v1746, %v1732
  %v1971 = vpack.c.b16 %v1747, %v1733
  %v1972 = vpack.c.b16 %v1748, %v1734
  %v1973 = vpack.c.b16 %v1749, %v1749
  %v1974 = vpack.c.b16 %v1750, %v1750
  %v1975 = vpack.c.b16 %v1751, %v1751
  %v1976 = vpack.c.b16 %v1752, %v1752
  %v1977 = vpack.c.b16 %v1753, %v1753
  %v1978 = vpack.c.b16 %v1754, %v1754
  %v1979 = vpack.c.b16 %v1755, %v1755
  %v1980 = vpack.c.b16 %v1756, %v1756
  %v1981 = vpack.c.b16 %v1757, %v1757
  %v1982 = vpack.c.b16 %v1758, %v1758
  %v1983 = vpack.c.b16 %v1759, %v1759
  %v1984 = vpack.c.b16 %v1760, %v1760
  %v1985 = vpack.c.b16 %v1761, %v1761
  %v1986 = vpack.c.b16 %v1762, %v1762
  %v3075 = vunpack.c.l.b16 %v232
  %v3076 = vunpack.c.h.b16 %v232
  %v3077 = vunpack.c.l.b16 %v233
  %v3078 = vunpack.c.h.b16 %v233
  %v3079 = vunpack.c.l.b16 %v234
  %v3080 = vunpack.c.h.b16 %v234
  %v3081 = vunpack.c.l.b16 %v235
  %v3082 = vunpack.c.l.b16 %v236
  %v3083 = vunpack.c.h.b16 %v236
  %v3084 = vunpack.c.l.b16 %v237
  %v3085 = vunpack.c.h.b16 %v237
  %v3086 = vunpack.c.l.b16 %v238
  %v3087 = vunpack.c.h.b16 %v238
  %v3088 = vunpack.c.l.b16 %v239
  %v3089 = vunpack.c.l.b16 %v240
  %v3090 = vunpack.c.h.b16 %v240
  %v3091 = vunpack.c.l.b16 %v241
  %v3092 = vunpack.c.h.b16 %v241
  %v3093 = vunpack.c.l.b16 %v242
  %v3094 = vunpack.c.h.b16 %v242
  %v3095 = vunpack.c.l.b16 %v243
  %v3096 = vunpack.c.l.b16 %v244
  %v3097 = vunpack.c.h.b16 %v244
  %v3098 = vunpack.c.l.b16 %v245
  %v3099 = vunpack.c.h.b16 %v245
  %v3100 = vunpack.c.l.b16 %v246
  %v3101 = vunpack.c.h.b16 %v246
  %v3102 = vunpack.c.l.b16 %v247
  %v3103 = vunpack.c.l.b16 %v248
  %v3104 = vunpack.c.h.b16 %v248
  %v3105 = vunpack.c.l.b16 %v249
  %v3106 = vunpack.c.h.b16 %v249
  %v3107 = vunpack.c.l.b16 %v250
  %v3108 = vunpack.c.h.b16 %v250
  %v3109 = vunpack.c.l.b16 %v251
  %v3110 = vunpack.c.l.b16 %v252
  %v3111 = vunpack.c.h.b16 %v252
  %v3112 = vunpack.c.l.b16 %v253
  %v3113 = vunpack.c.h.b16 %v253
  %v3114 = vunpack.c.l.b16 %v254
  %v3115 = vunpack.c.h.b16 %v254
  %v3116 = vunpack.c.l.b16 %v255
  %v3117 = vunpack.c.l.b16 %v256
  %v3118 = vunpack.c.h.b16 %v256
  %v3119 = vunpack.c.l.b16 %v257
  %v3120 = vunpack.c.h.b16 %v257
  %v3121 = vunpack.c.l.b16 %v258
  %v3122 = vunpack.c.h.b16 %v258
  %v3123 = vunpack.c.l.b16 %v259
  %v3124 = vunpack.c.l.b16 %v260
  %v3125 = vunpack.c.h.b16 %v260
  %v3126 = vunpack.c.l.b16 %v261
  %v3127 = vunpack.c.h.b16 %v261
  %v3128 = vunpack.c.l.b16 %v262
  %v3129 = vunpack.c.h.b16 %v262
  %v3130 = vunpack.c.l.b16 %v263
  %v3131 = vunpack.c.l.b16 %v264
  %v3132 = vunpack.c.h.b16 %v264
  %v3133 = vunpack.c.l.b16 %v265
  %v3134 = vunpack.c.h.b16 %v265
  %v3135 = vunpack.c.l.b16 %v266
  %v3136 = vunpack.c.h.b16 %v266
  %v3137 = vunpack.c.l.b16 %v267
  %v3138 = vunpack.c.l.b16 %v268
  %v3139 = vunpack.c.h.b16 %v268
  %v3140 = vunpack.c.l.b16 %v269
  %v3141 = vunpack.c.h.b16 %v269
  %v3142 = vunpack.c.l.b16 %v270
  %v3143 = vunpack.c.h.b16 %v270
  %v3144 = vunpack.c.l.b16 %v271
  %v3145 = vunpack.c.l.b16 %v272
  %v3146 = vunpack.c.h.b16 %v272
  %v3147 = vunpack.c.l.b16 %v273
  %v3148 = vunpack.c.h.b16 %v273
  %v3149 = vunpack.c.l.b16 %v274
  %v3150 = vunpack.c.h.b16 %v274
  %v3151 = vunpack.c.l.b16 %v275
  %v3152 = vunpack.c.l.b16 %v276
  %v3153 = vunpack.c.h.b16 %v276
  %v3154 = vunpack.c.l.b16 %v277
  %v3155 = vunpack.c.h.b16 %v277
  %v3156 = vunpack.c.l.b16 %v278
  %v3157 = vunpack.c.h.b16 %v278
  %v3158 = vunpack.c.l.b16 %v279
  %v3159 = vunpack.c.l.b16 %v280
  %v3160 = vunpack.c.h.b16 %v280
  %v3161 = vunpack.c.l.b16 %v281
  %v3162 = vunpack.c.h.b16 %v281
  %v3163 = vunpack.c.l.b16 %v282
  %v3164 = vunpack.c.h.b16 %v282
  %v3165 = vunpack.c.l.b16 %v283
  %v3166 = vunpack.c.l.b16 %v284
  %v3167 = vunpack.c.h.b16 %v284
  %v3168 = vunpack.c.l.b16 %v285
  %v3169 = vunpack.c.h.b16 %v285
  %v3170 = vunpack.c.l.b16 %v286
  %v3171 = vunpack.c.h.b16 %v286
  %v3172 = vunpack.c.l.b16 %v287
  %v3173 = vunpack.c.l.b16 %v288
  %v3174 = vunpack.c.h.b16 %v288
  %v3175 = vunpack.c.l.b16 %v289
  %v3176 = vunpack.c.h.b16 %v289
  %v3177 = vunpack.c.l.b16 %v290
  %v3178 = vunpack.c.h.b16 %v290
  %v3179 = vunpack.c.l.b16 %v291
  %v3180 = vunpack.c.l.b16 %v292
  %v3181 = vunpack.c.h.b16 %v292
  %v3182 = vunpack.c.l.b16 %v293
  %v3183 = vunpack.c.h.b16 %v293
  %v3184 = vunpack.c.l.b16 %v294
  %v3185 = vunpack.c.h.b16 %v294
  %v3186 = vunpack.c.l.b16 %v295
  %v3187 = vunpack.c.l.b16 %v296
  %v3188 = vunpack.c.h.b16 %v296
  %v3189 = vunpack.c.l.b16 %v297
  %v3190 = vunpack.c.h.b16 %v297
  %v3191 = vunpack.c.l.b16 %v298
  %v3192 = vunpack.c.h.b16 %v298
  %v3193 = vunpack.c.l.b16 %v299
  %v3194 = vunpack.c.l.b16 %v300
  %v3195 = vunpack.c.h.b16 %v300
  %v3196 = vunpack.c.l.b16 %v301
  %v3197 = vunpack.c.h.b16 %v301
  %v3198 = vunpack.c.l.b16 %v302
  %v3199 = vunpack.c.h.b16 %v302
  %v3200 = vunpack.c.l.b16 %v303
  %v3201 = vunpack.c.l.b16 %v304
  %v3202 = vunpack.c.h.b16 %v304
  %v3203 = vunpack.c.l.b16 %v305
  %v3204 = vunpack.c.h.b16 %v305
  %v3205 = vunpack.c.l.b16 %v306
  %v3206 = vunpack.c.h.b16 %v306
  %v3207 = vunpack.c.l.b16 %v307
  %v3208 = vunpack.c.l.b16 %v308
  %v3209 = vunpack.c.h.b16 %v308
  %v3210 = vunpack.c.l.b16 %v309
  %v3211 = vunpack.c.h.b16 %v309
  %v3212 = vunpack.c.l.b16 %v310
  %v3213 = vunpack.c.h.b16 %v310
  %v3214 = vunpack.c.l.b16 %v311
  %v3215 = vunpack.c.l.b16 %v312
  %v3216 = vunpack.c.h.b16 %v312
  %v3217 = vunpack.c.l.b16 %v313
  %v3218 = vunpack.c.h.b16 %v313
  %v3219 = vunpack.c.l.b16 %v314
  %v3220 = vunpack.c.h.b16 %v314
  %v3221 = vunpack.c.l.b16 %v315
  %v3222 = vunpack.c.l.b16 %v316
  %v3223 = vunpack.c.h.b16 %v316
  %v3224 = vunpack.c.l.b16 %v317
  %v3225 = vunpack.c.h.b16 %v317
  %v3226 = vunpack.c.l.b16 %v318
  %v3227 = vunpack.c.h.b16 %v318
  %v3228 = vunpack.c.l.b16 %v319
  %v3229 = vunpack.c.l.b16 %v320
  %v3230 = vunpack.c.h.b16 %v320
  %v3231 = vunpack.c.l.b16 %v321
  %v3232 = vunpack.c.h.b16 %v321
  %v3233 = vunpack.c.l.b16 %v322
  %v3234 = vunpack.c.h.b16 %v322
  %v3235 = vunpack.c.l.b16 %v323
  %v3236 = vunpack.c.l.b16 %v324
  %v3237 = vunpack.c.h.b16 %v324
  %v3238 = vunpack.c.l.b16 %v325
  %v3239 = vunpack.c.h.b16 %v325
  %v3240 = vunpack.c.l.b16 %v326
  %v3241 = vunpack.c.h.b16 %v326
  %v3242 = vunpack.c.l.b16 %v327
  %v3243 = vunpack.c.l.b16 %v328
  %v3244 = vunpack.c.h.b16 %v328
  %v3245 = vunpack.c.l.b16 %v329
  %v3246 = vunpack.c.h.b16 %v329
  %v3247 = vunpack.c.l.b16 %v330
  %v3248 = vunpack.c.h.b16 %v330
  %v3249 = vunpack.c.l.b16 %v331
  %v3250 = vunpack.c.l.b16 %v332
  %v3251 = vunpack.c.h.b16 %v332
  %v3252 = vunpack.c.l.b16 %v333
  %v3253 = vunpack.c.h.b16 %v333
  %v3254 = vunpack.c.l.b16 %v334
  %v3255 = vunpack.c.h.b16 %v334
  %v3256 = vunpack.c.l.b16 %v335
  %v3257 = vunpack.c.l.b16 %v336
  %v3258 = vunpack.c.h.b16 %v336
  %v3259 = vunpack.c.l.b16 %v337
  %v3260 = vunpack.c.h.b16 %v337
  %v3261 = vunpack.c.l.b16 %v338
  %v3262 = vunpack.c.h.b16 %v338
  %v3263 = vunpack.c.l.b16 %v339
  %v3264 = vunpack.c.l.b16 %v340
  %v3265 = vunpack.c.h.b16 %v340
  %v3266 = vunpack.c.l.b16 %v341
  %v3267 = vunpack.c.h.b16 %v341
  %v3268 = vunpack.c.l.b16 %v342
  %v3269 = vunpack.c.h.b16 %v342
  %v3270 = vunpack.c.l.b16 %v343
  %v3271 = vunpack.c.l.b16 %v344
  %v3272 = vunpack.c.h.b16 %v344
  %v3273 = vunpack.c.l.b16 %v345
  %v3274 = vunpack.c.h.b16 %v345
  %v3275 = vunpack.c.l.b16 %v346
  %v3276 = vunpack.c.h.b16 %v346
  %v3277 = vunpack.c.l.b16 %v347
  %v3278 = vunpack.c.l.b16 %v348
  %v3279 = vunpack.c.h.b16 %v348
  %v3280 = vunpack.c.l.b16 %v349
  %v3281 = vunpack.c.h.b16 %v349
  %v3282 = vunpack.c.l.b16 %v350
  %v3283 = vunpack.c.h.b16 %v350
  %v3284 = vunpack.c.l.b16 %v351
  %v3285 = vunpack.c.l.b16 %v352
  %v3286 = vunpack.c.h.b16 %v352
  %v3287 = vunpack.c.l.b16 %v353
  %v3288 = vunpack.c.h.b16 %v353
  %v3289 = vunpack.c.l.b16 %v354
  %v3290 = vunpack.c.h.b16 %v354
  %v3291 = vunpack.c.l.b16 %v355
  %v3292 = vunpack.c.l.b16 %v356
  %v3293 = vunpack.c.h.b16 %v356
  %v3294 = vunpack.c.l.b16 %v357
  %v3295 = vunpack.c.h.b16 %v357
  %v3296 = vunpack.c.l.b16 %v358
  %v3297 = vunpack.c.h.b16 %v358
  %v3298 = vunpack.c.l.b16 %v359
  %v3299 = vunpack.c.l.b16 %v360
  %v3300 = vunpack.c.h.b16 %v360
  %v3301 = vunpack.c.l.b16 %v361
  %v3302 = vunpack.c.h.b16 %v361
  %v3303 = vunpack.c.l.b16 %v362
  %v3304 = vunpack.c.h.b16 %v362
  %v3305 = vunpack.c.l.b16 %v363
  %v3306 = vunpack.c.l.b16 %v364
  %v3307 = vunpack.c.h.b16 %v364
  %v3308 = vunpack.c.l.b16 %v365
  %v3309 = vunpack.c.h.b16 %v365
  %v3310 = vunpack.c.l.b16 %v366
  %v3311 = vunpack.c.h.b16 %v366
  %v3312 = vunpack.c.l.b16 %v367
  %v3313 = vunpack.c.l.b16 %v368
  %v3314 = vunpack.c.h.b16 %v368
  %v3315 = vunpack.c.l.b16 %v369
  %v3316 = vunpack.c.h.b16 %v369
  %v3317 = vunpack.c.l.b16 %v370
  %v3318 = vunpack.c.h.b16 %v370
  %v3319 = vunpack.c.l.b16 %v371
  %v3320 = vunpack.c.l.b16 %v372
  %v3321 = vunpack.c.h.b16 %v372
  %v3322 = vunpack.c.l.b16 %v373
  %v3323 = vunpack.c.h.b16 %v373
  %v3324 = vunpack.c.l.b16 %v374
  %v3325 = vunpack.c.h.b16 %v374
  %v3326 = vunpack.c.l.b16 %v375
  %v3327 = vunpack.c.l.b16 %v376
  %v3328 = vunpack.c.h.b16 %v376
  %v3329 = vunpack.c.l.b16 %v377
  %v3330 = vunpack.c.h.b16 %v377
  %v3331 = vunpack.c.l.b16 %v378
  %v3332 = vunpack.c.h.b16 %v378
  %v3333 = vunpack.c.l.b16 %v379
  %v3334 = vunpack.c.l.b16 %v380
  %v3335 = vunpack.c.h.b16 %v380
  %v3336 = vunpack.c.l.b16 %v381
  %v3337 = vunpack.c.h.b16 %v381
  %v3338 = vunpack.c.l.b16 %v382
  %v3339 = vunpack.c.h.b16 %v382
  %v3340 = vunpack.c.l.b16 %v383
  %v3341 = vunpack.c.l.b16 %v384
  %v3342 = vunpack.c.h.b16 %v384
  %v3343 = vunpack.c.l.b16 %v385
  %v3344 = vunpack.c.h.b16 %v385
  %v3345 = vunpack.c.l.b16 %v386
  %v3346 = vunpack.c.h.b16 %v386
  %v3347 = vunpack.c.l.b16 %v387
  %v3348 = vunpack.c.l.b16 %v388
  %v3349 = vunpack.c.h.b16 %v388
  %v3350 = vunpack.c.l.b16 %v389
  %v3351 = vunpack.c.h.b16 %v389
  %v3352 = vunpack.c.l.b16 %v390
  %v3353 = vunpack.c.h.b16 %v390
  %v3354 = vunpack.c.l.b16 %v391
  %v3355 = vunpack.c.l.b16 %v392
  %v3356 = vunpack.c.h.b16 %v392
  %v3357 = vunpack.c.l.b16 %v393
  %v3358 = vunpack.c.h.b16 %v393
  %v3359 = vunpack.c.l.b16 %v394
  %v3360 = vunpack.c.h.b16 %v394
  %v3361 = vunpack.c.l.b16 %v395
  %v3362 = vunpack.c.l.b16 %v396
  %v3363 = vunpack.c.h.b16 %v396
  %v3364 = vunpack.c.l.b16 %v397
  %v3365 = vunpack.c.h.b16 %v397
  %v3366 = vunpack.c.l.b16 %v398
  %v3367 = vunpack.c.h.b16 %v398
  %v3368 = vunpack.c.l.b16 %v399
  %v3369 = vunpack.c.l.b16 %v400
  %v3370 = vunpack.c.h.b16 %v400
  %v3371 = vunpack.c.l.b16 %v401
  %v3372 = vunpack.c.h.b16 %v401
  %v3373 = vunpack.c.l.b16 %v402
  %v3374 = vunpack.c.h.b16 %v402
  %v3375 = vunpack.c.l.b16 %v403
  %v3376 = vunpack.c.l.b16 %v404
  %v3377 = vunpack.c.h.b16 %v404
  %v3378 = vunpack.c.l.b16 %v405
  %v3379 = vunpack.c.h.b16 %v405
  %v3380 = vunpack.c.l.b16 %v406
  %v3381 = vunpack.c.h.b16 %v406
  %v3382 = vunpack.c.l.b16 %v407
  %v3383 = vunpack.c.l.b16 %v408
  %v3384 = vunpack.c.h.b16 %v408
  %v3385 = vunpack.c.l.b16 %v409
  %v3386 = vunpack.c.h.b16 %v409
  %v3387 = vunpack.c.l.b16 %v410
  %v3388 = vunpack.c.h.b16 %v410
  %v3389 = vunpack.c.l.b16 %v411
  %v3390 = vunpack.c.l.b16 %v412
  %v3391 = vunpack.c.h.b16 %v412
  %v3392 = vunpack.c.l.b16 %v413
  %v3393 = vunpack.c.h.b16 %v413
  %v3394 = vunpack.c.l.b16 %v414
  %v3395 = vunpack.c.h.b16 %v414
  %v3396 = vunpack.c.l.b16 %v415
  %v3397 = vunpack.c.l.b16 %v416
  %v3398 = vunpack.c.h.b16 %v416
  %v3399 = vunpack.c.l.b16 %v417
  %v3400 = vunpack.c.h.b16 %v417
  %v3401 = vunpack.c.l.b16 %v418
  %v3402 = vunpack.c.h.b16 %v418
  %v3403 = vunpack.c.l.b16 %v419
  %v3404 = vunpack.c.l.b16 %v420
  %v3405 = vunpack.c.h.b16 %v420
  %v3406 = vunpack.c.l.b16 %v421
  %v3407 = vunpack.c.h.b16 %v421
  %v3408 = vunpack.c.l.b16 %v422
  %v3409 = vunpack.c.h.b16 %v422
  %v3410 = vunpack.c.l.b16 %v423
  %v3411 = vunpack.c.l.b16 %v424
  %v3412 = vunpack.c.h.b16 %v424
  %v3413 = vunpack.c.l.b16 %v425
  %v3414 = vunpack.c.h.b16 %v425
  %v3415 = vunpack.c.l.b16 %v426
  %v3416 = vunpack.c.h.b16 %v426
  %v3417 = vunpack.c.l.b16 %v427
  %v3418 = vunpack.c.l.b16 %v428
  %v3419 = vunpack.c.h.b16 %v428
  %v3420 = vunpack.c.l.b16 %v429
  %v3421 = vunpack.c.h.b16 %v429
  %v3422 = vunpack.c.l.b16 %v430
  %v3423 = vunpack.c.h.b16 %v430
  %v3424 = vunpack.c.l.b16 %v431
  %v3425 = vunpack.c.l.b16 %v432
  %v3426 = vunpack.c.h.b16 %v432
  %v3427 = vunpack.c.l.b16 %v433
  %v3428 = vunpack.c.h.b16 %v433
  %v3429 = vunpack.c.l.b16 %v434
  %v3430 = vunpack.c.h.b16 %v434
  %v3431 = vunpack.c.l.b16 %v435
  %v3432 = vunpack.c.l.b16 %v436
  %v3433 = vunpack.c.h.b16 %v436
  %v3434 = vunpack.c.l.b16 %v437
  %v3435 = vunpack.c.h.b16 %v437
  %v3436 = vunpack.c.l.b16 %v438
  %v3437 = vunpack.c.h.b16 %v438
  %v3438 = vunpack.c.l.b16 %v439
  %v3439 = vunpack.c.l.b16 %v440
  %v3440 = vunpack.c.h.b16 %v440
  %v3441 = vunpack.c.l.b16 %v441
  %v3442 = vunpack.c.h.b16 %v441
  %v3443 = vunpack.c.l.b16 %v442
  %v3444 = vunpack.c.h.b16 %v442
  %v3445 = vunpack.c.l.b16 %v443
  %v3446 = vunpack.c.l.b16 %v444
  %v3447 = vunpack.c.h.b16 %v444
  %v3448 = vunpack.c.l.b16 %v445
  %v3449 = vunpack.c.h.b16 %v445
  %v3450 = vunpack.c.l.b16 %v446
  %v3451 = vunpack.c.h.b16 %v446
  %v3452 = vunpack.c.l.b16 %v447
  %v3453 = vunpack.c.l.b16 %v448
  %v3454 = vunpack.c.h.b16 %v448
  %v3455 = vunpack.c.l.b16 %v449
  %v3456 = vunpack.c.h.b16 %v449
  %v3457 = vunpack.c.l.b16 %v450
  %v3458 = vunpack.c.h.b16 %v450
  %v3459 = vunpack.c.l.b16 %v451
  %v3460 = vunpack.c.l.b16 %v452
  %v3461 = vunpack.c.h.b16 %v452
  %v3462 = vunpack.c.l.b16 %v453
  %v3463 = vunpack.c.h.b16 %v453
  %v3464 = vunpack.c.l.b16 %v454
  %v3465 = vunpack.c.h.b16 %v454
  %v3466 = vunpack.c.l.b16 %v455
  %v3467 = vunpack.c.l.b16 %v456
  %v3468 = vunpack.c.h.b16 %v456
  %v3469 = vunpack.c.l.b16 %v457
  %v3470 = vunpack.c.h.b16 %v457
  %v3471 = vunpack.c.l.b16 %v458
  %v3472 = vunpack.c.h.b16 %v458
  %v3473 = vunpack.c.l.b16 %v459
  %v3474 = vunpack.c.l.b16 %v460
  %v3475 = vunpack.c.h.b16 %v460
  %v3476 = vunpack.c.l.b16 %v461
  %v3477 = vunpack.c.h.b16 %v461
  %v3478 = vunpack.c.l.b16 %v462
  %v3479 = vunpack.c.h.b16 %v462
  %v3480 = vunpack.c.l.b16 %v463
  %v3481 = vunpack.c.l.b16 %v464
  %v3482 = vunpack.c.h.b16 %v464
  %v3483 = vunpack.c.l.b16 %v465
  %v3484 = vunpack.c.h.b16 %v465
  %v3485 = vunpack.c.l.b16 %v466
  %v3486 = vunpack.c.h.b16 %v466
  %v3487 = vunpack.c.l.b16 %v467
  %v3488 = vunpack.c.l.b16 %v468
  %v3489 = vunpack.c.h.b16 %v468
  %v3490 = vunpack.c.l.b16 %v469
  %v3491 = vunpack.c.h.b16 %v469
  %v3492 = vunpack.c.l.b16 %v470
  %v3493 = vunpack.c.h.b16 %v470
  %v3494 = vunpack.c.l.b16 %v471
  %v3495 = vunpack.c.l.b16 %v472
  %v3496 = vunpack.c.h.b16 %v472
  %v3497 = vunpack.c.l.b16 %v473
  %v3498 = vunpack.c.h.b16 %v473
  %v3499 = vunpack.c.l.b16 %v474
  %v3500 = vunpack.c.h.b16 %v474
  %v3501 = vunpack.c.l.b16 %v475
  %v3502 = vunpack.c.l.b16 %v476
  %v3503 = vunpack.c.h.b16 %v476
  %v3504 = vunpack.c.l.b16 %v477
  %v3505 = vunpack.c.h.b16 %v477
  %v3506 = vunpack.c.l.b16 %v478
  %v3507 = vunpack.c.h.b16 %v478
  %v3508 = vunpack.c.l.b16 %v479
  %v3509 = vunpack.c.l.b16 %v480
  %v3510 = vunpack.c.h.b16 %v480
  %v3511 = vunpack.c.l.b16 %v481
  %v3512 = vunpack.c.h.b16 %v481
  %v3513 = vunpack.c.l.b16 %v482
  %v3514 = vunpack.c.h.b16 %v482
  %v3515 = vunpack.c.l.b16 %v483
  %v3516 = vunpack.c.l.b16 %v484
  %v3517 = vunpack.c.h.b16 %v484
  %v3518 = vunpack.c.l.b16 %v485
  %v3519 = vunpack.c.h.b16 %v485
  %v3520 = vunpack.c.l.b16 %v486
  %v3521 = vunpack.c.h.b16 %v486
  %v3522 = vunpack.c.l.b16 %v487
  %v3523 = vunpack.c.l.b16 %v488
  %v3524 = vunpack.c.h.b16 %v488
  %v3525 = vunpack.c.l.b16 %v489
  %v3526 = vunpack.c.h.b16 %v489
  %v3527 = vunpack.c.l.b16 %v490
  %v3528 = vunpack.c.h.b16 %v490
  %v3529 = vunpack.c.l.b16 %v491
  %v3530 = vunpack.c.l.b16 %v492
  %v3531 = vunpack.c.h.b16 %v492
  %v3532 = vunpack.c.l.b16 %v493
  %v3533 = vunpack.c.h.b16 %v493
  %v3534 = vunpack.c.l.b16 %v494
  %v3535 = vunpack.c.h.b16 %v494
  %v3536 = vunpack.c.l.b16 %v495
  %v3537 = vunpack.c.l.b16 %v496
  %v3538 = vunpack.c.h.b16 %v496
  %v3539 = vunpack.c.l.b16 %v497
  %v3540 = vunpack.c.h.b16 %v497
  %v3541 = vunpack.c.l.b16 %v498
  %v3542 = vunpack.c.h.b16 %v498
  %v3543 = vunpack.c.l.b16 %v499
  %v3544 = vunpack.c.l.b16 %v500
  %v3545 = vunpack.c.h.b16 %v500
  %v3546 = vunpack.c.l.b16 %v501
  %v3547 = vunpack.c.h.b16 %v501
  %v3548 = vunpack.c.l.b16 %v502
  %v3549 = vunpack.c.h.b16 %v502
  %v3550 = vunpack.c.l.b16 %v503
  %v3551 = vunpack.c.l.b16 %v504
  %v3552 = vunpack.c.h.b16 %v504
  %v3553 = vunpack.c.l.b16 %v505
  %v3554 = vunpack.c.h.b16 %v505
  %v3555 = vunpack.c.l.b16 %v506
  %v3556 = vunpack.c.h.b16 %v506
  %v3557 = vunpack.c.l.b16 %v507
  %v3558 = vunpack.c.l.b16 %v508
  %v3559 = vunpack.c.h.b16 %v508
  %v3560 = vunpack.c.l.b16 %v509
  %v3561 = vunpack.c.h.b16 %v509
  %v3562 = vunpack.c.l.b16 %v510
  %v3563 = vunpack.c.h.b16 %v510
  %v3564 = vunpack.c.l.b16 %v511
  %v3565 = vunpack.c.l.b16 %v512
  %v3566 = vunpack.c.h.b16 %v512
  %v3567 = vunpack.c.l.b16 %v513
  %v3568 = vunpack.c.h.b16 %v513
  %v3569 = vunpack.c.l.b16 %v514
  %v3570 = vunpack.c.h.b16 %v514
  %v3571 = vunpack.c.l.b16 %v515
  %v3572 = vunpack.c.l.b16 %v516
  %v3573 = vunpack.c.h.b16 %v516
  %v3574 = vunpack.c.l.b16 %v517
  %v3575 = vunpack.c.h.b16 %v517
  %v3576 = vunpack.c.l.b16 %v518
  %v3577 = vunpack.c.h.b16 %v518
  %v3578 = vunpack.c.l.b16 %v519
  %v3579 = vunpack.c.l.b16 %v520
  %v3580 = vunpack.c.h.b16 %v520
  %v3581 = vunpack.c.l.b16 %v521
  %v3582 = vunpack.c.h.b16 %v521
  %v3583 = vunpack.c.l.b16 %v522
  %v3584 = vunpack.c.h.b16 %v522
  %v3585 = vunpack.c.l.b16 %v523
  %v3586 = vunpack.c.l.b16 %v524
  %v3587 = vunpack.c.h.b16 %v524
  %v3588 = vunpack.c.l.b16 %v525
  %v3589 = vunpack.c.h.b16 %v525
  %v3590 = vunpack.c.l.b16 %v526
  %v3591 = vunpack.c.h.b16 %v526
  %v3592 = vunpack.c.l.b16 %v527
  %v3593 = vunpack.c.l.b16 %v528
  %v3594 = vunpack.c.h.b16 %v528
  %v3595 = vunpack.c.l.b16 %v529
  %v3596 = vunpack.c.h.b16 %v529
  %v3597 = vunpack.c.l.b16 %v530
  %v3598 = vunpack.c.h.b16 %v530
  %v3599 = vunpack.c.l.b16 %v531
  %v3600 = vunpack.c.l.b16 %v532
  %v3601 = vunpack.c.h.b16 %v532
  %v3602 = vunpack.c.l.b16 %v533
  %v3603 = vunpack.c.h.b16 %v533
  %v3604 = vunpack.c.l.b16 %v534
  %v3605 = vunpack.c.h.b16 %v534
  %v3606 = vunpack.c.l.b16 %v535
  %v3607 = vunpack.c.l.b16 %v536
  %v3608 = vunpack.c.h.b16 %v536
  %v3609 = vunpack.c.l.b16 %v537
  %v3610 = vunpack.c.h.b16 %v537
  %v3611 = vunpack.c.l.b16 %v538
  %v3612 = vunpack.c.h.b16 %v538
  %v3613 = vunpack.c.l.b16 %v539
  %v3614 = vunpack.c.l.b16 %v540
  %v3615 = vunpack.c.h.b16 %v540
  %v3616 = vunpack.c.l.b16 %v541
  %v3617 = vunpack.c.h.b16 %v541
  %v3618 = vunpack.c.l.b16 %v542
  %v3619 = vunpack.c.h.b16 %v542
  %v3620 = vunpack.c.l.b16 %v543
  %v3621 = vunpack.c.l.b16 %v544
  %v3622 = vunpack.c.h.b16 %v544
  %v3623 = vunpack.c.l.b16 %v545
  %v3624 = vunpack.c.h.b16 %v545
  %v3625 = vunpack.c.l.b16 %v546
  %v3626 = vunpack.c.h.b16 %v546
  %v3627 = vunpack.c.l.b16 %v547
  %v3628 = vunpack.c.l.b16 %v548
  %v3629 = vunpack.c.h.b16 %v548
  %v3630 = vunpack.c.l.b16 %v549
  %v3631 = vunpack.c.h.b16 %v549
  %v3632 = vunpack.c.l.b16 %v550
  %v3633 = vunpack.c.h.b16 %v550
  %v3634 = vunpack.c.l.b16 %v551
  %v3635 = vunpack.c.l.b16 %v552
  %v3636 = vunpack.c.h.b16 %v552
  %v3637 = vunpack.c.l.b16 %v553
  %v3638 = vunpack.c.h.b16 %v553
  %v3639 = vunpack.c.l.b16 %v554
  %v3640 = vunpack.c.h.b16 %v554
  %v3641 = vunpack.c.l.b16 %v555
  %v3642 = vunpack.c.l.b16 %v556
  %v3643 = vunpack.c.h.b16 %v556
  %v3644 = vunpack.c.l.b16 %v557
  %v3645 = vunpack.c.h.b16 %v557
  %v3646 = vunpack.c.l.b16 %v558
  %v3647 = vunpack.c.h.b16 %v558
  %v3648 = vunpack.c.l.b16 %v559
  %v3649 = vunpack.c.l.b16 %v560
  %v3650 = vunpack.c.h.b16 %v560
  %v3651 = vunpack.c.l.b16 %v561
  %v3652 = vunpack.c.h.b16 %v561
  %v3653 = vunpack.c.l.b16 %v562
  %v3654 = vunpack.c.h.b16 %v562
  %v3655 = vunpack.c.l.b16 %v563
  %v3656 = vunpack.c.l.b16 %v564
  %v3657 = vunpack.c.h.b16 %v564
  %v3658 = vunpack.c.l.b16 %v565
  %v3659 = vunpack.c.h.b16 %v565
  %v3660 = vunpack.c.l.b16 %v566
  %v3661 = vunpack.c.h.b16 %v566
  %v3662 = vunpack.c.l.b16 %v567
  %v3663 = vunpack.c.l.b16 %v568
  %v3664 = vunpack.c.h.b16 %v568
  %v3665 = vunpack.c.l.b16 %v569
  %v3666 = vunpack.c.h.b16 %v569
  %v3667 = vunpack.c.l.b16 %v570
  %v3668 = vunpack.c.h.b16 %v570
  %v3669 = vunpack.c.l.b16 %v571
  %v3670 = vunpack.c.l.b16 %v572
  %v3671 = vunpack.c.h.b16 %v572
  %v3672 = vunpack.c.l.b16 %v573
  %v3673 = vunpack.c.h.b16 %v573
  %v3674 = vunpack.c.l.b16 %v574
  %v3675 = vunpack.c.h.b16 %v574
  %v3676 = vunpack.c.l.b16 %v575
  %v3677 = vunpack.c.l.b16 %v576
  %v3678 = vunpack.c.h.b16 %v576
  %v3679 = vunpack.c.l.b16 %v577
  %v3680 = vunpack.c.h.b16 %v577
  %v3681 = vunpack.c.l.b16 %v578
  %v3682 = vunpack.c.h.b16 %v578
  %v3683 = vunpack.c.l.b16 %v579
  %v3684 = vunpack.c.l.b16 %v580
  %v3685 = vunpack.c.h.b16 %v580
  %v3686 = vunpack.c.l.b16 %v581
  %v3687 = vunpack.c.h.b16 %v581
  %v3688 = vunpack.c.l.b16 %v582
  %v3689 = vunpack.c.h.b16 %v582
  %v3690 = vunpack.c.l.b16 %v583
  %v3691 = vunpack.c.l.b16 %v584
  %v3692 = vunpack.c.h.b16 %v584
  %v3693 = vunpack.c.l.b16 %v585
  %v3694 = vunpack.c.h.b16 %v585
  %v3695 = vunpack.c.l.b16 %v586
  %v3696 = vunpack.c.h.b16 %v586
  %v3697 = vunpack.c.l.b16 %v587
  %v3698 = vunpack.c.l.b16 %v588
  %v3699 = vunpack.c.h.b16 %v588
  %v3700 = vunpack.c.l.b16 %v589
  %v3701 = vunpack.c.h.b16 %v589
  %v3702 = vunpack.c.l.b16 %v590
  %v3703 = vunpack.c.h.b16 %v590
  %v3704 = vunpack.c.l.b16 %v591
  %v3705 = vunpack.c.l.b16 %v592
  %v3706 = vunpack.c.h.b16 %v592
  %v3707 = vunpack.c.l.b16 %v593
  %v3708 = vunpack.c.h.b16 %v593
  %v3709 = vunpack.c.l.b16 %v594
  %v3710 = vunpack.c.h.b16 %v594
  %v3711 = vunpack.c.l.b16 %v595
  %v3712 = vunpack.c.l.b16 %v596
  %v3713 = vunpack.c.h.b16 %v596
  %v3714 = vunpack.c.l.b16 %v597
  %v3715 = vunpack.c.h.b16 %v597
  %v3716 = vunpack.c.l.b16 %v598
  %v3717 = vunpack.c.h.b16 %v598
  %v3718 = vunpack.c.l.b16 %v599
  %v3719 = vunpack.c.l.b16 %v600
  %v3720 = vunpack.c.h.b16 %v600
  %v3721 = vunpack.c.l.b16 %v601
  %v3722 = vunpack.c.h.b16 %v601
  %v3723 = vunpack.c.l.b16 %v602
  %v3724 = vunpack.c.h.b16 %v602
  %v3725 = vunpack.c.l.b16 %v603
  %v3726 = vunpack.c.l.b16 %v604
  %v3727 = vunpack.c.h.b16 %v604
  %v3728 = vunpack.c.l.b16 %v605
  %v3729 = vunpack.c.h.b16 %v605
  %v3730 = vunpack.c.l.b16 %v606
  %v3731 = vunpack.c.h.b16 %v606
  %v3732 = vunpack.c.l.b16 %v607
  %v3733 = vunpack.c.l.b16 %v608
  %v3734 = vunpack.c.h.b16 %v608
  %v3735 = vunpack.c.l.b16 %v609
  %v3736 = vunpack.c.h.b16 %v609
  %v3737 = vunpack.c.l.b16 %v610
  %v3738 = vunpack.c.h.b16 %v610
  %v3739 = vunpack.c.l.b16 %v611
  %v3740 = vunpack.c.l.b16 %v612
  %v3741 = vunpack.c.h.b16 %v612
  %v3742 = vunpack.c.l.b16 %v613
  %v3743 = vunpack.c.h.b16 %v613
  %v3744 = vunpack.c.l.b16 %v614
  %v3745 = vunpack.c.h.b16 %v614
  %v3746 = vunpack.c.l.b16 %v615
  %v3747 = vunpack.c.l.b16 %v616
  %v3748 = vunpack.c.h.b16 %v616
  %v3749 = vunpack.c.l.b16 %v617
  %v3750 = vunpack.c.h.b16 %v617
  %v3751 = vunpack.c.l.b16 %v618
  %v3752 = vunpack.c.h.b16 %v618
  %v3753 = vunpack.c.l.b16 %v619
  %v3754 = vunpack.c.l.b16 %v620
  %v3755 = vunpack.c.h.b16 %v620
  %v3756 = vunpack.c.l.b16 %v621
  %v3757 = vunpack.c.h.b16 %v621
  %v3758 = vunpack.c.l.b16 %v622
  %v3759 = vunpack.c.h.b16 %v622
  %v3760 = vunpack.c.l.b16 %v623
  %v3761 = vunpack.c.l.b16 %v624
  %v3762 = vunpack.c.h.b16 %v624
  %v3763 = vunpack.c.l.b16 %v625
  %v3764 = vunpack.c.h.b16 %v625
  %v3765 = vunpack.c.l.b16 %v626
  %v3766 = vunpack.c.h.b16 %v626
  %v3767 = vunpack.c.l.b16 %v627
  %v3768 = vunpack.c.l.b16 %v628
  %v3769 = vunpack.c.h.b16 %v628
  %v3770 = vunpack.c.l.b16 %v629
  %v3771 = vunpack.c.h.b16 %v629
  %v3772 = vunpack.c.l.b16 %v630
  %v3773 = vunpack.c.h.b16 %v630
  %v3774 = vunpack.c.l.b16 %v631
  %v3775 = vunpack.c.l.b16 %v632
  %v3776 = vunpack.c.h.b16 %v632
  %v3777 = vunpack.c.l.b16 %v633
  %v3778 = vunpack.c.h.b16 %v633
  %v3779 = vunpack.c.l.b16 %v634
  %v3780 = vunpack.c.h.b16 %v634
  %v3781 = vunpack.c.l.b16 %v635
  %v3782 = vunpack.c.l.b16 %v636
  %v3783 = vunpack.c.h.b16 %v636
  %v3784 = vunpack.c.l.b16 %v637
  %v3785 = vunpack.c.h.b16 %v637
  %v3786 = vunpack.c.l.b16 %v638
  %v3787 = vunpack.c.h.b16 %v638
  %v3788 = vunpack.c.l.b16 %v639
  %v3789 = vunpack.c.l.b16 %v640
  %v3790 = vunpack.c.h.b16 %v640
  %v3791 = vunpack.c.l.b16 %v641
  %v3792 = vunpack.c.h.b16 %v641
  %v3793 = vunpack.c.l.b16 %v642
  %v3794 = vunpack.c.h.b16 %v642
  %v3795 = vunpack.c.l.b16 %v643
  %v3796 = vunpack.c.l.b16 %v644
  %v3797 = vunpack.c.h.b16 %v644
  %v3798 = vunpack.c.l.b16 %v645
  %v3799 = vunpack.c.h.b16 %v645
  %v3800 = vunpack.c.l.b16 %v646
  %v3801 = vunpack.c.h.b16 %v646
  %v3802 = vunpack.c.l.b16 %v647
  %v3803 = vunpack.c.l.b16 %v648
  %v3804 = vunpack.c.h.b16 %v648
  %v3805 = vunpack.c.l.b16 %v649
  %v3806 = vunpack.c.h.b16 %v649
  %v3807 = vunpack.c.l.b16 %v650
  %v3808 = vunpack.c.h.b16 %v650
  %v3809 = vunpack.c.l.b16 %v651
  %v3810 = vunpack.c.l.b16 %v652
  %v3811 = vunpack.c.h.b16 %v652
  %v3812 = vunpack.c.l.b16 %v653
  %v3813 = vunpack.c.h.b16 %v653
  %v3814 = vunpack.c.l.b16 %v654
  %v3815 = vunpack.c.h.b16 %v654
  %v3816 = vunpack.c.l.b16 %v655
  %v3817 = vunpack.c.l.b16 %v656
  %v3818 = vunpack.c.h.b16 %v656
  %v3819 = vunpack.c.l.b16 %v657
  %v3820 = vunpack.c.h.b16 %v657
  %v3821 = vunpack.c.l.b16 %v658
  %v3822 = vunpack.c.h.b16 %v658
  %v3823 = vunpack.c.l.b16 %v659
  %v3824 = vunpack.c.l.b16 %v660
  %v3825 = vunpack.c.h.b16 %v660
  %v3826 = vunpack.c.l.b16 %v661
  %v3827 = vunpack.c.h.b16 %v661
  %v3828 = vunpack.c.l.b16 %v662
  %v3829 = vunpack.c.h.b16 %v662
  %v3830 = vunpack.c.l.b16 %v663
  %v3831 = vunpack.c.l.b16 %v664
  %v3832 = vunpack.c.h.b16 %v664
  %v3833 = vunpack.c.l.b16 %v665
  %v3834 = vunpack.c.h.b16 %v665
  %v3835 = vunpack.c.l.b16 %v666
  %v3836 = vunpack.c.h.b16 %v666
  %v3837 = vunpack.c.l.b16 %v667
  %v3838 = vunpack.c.l.b16 %v668
  %v3839 = vunpack.c.h.b16 %v668
  %v3840 = vunpack.c.l.b16 %v669
  %v3841 = vunpack.c.h.b16 %v669
  %v3842 = vunpack.c.l.b16 %v670
  %v3843 = vunpack.c.h.b16 %v670
  %v3844 = vunpack.c.l.b16 %v671
  %v3845 = vunpack.c.l.b16 %v672
  %v3846 = vunpack.c.h.b16 %v672
  %v3847 = vunpack.c.l.b16 %v673
  %v3848 = vunpack.c.h.b16 %v673
  %v3849 = vunpack.c.l.b16 %v674
  %v3850 = vunpack.c.h.b16 %v674
  %v3851 = vunpack.c.l.b16 %v675
  %v3852 = vunpack.c.l.b16 %v676
  %v3853 = vunpack.c.h.b16 %v676
  %v3854 = vunpack.c.l.b16 %v677
  %v3855 = vunpack.c.h.b16 %v677
  %v3856 = vunpack.c.l.b16 %v678
  %v3857 = vunpack.c.h.b16 %v678
  %v3858 = vunpack.c.l.b16 %v679
  %v3859 = vunpack.c.l.b16 %v680
  %v3860 = vunpack.c.h.b16 %v680
  %v3861 = vunpack.c.l.b16 %v681
  %v3862 = vunpack.c.h.b16 %v681
  %v3863 = vunpack.c.l.b16 %v682
  %v3864 = vunpack.c.h.b16 %v682
  %v3865 = vunpack.c.l.b16 %v683
  %v3866 = vunpack.c.l.b16 %v684
  %v3867 = vunpack.c.h.b16 %v684
  %v3868 = vunpack.c.l.b16 %v685
  %v3869 = vunpack.c.h.b16 %v685
  %v3870 = vunpack.c.l.b16 %v686
  %v3871 = vunpack.c.h.b16 %v686
  %v3872 = vunpack.c.l.b16 %v687
  %v3873 = vunpack.c.l.b16 %v688
  %v3874 = vunpack.c.h.b16 %v688
  %v3875 = vunpack.c.l.b16 %v689
  %v3876 = vunpack.c.h.b16 %v689
  %v3877 = vunpack.c.l.b16 %v690
  %v3878 = vunpack.c.h.b16 %v690
  %v3879 = vunpack.c.l.b16 %v691
  %v3880 = vunpack.c.l.b16 %v692
  %v3881 = vunpack.c.h.b16 %v692
  %v3882 = vunpack.c.l.b16 %v693
  %v3883 = vunpack.c.h.b16 %v693
  %v3884 = vunpack.c.l.b16 %v694
  %v3885 = vunpack.c.h.b16 %v694
  %v3886 = vunpack.c.l.b16 %v695
  %v3887 = vunpack.c.l.b16 %v696
  %v3888 = vunpack.c.h.b16 %v696
  %v3889 = vunpack.c.l.b16 %v697
  %v3890 = vunpack.c.h.b16 %v697
  %v3891 = vunpack.c.l.b16 %v698
  %v3892 = vunpack.c.h.b16 %v698
  %v3893 = vunpack.c.l.b16 %v699
  %v3894 = vunpack.c.l.b16 %v700
  %v3895 = vunpack.c.h.b16 %v700
  %v3896 = vunpack.c.l.b16 %v701
  %v3897 = vunpack.c.h.b16 %v701
  %v3898 = vunpack.c.l.b16 %v702
  %v3899 = vunpack.c.h.b16 %v702
  %v3900 = vunpack.c.l.b16 %v703
  %v3901 = vunpack.c.l.b16 %v704
  %v3902 = vunpack.c.h.b16 %v704
  %v3903 = vunpack.c.l.b16 %v705
  %v3904 = vunpack.c.h.b16 %v705
  %v3905 = vunpack.c.l.b16 %v706
  %v3906 = vunpack.c.h.b16 %v706
  %v3907 = vunpack.c.l.b16 %v707
  %v3908 = vunpack.c.l.b16 %v708
  %v3909 = vunpack.c.h.b16 %v708
  %v3910 = vunpack.c.l.b16 %v709
  %v3911 = vunpack.c.h.b16 %v709
  %v3912 = vunpack.c.l.b16 %v710
  %v3913 = vunpack.c.h.b16 %v710
  %v3914 = vunpack.c.l.b16 %v711
  %v3915 = vunpack.c.l.b16 %v712
  %v3916 = vunpack.c.h.b16 %v712
  %v3917 = vunpack.c.l.b16 %v713
  %v3918 = vunpack.c.h.b16 %v713
  %v3919 = vunpack.c.l.b16 %v714
  %v3920 = vunpack.c.h.b16 %v714
  %v3921 = vunpack.c.l.b16 %v715
  %v3922 = vunpack.c.l.b16 %v716
  %v3923 = vunpack.c.h.b16 %v716
  %v3924 = vunpack.c.l.b16 %v717
  %v3925 = vunpack.c.h.b16 %v717
  %v3926 = vunpack.c.l.b16 %v718
  %v3927 = vunpack.c.h.b16 %v718
  %v3928 = vunpack.c.l.b16 %v719
  %v3929 = vunpack.c.l.b16 %v720
  %v3930 = vunpack.c.h.b16 %v720
  %v3931 = vunpack.c.l.b16 %v721
  %v3932 = vunpack.c.h.b16 %v721
  %v3933 = vunpack.c.l.b16 %v722
  %v3934 = vunpack.c.h.b16 %v722
  %v3935 = vunpack.c.l.b16 %v723
  %v3936 = vunpack.c.l.b16 %v724
  %v3937 = vunpack.c.h.b16 %v724
  %v3938 = vunpack.c.l.b16 %v725
  %v3939 = vunpack.c.h.b16 %v725
  %v3940 = vunpack.c.l.b16 %v726
  %v3941 = vunpack.c.h.b16 %v726
  %v3942 = vunpack.c.l.b16 %v727
  %v3943 = vunpack.c.l.b16 %v728
  %v3944 = vunpack.c.h.b16 %v728
  %v3945 = vunpack.c.l.b16 %v729
  %v3946 = vunpack.c.h.b16 %v729
  %v3947 = vunpack.c.l.b16 %v730
  %v3948 = vunpack.c.h.b16 %v730
  %v3949 = vunpack.c.l.b16 %v731
  %v3950 = vunpack.c.l.b16 %v732
  %v3951 = vunpack.c.h.b16 %v732
  %v3952 = vunpack.c.l.b16 %v733
  %v3953 = vunpack.c.h.b16 %v733
  %v3954 = vunpack.c.l.b16 %v734
  %v3955 = vunpack.c.h.b16 %v734
  %v3956 = vunpack.c.l.b16 %v735
  %v3957 = vunpack.c.l.b16 %v736
  %v3958 = vunpack.c.h.b16 %v736
  %v3959 = vunpack.c.l.b16 %v737
  %v3960 = vunpack.c.h.b16 %v737
  %v3961 = vunpack.c.l.b16 %v738
  %v3962 = vunpack.c.h.b16 %v738
  %v3963 = vunpack.c.l.b16 %v739
  %v3964 = vunpack.c.l.b16 %v740
  %v3965 = vunpack.c.h.b16 %v740
  %v3966 = vunpack.c.l.b16 %v741
  %v3967 = vunpack.c.h.b16 %v741
  %v3968 = vunpack.c.l.b16 %v742
  %v3969 = vunpack.c.h.b16 %v742
  %v3970 = vunpack.c.l.b16 %v743
  %v3971 = vunpack.c.l.b16 %v744
  %v3972 = vunpack.c.h.b16 %v744
  %v3973 = vunpack.c.l.b16 %v745
  %v3974 = vunpack.c.h.b16 %v745
  %v3975 = vunpack.c.l.b16 %v746
  %v3976 = vunpack.c.h.b16 %v746
  %v3977 = vunpack.c.l.b16 %v747
  %v3978 = vunpack.c.l.b16 %v748
  %v3979 = vunpack.c.h.b16 %v748
  %v3980 = vunpack.c.l.b16 %v749
  %v3981 = vunpack.c.h.b16 %v749
  %v3982 = vunpack.c.l.b16 %v750
  %v3983 = vunpack.c.h.b16 %v750
  %v3984 = vunpack.c.l.b16 %v751
  %v3985 = vunpack.c.l.b16 %v752
  %v3986 = vunpack.c.h.b16 %v752
  %v3987 = vunpack.c.l.b16 %v753
  %v3988 = vunpack.c.h.b16 %v753
  %v3989 = vunpack.c.l.b16 %v754
  %v3990 = vunpack.c.h.b16 %v754
  %v3991 = vunpack.c.l.b16 %v755
  %v3992 = vunpack.c.l.b16 %v756
  %v3993 = vunpack.c.h.b16 %v756
  %v3994 = vunpack.c.l.b16 %v757
  %v3995 = vunpack.c.h.b16 %v757
  %v3996 = vunpack.c.l.b16 %v758
  %v3997 = vunpack.c.h.b16 %v758
  %v3998 = vunpack.c.l.b16 %v759
  %v3999 = vunpack.c.l.b16 %v760
  %v4000 = vunpack.c.h.b16 %v760
  %v4001 = vunpack.c.l.b16 %v761
  %v4002 = vunpack.c.h.b16 %v761
  %v4003 = vunpack.c.l.b16 %v762
  %v4004 = vunpack.c.h.b16 %v762
  %v4005 = vunpack.c.l.b16 %v763
  %v4006 = vunpack.c.l.b16 %v764
  %v4007 = vunpack.c.h.b16 %v764
  %v4008 = vunpack.c.l.b16 %v765
  %v4009 = vunpack.c.h.b16 %v765
  %v4010 = vunpack.c.l.b16 %v766
  %v4011 = vunpack.c.h.b16 %v766
  %v4012 = vunpack.c.l.b16 %v767
  %v4013 = vunpack.c.l.b16 %v768
  %v4014 = vunpack.c.h.b16 %v768
  %v4015 = vunpack.c.l.b16 %v769
  %v4016 = vunpack.c.h.b16 %v769
  %v4017 = vunpack.c.l.b16 %v770
  %v4018 = vunpack.c.h.b16 %v770
  %v4019 = vunpack.c.l.b16 %v771
  %v4020 = vunpack.c.l.b16 %v772
  %v4021 = vunpack.c.h.b16 %v772
  %v4022 = vunpack.c.l.b16 %v773
  %v4023 = vunpack.c.h.b16 %v773
  %v4024 = vunpack.c.l.b16 %v774
  %v4025 = vunpack.c.h.b16 %v774
  %v4026 = vunpack.c.l.b16 %v775
  %v4027 = vunpack.c.l.b16 %v776
  %v4028 = vunpack.c.h.b16 %v776
  %v4029 = vunpack.c.l.b16 %v777
  %v4030 = vunpack.c.h.b16 %v777
  %v4031 = vunpack.c.l.b16 %v778
  %v4032 = vunpack.c.h.b16 %v778
  %v4033 = vunpack.c.l.b16 %v779
  %v4034 = vunpack.c.l.b16 %v780
  %v4035 = vunpack.c.h.b16 %v780
  %v4036 = vunpack.c.l.b16 %v781
  %v4037 = vunpack.c.h.b16 %v781
  %v4038 = vunpack.c.l.b16 %v782
  %v4039 = vunpack.c.h.b16 %v782
  %v4040 = vunpack.c.l.b16 %v783
  %v4041 = vunpack.c.l.b16 %v784
  %v4042 = vunpack.c.h.b16 %v784
  %v4043 = vunpack.c.l.b16 %v785
  %v4044 = vunpack.c.h.b16 %v785
  %v4045 = vunpack.c.l.b16 %v786
  %v4046 = vunpack.c.h.b16 %v786
  %v4047 = vunpack.c.l.b16 %v787
  %v4048 = vunpack.c.l.b16 %v788
  %v4049 = vunpack.c.h.b16 %v788
  %v4050 = vunpack.c.l.b16 %v789
  %v4051 = vunpack.c.h.b16 %v789
  %v4052 = vunpack.c.l.b16 %v790
  %v4053 = vunpack.c.h.b16 %v790
  %v4054 = vunpack.c.l.b16 %v791
  %v4055 = vunpack.c.l.b16 %v792
  %v4056 = vunpack.c.h.b16 %v792
  %v4057 = vunpack.c.l.b16 %v793
  %v4058 = vunpack.c.h.b16 %v793
  %v4059 = vunpack.c.l.b16 %v794
  %v4060 = vunpack.c.h.b16 %v794
  %v4061 = vunpack.c.l.b16 %v795
  %v4062 = vunpack.c.l.b16 %v796
  %v4063 = vunpack.c.h.b16 %v796
  %v4064 = vunpack.c.l.b16 %v797
  %v4065 = vunpack.c.h.b16 %v797
  %v4066 = vunpack.c.l.b16 %v798
  %v4067 = vunpack.c.h.b16 %v798
  %v4068 = vunpack.c.l.b16 %v799
  %v4069 = vunpack.c.l.b16 %v800
  %v4070 = vunpack.c.h.b16 %v800
  %v4071 = vunpack.c.l.b16 %v801
  %v4072 = vunpack.c.h.b16 %v801
  %v4073 = vunpack.c.l.b16 %v802
  %v4074 = vunpack.c.h.b16 %v802
  %v4075 = vunpack.c.l.b16 %v803
  %v4076 = vunpack.c.l.b16 %v804
  %v4077 = vunpack.c.h.b16 %v804
  %v4078 = vunpack.c.l.b16 %v805
  %v4079 = vunpack.c.h.b16 %v805
  %v4080 = vunpack.c.l.b16 %v806
  %v4081 = vunpack.c.h.b16 %v806
  %v4082 = vunpack.c.l.b16 %v807
  %v4083 = vunpack.c.l.b16 %v808
  %v4084 = vunpack.c.h.b16 %v808
  %v4085 = vunpack.c.l.b16 %v809
  %v4086 = vunpack.c.h.b16 %v809
  %v4087 = vunpack.c.l.b16 %v810
  %v4088 = vunpack.c.h.b16 %v810
  %v4089 = vunpack.c.l.b16 %v811
  %v4090 = vunpack.c.l.b16 %v812
  %v4091 = vunpack.c.h.b16 %v812
  %v4092 = vunpack.c.l.b16 %v813
  %v4093 = vunpack.c.h.b16 %v813
  %v4094 = vunpack.c.l.b16 %v814
  %v4095 = vunpack.c.h.b16 %v814
  %v4096 = vunpack.c.l.b16 %v815
  %v4097 = vunpack.c.l.b16 %v816
  %v4098 = vunpack.c.h.b16 %v816
  %v4099 = vunpack.c.l.b16 %v817
  %v4100 = vunpack.c.h.b16 %v817
  %v4101 = vunpack.c.l.b16 %v818
  %v4102 = vunpack.c.h.b16 %v818
  %v4103 = vunpack.c.l.b16 %v819
  %v4104 = vunpack.c.l.b16 %v820
  %v4105 = vunpack.c.h.b16 %v820
  %v4106 = vunpack.c.l.b16 %v821
  %v4107 = vunpack.c.h.b16 %v821
  %v4108 = vunpack.c.l.b16 %v822
  %v4109 = vunpack.c.h.b16 %v822
  %v4110 = vunpack.c.l.b16 %v823
  %v4111 = vunpack.c.l.b16 %v824
  %v4112 = vunpack.c.h.b16 %v824
  %v4113 = vunpack.c.l.b16 %v825
  %v4114 = vunpack.c.h.b16 %v825
  %v4115 = vunpack.c.l.b16 %v826
  %v4116 = vunpack.c.h.b16 %v826
  %v4117 = vunpack.c.l.b16 %v827
  %v4118 = vunpack.c.l.b16 %v828
  %v4119 = vunpack.c.h.b16 %v828
  %v4120 = vunpack.c.l.b16 %v829
  %v4121 = vunpack.c.h.b16 %v829
  %v4122 = vunpack.c.l.b16 %v830
  %v4123 = vunpack.c.h.b16 %v830
  %v4124 = vunpack.c.l.b16 %v831
  %v4125 = vunpack.c.l.b16 %v832
  %v4126 = vunpack.c.h.b16 %v832
  %v4127 = vunpack.c.l.b16 %v833
  %v4128 = vunpack.c.h.b16 %v833
  %v4129 = vunpack.c.l.b16 %v834
  %v4130 = vunpack.c.h.b16 %v834
  %v4131 = vunpack.c.l.b16 %v835
  %v4132 = vunpack.c.l.b16 %v836
  %v4133 = vunpack.c.h.b16 %v836
  %v4134 = vunpack.c.l.b16 %v837
  %v4135 = vunpack.c.h.b16 %v837
  %v4136 = vunpack.c.l.b16 %v838
  %v4137 = vunpack.c.h.b16 %v838
  %v4138 = vunpack.c.l.b16 %v839
  %v4139 = vunpack.c.l.b16 %v840
  %v4140 = vunpack.c.h.b16 %v840
  %v4141 = vunpack.c.l.b16 %v841
  %v4142 = vunpack.c.h.b16 %v841
  %v4143 = vunpack.c.l.b16 %v842
  %v4144 = vunpack.c.h.b16 %v842
  %v4145 = vunpack.c.l.b16 %v843
  %v4146 = vunpack.c.l.b16 %v844
  %v4147 = vunpack.c.h.b16 %v844
  %v4148 = vunpack.c.l.b16 %v845
  %v4149 = vunpack.c.h.b16 %v845
  %v4150 = vunpack.c.l.b16 %v846
  %v4151 = vunpack.c.h.b16 %v846
  %v4152 = vunpack.c.l.b16 %v847
  %v4153 = vunpack.c.l.b16 %v848
  %v4154 = vunpack.c.h.b16 %v848
  %v4155 = vunpack.c.l.b16 %v849
  %v4156 = vunpack.c.h.b16 %v849
  %v4157 = vunpack.c.l.b16 %v850
  %v4158 = vunpack.c.h.b16 %v850
  %v4159 = vunpack.c.l.b16 %v851
  %v4160 = vunpack.c.l.b16 %v852
  %v4161 = vunpack.c.h.b16 %v852
  %v4162 = vunpack.c.l.b16 %v853
  %v4163 = vunpack.c.h.b16 %v853
  %v4164 = vunpack.c.l.b16 %v854
  %v4165 = vunpack.c.h.b16 %v854
  %v4166 = vunpack.c.l.b16 %v855
  %v4167 = vunpack.c.l.b16 %v856
  %v4168 = vunpack.c.h.b16 %v856
  %v4169 = vunpack.c.l.b16 %v857
  %v4170 = vunpack.c.h.b16 %v857
  %v4171 = vunpack.c.l.b16 %v858
  %v4172 = vunpack.c.h.b16 %v858
  %v4173 = vunpack.c.l.b16 %v859
  %v4174 = vunpack.c.l.b16 %v860
  %v4175 = vunpack.c.h.b16 %v860
  %v4176 = vunpack.c.l.b16 %v861
  %v4177 = vunpack.c.h.b16 %v861
  %v4178 = vunpack.c.l.b16 %v862
  %v4179 = vunpack.c.h.b16 %v862
  %v4180 = vunpack.c.l.b16 %v863
  %v4181 = vunpack.c.l.b16 %v864
  %v4182 = vunpack.c.h.b16 %v864
  %v4183 = vunpack.c.l.b16 %v865
  %v4184 = vunpack.c.h.b16 %v865
  %v4185 = vunpack.c.l.b16 %v866
  %v4186 = vunpack.c.h.b16 %v866
  %v4187 = vunpack.c.l.b16 %v867
  %v4188 = vunpack.c.l.b16 %v868
  %v4189 = vunpack.c.h.b16 %v868
  %v4190 = vunpack.c.l.b16 %v869
  %v4191 = vunpack.c.h.b16 %v869
  %v4192 = vunpack.c.l.b16 %v870
  %v4193 = vunpack.c.h.b16 %v870
  %v4194 = vunpack.c.l.b16 %v871
  %v4195 = vunpack.c.l.b16 %v872
  %v4196 = vunpack.c.h.b16 %v872
  %v4197 = vunpack.c.l.b16 %v873
  %v4198 = vunpack.c.h.b16 %v873
  %v4199 = vunpack.c.l.b16 %v874
  %v4200 = vunpack.c.h.b16 %v874
  %v4201 = vunpack.c.l.b16 %v875
  %v4202 = vunpack.c.l.b16 %v876
  %v4203 = vunpack.c.h.b16 %v876
  %v4204 = vunpack.c.l.b16 %v877
  %v4205 = vunpack.c.h.b16 %v877
  %v4206 = vunpack.c.l.b16 %v878
  %v4207 = vunpack.c.h.b16 %v878
  %v4208 = vunpack.c.l.b16 %v879
  %v4209 = vunpack.c.l.b16 %v880
  %v4210 = vunpack.c.h.b16 %v880
  %v4211 = vunpack.c.l.b16 %v881
  %v4212 = vunpack.c.h.b16 %v881
  %v4213 = vunpack.c.l.b16 %v882
  %v4214 = vunpack.c.h.b16 %v882
  %v4215 = vunpack.c.l.b16 %v883
  %v4216 = vunpack.c.l.b16 %v884
  %v4217 = vunpack.c.h.b16 %v884
  %v4218 = vunpack.c.l.b16 %v885
  %v4219 = vunpack.c.h.b16 %v885
  %v4220 = vunpack.c.l.b16 %v886
  %v4221 = vunpack.c.h.b16 %v886
  %v4222 = vunpack.c.l.b16 %v887
  %v4223 = vunpack.c.l.b16 %v888
  %v4224 = vunpack.c.h.b16 %v888
  %v4225 = vunpack.c.l.b16 %v889
  %v4226 = vunpack.c.h.b16 %v889
  %v4227 = vunpack.c.l.b16 %v890
  %v4228 = vunpack.c.h.b16 %v890
  %v4229 = vunpack.c.l.b16 %v891
  %v4230 = vunpack.c.l.b16 %v892
  %v4231 = vunpack.c.h.b16 %v892
  %v4232 = vunpack.c.l.b16 %v893
  %v4233 = vunpack.c.h.b16 %v893
  %v4234 = vunpack.c.l.b16 %v894
  %v4235 = vunpack.c.h.b16 %v894
  %v4236 = vunpack.c.l.b16 %v895
  %v4237 = vunpack.c.l.b16 %v896
  %v4238 = vunpack.c.h.b16 %v896
  %v4239 = vunpack.c.l.b16 %v897
  %v4240 = vunpack.c.h.b16 %v897
  %v4241 = vunpack.c.l.b16 %v898
  %v4242 = vunpack.c.h.b16 %v898
  %v4243 = vunpack.c.l.b16 %v899
  %v4244 = vunpack.c.l.b16 %v900
  %v4245 = vunpack.c.h.b16 %v900
  %v4246 = vunpack.c.l.b16 %v901
  %v4247 = vunpack.c.h.b16 %v901
  %v4248 = vunpack.c.l.b16 %v902
  %v4249 = vunpack.c.h.b16 %v902
  %v4250 = vunpack.c.l.b16 %v903
  %v4251 = vunpack.c.l.b16 %v904
  %v4252 = vunpack.c.h.b16 %v904
  %v4253 = vunpack.c.l.b16 %v905
  %v4254 = vunpack.c.h.b16 %v905
  %v4255 = vunpack.c.l.b16 %v906
  %v4256 = vunpack.c.h.b16 %v906
  %v4257 = vunpack.c.l.b16 %v907
  %v4258 = vunpack.c.l.b16 %v908
  %v4259 = vunpack.c.h.b16 %v908
  %v4260 = vunpack.c.l.b16 %v909
  %v4261 = vunpack.c.h.b16 %v909
  %v4262 = vunpack.c.l.b16 %v910
  %v4263 = vunpack.c.h.b16 %v910
  %v4264 = vunpack.c.l.b16 %v911
  %v4265 = vunpack.c.l.b16 %v912
  %v4266 = vunpack.c.h.b16 %v912
  %v4267 = vunpack.c.l.b16 %v913
  %v4268 = vunpack.c.h.b16 %v913
  %v4269 = vunpack.c.l.b16 %v914
  %v4270 = vunpack.c.h.b16 %v914
  %v4271 = vunpack.c.l.b16 %v915
  %v4272 = vunpack.c.l.b16 %v916
  %v4273 = vunpack.c.h.b16 %v916
  %v4274 = vunpack.c.l.b16 %v917
  %v4275 = vunpack.c.h.b16 %v917
  %v4276 = vunpack.c.l.b16 %v918
  %v4277 = vunpack.c.h.b16 %v918
  %v4278 = vunpack.c.l.b16 %v919
  %v4279 = vunpack.c.l.b16 %v920
  %v4280 = vunpack.c.h.b16 %v920
  %v4281 = vunpack.c.l.b16 %v921
  %v4282 = vunpack.c.h.b16 %v921
  %v4283 = vunpack.c.l.b16 %v922
  %v4284 = vunpack.c.h.b16 %v922
  %v4285 = vunpack.c.l.b16 %v923
  %v4286 = vunpack.c.l.b16 %v924
  %v4287 = vunpack.c.h.b16 %v924
  %v4288 = vunpack.c.l.b16 %v925
  %v4289 = vunpack.c.h.b16 %v925
  %v4290 = vunpack.c.l.b16 %v926
  %v4291 = vunpack.c.h.b16 %v926
  %v4292 = vunpack.c.l.b16 %v927
  %v4293 = vunpack.c.l.b16 %v928
  %v4294 = vunpack.c.h.b16 %v928
  %v4295 = vunpack.c.l.b16 %v929
  %v4296 = vunpack.c.h.b16 %v929
  %v4297 = vunpack.c.l.b16 %v930
  %v4298 = vunpack.c.h.b16 %v930
  %v4299 = vunpack.c.l.b16 %v931
  %v4300 = vunpack.c.l.b16 %v932
  %v4301 = vunpack.c.h.b16 %v932
  %v4302 = vunpack.c.l.b16 %v933
  %v4303 = vunpack.c.h.b16 %v933
  %v4304 = vunpack.c.l.b16 %v934
  %v4305 = vunpack.c.h.b16 %v934
  %v4306 = vunpack.c.l.b16 %v935
  %v4307 = vunpack.c.l.b16 %v936
  %v4308 = vunpack.c.h.b16 %v936
  %v4309 = vunpack.c.l.b16 %v937
  %v4310 = vunpack.c.h.b16 %v937
  %v4311 = vunpack.c.l.b16 %v938
  %v4312 = vunpack.c.h.b16 %v938
  %v4313 = vunpack.c.l.b16 %v939
  %v4314 = vunpack.c.l.b16 %v940
  %v4315 = vunpack.c.h.b16 %v940
  %v4316 = vunpack.c.l.b16 %v941
  %v4317 = vunpack.c.h.b16 %v941
  %v4318 = vunpack.c.l.b16 %v942
  %v4319 = vunpack.c.h.b16 %v942
  %v4320 = vunpack.c.l.b16 %v943
  %v4321 = vunpack.c.l.b16 %v944
  %v4322 = vunpack.c.h.b16 %v944
  %v4323 = vunpack.c.l.b16 %v945
  %v4324 = vunpack.c.h.b16 %v945
  %v4325 = vunpack.c.l.b16 %v946
  %v4326 = vunpack.c.h.b16 %v946
  %v4327 = vunpack.c.l.b16 %v947
  %v4328 = vunpack.c.l.b16 %v948
  %v4329 = vunpack.c.h.b16 %v948
  %v4330 = vunpack.c.l.b16 %v949
  %v4331 = vunpack.c.h.b16 %v949
  %v4332 = vunpack.c.l.b16 %v950
  %v4333 = vunpack.c.h.b16 %v950
  %v4334 = vunpack.c.l.b16 %v951
  %v4335 = vunpack.c.l.b16 %v952
  %v4336 = vunpack.c.h.b16 %v952
  %v4337 = vunpack.c.l.b16 %v953
  %v4338 = vunpack.c.h.b16 %v953
  %v4339 = vunpack.c.l.b16 %v954
  %v4340 = vunpack.c.h.b16 %v954
  %v4341 = vunpack.c.l.b16 %v955
  %v4342 = vunpack.c.l.b16 %v956
  %v4343 = vunpack.c.h.b16 %v956
  %v4344 = vunpack.c.l.b16 %v957
  %v4345 = vunpack.c.h.b16 %v957
  %v4346 = vunpack.c.l.b16 %v958
  %v4347 = vunpack.c.h.b16 %v958
  %v4348 = vunpack.c.l.b16 %v959
  %v4349 = vunpack.c.l.b16 %v960
  %v4350 = vunpack.c.h.b16 %v960
  %v4351 = vunpack.c.l.b16 %v961
  %v4352 = vunpack.c.h.b16 %v961
  %v4353 = vunpack.c.l.b16 %v962
  %v4354 = vunpack.c.h.b16 %v962
  %v4355 = vunpack.c.l.b16 %v963
  %v4356 = vunpack.c.l.b16 %v964
  %v4357 = vunpack.c.h.b16 %v964
  %v4358 = vunpack.c.l.b16 %v965
  %v4359 = vunpack.c.h.b16 %v965
  %v4360 = vunpack.c.l.b16 %v966
  %v4361 = vunpack.c.h.b16 %v966
  %v4362 = vunpack.c.l.b16 %v967
  %v4363 = vunpack.c.l.b16 %v968
  %v4364 = vunpack.c.h.b16 %v968
  %v4365 = vunpack.c.l.b16 %v969
  %v4366 = vunpack.c.h.b16 %v969
  %v4367 = vunpack.c.l.b16 %v970
  %v4368 = vunpack.c.h.b16 %v970
  %v4369 = vunpack.c.l.b16 %v971
  %v4370 = vunpack.c.l.b16 %v972
  %v4371 = vunpack.c.h.b16 %v972
  %v4372 = vunpack.c.l.b16 %v973
  %v4373 = vunpack.c.h.b16 %v973
  %v4374 = vunpack.c.l.b16 %v974
  %v4375 = vunpack.c.h.b16 %v974
  %v4376 = vunpack.c.l.b16 %v975
  %v4377 = vunpack.c.l.b16 %v976
  %v4378 = vunpack.c.h.b16 %v976
  %v4379 = vunpack.c.l.b16 %v977
  %v4380 = vunpack.c.h.b16 %v977
  %v4381 = vunpack.c.l.b16 %v978
  %v4382 = vunpack.c.h.b16 %v978
  %v4383 = vunpack.c.l.b16 %v979
  %v4384 = vunpack.c.l.b16 %v980
  %v4385 = vunpack.c.h.b16 %v980
  %v4386 = vunpack.c.l.b16 %v981
  %v4387 = vunpack.c.h.b16 %v981
  %v4388 = vunpack.c.l.b16 %v982
  %v4389 = vunpack.c.h.b16 %v982
  %v4390 = vunpack.c.l.b16 %v983
  %v4391 = vunpack.c.l.b16 %v984
  %v4392 = vunpack.c.h.b16 %v984
  %v4393 = vunpack.c.l.b16 %v985
  %v4394 = vunpack.c.h.b16 %v985
  %v4395 = vunpack.c.l.b16 %v986
  %v4396 = vunpack.c.h.b16 %v986
  %v4397 = vunpack.c.l.b16 %v987
  %v4398 = vunpack.c.l.b16 %v988
  %v4399 = vunpack.c.h.b16 %v988
  %v4400 = vunpack.c.l.b16 %v989
  %v4401 = vunpack.c.h.b16 %v989
  %v4402 = vunpack.c.l.b16 %v990
  %v4403 = vunpack.c.h.b16 %v990
  %v4404 = vunpack.c.l.b16 %v991
  %v4405 = vunpack.c.l.b16 %v992
  %v4406 = vunpack.c.h.b16 %v992
  %v4407 = vunpack.c.l.b16 %v993
  %v4408 = vunpack.c.h.b16 %v993
  %v4409 = vunpack.c.l.b16 %v994
  %v4410 = vunpack.c.h.b16 %v994
  %v4411 = vunpack.c.l.b16 %v995
  %v4412 = vunpack.c.l.b16 %v996
  %v4413 = vunpack.c.h.b16 %v996
  %v4414 = vunpack.c.l.b16 %v997
  %v4415 = vunpack.c.h.b16 %v997
  %v4416 = vunpack.c.l.b16 %v998
  %v4417 = vunpack.c.h.b16 %v998
  %v4418 = vunpack.c.l.b16 %v999
  %v4419 = vunpack.c.l.b16 %v1000
  %v4420 = vunpack.c.h.b16 %v1000
  %v4421 = vunpack.c.l.b16 %v1001
  %v4422 = vunpack.c.h.b16 %v1001
  %v4423 = vunpack.c.l.b16 %v1002
  %v4424 = vunpack.c.h.b16 %v1002
  %v4425 = vunpack.c.l.b16 %v1003
  %v4426 = vunpack.c.l.b16 %v1004
  %v4427 = vunpack.c.h.b16 %v1004
  %v4428 = vunpack.c.l.b16 %v1005
  %v4429 = vunpack.c.h.b16 %v1005
  %v4430 = vunpack.c.l.b16 %v1006
  %v4431 = vunpack.c.h.b16 %v1006
  %v4432 = vunpack.c.l.b16 %v1007
  %v4433 = vunpack.c.l.b16 %v1008
  %v4434 = vunpack.c.h.b16 %v1008
  %v4435 = vunpack.c.l.b16 %v1009
  %v4436 = vunpack.c.h.b16 %v1009
  %v4437 = vunpack.c.l.b16 %v1010
  %v4438 = vunpack.c.h.b16 %v1010
  %v4439 = vunpack.c.l.b16 %v1011
  %v4440 = vunpack.c.l.b16 %v1012
  %v4441 = vunpack.c.h.b16 %v1012
  %v4442 = vunpack.c.l.b16 %v1013
  %v4443 = vunpack.c.h.b16 %v1013
  %v4444 = vunpack.c.l.b16 %v1014
  %v4445 = vunpack.c.h.b16 %v1014
  %v4446 = vunpack.c.l.b16 %v1015
  %v4447 = vunpack.c.l.b16 %v1016
  %v4448 = vunpack.c.h.b16 %v1016
  %v4449 = vunpack.c.l.b16 %v1017
  %v4450 = vunpack.c.h.b16 %v1017
  %v4451 = vunpack.c.l.b16 %v1018
  %v4452 = vunpack.c.h.b16 %v1018
  %v4453 = vunpack.c.l.b16 %v1019
  %v4454 = vunpack.c.l.b16 %v1020
  %v4455 = vunpack.c.h.b16 %v1020
  %v4456 = vunpack.c.l.b16 %v1021
  %v4457 = vunpack.c.h.b16 %v1021
  %v4458 = vunpack.c.l.b16 %v1022
  %v4459 = vunpack.c.h.b16 %v1022
  %v4460 = vunpack.c.l.b16 %v1023
  %v4461 = vunpack.c.l.b16 %v1024
  %v4462 = vunpack.c.h.b16 %v1024
  %v4463 = vunpack.c.l.b16 %v1025
  %v4464 = vunpack.c.h.b16 %v1025
  %v4465 = vunpack.c.l.b16 %v1026
  %v4466 = vunpack.c.h.b16 %v1026
  %v4467 = vunpack.c.l.b16 %v1027
  %v4468 = vunpack.c.l.b16 %v1028
  %v4469 = vunpack.c.h.b16 %v1028
  %v4470 = vunpack.c.l.b16 %v1029
  %v4471 = vunpack.c.h.b16 %v1029
  %v4472 = vunpack.c.l.b16 %v1030
  %v4473 = vunpack.c.h.b16 %v1030
  %v4474 = vunpack.c.l.b16 %v1031
  %v4475 = vunpack.c.l.b16 %v1032
  %v4476 = vunpack.c.h.b16 %v1032
  %v4477 = vunpack.c.l.b16 %v1033
  %v4478 = vunpack.c.h.b16 %v1033
  %v4479 = vunpack.c.l.b16 %v1034
  %v4480 = vunpack.c.h.b16 %v1034
  %v4481 = vunpack.c.l.b16 %v1035
  %v4482 = vunpack.c.l.b16 %v1036
  %v4483 = vunpack.c.h.b16 %v1036
  %v4484 = vunpack.c.l.b16 %v1037
  %v4485 = vunpack.c.h.b16 %v1037
  %v4486 = vunpack.c.l.b16 %v1038
  %v4487 = vunpack.c.h.b16 %v1038
  %v4488 = vunpack.c.l.b16 %v1039
  %v4489 = vunpack.c.l.b16 %v1040
  %v4490 = vunpack.c.h.b16 %v1040
  %v4491 = vunpack.c.l.b16 %v1041
  %v4492 = vunpack.c.h.b16 %v1041
  %v4493 = vunpack.c.l.b16 %v1042
  %v4494 = vunpack.c.h.b16 %v1042
  %v4495 = vunpack.c.l.b16 %v1043
  %v4496 = vunpack.c.l.b16 %v1044
  %v4497 = vunpack.c.h.b16 %v1044
  %v4498 = vunpack.c.l.b16 %v1045
  %v4499 = vunpack.c.h.b16 %v1045
  %v4500 = vunpack.c.l.b16 %v1046
  %v4501 = vunpack.c.h.b16 %v1046
  %v4502 = vunpack.c.l.b16 %v1047
  %v4503 = vunpack.c.l.b16 %v1048
  %v4504 = vunpack.c.h.b16 %v1048
  %v4505 = vunpack.c.l.b16 %v1049
  %v4506 = vunpack.c.h.b16 %v1049
  %v4507 = vunpack.c.l.b16 %v1050
  %v4508 = vunpack.c.h.b16 %v1050
  %v4509 = vunpack.c.l.b16 %v1051
  %v4510 = vunpack.c.l.b16 %v1052
  %v4511 = vunpack.c.h.b16 %v1052
  %v4512 = vunpack.c.l.b16 %v1053
  %v4513 = vunpack.c.h.b16 %v1053
  %v4514 = vunpack.c.l.b16 %v1054
  %v4515 = vunpack.c.h.b16 %v1054
  %v4516 = vunpack.c.l.b16 %v1055
  %v4517 = vunpack.c.l.b16 %v1056
  %v4518 = vunpack.c.h.b16 %v1056
  %v4519 = vunpack.c.l.b16 %v1057
  %v4520 = vunpack.c.h.b16 %v1057
  %v4521 = vunpack.c.l.b16 %v1058
  %v4522 = vunpack.c.h.b16 %v1058
  %v4523 = vunpack.c.l.b16 %v1059
  %v4524 = vunpack.c.l.b16 %v1060
  %v4525 = vunpack.c.h.b16 %v1060
  %v4526 = vunpack.c.l.b16 %v1061
  %v4527 = vunpack.c.h.b16 %v1061
  %v4528 = vunpack.c.l.b16 %v1062
  %v4529 = vunpack.c.h.b16 %v1062
  %v4530 = vunpack.c.l.b16 %v1063
  %v4531 = vunpack.c.l.b16 %v1064
  %v4532 = vunpack.c.h.b16 %v1064
  %v4533 = vunpack.c.l.b16 %v1065
  %v4534 = vunpack.c.h.b16 %v1065
  %v4535 = vunpack.c.l.b16 %v1066
  %v4536 = vunpack.c.h.b16 %v1066
  %v4537 = vunpack.c.l.b16 %v1067
  %v4538 = vunpack.c.l.b16 %v1068
  %v4539 = vunpack.c.h.b16 %v1068
  %v4540 = vunpack.c.l.b16 %v1069
  %v4541 = vunpack.c.h.b16 %v1069
  %v4542 = vunpack.c.l.b16 %v1070
  %v4543 = vunpack.c.h.b16 %v1070
  %v4544 = vunpack.c.l.b16 %v1071
  %v4545 = vunpack.c.l.b16 %v1072
  %v4546 = vunpack.c.h.b16 %v1072
  %v4547 = vunpack.c.l.b16 %v1073
  %v4548 = vunpack.c.h.b16 %v1073
  %v4549 = vunpack.c.l.b16 %v1074
  %v4550 = vunpack.c.h.b16 %v1074
  %v4551 = vunpack.c.l.b16 %v1075
  %v4552 = vunpack.c.l.b16 %v1076
  %v4553 = vunpack.c.h.b16 %v1076
  %v4554 = vunpack.c.l.b16 %v1077
  %v4555 = vunpack.c.h.b16 %v1077
  %v4556 = vunpack.c.l.b16 %v1078
  %v4557 = vunpack.c.h.b16 %v1078
  %v4558 = vunpack.c.l.b16 %v1079
  %v4559 = vunpack.c.l.b16 %v1080
  %v4560 = vunpack.c.h.b16 %v1080
  %v4561 = vunpack.c.l.b16 %v1081
  %v4562 = vunpack.c.h.b16 %v1081
  %v4563 = vunpack.c.l.b16 %v1082
  %v4564 = vunpack.c.h.b16 %v1082
  %v4565 = vunpack.c.l.b16 %v1083
  %v4566 = vunpack.c.l.b16 %v1084
  %v4567 = vunpack.c.h.b16 %v1084
  %v4568 = vunpack.c.l.b16 %v1085
  %v4569 = vunpack.c.h.b16 %v1085
  %v4570 = vunpack.c.l.b16 %v1086
  %v4571 = vunpack.c.h.b16 %v1086
  %v4572 = vunpack.c.l.b16 %v1087
  %v4573 = vunpack.c.l.b16 %v1088
  %v4574 = vunpack.c.h.b16 %v1088
  %v4575 = vunpack.c.l.b16 %v1089
  %v4576 = vunpack.c.h.b16 %v1089
  %v4577 = vunpack.c.l.b16 %v1090
  %v4578 = vunpack.c.h.b16 %v1090
  %v4579 = vunpack.c.l.b16 %v1091
  %v4580 = vunpack.c.l.b16 %v1092
  %v4581 = vunpack.c.h.b16 %v1092
  %v4582 = vunpack.c.l.b16 %v1093
  %v4583 = vunpack.c.h.b16 %v1093
  %v4584 = vunpack.c.l.b16 %v1094
  %v4585 = vunpack.c.h.b16 %v1094
  %v4586 = vunpack.c.l.b16 %v1095
  %v4587 = vunpack.c.l.b16 %v1096
  %v4588 = vunpack.c.h.b16 %v1096
  %v4589 = vunpack.c.l.b16 %v1097
  %v4590 = vunpack.c.h.b16 %v1097
  %v4591 = vunpack.c.l.b16 %v1098
  %v4592 = vunpack.c.h.b16 %v1098
  %v4593 = vunpack.c.l.b16 %v1099
  %v4594 = vunpack.c.l.b16 %v1100
  %v4595 = vunpack.c.h.b16 %v1100
  %v4596 = vunpack.c.l.b16 %v1101
  %v4597 = vunpack.c.h.b16 %v1101
  %v4598 = vunpack.c.l.b16 %v1102
  %v4599 = vunpack.c.h.b16 %v1102
  %v4600 = vunpack.c.l.b16 %v1103
  %v4601 = vunpack.c.l.b16 %v1104
  %v4602 = vunpack.c.h.b16 %v1104
  %v4603 = vunpack.c.l.b16 %v1105
  %v4604 = vunpack.c.h.b16 %v1105
  %v4605 = vunpack.c.l.b16 %v1106
  %v4606 = vunpack.c.h.b16 %v1106
  %v4607 = vunpack.c.l.b16 %v1107
  %v4608 = vunpack.c.l.b16 %v1108
  %v4609 = vunpack.c.h.b16 %v1108
  %v4610 = vunpack.c.l.b16 %v1109
  %v4611 = vunpack.c.h.b16 %v1109
  %v4612 = vunpack.c.l.b16 %v1110
  %v4613 = vunpack.c.h.b16 %v1110
  %v4614 = vunpack.c.l.b16 %v1111
  %v4615 = vpack.c.b16 %v3082, %v3075
  %v4616 = vpack.c.b16 %v3083, %v3076
  %v4617 = vpack.c.b16 %v3084, %v3077
  %v4618 = vpack.c.b16 %v3085, %v3078
  %v4619 = vpack.c.b16 %v3086, %v3079
  %v4620 = vpack.c.b16 %v3087, %v3080
  %v4621 = vpack.c.b16 %v3088, %v3081
  %v4622 = vpack.c.b16 %v3096, %v3089
  %v4623 = vpack.c.b16 %v3097, %v3090
  %v4624 = vpack.c.b16 %v3098, %v3091
  %v4625 = vpack.c.b16 %v3099, %v3092
  %v4626 = vpack.c.b16 %v3100, %v3093
  %v4627 = vpack.c.b16 %v3101, %v3094
  %v4628 = vpack.c.b16 %v3102, %v3095
  %v4629 = vpack.c.b16 %v3110, %v3103
  %v4630 = vpack.c.b16 %v3111, %v3104
  %v4631 = vpack.c.b16 %v3112, %v3105
  %v4632 = vpack.c.b16 %v3113, %v3106
  %v4633 = vpack.c.b16 %v3114, %v3107
  %v4634 = vpack.c.b16 %v3115, %v3108
  %v4635 = vpack.c.b16 %v3116, %v3109
  %v4636 = vpack.c.b16 %v3124, %v3117
  %v4637 = vpack.c.b16 %v3125, %v3118
  %v4638 = vpack.c.b16 %v3126, %v3119
  %v4639 = vpack.c.b16 %v3127, %v3120
  %v4640 = vpack.c.b16 %v3128, %v3121
  %v4641 = vpack.c.b16 %v3129, %v3122
  %v4642 = vpack.c.b16 %v3130, %v3123
  %v4643 = vpack.c.b16 %v3138, %v3131
  %v4644 = vpack.c.b16 %v3139, %v3132
  %v4645 = vpack.c.b16 %v3140, %v3133
  %v4646 = vpack.c.b16 %v3141, %v3134
  %v4647 = vpack.c.b16 %v3142, %v3135
  %v4648 = vpack.c.b16 %v3143, %v3136
  %v4649 = vpack.c.b16 %v3144, %v3137
  %v4650 = vpack.c.b16 %v3152, %v3145
  %v4651 = vpack.c.b16 %v3153, %v3146
  %v4652 = vpack.c.b16 %v3154, %v3147
  %v4653 = vpack.c.b16 %v3155, %v3148
  %v4654 = vpack.c.b16 %v3156, %v3149
  %v4655 = vpack.c.b16 %v3157, %v3150
  %v4656 = vpack.c.b16 %v3158, %v3151
  %v4657 = vpack.c.b16 %v3166, %v3159
  %v4658 = vpack.c.b16 %v3167, %v3160
  %v4659 = vpack.c.b16 %v3168, %v3161
  %v4660 = vpack.c.b16 %v3169, %v3162
  %v4661 = vpack.c.b16 %v3170, %v3163
  %v4662 = vpack.c.b16 %v3171, %v3164
  %v4663 = vpack.c.b16 %v3172, %v3165
  %v4664 = vpack.c.b16 %v3180, %v3173
  %v4665 = vpack.c.b16 %v3181, %v3174
  %v4666 = vpack.c.b16 %v3182, %v3175
  %v4667 = vpack.c.b16 %v3183, %v3176
  %v4668 = vpack.c.b16 %v3184, %v3177
  %v4669 = vpack.c.b16 %v3185, %v3178
  %v4670 = vpack.c.b16 %v3186, %v3179
  %v4671 = vpack.c.b16 %v3194, %v3187
  %v4672 = vpack.c.b16 %v3195, %v3188
  %v4673 = vpack.c.b16 %v3196, %v3189
  %v4674 = vpack.c.b16 %v3197, %v3190
  %v4675 = vpack.c.b16 %v3198, %v3191
  %v4676 = vpack.c.b16 %v3199, %v3192
  %v4677 = vpack.c.b16 %v3200, %v3193
  %v4678 = vpack.c.b16 %v3208, %v3201
  %v4679 = vpack.c.b16 %v3209, %v3202
  %v4680 = vpack.c.b16 %v3210, %v3203
  %v4681 = vpack.c.b16 %v3211, %v3204
  %v4682 = vpack.c.b16 %v3212, %v3205
  %v4683 = vpack.c.b16 %v3213, %v3206
  %v4684 = vpack.c.b16 %v3214, %v3207
  %v4685 = vpack.c.b16 %v3222, %v3215
  %v4686 = vpack.c.b16 %v3223, %v3216
  %v4687 = vpack.c.b16 %v3224, %v3217
  %v4688 = vpack.c.b16 %v3225, %v3218
  %v4689 = vpack.c.b16 %v3226, %v3219
  %v4690 = vpack.c.b16 %v3227, %v3220
  %v4691 = vpack.c.b16 %v3228, %v3221
  %v4692 = vpack.c.b16 %v3236, %v3229
  %v4693 = vpack.c.b16 %v3237, %v3230
  %v4694 = vpack.c.b16 %v3238, %v3231
  %v4695 = vpack.c.b16 %v3239, %v3232
  %v4696 = vpack.c.b16 %v3240, %v3233
  %v4697 = vpack.c.b16 %v3241, %v3234
  %v4698 = vpack.c.b16 %v3242, %v3235
  %v4699 = vpack.c.b16 %v3250, %v3243
  %v4700 = vpack.c.b16 %v3251, %v3244
  %v4701 = vpack.c.b16 %v3252, %v3245
  %v4702 = vpack.c.b16 %v3253, %v3246
  %v4703 = vpack.c.b16 %v3254, %v3247
  %v4704 = vpack.c.b16 %v3255, %v3248
  %v4705 = vpack.c.b16 %v3256, %v3249
  %v4706 = vpack.c.b16 %v3264, %v3257
  %v4707 = vpack.c.b16 %v3265, %v3258
  %v4708 = vpack.c.b16 %v3266, %v3259
  %v4709 = vpack.c.b16 %v3267, %v3260
  %v4710 = vpack.c.b16 %v3268, %v3261
  %v4711 = vpack.c.b16 %v3269, %v3262
  %v4712 = vpack.c.b16 %v3270, %v3263
  %v4713 = vpack.c.b16 %v3278, %v3271
  %v4714 = vpack.c.b16 %v3279, %v3272
  %v4715 = vpack.c.b16 %v3280, %v3273
  %v4716 = vpack.c.b16 %v3281, %v3274
  %v4717 = vpack.c.b16 %v3282, %v3275
  %v4718 = vpack.c.b16 %v3283, %v3276
  %v4719 = vpack.c.b16 %v3284, %v3277
  %v4720 = vpack.c.b16 %v3292, %v3285
  %v4721 = vpack.c.b16 %v3293, %v3286
  %v4722 = vpack.c.b16 %v3294, %v3287
  %v4723 = vpack.c.b16 %v3295, %v3288
  %v4724 = vpack.c.b16 %v3296, %v3289
  %v4725 = vpack.c.b16 %v3297, %v3290
  %v4726 = vpack.c.b16 %v3298, %v3291
  %v4727 = vpack.c.b16 %v3306, %v3299
  %v4728 = vpack.c.b16 %v3307, %v3300
  %v4729 = vpack.c.b16 %v3308, %v3301
  %v4730 = vpack.c.b16 %v3309, %v3302
  %v4731 = vpack.c.b16 %v3310, %v3303
  %v4732 = vpack.c.b16 %v3311, %v3304
  %v4733 = vpack.c.b16 %v3312, %v3305
  %v4734 = vpack.c.b16 %v3320, %v3313
  %v4735 = vpack.c.b16 %v3321, %v3314
  %v4736 = vpack.c.b16 %v3322, %v3315
  %v4737 = vpack.c.b16 %v3323, %v3316
  %v4738 = vpack.c.b16 %v3324, %v3317
  %v4739 = vpack.c.b16 %v3325, %v3318
  %v4740 = vpack.c.b16 %v3326, %v3319
  %v4741 = vpack.c.b16 %v3334, %v3327
  %v4742 = vpack.c.b16 %v3335, %v3328
  %v4743 = vpack.c.b16 %v3336, %v3329
  %v4744 = vpack.c.b16 %v3337, %v3330
  %v4745 = vpack.c.b16 %v3338, %v3331
  %v4746 = vpack.c.b16 %v3339, %v3332
  %v4747 = vpack.c.b16 %v3340, %v3333
  %v4748 = vpack.c.b16 %v3348, %v3341
  %v4749 = vpack.c.b16 %v3349, %v3342
  %v4750 = vpack.c.b16 %v3350, %v3343
  %v4751 = vpack.c.b16 %v3351, %v3344
  %v4752 = vpack.c.b16 %v3352, %v3345
  %v4753 = vpack.c.b16 %v3353, %v3346
  %v4754 = vpack.c.b16 %v3354, %v3347
  %v4755 = vpack.c.b16 %v3362, %v3355
  %v4756 = vpack.c.b16 %v3363, %v3356
  %v4757 = vpack.c.b16 %v3364, %v3357
  %v4758 = vpack.c.b16 %v3365, %v3358
  %v4759 = vpack.c.b16 %v3366, %v3359
  %v4760 = vpack.c.b16 %v3367, %v3360
  %v4761 = vpack.c.b16 %v3368, %v3361
  %v4762 = vpack.c.b16 %v3376, %v3369
  %v4763 = vpack.c.b16 %v3377, %v3370
  %v4764 = vpack.c.b16 %v3378, %v3371
  %v4765 = vpack.c.b16 %v3379, %v3372
  %v4766 = vpack.c.b16 %v3380, %v3373
  %v4767 = vpack.c.b16 %v3381, %v3374
  %v4768 = vpack.c.b16 %v3382, %v3375
  %v4769 = vpack.c.b16 %v3390, %v3383
  %v4770 = vpack.c.b16 %v3391, %v3384
  %v4771 = vpack.c.b16 %v3392, %v3385
  %v4772 = vpack.c.b16 %v3393, %v3386
  %v4773 = vpack.c.b16 %v3394, %v3387
  %v4774 = vpack.c.b16 %v3395, %v3388
  %v4775 = vpack.c.b16 %v3396, %v3389
  %v4776 = vpack.c.b16 %v3404, %v3397
  %v4777 = vpack.c.b16 %v3405, %v3398
  %v4778 = vpack.c.b16 %v3406, %v3399
  %v4779 = vpack.c.b16 %v3407, %v3400
  %v4780 = vpack.c.b16 %v3408, %v3401
  %v4781 = vpack.c.b16 %v3409, %v3402
  %v4782 = vpack.c.b16 %v3410, %v3403
  %v4783 = vpack.c.b16 %v3418, %v3411
  %v4784 = vpack.c.b16 %v3419, %v3412
  %v4785 = vpack.c.b16 %v3420, %v3413
  %v4786 = vpack.c.b16 %v3421, %v3414
  %v4787 = vpack.c.b16 %v3422, %v3415
  %v4788 = vpack.c.b16 %v3423, %v3416
  %v4789 = vpack.c.b16 %v3424, %v3417
  %v4790 = vpack.c.b16 %v3432, %v3425
  %v4791 = vpack.c.b16 %v3433, %v3426
  %v4792 = vpack.c.b16 %v3434, %v3427
  %v4793 = vpack.c.b16 %v3435, %v3428
  %v4794 = vpack.c.b16 %v3436, %v3429
  %v4795 = vpack.c.b16 %v3437, %v3430
  %v4796 = vpack.c.b16 %v3438, %v3431
  %v4797 = vpack.c.b16 %v3446, %v3439
  %v4798 = vpack.c.b16 %v3447, %v3440
  %v4799 = vpack.c.b16 %v3448, %v3441
  %v4800 = vpack.c.b16 %v3449, %v3442
  %v4801 = vpack.c.b16 %v3450, %v3443
  %v4802 = vpack.c.b16 %v3451, %v3444
  %v4803 = vpack.c.b16 %v3452, %v3445
  %v4804 = vpack.c.b16 %v3460, %v3453
  %v4805 = vpack.c.b16 %v3461, %v3454
  %v4806 = vpack.c.b16 %v3462, %v3455
  %v4807 = vpack.c.b16 %v3463, %v3456
  %v4808 = vpack.c.b16 %v3464, %v3457
  %v4809 = vpack.c.b16 %v3465, %v3458
  %v4810 = vpack.c.b16 %v3466, %v3459
  %v4811 = vpack.c.b16 %v3474, %v3467
  %v4812 = vpack.c.b16 %v3475, %v3468
  %v4813 = vpack.c.b16 %v3476, %v3469
  %v4814 = vpack.c.b16 %v3477, %v3470
  %v4815 = vpack.c.b16 %v3478, %v3471
  %v4816 = vpack.c.b16 %v3479, %v3472
  %v4817 = vpack.c.b16 %v3480, %v3473
  %v4818 = vpack.c.b16 %v3488, %v3481
  %v4819 = vpack.c.b16 %v3489, %v3482
  %v4820 = vpack.c.b16 %v3490, %v3483
  %v4821 = vpack.c.b16 %v3491, %v3484
  %v4822 = vpack.c.b16 %v3492, %v3485
  %v4823 = vpack.c.b16 %v3493, %v3486
  %v4824 = vpack.c.b16 %v3494, %v3487
  %v4825 = vpack.c.b16 %v3502, %v3495
  %v4826 = vpack.c.b16 %v3503, %v3496
  %v4827 = vpack.c.b16 %v3504, %v3497
  %v4828 = vpack.c.b16 %v3505, %v3498
  %v4829 = vpack.c.b16 %v3506, %v3499
  %v4830 = vpack.c.b16 %v3507, %v3500
  %v4831 = vpack.c.b16 %v3508, %v3501
  %v4832 = vpack.c.b16 %v3516, %v3509
  %v4833 = vpack.c.b16 %v3517, %v3510
  %v4834 = vpack.c.b16 %v3518, %v3511
  %v4835 = vpack.c.b16 %v3519, %v3512
  %v4836 = vpack.c.b16 %v3520, %v3513
  %v4837 = vpack.c.b16 %v3521, %v3514
  %v4838 = vpack.c.b16 %v3522, %v3515
  %v4839 = vpack.c.b16 %v3530, %v3523
  %v4840 = vpack.c.b16 %v3531, %v3524
  %v4841 = vpack.c.b16 %v3532, %v3525
  %v4842 = vpack.c.b16 %v3533, %v3526
  %v4843 = vpack.c.b16 %v3534, %v3527
  %v4844 = vpack.c.b16 %v3535, %v3528
  %v4845 = vpack.c.b16 %v3536, %v3529
  %v4846 = vpack.c.b16 %v3544, %v3537
  %v4847 = vpack.c.b16 %v3545, %v3538
  %v4848 = vpack.c.b16 %v3546, %v3539
  %v4849 = vpack.c.b16 %v3547, %v3540
  %v4850 = vpack.c.b16 %v3548, %v3541
  %v4851 = vpack.c.b16 %v3549, %v3542
  %v4852 = vpack.c.b16 %v3550, %v3543
  %v4853 = vpack.c.b16 %v3558, %v3551
  %v4854 = vpack.c.b16 %v3559, %v3552
  %v4855 = vpack.c.b16 %v3560, %v3553
  %v4856 = vpack.c.b16 %v3561, %v3554
  %v4857 = vpack.c.b16 %v3562, %v3555
  %v4858 = vpack.c.b16 %v3563, %v3556
  %v4859 = vpack.c.b16 %v3564, %v3557
  %v4860 = vpack.c.b16 %v3572, %v3565
  %v4861 = vpack.c.b16 %v3573, %v3566
  %v4862 = vpack.c.b16 %v3574, %v3567
  %v4863 = vpack.c.b16 %v3575, %v3568
  %v4864 = vpack.c.b16 %v3576, %v3569
  %v4865 = vpack.c.b16 %v3577, %v3570
  %v4866 = vpack.c.b16 %v3578, %v3571
  %v4867 = vpack.c.b16 %v3586, %v3579
  %v4868 = vpack.c.b16 %v3587, %v3580
  %v4869 = vpack.c.b16 %v3588, %v3581
  %v4870 = vpack.c.b16 %v3589, %v3582
  %v4871 = vpack.c.b16 %v3590, %v3583
  %v4872 = vpack.c.b16 %v3591, %v3584
  %v4873 = vpack.c.b16 %v3592, %v3585
  %v4874 = vpack.c.b16 %v3600, %v3593
  %v4875 = vpack.c.b16 %v3601, %v3594
  %v4876 = vpack.c.b16 %v3602, %v3595
  %v4877 = vpack.c.b16 %v3603, %v3596
  %v4878 = vpack.c.b16 %v3604, %v3597
  %v4879 = vpack.c.b16 %v3605, %v3598
  %v4880 = vpack.c.b16 %v3606, %v3599
  %v4881 = vpack.c.b16 %v3614, %v3607
  %v4882 = vpack.c.b16 %v3615, %v3608
  %v4883 = vpack.c.b16 %v3616, %v3609
  %v4884 = vpack.c.b16 %v3617, %v3610
  %v4885 = vpack.c.b16 %v3618, %v3611
  %v4886 = vpack.c.b16 %v3619, %v3612
  %v4887 = vpack.c.b16 %v3620, %v3613
  %v4888 = vpack.c.b16 %v3628, %v3621
  %v4889 = vpack.c.b16 %v3629, %v3622
  %v4890 = vpack.c.b16 %v3630, %v3623
  %v4891 = vpack.c.b16 %v3631, %v3624
  %v4892 = vpack.c.b16 %v3632, %v3625
  %v4893 = vpack.c.b16 %v3633, %v3626
  %v4894 = vpack.c.b16 %v3634, %v3627
  %v4895 = vpack.c.b16 %v3642, %v3635
  %v4896 = vpack.c.b16 %v3643, %v3636
  %v4897 = vpack.c.b16 %v3644, %v3637
  %v4898 = vpack.c.b16 %v3645, %v3638
  %v4899 = vpack.c.b16 %v3646, %v3639
  %v4900 = vpack.c.b16 %v3647, %v3640
  %v4901 = vpack.c.b16 %v3648, %v3641
  %v4902 = vpack.c.b16 %v3656, %v3649
  %v4903 = vpack.c.b16 %v3657, %v3650
  %v4904 = vpack.c.b16 %v3658, %v3651
  %v4905 = vpack.c.b16 %v3659, %v3652
  %v4906 = vpack.c.b16 %v3660, %v3653
  %v4907 = vpack.c.b16 %v3661, %v3654
  %v4908 = vpack.c.b16 %v3662, %v3655
  %v4909 = vpack.c.b16 %v3670, %v3663
  %v4910 = vpack.c.b16 %v3671, %v3664
  %v4911 = vpack.c.b16 %v3672, %v3665
  %v4912 = vpack.c.b16 %v3673, %v3666
  %v4913 = vpack.c.b16 %v3674, %v3667
  %v4914 = vpack.c.b16 %v3675, %v3668
  %v4915 = vpack.c.b16 %v3676, %v3669
  %v4916 = vpack.c.b16 %v3684, %v3677
  %v4917 = vpack.c.b16 %v3685, %v3678
  %v4918 = vpack.c.b16 %v3686, %v3679
  %v4919 = vpack.c.b16 %v3687, %v3680
  %v4920 = vpack.c.b16 %v3688, %v3681
  %v4921 = vpack.c.b16 %v3689, %v3682
  %v4922 = vpack.c.b16 %v3690, %v3683
  %v4923 = vpack.c.b16 %v3698, %v3691
  %v4924 = vpack.c.b16 %v3699, %v3692
  %v4925 = vpack.c.b16 %v3700, %v3693
  %v4926 = vpack.c.b16 %v3701, %v3694
  %v4927 = vpack.c.b16 %v3702, %v3695
  %v4928 = vpack.c.b16 %v3703, %v3696
  %v4929 = vpack.c.b16 %v3704, %v3697
  %v4930 = vpack.c.b16 %v3712, %v3705
  %v4931 = vpack.c.b16 %v3713, %v3706
  %v4932 = vpack.c.b16 %v3714, %v3707
  %v4933 = vpack.c.b16 %v3715, %v3708
  %v4934 = vpack.c.b16 %v3716, %v3709
  %v4935 = vpack.c.b16 %v3717, %v3710
  %v4936 = vpack.c.b16 %v3718, %v3711
  %v4937 = vpack.c.b16 %v3726, %v3719
  %v4938 = vpack.c.b16 %v3727, %v3720
  %v4939 = vpack.c.b16 %v3728, %v3721
  %v4940 = vpack.c.b16 %v3729, %v3722
  %v4941 = vpack.c.b16 %v3730, %v3723
  %v4942 = vpack.c.b16 %v3731, %v3724
  %v4943 = vpack.c.b16 %v3732, %v3725
  %v4944 = vpack.c.b16 %v3740, %v3733
  %v4945 = vpack.c.b16 %v3741, %v3734
  %v4946 = vpack.c.b16 %v3742, %v3735
  %v4947 = vpack.c.b16 %v3743, %v3736
  %v4948 = vpack.c.b16 %v3744, %v3737
  %v4949 = vpack.c.b16 %v3745, %v3738
  %v4950 = vpack.c.b16 %v3746, %v3739
  %v4951 = vpack.c.b16 %v3754, %v3747
  %v4952 = vpack.c.b16 %v3755, %v3748
  %v4953 = vpack.c.b16 %v3756, %v3749
  %v4954 = vpack.c.b16 %v3757, %v3750
  %v4955 = vpack.c.b16 %v3758, %v3751
  %v4956 = vpack.c.b16 %v3759, %v3752
  %v4957 = vpack.c.b16 %v3760, %v3753
  %v4958 = vpack.c.b16 %v3768, %v3761
  %v4959 = vpack.c.b16 %v3769, %v3762
  %v4960 = vpack.c.b16 %v3770, %v3763
  %v4961 = vpack.c.b16 %v3771, %v3764
  %v4962 = vpack.c.b16 %v3772, %v3765
  %v4963 = vpack.c.b16 %v3773, %v3766
  %v4964 = vpack.c.b16 %v3774, %v3767
  %v4965 = vpack.c.b16 %v3782, %v3775
  %v4966 = vpack.c.b16 %v3783, %v3776
  %v4967 = vpack.c.b16 %v3784, %v3777
  %v4968 = vpack.c.b16 %v3785, %v3778
  %v4969 = vpack.c.b16 %v3786, %v3779
  %v4970 = vpack.c.b16 %v3787, %v3780
  %v4971 = vpack.c.b16 %v3788, %v3781
  %v4972 = vpack.c.b16 %v3796, %v3789
  %v4973 = vpack.c.b16 %v3797, %v3790
  %v4974 = vpack.c.b16 %v3798, %v3791
  %v4975 = vpack.c.b16 %v3799, %v3792
  %v4976 = vpack.c.b16 %v3800, %v3793
  %v4977 = vpack.c.b16 %v3801, %v3794
  %v4978 = vpack.c.b16 %v3802, %v3795
  %v4979 = vpack.c.b16 %v3810, %v3803
  %v4980 = vpack.c.b16 %v3811, %v3804
  %v4981 = vpack.c.b16 %v3812, %v3805
  %v4982 = vpack.c.b16 %v3813, %v3806
  %v4983 = vpack.c.b16 %v3814, %v3807
  %v4984 = vpack.c.b16 %v3815, %v3808
  %v4985 = vpack.c.b16 %v3816, %v3809
  %v4986 = vpack.c.b16 %v3824, %v3817
  %v4987 = vpack.c.b16 %v3825, %v3818
  %v4988 = vpack.c.b16 %v3826, %v3819
  %v4989 = vpack.c.b16 %v3827, %v3820
  %v4990 = vpack.c.b16 %v3828, %v3821
  %v4991 = vpack.c.b16 %v3829, %v3822
  %v4992 = vpack.c.b16 %v3830, %v3823
  %v4993 = vpack.c.b16 %v3838, %v3831
  %v4994 = vpack.c.b16 %v3839, %v3832
  %v4995 = vpack.c.b16 %v3840, %v3833
  %v4996 = vpack.c.b16 %v3841, %v3834
  %v4997 = vpack.c.b16 %v3842, %v3835
  %v4998 = vpack.c.b16 %v3843, %v3836
  %v4999 = vpack.c.b16 %v3844, %v3837
  %v5000 = vpack.c.b16 %v3852, %v3845
  %v5001 = vpack.c.b16 %v3853, %v3846
  %v5002 = vpack.c.b16 %v3854, %v3847
  %v5003 = vpack.c.b16 %v3855, %v3848
  %v5004 = vpack.c.b16 %v3856, %v3849
  %v5005 = vpack.c.b16 %v3857, %v3850
  %v5006 = vpack.c.b16 %v3858, %v3851
  %v5007 = vpack.c.b16 %v3866, %v3859
  %v5008 = vpack.c.b16 %v3867, %v3860
  %v5009 = vpack.c.b16 %v3868, %v3861
  %v5010 = vpack.c.b16 %v3869, %v3862
  %v5011 = vpack.c.b16 %v3870, %v3863
  %v5012 = vpack.c.b16 %v3871, %v3864
  %v5013 = vpack.c.b16 %v3872, %v3865
  %v5014 = vpack.c.b16 %v3880, %v3873
  %v5015 = vpack.c.b16 %v3881, %v3874
  %v5016 = vpack.c.b16 %v3882, %v3875
  %v5017 = vpack.c.b16 %v3883, %v3876
  %v5018 = vpack.c.b16 %v3884, %v3877
  %v5019 = vpack.c.b16 %v3885, %v3878
  %v5020 = vpack.c.b16 %v3886, %v3879
  %v5021 = vpack.c.b16 %v3894, %v3887
  %v5022 = vpack.c.b16 %v3895, %v3888
  %v5023 = vpack.c.b16 %v3896, %v3889
  %v5024 = vpack.c.b16 %v3897, %v3890
  %v5025 = vpack.c.b16 %v3898, %v3891
  %v5026 = vpack.c.b16 %v3899, %v3892
  %v5027 = vpack.c.b16 %v3900, %v3893
  %v5028 = vpack.c.b16 %v3908, %v3901
  %v5029 = vpack.c.b16 %v3909, %v3902
  %v5030 = vpack.c.b16 %v3910, %v3903
  %v5031 = vpack.c.b16 %v3911, %v3904
  %v5032 = vpack.c.b16 %v3912, %v3905
  %v5033 = vpack.c.b16 %v3913, %v3906
  %v5034 = vpack.c.b16 %v3914, %v3907
  %v5035 = vpack.c.b16 %v3922, %v3915
  %v5036 = vpack.c.b16 %v3923, %v3916
  %v5037 = vpack.c.b16 %v3924, %v3917
  %v5038 = vpack.c.b16 %v3925, %v3918
  %v5039 = vpack.c.b16 %v3926, %v3919
  %v5040 = vpack.c.b16 %v3927, %v3920
  %v5041 = vpack.c.b16 %v3928, %v3921
  %v5042 = vpack.c.b16 %v3936, %v3929
  %v5043 = vpack.c.b16 %v3937, %v3930
  %v5044 = vpack.c.b16 %v3938, %v3931
  %v5045 = vpack.c.b16 %v3939, %v3932
  %v5046 = vpack.c.b16 %v3940, %v3933
  %v5047 = vpack.c.b16 %v3941, %v3934
  %v5048 = vpack.c.b16 %v3942, %v3935
  %v5049 = vpack.c.b16 %v3950, %v3943
  %v5050 = vpack.c.b16 %v3951, %v3944
  %v5051 = vpack.c.b16 %v3952, %v3945
  %v5052 = vpack.c.b16 %v3953, %v3946
  %v5053 = vpack.c.b16 %v3954, %v3947
  %v5054 = vpack.c.b16 %v3955, %v3948
  %v5055 = vpack.c.b16 %v3956, %v3949
  %v5056 = vpack.c.b16 %v3964, %v3957
  %v5057 = vpack.c.b16 %v3965, %v3958
  %v5058 = vpack.c.b16 %v3966, %v3959
  %v5059 = vpack.c.b16 %v3967, %v3960
  %v5060 = vpack.c.b16 %v3968, %v3961
  %v5061 = vpack.c.b16 %v3969, %v3962
  %v5062 = vpack.c.b16 %v3970, %v3963
  %v5063 = vpack.c.b16 %v3978, %v3971
  %v5064 = vpack.c.b16 %v3979, %v3972
  %v5065 = vpack.c.b16 %v3980, %v3973
  %v5066 = vpack.c.b16 %v3981, %v3974
  %v5067 = vpack.c.b16 %v3982, %v3975
  %v5068 = vpack.c.b16 %v3983, %v3976
  %v5069 = vpack.c.b16 %v3984, %v3977
  %v5070 = vpack.c.b16 %v3992, %v3985
  %v5071 = vpack.c.b16 %v3993, %v3986
  %v5072 = vpack.c.b16 %v3994, %v3987
  %v5073 = vpack.c.b16 %v3995, %v3988
  %v5074 = vpack.c.b16 %v3996, %v3989
  %v5075 = vpack.c.b16 %v3997, %v3990
  %v5076 = vpack.c.b16 %v3998, %v3991
  %v5077 = vpack.c.b16 %v4006, %v3999
  %v5078 = vpack.c.b16 %v4007, %v4000
  %v5079 = vpack.c.b16 %v4008, %v4001
  %v5080 = vpack.c.b16 %v4009, %v4002
  %v5081 = vpack.c.b16 %v4010, %v4003
  %v5082 = vpack.c.b16 %v4011, %v4004
  %v5083 = vpack.c.b16 %v4012, %v4005
  %v5084 = vpack.c.b16 %v4020, %v4013
  %v5085 = vpack.c.b16 %v4021, %v4014
  %v5086 = vpack.c.b16 %v4022, %v4015
  %v5087 = vpack.c.b16 %v4023, %v4016
  %v5088 = vpack.c.b16 %v4024, %v4017
  %v5089 = vpack.c.b16 %v4025, %v4018
  %v5090 = vpack.c.b16 %v4026, %v4019
  %v5091 = vpack.c.b16 %v4034, %v4027
  %v5092 = vpack.c.b16 %v4035, %v4028
  %v5093 = vpack.c.b16 %v4036, %v4029
  %v5094 = vpack.c.b16 %v4037, %v4030
  %v5095 = vpack.c.b16 %v4038, %v4031
  %v5096 = vpack.c.b16 %v4039, %v4032
  %v5097 = vpack.c.b16 %v4040, %v4033
  %v5098 = vpack.c.b16 %v4048, %v4041
  %v5099 = vpack.c.b16 %v4049, %v4042
  %v5100 = vpack.c.b16 %v4050, %v4043
  %v5101 = vpack.c.b16 %v4051, %v4044
  %v5102 = vpack.c.b16 %v4052, %v4045
  %v5103 = vpack.c.b16 %v4053, %v4046
  %v5104 = vpack.c.b16 %v4054, %v4047
  %v5105 = vpack.c.b16 %v4062, %v4055
  %v5106 = vpack.c.b16 %v4063, %v4056
  %v5107 = vpack.c.b16 %v4064, %v4057
  %v5108 = vpack.c.b16 %v4065, %v4058
  %v5109 = vpack.c.b16 %v4066, %v4059
  %v5110 = vpack.c.b16 %v4067, %v4060
  %v5111 = vpack.c.b16 %v4068, %v4061
  %v5112 = vpack.c.b16 %v4076, %v4069
  %v5113 = vpack.c.b16 %v4077, %v4070
  %v5114 = vpack.c.b16 %v4078, %v4071
  %v5115 = vpack.c.b16 %v4079, %v4072
  %v5116 = vpack.c.b16 %v4080, %v4073
  %v5117 = vpack.c.b16 %v4081, %v4074
  %v5118 = vpack.c.b16 %v4082, %v4075
  %v5119 = vpack.c.b16 %v4090, %v4083
  %v5120 = vpack.c.b16 %v4091, %v4084
  %v5121 = vpack.c.b16 %v4092, %v4085
  %v5122 = vpack.c.b16 %v4093, %v4086
  %v5123 = vpack.c.b16 %v4094, %v4087
  %v5124 = vpack.c.b16 %v4095, %v4088
  %v5125 = vpack.c.b16 %v4096, %v4089
  %v5126 = vpack.c.b16 %v4104, %v4097
  %v5127 = vpack.c.b16 %v4105, %v4098
  %v5128 = vpack.c.b16 %v4106, %v4099
  %v5129 = vpack.c.b16 %v4107, %v4100
  %v5130 = vpack.c.b16 %v4108, %v4101
  %v5131 = vpack.c.b16 %v4109, %v4102
  %v5132 = vpack.c.b16 %v4110, %v4103
  %v5133 = vpack.c.b16 %v4118, %v4111
  %v5134 = vpack.c.b16 %v4119, %v4112
  %v5135 = vpack.c.b16 %v4120, %v4113
  %v5136 = vpack.c.b16 %v4121, %v4114
  %v5137 = vpack.c.b16 %v4122, %v4115
  %v5138 = vpack.c.b16 %v4123, %v4116
  %v5139 = vpack.c.b16 %v4124, %v4117
  %v5140 = vpack.c.b16 %v4132, %v4125
  %v5141 = vpack.c.b16 %v4133, %v4126
  %v5142 = vpack.c.b16 %v4134, %v4127
  %v5143 = vpack.c.b16 %v4135, %v4128
  %v5144 = vpack.c.b16 %v4136, %v4129
  %v5145 = vpack.c.b16 %v4137, %v4130
  %v5146 = vpack.c.b16 %v4138, %v4131
  %v5147 = vpack.c.b16 %v4146, %v4139
  %v5148 = vpack.c.b16 %v4147, %v4140
  %v5149 = vpack.c.b16 %v4148, %v4141
  %v5150 = vpack.c.b16 %v4149, %v4142
  %v5151 = vpack.c.b16 %v4150, %v4143
  %v5152 = vpack.c.b16 %v4151, %v4144
  %v5153 = vpack.c.b16 %v4152, %v4145
  %v5154 = vpack.c.b16 %v4160, %v4153
  %v5155 = vpack.c.b16 %v4161, %v4154
  %v5156 = vpack.c.b16 %v4162, %v4155
  %v5157 = vpack.c.b16 %v4163, %v4156
  %v5158 = vpack.c.b16 %v4164, %v4157
  %v5159 = vpack.c.b16 %v4165, %v4158
  %v5160 = vpack.c.b16 %v4166, %v4159
  %v5161 = vpack.c.b16 %v4174, %v4167
  %v5162 = vpack.c.b16 %v4175, %v4168
  %v5163 = vpack.c.b16 %v4176, %v4169
  %v5164 = vpack.c.b16 %v4177, %v4170
  %v5165 = vpack.c.b16 %v4178, %v4171
  %v5166 = vpack.c.b16 %v4179, %v4172
  %v5167 = vpack.c.b16 %v4180, %v4173
  %v5168 = vpack.c.b16 %v4188, %v4181
  %v5169 = vpack.c.b16 %v4189, %v4182
  %v5170 = vpack.c.b16 %v4190, %v4183
  %v5171 = vpack.c.b16 %v4191, %v4184
  %v5172 = vpack.c.b16 %v4192, %v4185
  %v5173 = vpack.c.b16 %v4193, %v4186
  %v5174 = vpack.c.b16 %v4194, %v4187
  %v5175 = vpack.c.b16 %v4202, %v4195
  %v5176 = vpack.c.b16 %v4203, %v4196
  %v5177 = vpack.c.b16 %v4204, %v4197
  %v5178 = vpack.c.b16 %v4205, %v4198
  %v5179 = vpack.c.b16 %v4206, %v4199
  %v5180 = vpack.c.b16 %v4207, %v4200
  %v5181 = vpack.c.b16 %v4208, %v4201
  %v5182 = vpack.c.b16 %v4216, %v4209
  %v5183 = vpack.c.b16 %v4217, %v4210
  %v5184 = vpack.c.b16 %v4218, %v4211
  %v5185 = vpack.c.b16 %v4219, %v4212
  %v5186 = vpack.c.b16 %v4220, %v4213
  %v5187 = vpack.c.b16 %v4221, %v4214
  %v5188 = vpack.c.b16 %v4222, %v4215
  %v5189 = vpack.c.b16 %v4230, %v4223
  %v5190 = vpack.c.b16 %v4231, %v4224
  %v5191 = vpack.c.b16 %v4232, %v4225
  %v5192 = vpack.c.b16 %v4233, %v4226
  %v5193 = vpack.c.b16 %v4234, %v4227
  %v5194 = vpack.c.b16 %v4235, %v4228
  %v5195 = vpack.c.b16 %v4236, %v4229
  %v5196 = vpack.c.b16 %v4244, %v4237
  %v5197 = vpack.c.b16 %v4245, %v4238
  %v5198 = vpack.c.b16 %v4246, %v4239
  %v5199 = vpack.c.b16 %v4247, %v4240
  %v5200 = vpack.c.b16 %v4248, %v4241
  %v5201 = vpack.c.b16 %v4249, %v4242
  %v5202 = vpack.c.b16 %v4250, %v4243
  %v5203 = vpack.c.b16 %v4258, %v4251
  %v5204 = vpack.c.b16 %v4259, %v4252
  %v5205 = vpack.c.b16 %v4260, %v4253
  %v5206 = vpack.c.b16 %v4261, %v4254
  %v5207 = vpack.c.b16 %v4262, %v4255
  %v5208 = vpack.c.b16 %v4263, %v4256
  %v5209 = vpack.c.b16 %v4264, %v4257
  %v5210 = vpack.c.b16 %v4272, %v4265
  %v5211 = vpack.c.b16 %v4273, %v4266
  %v5212 = vpack.c.b16 %v4274, %v4267
  %v5213 = vpack.c.b16 %v4275, %v4268
  %v5214 = vpack.c.b16 %v4276, %v4269
  %v5215 = vpack.c.b16 %v4277, %v4270
  %v5216 = vpack.c.b16 %v4278, %v4271
  %v5217 = vpack.c.b16 %v4286, %v4279
  %v5218 = vpack.c.b16 %v4287, %v4280
  %v5219 = vpack.c.b16 %v4288, %v4281
  %v5220 = vpack.c.b16 %v4289, %v4282
  %v5221 = vpack.c.b16 %v4290, %v4283
  %v5222 = vpack.c.b16 %v4291, %v4284
  %v5223 = vpack.c.b16 %v4292, %v4285
  %v5224 = vpack.c.b16 %v4300, %v4293
  %v5225 = vpack.c.b16 %v4301, %v4294
  %v5226 = vpack.c.b16 %v4302, %v4295
  %v5227 = vpack.c.b16 %v4303, %v4296
  %v5228 = vpack.c.b16 %v4304, %v4297
  %v5229 = vpack.c.b16 %v4305, %v4298
  %v5230 = vpack.c.b16 %v4306, %v4299
  %v5231 = vpack.c.b16 %v4314, %v4307
  %v5232 = vpack.c.b16 %v4315, %v4308
  %v5233 = vpack.c.b16 %v4316, %v4309
  %v5234 = vpack.c.b16 %v4317, %v4310
  %v5235 = vpack.c.b16 %v4318, %v4311
  %v5236 = vpack.c.b16 %v4319, %v4312
  %v5237 = vpack.c.b16 %v4320, %v4313
  %v5238 = vpack.c.b16 %v4328, %v4321
  %v5239 = vpack.c.b16 %v4329, %v4322
  %v5240 = vpack.c.b16 %v4330, %v4323
  %v5241 = vpack.c.b16 %v4331, %v4324
  %v5242 = vpack.c.b16 %v4332, %v4325
  %v5243 = vpack.c.b16 %v4333, %v4326
  %v5244 = vpack.c.b16 %v4334, %v4327
  %v5245 = vpack.c.b16 %v4342, %v4335
  %v5246 = vpack.c.b16 %v4343, %v4336
  %v5247 = vpack.c.b16 %v4344, %v4337
  %v5248 = vpack.c.b16 %v4345, %v4338
  %v5249 = vpack.c.b16 %v4346, %v4339
  %v5250 = vpack.c.b16 %v4347, %v4340
  %v5251 = vpack.c.b16 %v4348, %v4341
  %v5252 = vpack.c.b16 %v4356, %v4349
  %v5253 = vpack.c.b16 %v4357, %v4350
  %v5254 = vpack.c.b16 %v4358, %v4351
  %v5255 = vpack.c.b16 %v4359, %v4352
  %v5256 = vpack.c.b16 %v4360, %v4353
  %v5257 = vpack.c.b16 %v4361, %v4354
  %v5258 = vpack.c.b16 %v4362, %v4355
  %v5259 = vpack.c.b16 %v4370, %v4363
  %v5260 = vpack.c.b16 %v4371, %v4364
  %v5261 = vpack.c.b16 %v4372, %v4365
  %v5262 = vpack.c.b16 %v4373, %v4366
  %v5263 = vpack.c.b16 %v4374, %v4367
  %v5264 = vpack.c.b16 %v4375, %v4368
  %v5265 = vpack.c.b16 %v4376, %v4369
  %v5266 = vpack.c.b16 %v4384, %v4377
  %v5267 = vpack.c.b16 %v4385, %v4378
  %v5268 = vpack.c.b16 %v4386, %v4379
  %v5269 = vpack.c.b16 %v4387, %v4380
  %v5270 = vpack.c.b16 %v4388, %v4381
  %v5271 = vpack.c.b16 %v4389, %v4382
  %v5272 = vpack.c.b16 %v4390, %v4383
  %v5273 = vpack.c.b16 %v4398, %v4391
  %v5274 = vpack.c.b16 %v4399, %v4392
  %v5275 = vpack.c.b16 %v4400, %v4393
  %v5276 = vpack.c.b16 %v4401, %v4394
  %v5277 = vpack.c.b16 %v4402, %v4395
  %v5278 = vpack.c.b16 %v4403, %v4396
  %v5279 = vpack.c.b16 %v4404, %v4397
  %v5280 = vpack.c.b16 %v4412, %v4405
  %v5281 = vpack.c.b16 %v4413, %v4406
  %v5282 = vpack.c.b16 %v4414, %v4407
  %v5283 = vpack.c.b16 %v4415, %v4408
  %v5284 = vpack.c.b16 %v4416, %v4409
  %v5285 = vpack.c.b16 %v4417, %v4410
  %v5286 = vpack.c.b16 %v4418, %v4411
  %v5287 = vpack.c.b16 %v4426, %v4419
  %v5288 = vpack.c.b16 %v4427, %v4420
  %v5289 = vpack.c.b16 %v4428, %v4421
  %v5290 = vpack.c.b16 %v4429, %v4422
  %v5291 = vpack.c.b16 %v4430, %v4423
  %v5292 = vpack.c.b16 %v4431, %v4424
  %v5293 = vpack.c.b16 %v4432, %v4425
  %v5294 = vpack.c.b16 %v4440, %v4433
  %v5295 = vpack.c.b16 %v4441, %v4434
  %v5296 = vpack.c.b16 %v4442, %v4435
  %v5297 = vpack.c.b16 %v4443, %v4436
  %v5298 = vpack.c.b16 %v4444, %v4437
  %v5299 = vpack.c.b16 %v4445, %v4438
  %v5300 = vpack.c.b16 %v4446, %v4439
  %v5301 = vpack.c.b16 %v4454, %v4447
  %v5302 = vpack.c.b16 %v4455, %v4448
  %v5303 = vpack.c.b16 %v4456, %v4449
  %v5304 = vpack.c.b16 %v4457, %v4450
  %v5305 = vpack.c.b16 %v4458, %v4451
  %v5306 = vpack.c.b16 %v4459, %v4452
  %v5307 = vpack.c.b16 %v4460, %v4453
  %v5308 = vpack.c.b16 %v4468, %v4461
  %v5309 = vpack.c.b16 %v4469, %v4462
  %v5310 = vpack.c.b16 %v4470, %v4463
  %v5311 = vpack.c.b16 %v4471, %v4464
  %v5312 = vpack.c.b16 %v4472, %v4465
  %v5313 = vpack.c.b16 %v4473, %v4466
  %v5314 = vpack.c.b16 %v4474, %v4467
  %v5315 = vpack.c.b16 %v4482, %v4475
  %v5316 = vpack.c.b16 %v4483, %v4476
  %v5317 = vpack.c.b16 %v4484, %v4477
  %v5318 = vpack.c.b16 %v4485, %v4478
  %v5319 = vpack.c.b16 %v4486, %v4479
  %v5320 = vpack.c.b16 %v4487, %v4480
  %v5321 = vpack.c.b16 %v4488, %v4481
  %v5322 = vpack.c.b16 %v4496, %v4489
  %v5323 = vpack.c.b16 %v4497, %v4490
  %v5324 = vpack.c.b16 %v4498, %v4491
  %v5325 = vpack.c.b16 %v4499, %v4492
  %v5326 = vpack.c.b16 %v4500, %v4493
  %v5327 = vpack.c.b16 %v4501, %v4494
  %v5328 = vpack.c.b16 %v4502, %v4495
  %v5329 = vpack.c.b16 %v4510, %v4503
  %v5330 = vpack.c.b16 %v4511, %v4504
  %v5331 = vpack.c.b16 %v4512, %v4505
  %v5332 = vpack.c.b16 %v4513, %v4506
  %v5333 = vpack.c.b16 %v4514, %v4507
  %v5334 = vpack.c.b16 %v4515, %v4508
  %v5335 = vpack.c.b16 %v4516, %v4509
  %v5336 = vpack.c.b16 %v4524, %v4517
  %v5337 = vpack.c.b16 %v4525, %v4518
  %v5338 = vpack.c.b16 %v4526, %v4519
  %v5339 = vpack.c.b16 %v4527, %v4520
  %v5340 = vpack.c.b16 %v4528, %v4521
  %v5341 = vpack.c.b16 %v4529, %v4522
  %v5342 = vpack.c.b16 %v4530, %v4523
  %v5343 = vpack.c.b16 %v4538, %v4531
  %v5344 = vpack.c.b16 %v4539, %v4532
  %v5345 = vpack.c.b16 %v4540, %v4533
  %v5346 = vpack.c.b16 %v4541, %v4534
  %v5347 = vpack.c.b16 %v4542, %v4535
  %v5348 = vpack.c.b16 %v4543, %v4536
  %v5349 = vpack.c.b16 %v4544, %v4537
  %v5350 = vpack.c.b16 %v4552, %v4545
  %v5351 = vpack.c.b16 %v4553, %v4546
  %v5352 = vpack.c.b16 %v4554, %v4547
  %v5353 = vpack.c.b16 %v4555, %v4548
  %v5354 = vpack.c.b16 %v4556, %v4549
  %v5355 = vpack.c.b16 %v4557, %v4550
  %v5356 = vpack.c.b16 %v4558, %v4551
  %v5357 = vpack.c.b16 %v4566, %v4559
  %v5358 = vpack.c.b16 %v4567, %v4560
  %v5359 = vpack.c.b16 %v4568, %v4561
  %v5360 = vpack.c.b16 %v4569, %v4562
  %v5361 = vpack.c.b16 %v4570, %v4563
  %v5362 = vpack.c.b16 %v4571, %v4564
  %v5363 = vpack.c.b16 %v4572, %v4565
  %v5364 = vpack.c.b16 %v4580, %v4573
  %v5365 = vpack.c.b16 %v4581, %v4574
  %v5366 = vpack.c.b16 %v4582, %v4575
  %v5367 = vpack.c.b16 %v4583, %v4576
  %v5368 = vpack.c.b16 %v4584, %v4577
  %v5369 = vpack.c.b16 %v4585, %v4578
  %v5370 = vpack.c.b16 %v4586, %v4579
  %v5371 = vpack.c.b16 %v4594, %v4587
  %v5372 = vpack.c.b16 %v4595, %v4588
  %v5373 = vpack.c.b16 %v4596, %v4589
  %v5374 = vpack.c.b16 %v4597, %v4590
  %v5375 = vpack.c.b16 %v4598, %v4591
  %v5376 = vpack.c.b16 %v4599, %v4592
  %v5377 = vpack.c.b16 %v4600, %v4593
  %v5378 = vpack.c.b16 %v4608, %v4601
  %v5379 = vpack.c.b16 %v4609, %v4602
  %v5380 = vpack.c.b16 %v4610, %v4603
  %v5381 = vpack.c.b16 %v4611, %v4604
  %v5382 = vpack.c.b16 %v4612, %v4605
  %v5383 = vpack.c.b16 %v4613, %v4606
  %v5384 = vpack.c.b16 %v4614, %v4607
  %vm6148 = vcmask 744448
  %v6150 = vsel %vm6148, %v1776, 0
  %v6153 = vsel %vm6148, %v1790, 0
  %v6156 = vsel %vm6148, %v1804, 0
  %v6159 = vsel %vm6148, %v1818, 0
  %v6162 = vsel %vm6148, %v1832, 0
  %v6165 = vsel %vm6148, %v1846, 0
  %v6168 = vsel %vm6148, %v1860, 0
  %v6171 = vsel %vm6148, %v1874, 0
  %v6174 = vsel %vm6148, %v1888, 0
  %v6177 = vsel %vm6148, %v1902, 0
  %v6180 = vsel %vm6148, %v1916, 0
  %v6183 = vsel %vm6148, %v1930, 0
  %v6186 = vsel %vm6148, %v1944, 0
  %v6189 = vsel %vm6148, %v1958, 0
  %v6192 = vsel %vm6148, %v1972, 0
  %v6195 = vsel %vm6148, %v1986, 0
  %vm6197 = vcmask 1044480
  %vm6198 = vcmask 1045504
  %v6199 = vsel %vm6197, 4294967295, 65535
  %v6200 = vsel %vm6198, %v6199, 0
  %v6202 = vand.u32 %v5378, %v6200
  %v6205 = vand.u32 %v5379, %v6200
  %v6208 = vand.u32 %v5380, %v6200
  %v6211 = vand.u32 %v5381, %v6200
  %v6214 = vand.u32 %v5382, %v6200
  %v6217 = vand.u32 %v5383, %v6200
  %v6220 = vand.u32 %v5384, %v6200
  %6222 = vmatprep.subr.bf16.mxu0 %v4665
  %6223 = vmatpush1.bf16.msra.mxu0 %v4664
  %6224 = vmatprep.subr.bf16.mxu0 %v4658
  %6225 = vmatpush1.bf16.msra.mxu0 %v4657
  %6226 = vmatprep.subr.bf16.mxu0 %v4651
  %6227 = vmatpush1.bf16.msra.mxu0 %v4650
  %6228 = vmatprep.subr.bf16.mxu0 %v4644
  %6229 = vmatpush1.bf16.msra.mxu0 %v4643
  %6230 = vmatprep.subr.bf16.mxu0 %v4637
  %6231 = vmatpush1.bf16.msra.mxu0 %v4636
  %6232 = vmatprep.subr.bf16.mxu0 %v4630
  %6233 = vmatpush1.bf16.msra.mxu0 %v4629
  %6234 = vmatprep.subr.bf16.mxu0 %v4623
  %6235 = vmatpush1.bf16.msra.mxu0 %v4622
  %6236 = vmatprep.subr.bf16.mxu0 %v4616
  %6237 = vmatpush1.bf16.msra.mxu0 %v4615
  %6238 = vmatprep.subr.bf16.mxu0 %v4721
  %6239 = vmatpush2.bf16.msra.mxu0 %v4720
  %6240 = vmatprep.subr.bf16.mxu0 %v4714
  %6241 = vmatpush2.bf16.msra.mxu0 %v4713
  %6242 = vmatprep.subr.bf16.mxu0 %v4707
  %6243 = vmatpush2.bf16.msra.mxu0 %v4706
  %6244 = vmatprep.subr.bf16.mxu0 %v4700
  %6245 = vmatpush2.bf16.msra.mxu0 %v4699
  %6246 = vmatprep.subr.bf16.mxu0 %v4693
  %6247 = vmatpush2.bf16.msra.mxu0 %v4692
  %6248 = vmatprep.subr.bf16.mxu0 %v4686
  %6249 = vmatpush2.bf16.msra.mxu0 %v4685
  %6250 = vmatprep.subr.bf16.mxu0 %v4679
  %6251 = vmatpush2.bf16.msra.mxu0 %v4678
  %6252 = vmatprep.subr.bf16.mxu0 %v4672
  %6253 = vmatpush2.bf16.msra.mxu0 %v4671
  %6254 = vmatprep.mubr.bf16.mxu0 %v1764
  %6255 = vmatmul.mubr.bf16.gmra.mxu0 %v1763
  %v6256 = vpop.f32.mrf.mxu0
  %v6257 = vadd.f32 0.0, %v6256
  %v6258 = vpop.f32.mrf.mxu0
  %v6259 = vadd.f32 0.0, %v6258
  %v6260 = vpop.f32.mrf.mxu0
  %v6261 = vadd.f32 0.0, %v6260
  %v6262 = vpop.f32.mrf.mxu0
  %v6263 = vadd.f32 0.0, %v6262
  %6264 = vmatprep.mubr.bf16.mxu0 %v1778
  %6265 = vmatmul.mubr.bf16.gmra.mxu0 %v1777
  %v6266 = vpop.f32.mrf.mxu0
  %v6267 = vadd.f32 0.0, %v6266
  %v6268 = vpop.f32.mrf.mxu0
  %v6269 = vadd.f32 0.0, %v6268
  %v6270 = vpop.f32.mrf.mxu0
  %v6271 = vadd.f32 0.0, %v6270
  %v6272 = vpop.f32.mrf.mxu0
  %v6273 = vadd.f32 0.0, %v6272
  %6274 = vmatprep.mubr.bf16.mxu0 %v1792
  %6275 = vmatmul.mubr.bf16.gmra.mxu0 %v1791
  %v6276 = vpop.f32.mrf.mxu0
  %v6277 = vadd.f32 0.0, %v6276
  %v6278 = vpop.f32.mrf.mxu0
  %v6279 = vadd.f32 0.0, %v6278
  %v6280 = vpop.f32.mrf.mxu0
  %v6281 = vadd.f32 0.0, %v6280
  %v6282 = vpop.f32.mrf.mxu0
  %v6283 = vadd.f32 0.0, %v6282
  %6284 = vmatprep.mubr.bf16.mxu0 %v1806
  %6285 = vmatmul.mubr.bf16.gmra.mxu0 %v1805
  %v6286 = vpop.f32.mrf.mxu0
  %v6287 = vadd.f32 0.0, %v6286
  %v6288 = vpop.f32.mrf.mxu0
  %v6289 = vadd.f32 0.0, %v6288
  %v6290 = vpop.f32.mrf.mxu0
  %v6291 = vadd.f32 0.0, %v6290
  %v6292 = vpop.f32.mrf.mxu0
  %v6293 = vadd.f32 0.0, %v6292
  %6294 = vmatprep.mubr.bf16.mxu0 %v1820
  %6295 = vmatmul.mubr.bf16.gmra.mxu0 %v1819
  %v6296 = vpop.f32.mrf.mxu0
  %v6297 = vadd.f32 0.0, %v6296
  %v6298 = vpop.f32.mrf.mxu0
  %v6299 = vadd.f32 0.0, %v6298
  %v6300 = vpop.f32.mrf.mxu0
  %v6301 = vadd.f32 0.0, %v6300
  %v6302 = vpop.f32.mrf.mxu0
  %v6303 = vadd.f32 0.0, %v6302
  %6304 = vmatprep.mubr.bf16.mxu0 %v1834
  %6305 = vmatmul.mubr.bf16.gmra.mxu0 %v1833
  %v6306 = vpop.f32.mrf.mxu0
  %v6307 = vadd.f32 0.0, %v6306
  %v6308 = vpop.f32.mrf.mxu0
  %v6309 = vadd.f32 0.0, %v6308
  %v6310 = vpop.f32.mrf.mxu0
  %v6311 = vadd.f32 0.0, %v6310
  %v6312 = vpop.f32.mrf.mxu0
  %v6313 = vadd.f32 0.0, %v6312
  %6314 = vmatprep.mubr.bf16.mxu0 %v1848
  %6315 = vmatmul.mubr.bf16.gmra.mxu0 %v1847
  %v6316 = vpop.f32.mrf.mxu0
  %v6317 = vadd.f32 0.0, %v6316
  %v6318 = vpop.f32.mrf.mxu0
  %v6319 = vadd.f32 0.0, %v6318
  %v6320 = vpop.f32.mrf.mxu0
  %v6321 = vadd.f32 0.0, %v6320
  %v6322 = vpop.f32.mrf.mxu0
  %v6323 = vadd.f32 0.0, %v6322
  %6324 = vmatprep.mubr.bf16.mxu0 %v1862
  %6325 = vmatmul.mubr.bf16.gmra.mxu0 %v1861
  %v6326 = vpop.f32.mrf.mxu0
  %v6327 = vadd.f32 0.0, %v6326
  %v6328 = vpop.f32.mrf.mxu0
  %v6329 = vadd.f32 0.0, %v6328
  %v6330 = vpop.f32.mrf.mxu0
  %v6331 = vadd.f32 0.0, %v6330
  %v6332 = vpop.f32.mrf.mxu0
  %v6333 = vadd.f32 0.0, %v6332
  %6334 = vmatprep.mubr.bf16.mxu0 %v1876
  %6335 = vmatmul.mubr.bf16.gmra.mxu0 %v1875
  %v6336 = vpop.f32.mrf.mxu0
  %v6337 = vadd.f32 0.0, %v6336
  %v6338 = vpop.f32.mrf.mxu0
  %v6339 = vadd.f32 0.0, %v6338
  %v6340 = vpop.f32.mrf.mxu0
  %v6341 = vadd.f32 0.0, %v6340
  %v6342 = vpop.f32.mrf.mxu0
  %v6343 = vadd.f32 0.0, %v6342
  %6344 = vmatprep.mubr.bf16.mxu0 %v1890
  %6345 = vmatmul.mubr.bf16.gmra.mxu0 %v1889
  %v6346 = vpop.f32.mrf.mxu0
  %v6347 = vadd.f32 0.0, %v6346
  %v6348 = vpop.f32.mrf.mxu0
  %v6349 = vadd.f32 0.0, %v6348
  %v6350 = vpop.f32.mrf.mxu0
  %v6351 = vadd.f32 0.0, %v6350
  %v6352 = vpop.f32.mrf.mxu0
  %v6353 = vadd.f32 0.0, %v6352
  %6354 = vmatprep.mubr.bf16.mxu0 %v1904
  %6355 = vmatmul.mubr.bf16.gmra.mxu0 %v1903
  %v6356 = vpop.f32.mrf.mxu0
  %v6357 = vadd.f32 0.0, %v6356
  %v6358 = vpop.f32.mrf.mxu0
  %v6359 = vadd.f32 0.0, %v6358
  %v6360 = vpop.f32.mrf.mxu0
  %v6361 = vadd.f32 0.0, %v6360
  %v6362 = vpop.f32.mrf.mxu0
  %v6363 = vadd.f32 0.0, %v6362
  %6364 = vmatprep.mubr.bf16.mxu0 %v1918
  %6365 = vmatmul.mubr.bf16.gmra.mxu0 %v1917
  %v6366 = vpop.f32.mrf.mxu0
  %v6367 = vadd.f32 0.0, %v6366
  %v6368 = vpop.f32.mrf.mxu0
  %v6369 = vadd.f32 0.0, %v6368
  %v6370 = vpop.f32.mrf.mxu0
  %v6371 = vadd.f32 0.0, %v6370
  %v6372 = vpop.f32.mrf.mxu0
  %v6373 = vadd.f32 0.0, %v6372
  %6374 = vmatprep.mubr.bf16.mxu0 %v1932
  %6375 = vmatmul.mubr.bf16.gmra.mxu0 %v1931
  %v6376 = vpop.f32.mrf.mxu0
  %v6377 = vadd.f32 0.0, %v6376
  %v6378 = vpop.f32.mrf.mxu0
  %v6379 = vadd.f32 0.0, %v6378
  %v6380 = vpop.f32.mrf.mxu0
  %v6381 = vadd.f32 0.0, %v6380
  %v6382 = vpop.f32.mrf.mxu0
  %v6383 = vadd.f32 0.0, %v6382
  %6384 = vmatprep.mubr.bf16.mxu0 %v1946
  %6385 = vmatmul.mubr.bf16.gmra.mxu0 %v1945
  %v6386 = vpop.f32.mrf.mxu0
  %v6387 = vadd.f32 0.0, %v6386
  %v6388 = vpop.f32.mrf.mxu0
  %v6389 = vadd.f32 0.0, %v6388
  %v6390 = vpop.f32.mrf.mxu0
  %v6391 = vadd.f32 0.0, %v6390
  %v6392 = vpop.f32.mrf.mxu0
  %v6393 = vadd.f32 0.0, %v6392
  %6394 = vmatprep.mubr.bf16.mxu0 %v1960
  %6395 = vmatmul.mubr.bf16.gmra.mxu0 %v1959
  %v6396 = vpop.f32.mrf.mxu0
  %v6397 = vadd.f32 0.0, %v6396
  %v6398 = vpop.f32.mrf.mxu0
  %v6399 = vadd.f32 0.0, %v6398
  %v6400 = vpop.f32.mrf.mxu0
  %v6401 = vadd.f32 0.0, %v6400
  %v6402 = vpop.f32.mrf.mxu0
  %v6403 = vadd.f32 0.0, %v6402
  %6404 = vmatprep.mubr.bf16.mxu0 %v1974
  %6405 = vmatmul.mubr.bf16.gmra.mxu0 %v1973
  %v6406 = vpop.f32.mrf.mxu0
  %v6407 = vadd.f32 0.0, %v6406
  %v6408 = vpop.f32.mrf.mxu0
  %v6409 = vadd.f32 0.0, %v6408
  %v6410 = vpop.f32.mrf.mxu0
  %v6411 = vpop.f32.mrf.mxu0
  %6412 = vdwg.mxu0
  %6413 = vmatprep.subr.bf16.mxu0 %v4777
  %6414 = vmatpush1.bf16.msra.mxu0 %v4776
  %6415 = vmatprep.subr.bf16.mxu0 %v4770
  %6416 = vmatpush1.bf16.msra.mxu0 %v4769
  %6417 = vmatprep.subr.bf16.mxu0 %v4763
  %6418 = vmatpush1.bf16.msra.mxu0 %v4762
  %6419 = vmatprep.subr.bf16.mxu0 %v4756
  %6420 = vmatpush1.bf16.msra.mxu0 %v4755
  %6421 = vmatprep.subr.bf16.mxu0 %v4749
  %6422 = vmatpush1.bf16.msra.mxu0 %v4748
  %6423 = vmatprep.subr.bf16.mxu0 %v4742
  %6424 = vmatpush1.bf16.msra.mxu0 %v4741
  %6425 = vmatprep.subr.bf16.mxu0 %v4735
  %6426 = vmatpush1.bf16.msra.mxu0 %v4734
  %6427 = vmatprep.subr.bf16.mxu0 %v4728
  %6428 = vmatpush1.bf16.msra.mxu0 %v4727
  %6429 = vmatprep.subr.bf16.mxu0 %v4833
  %6430 = vmatpush2.bf16.msra.mxu0 %v4832
  %6431 = vmatprep.subr.bf16.mxu0 %v4826
  %6432 = vmatpush2.bf16.msra.mxu0 %v4825
  %6433 = vmatprep.subr.bf16.mxu0 %v4819
  %6434 = vmatpush2.bf16.msra.mxu0 %v4818
  %6435 = vmatprep.subr.bf16.mxu0 %v4812
  %6436 = vmatpush2.bf16.msra.mxu0 %v4811
  %6437 = vmatprep.subr.bf16.mxu0 %v4805
  %6438 = vmatpush2.bf16.msra.mxu0 %v4804
  %6439 = vmatprep.subr.bf16.mxu0 %v4798
  %6440 = vmatpush2.bf16.msra.mxu0 %v4797
  %6441 = vmatprep.subr.bf16.mxu0 %v4791
  %6442 = vmatpush2.bf16.msra.mxu0 %v4790
  %6443 = vmatprep.subr.bf16.mxu0 %v4784
  %6444 = vmatpush2.bf16.msra.mxu0 %v4783
  %6445 = vmatprep.mubr.bf16.mxu0 %v1766
  %6446 = vmatmul.mubr.bf16.gmra.mxu0 %v1765
  %v6447 = vpop.f32.mrf.mxu0
  %v6448 = vadd.f32 %v6257, %v6447
  %v6449 = vpop.f32.mrf.mxu0
  %v6450 = vadd.f32 %v6259, %v6449
  %v6451 = vpop.f32.mrf.mxu0
  %v6452 = vadd.f32 %v6261, %v6451
  %v6453 = vpop.f32.mrf.mxu0
  %v6454 = vadd.f32 %v6263, %v6453
  %6455 = vmatprep.mubr.bf16.mxu0 %v1780
  %6456 = vmatmul.mubr.bf16.gmra.mxu0 %v1779
  %v6457 = vpop.f32.mrf.mxu0
  %v6458 = vadd.f32 %v6267, %v6457
  %v6459 = vpop.f32.mrf.mxu0
  %v6460 = vadd.f32 %v6269, %v6459
  %v6461 = vpop.f32.mrf.mxu0
  %v6462 = vadd.f32 %v6271, %v6461
  %v6463 = vpop.f32.mrf.mxu0
  %v6464 = vadd.f32 %v6273, %v6463
  %6465 = vmatprep.mubr.bf16.mxu0 %v1794
  %6466 = vmatmul.mubr.bf16.gmra.mxu0 %v1793
  %v6467 = vpop.f32.mrf.mxu0
  %v6468 = vadd.f32 %v6277, %v6467
  %v6469 = vpop.f32.mrf.mxu0
  %v6470 = vadd.f32 %v6279, %v6469
  %v6471 = vpop.f32.mrf.mxu0
  %v6472 = vadd.f32 %v6281, %v6471
  %v6473 = vpop.f32.mrf.mxu0
  %v6474 = vadd.f32 %v6283, %v6473
  %6475 = vmatprep.mubr.bf16.mxu0 %v1808
  %6476 = vmatmul.mubr.bf16.gmra.mxu0 %v1807
  %v6477 = vpop.f32.mrf.mxu0
  %v6478 = vadd.f32 %v6287, %v6477
  %v6479 = vpop.f32.mrf.mxu0
  %v6480 = vadd.f32 %v6289, %v6479
  %v6481 = vpop.f32.mrf.mxu0
  %v6482 = vadd.f32 %v6291, %v6481
  %v6483 = vpop.f32.mrf.mxu0
  %v6484 = vadd.f32 %v6293, %v6483
  %6485 = vmatprep.mubr.bf16.mxu0 %v1822
  %6486 = vmatmul.mubr.bf16.gmra.mxu0 %v1821
  %v6487 = vpop.f32.mrf.mxu0
  %v6488 = vadd.f32 %v6297, %v6487
  %v6489 = vpop.f32.mrf.mxu0
  %v6490 = vadd.f32 %v6299, %v6489
  %v6491 = vpop.f32.mrf.mxu0
  %v6492 = vadd.f32 %v6301, %v6491
  %v6493 = vpop.f32.mrf.mxu0
  %v6494 = vadd.f32 %v6303, %v6493
  %6495 = vmatprep.mubr.bf16.mxu0 %v1836
  %6496 = vmatmul.mubr.bf16.gmra.mxu0 %v1835
  %v6497 = vpop.f32.mrf.mxu0
  %v6498 = vadd.f32 %v6307, %v6497
  %v6499 = vpop.f32.mrf.mxu0
  %v6500 = vadd.f32 %v6309, %v6499
  %v6501 = vpop.f32.mrf.mxu0
  %v6502 = vadd.f32 %v6311, %v6501
  %v6503 = vpop.f32.mrf.mxu0
  %v6504 = vadd.f32 %v6313, %v6503
  %6505 = vmatprep.mubr.bf16.mxu0 %v1850
  %6506 = vmatmul.mubr.bf16.gmra.mxu0 %v1849
  %v6507 = vpop.f32.mrf.mxu0
  %v6508 = vadd.f32 %v6317, %v6507
  %v6509 = vpop.f32.mrf.mxu0
  %v6510 = vadd.f32 %v6319, %v6509
  %v6511 = vpop.f32.mrf.mxu0
  %v6512 = vadd.f32 %v6321, %v6511
  %v6513 = vpop.f32.mrf.mxu0
  %v6514 = vadd.f32 %v6323, %v6513
  %6515 = vmatprep.mubr.bf16.mxu0 %v1864
  %6516 = vmatmul.mubr.bf16.gmra.mxu0 %v1863
  %v6517 = vpop.f32.mrf.mxu0
  %v6518 = vadd.f32 %v6327, %v6517
  %v6519 = vpop.f32.mrf.mxu0
  %v6520 = vadd.f32 %v6329, %v6519
  %v6521 = vpop.f32.mrf.mxu0
  %v6522 = vadd.f32 %v6331, %v6521
  %v6523 = vpop.f32.mrf.mxu0
  %v6524 = vadd.f32 %v6333, %v6523
  %6525 = vmatprep.mubr.bf16.mxu0 %v1878
  %6526 = vmatmul.mubr.bf16.gmra.mxu0 %v1877
  %v6527 = vpop.f32.mrf.mxu0
  %v6528 = vadd.f32 %v6337, %v6527
  %v6529 = vpop.f32.mrf.mxu0
  %v6530 = vadd.f32 %v6339, %v6529
  %v6531 = vpop.f32.mrf.mxu0
  %v6532 = vadd.f32 %v6341, %v6531
  %v6533 = vpop.f32.mrf.mxu0
  %v6534 = vadd.f32 %v6343, %v6533
  %6535 = vmatprep.mubr.bf16.mxu0 %v1892
  %6536 = vmatmul.mubr.bf16.gmra.mxu0 %v1891
  %v6537 = vpop.f32.mrf.mxu0
  %v6538 = vadd.f32 %v6347, %v6537
  %v6539 = vpop.f32.mrf.mxu0
  %v6540 = vadd.f32 %v6349, %v6539
  %v6541 = vpop.f32.mrf.mxu0
  %v6542 = vadd.f32 %v6351, %v6541
  %v6543 = vpop.f32.mrf.mxu0
  %v6544 = vadd.f32 %v6353, %v6543
  %6545 = vmatprep.mubr.bf16.mxu0 %v1906
  %6546 = vmatmul.mubr.bf16.gmra.mxu0 %v1905
  %v6547 = vpop.f32.mrf.mxu0
  %v6548 = vadd.f32 %v6357, %v6547
  %v6549 = vpop.f32.mrf.mxu0
  %v6550 = vadd.f32 %v6359, %v6549
  %v6551 = vpop.f32.mrf.mxu0
  %v6552 = vadd.f32 %v6361, %v6551
  %v6553 = vpop.f32.mrf.mxu0
  %v6554 = vadd.f32 %v6363, %v6553
  %6555 = vmatprep.mubr.bf16.mxu0 %v1920
  %6556 = vmatmul.mubr.bf16.gmra.mxu0 %v1919
  %v6557 = vpop.f32.mrf.mxu0
  %v6558 = vadd.f32 %v6367, %v6557
  %v6559 = vpop.f32.mrf.mxu0
  %v6560 = vadd.f32 %v6369, %v6559
  %v6561 = vpop.f32.mrf.mxu0
  %v6562 = vadd.f32 %v6371, %v6561
  %v6563 = vpop.f32.mrf.mxu0
  %v6564 = vadd.f32 %v6373, %v6563
  %6565 = vmatprep.mubr.bf16.mxu0 %v1934
  %6566 = vmatmul.mubr.bf16.gmra.mxu0 %v1933
  %v6567 = vpop.f32.mrf.mxu0
  %v6568 = vadd.f32 %v6377, %v6567
  %v6569 = vpop.f32.mrf.mxu0
  %v6570 = vadd.f32 %v6379, %v6569
  %v6571 = vpop.f32.mrf.mxu0
  %v6572 = vadd.f32 %v6381, %v6571
  %v6573 = vpop.f32.mrf.mxu0
  %v6574 = vadd.f32 %v6383, %v6573
  %6575 = vmatprep.mubr.bf16.mxu0 %v1948
  %6576 = vmatmul.mubr.bf16.gmra.mxu0 %v1947
  %v6577 = vpop.f32.mrf.mxu0
  %v6578 = vadd.f32 %v6387, %v6577
  %v6579 = vpop.f32.mrf.mxu0
  %v6580 = vadd.f32 %v6389, %v6579
  %v6581 = vpop.f32.mrf.mxu0
  %v6582 = vadd.f32 %v6391, %v6581
  %v6583 = vpop.f32.mrf.mxu0
  %v6584 = vadd.f32 %v6393, %v6583
  %6585 = vmatprep.mubr.bf16.mxu0 %v1962
  %6586 = vmatmul.mubr.bf16.gmra.mxu0 %v1961
  %v6587 = vpop.f32.mrf.mxu0
  %v6588 = vadd.f32 %v6397, %v6587
  %v6589 = vpop.f32.mrf.mxu0
  %v6590 = vadd.f32 %v6399, %v6589
  %v6591 = vpop.f32.mrf.mxu0
  %v6592 = vadd.f32 %v6401, %v6591
  %v6593 = vpop.f32.mrf.mxu0
  %v6594 = vadd.f32 %v6403, %v6593
  %6595 = vmatprep.mubr.bf16.mxu0 %v1976
  %6596 = vmatmul.mubr.bf16.gmra.mxu0 %v1975
  %v6597 = vpop.f32.mrf.mxu0
  %v6598 = vadd.f32 %v6407, %v6597
  %v6599 = vpop.f32.mrf.mxu0
  %v6600 = vadd.f32 %v6409, %v6599
  %v6601 = vpop.f32.mrf.mxu0
  %v6602 = vpop.f32.mrf.mxu0
  %6603 = vdwg.mxu0
  %6604 = vmatprep.subr.bf16.mxu0 %v4889
  %6605 = vmatpush1.bf16.msra.mxu0 %v4888
  %6606 = vmatprep.subr.bf16.mxu0 %v4882
  %6607 = vmatpush1.bf16.msra.mxu0 %v4881
  %6608 = vmatprep.subr.bf16.mxu0 %v4875
  %6609 = vmatpush1.bf16.msra.mxu0 %v4874
  %6610 = vmatprep.subr.bf16.mxu0 %v4868
  %6611 = vmatpush1.bf16.msra.mxu0 %v4867
  %6612 = vmatprep.subr.bf16.mxu0 %v4861
  %6613 = vmatpush1.bf16.msra.mxu0 %v4860
  %6614 = vmatprep.subr.bf16.mxu0 %v4854
  %6615 = vmatpush1.bf16.msra.mxu0 %v4853
  %6616 = vmatprep.subr.bf16.mxu0 %v4847
  %6617 = vmatpush1.bf16.msra.mxu0 %v4846
  %6618 = vmatprep.subr.bf16.mxu0 %v4840
  %6619 = vmatpush1.bf16.msra.mxu0 %v4839
  %6620 = vmatprep.subr.bf16.mxu0 %v4945
  %6621 = vmatpush2.bf16.msra.mxu0 %v4944
  %6622 = vmatprep.subr.bf16.mxu0 %v4938
  %6623 = vmatpush2.bf16.msra.mxu0 %v4937
  %6624 = vmatprep.subr.bf16.mxu0 %v4931
  %6625 = vmatpush2.bf16.msra.mxu0 %v4930
  %6626 = vmatprep.subr.bf16.mxu0 %v4924
  %6627 = vmatpush2.bf16.msra.mxu0 %v4923
  %6628 = vmatprep.subr.bf16.mxu0 %v4917
  %6629 = vmatpush2.bf16.msra.mxu0 %v4916
  %6630 = vmatprep.subr.bf16.mxu0 %v4910
  %6631 = vmatpush2.bf16.msra.mxu0 %v4909
  %6632 = vmatprep.subr.bf16.mxu0 %v4903
  %6633 = vmatpush2.bf16.msra.mxu0 %v4902
  %6634 = vmatprep.subr.bf16.mxu0 %v4896
  %6635 = vmatpush2.bf16.msra.mxu0 %v4895
  %6636 = vmatprep.mubr.bf16.mxu0 %v1768
  %6637 = vmatmul.mubr.bf16.gmra.mxu0 %v1767
  %v6638 = vpop.f32.mrf.mxu0
  %v6639 = vadd.f32 %v6448, %v6638
  %v6640 = vpop.f32.mrf.mxu0
  %v6641 = vadd.f32 %v6450, %v6640
  %v6642 = vpop.f32.mrf.mxu0
  %v6643 = vadd.f32 %v6452, %v6642
  %v6644 = vpop.f32.mrf.mxu0
  %v6645 = vadd.f32 %v6454, %v6644
  %6646 = vmatprep.mubr.bf16.mxu0 %v1782
  %6647 = vmatmul.mubr.bf16.gmra.mxu0 %v1781
  %v6648 = vpop.f32.mrf.mxu0
  %v6649 = vadd.f32 %v6458, %v6648
  %v6650 = vpop.f32.mrf.mxu0
  %v6651 = vadd.f32 %v6460, %v6650
  %v6652 = vpop.f32.mrf.mxu0
  %v6653 = vadd.f32 %v6462, %v6652
  %v6654 = vpop.f32.mrf.mxu0
  %v6655 = vadd.f32 %v6464, %v6654
  %6656 = vmatprep.mubr.bf16.mxu0 %v1796
  %6657 = vmatmul.mubr.bf16.gmra.mxu0 %v1795
  %v6658 = vpop.f32.mrf.mxu0
  %v6659 = vadd.f32 %v6468, %v6658
  %v6660 = vpop.f32.mrf.mxu0
  %v6661 = vadd.f32 %v6470, %v6660
  %v6662 = vpop.f32.mrf.mxu0
  %v6663 = vadd.f32 %v6472, %v6662
  %v6664 = vpop.f32.mrf.mxu0
  %v6665 = vadd.f32 %v6474, %v6664
  %6666 = vmatprep.mubr.bf16.mxu0 %v1810
  %6667 = vmatmul.mubr.bf16.gmra.mxu0 %v1809
  %v6668 = vpop.f32.mrf.mxu0
  %v6669 = vadd.f32 %v6478, %v6668
  %v6670 = vpop.f32.mrf.mxu0
  %v6671 = vadd.f32 %v6480, %v6670
  %v6672 = vpop.f32.mrf.mxu0
  %v6673 = vadd.f32 %v6482, %v6672
  %v6674 = vpop.f32.mrf.mxu0
  %v6675 = vadd.f32 %v6484, %v6674
  %6676 = vmatprep.mubr.bf16.mxu0 %v1824
  %6677 = vmatmul.mubr.bf16.gmra.mxu0 %v1823
  %v6678 = vpop.f32.mrf.mxu0
  %v6679 = vadd.f32 %v6488, %v6678
  %v6680 = vpop.f32.mrf.mxu0
  %v6681 = vadd.f32 %v6490, %v6680
  %v6682 = vpop.f32.mrf.mxu0
  %v6683 = vadd.f32 %v6492, %v6682
  %v6684 = vpop.f32.mrf.mxu0
  %v6685 = vadd.f32 %v6494, %v6684
  %6686 = vmatprep.mubr.bf16.mxu0 %v1838
  %6687 = vmatmul.mubr.bf16.gmra.mxu0 %v1837
  %v6688 = vpop.f32.mrf.mxu0
  %v6689 = vadd.f32 %v6498, %v6688
  %v6690 = vpop.f32.mrf.mxu0
  %v6691 = vadd.f32 %v6500, %v6690
  %v6692 = vpop.f32.mrf.mxu0
  %v6693 = vadd.f32 %v6502, %v6692
  %v6694 = vpop.f32.mrf.mxu0
  %v6695 = vadd.f32 %v6504, %v6694
  %6696 = vmatprep.mubr.bf16.mxu0 %v1852
  %6697 = vmatmul.mubr.bf16.gmra.mxu0 %v1851
  %v6698 = vpop.f32.mrf.mxu0
  %v6699 = vadd.f32 %v6508, %v6698
  %v6700 = vpop.f32.mrf.mxu0
  %v6701 = vadd.f32 %v6510, %v6700
  %v6702 = vpop.f32.mrf.mxu0
  %v6703 = vadd.f32 %v6512, %v6702
  %v6704 = vpop.f32.mrf.mxu0
  %v6705 = vadd.f32 %v6514, %v6704
  %6706 = vmatprep.mubr.bf16.mxu0 %v1866
  %6707 = vmatmul.mubr.bf16.gmra.mxu0 %v1865
  %v6708 = vpop.f32.mrf.mxu0
  %v6709 = vadd.f32 %v6518, %v6708
  %v6710 = vpop.f32.mrf.mxu0
  %v6711 = vadd.f32 %v6520, %v6710
  %v6712 = vpop.f32.mrf.mxu0
  %v6713 = vadd.f32 %v6522, %v6712
  %v6714 = vpop.f32.mrf.mxu0
  %v6715 = vadd.f32 %v6524, %v6714
  %6716 = vmatprep.mubr.bf16.mxu0 %v1880
  %6717 = vmatmul.mubr.bf16.gmra.mxu0 %v1879
  %v6718 = vpop.f32.mrf.mxu0
  %v6719 = vadd.f32 %v6528, %v6718
  %v6720 = vpop.f32.mrf.mxu0
  %v6721 = vadd.f32 %v6530, %v6720
  %v6722 = vpop.f32.mrf.mxu0
  %v6723 = vadd.f32 %v6532, %v6722
  %v6724 = vpop.f32.mrf.mxu0
  %v6725 = vadd.f32 %v6534, %v6724
  %6726 = vmatprep.mubr.bf16.mxu0 %v1894
  %6727 = vmatmul.mubr.bf16.gmra.mxu0 %v1893
  %v6728 = vpop.f32.mrf.mxu0
  %v6729 = vadd.f32 %v6538, %v6728
  %v6730 = vpop.f32.mrf.mxu0
  %v6731 = vadd.f32 %v6540, %v6730
  %v6732 = vpop.f32.mrf.mxu0
  %v6733 = vadd.f32 %v6542, %v6732
  %v6734 = vpop.f32.mrf.mxu0
  %v6735 = vadd.f32 %v6544, %v6734
  %6736 = vmatprep.mubr.bf16.mxu0 %v1908
  %6737 = vmatmul.mubr.bf16.gmra.mxu0 %v1907
  %v6738 = vpop.f32.mrf.mxu0
  %v6739 = vadd.f32 %v6548, %v6738
  %v6740 = vpop.f32.mrf.mxu0
  %v6741 = vadd.f32 %v6550, %v6740
  %v6742 = vpop.f32.mrf.mxu0
  %v6743 = vadd.f32 %v6552, %v6742
  %v6744 = vpop.f32.mrf.mxu0
  %v6745 = vadd.f32 %v6554, %v6744
  %6746 = vmatprep.mubr.bf16.mxu0 %v1922
  %6747 = vmatmul.mubr.bf16.gmra.mxu0 %v1921
  %v6748 = vpop.f32.mrf.mxu0
  %v6749 = vadd.f32 %v6558, %v6748
  %v6750 = vpop.f32.mrf.mxu0
  %v6751 = vadd.f32 %v6560, %v6750
  %v6752 = vpop.f32.mrf.mxu0
  %v6753 = vadd.f32 %v6562, %v6752
  %v6754 = vpop.f32.mrf.mxu0
  %v6755 = vadd.f32 %v6564, %v6754
  %6756 = vmatprep.mubr.bf16.mxu0 %v1936
  %6757 = vmatmul.mubr.bf16.gmra.mxu0 %v1935
  %v6758 = vpop.f32.mrf.mxu0
  %v6759 = vadd.f32 %v6568, %v6758
  %v6760 = vpop.f32.mrf.mxu0
  %v6761 = vadd.f32 %v6570, %v6760
  %v6762 = vpop.f32.mrf.mxu0
  %v6763 = vadd.f32 %v6572, %v6762
  %v6764 = vpop.f32.mrf.mxu0
  %v6765 = vadd.f32 %v6574, %v6764
  %6766 = vmatprep.mubr.bf16.mxu0 %v1950
  %6767 = vmatmul.mubr.bf16.gmra.mxu0 %v1949
  %v6768 = vpop.f32.mrf.mxu0
  %v6769 = vadd.f32 %v6578, %v6768
  %v6770 = vpop.f32.mrf.mxu0
  %v6771 = vadd.f32 %v6580, %v6770
  %v6772 = vpop.f32.mrf.mxu0
  %v6773 = vadd.f32 %v6582, %v6772
  %v6774 = vpop.f32.mrf.mxu0
  %v6775 = vadd.f32 %v6584, %v6774
  %6776 = vmatprep.mubr.bf16.mxu0 %v1964
  %6777 = vmatmul.mubr.bf16.gmra.mxu0 %v1963
  %v6778 = vpop.f32.mrf.mxu0
  %v6779 = vadd.f32 %v6588, %v6778
  %v6780 = vpop.f32.mrf.mxu0
  %v6781 = vadd.f32 %v6590, %v6780
  %v6782 = vpop.f32.mrf.mxu0
  %v6783 = vadd.f32 %v6592, %v6782
  %v6784 = vpop.f32.mrf.mxu0
  %v6785 = vadd.f32 %v6594, %v6784
  %6786 = vmatprep.mubr.bf16.mxu0 %v1978
  %6787 = vmatmul.mubr.bf16.gmra.mxu0 %v1977
  %v6788 = vpop.f32.mrf.mxu0
  %v6789 = vadd.f32 %v6598, %v6788
  %v6790 = vpop.f32.mrf.mxu0
  %v6791 = vadd.f32 %v6600, %v6790
  %v6792 = vpop.f32.mrf.mxu0
  %v6793 = vpop.f32.mrf.mxu0
  %6794 = vdwg.mxu0
  %6795 = vmatprep.subr.bf16.mxu0 %v5001
  %6796 = vmatpush1.bf16.msra.mxu0 %v5000
  %6797 = vmatprep.subr.bf16.mxu0 %v4994
  %6798 = vmatpush1.bf16.msra.mxu0 %v4993
  %6799 = vmatprep.subr.bf16.mxu0 %v4987
  %6800 = vmatpush1.bf16.msra.mxu0 %v4986
  %6801 = vmatprep.subr.bf16.mxu0 %v4980
  %6802 = vmatpush1.bf16.msra.mxu0 %v4979
  %6803 = vmatprep.subr.bf16.mxu0 %v4973
  %6804 = vmatpush1.bf16.msra.mxu0 %v4972
  %6805 = vmatprep.subr.bf16.mxu0 %v4966
  %6806 = vmatpush1.bf16.msra.mxu0 %v4965
  %6807 = vmatprep.subr.bf16.mxu0 %v4959
  %6808 = vmatpush1.bf16.msra.mxu0 %v4958
  %6809 = vmatprep.subr.bf16.mxu0 %v4952
  %6810 = vmatpush1.bf16.msra.mxu0 %v4951
  %6811 = vmatprep.subr.bf16.mxu0 %v5057
  %6812 = vmatpush2.bf16.msra.mxu0 %v5056
  %6813 = vmatprep.subr.bf16.mxu0 %v5050
  %6814 = vmatpush2.bf16.msra.mxu0 %v5049
  %6815 = vmatprep.subr.bf16.mxu0 %v5043
  %6816 = vmatpush2.bf16.msra.mxu0 %v5042
  %6817 = vmatprep.subr.bf16.mxu0 %v5036
  %6818 = vmatpush2.bf16.msra.mxu0 %v5035
  %6819 = vmatprep.subr.bf16.mxu0 %v5029
  %6820 = vmatpush2.bf16.msra.mxu0 %v5028
  %6821 = vmatprep.subr.bf16.mxu0 %v5022
  %6822 = vmatpush2.bf16.msra.mxu0 %v5021
  %6823 = vmatprep.subr.bf16.mxu0 %v5015
  %6824 = vmatpush2.bf16.msra.mxu0 %v5014
  %6825 = vmatprep.subr.bf16.mxu0 %v5008
  %6826 = vmatpush2.bf16.msra.mxu0 %v5007
  %6827 = vmatprep.mubr.bf16.mxu0 %v1770
  %6828 = vmatmul.mubr.bf16.gmra.mxu0 %v1769
  %v6829 = vpop.f32.mrf.mxu0
  %v6830 = vadd.f32 %v6639, %v6829
  %v6831 = vpop.f32.mrf.mxu0
  %v6832 = vadd.f32 %v6641, %v6831
  %v6833 = vpop.f32.mrf.mxu0
  %v6834 = vadd.f32 %v6643, %v6833
  %v6835 = vpop.f32.mrf.mxu0
  %v6836 = vadd.f32 %v6645, %v6835
  %6837 = vmatprep.mubr.bf16.mxu0 %v1784
  %6838 = vmatmul.mubr.bf16.gmra.mxu0 %v1783
  %v6839 = vpop.f32.mrf.mxu0
  %v6840 = vadd.f32 %v6649, %v6839
  %v6841 = vpop.f32.mrf.mxu0
  %v6842 = vadd.f32 %v6651, %v6841
  %v6843 = vpop.f32.mrf.mxu0
  %v6844 = vadd.f32 %v6653, %v6843
  %v6845 = vpop.f32.mrf.mxu0
  %v6846 = vadd.f32 %v6655, %v6845
  %6847 = vmatprep.mubr.bf16.mxu0 %v1798
  %6848 = vmatmul.mubr.bf16.gmra.mxu0 %v1797
  %v6849 = vpop.f32.mrf.mxu0
  %v6850 = vadd.f32 %v6659, %v6849
  %v6851 = vpop.f32.mrf.mxu0
  %v6852 = vadd.f32 %v6661, %v6851
  %v6853 = vpop.f32.mrf.mxu0
  %v6854 = vadd.f32 %v6663, %v6853
  %v6855 = vpop.f32.mrf.mxu0
  %v6856 = vadd.f32 %v6665, %v6855
  %6857 = vmatprep.mubr.bf16.mxu0 %v1812
  %6858 = vmatmul.mubr.bf16.gmra.mxu0 %v1811
  %v6859 = vpop.f32.mrf.mxu0
  %v6860 = vadd.f32 %v6669, %v6859
  %v6861 = vpop.f32.mrf.mxu0
  %v6862 = vadd.f32 %v6671, %v6861
  %v6863 = vpop.f32.mrf.mxu0
  %v6864 = vadd.f32 %v6673, %v6863
  %v6865 = vpop.f32.mrf.mxu0
  %v6866 = vadd.f32 %v6675, %v6865
  %6867 = vmatprep.mubr.bf16.mxu0 %v1826
  %6868 = vmatmul.mubr.bf16.gmra.mxu0 %v1825
  %v6869 = vpop.f32.mrf.mxu0
  %v6870 = vadd.f32 %v6679, %v6869
  %v6871 = vpop.f32.mrf.mxu0
  %v6872 = vadd.f32 %v6681, %v6871
  %v6873 = vpop.f32.mrf.mxu0
  %v6874 = vadd.f32 %v6683, %v6873
  %v6875 = vpop.f32.mrf.mxu0
  %v6876 = vadd.f32 %v6685, %v6875
  %6877 = vmatprep.mubr.bf16.mxu0 %v1840
  %6878 = vmatmul.mubr.bf16.gmra.mxu0 %v1839
  %v6879 = vpop.f32.mrf.mxu0
  %v6880 = vadd.f32 %v6689, %v6879
  %v6881 = vpop.f32.mrf.mxu0
  %v6882 = vadd.f32 %v6691, %v6881
  %v6883 = vpop.f32.mrf.mxu0
  %v6884 = vadd.f32 %v6693, %v6883
  %v6885 = vpop.f32.mrf.mxu0
  %v6886 = vadd.f32 %v6695, %v6885
  %6887 = vmatprep.mubr.bf16.mxu0 %v1854
  %6888 = vmatmul.mubr.bf16.gmra.mxu0 %v1853
  %v6889 = vpop.f32.mrf.mxu0
  %v6890 = vadd.f32 %v6699, %v6889
  %v6891 = vpop.f32.mrf.mxu0
  %v6892 = vadd.f32 %v6701, %v6891
  %v6893 = vpop.f32.mrf.mxu0
  %v6894 = vadd.f32 %v6703, %v6893
  %v6895 = vpop.f32.mrf.mxu0
  %v6896 = vadd.f32 %v6705, %v6895
  %6897 = vmatprep.mubr.bf16.mxu0 %v1868
  %6898 = vmatmul.mubr.bf16.gmra.mxu0 %v1867
  %v6899 = vpop.f32.mrf.mxu0
  %v6900 = vadd.f32 %v6709, %v6899
  %v6901 = vpop.f32.mrf.mxu0
  %v6902 = vadd.f32 %v6711, %v6901
  %v6903 = vpop.f32.mrf.mxu0
  %v6904 = vadd.f32 %v6713, %v6903
  %v6905 = vpop.f32.mrf.mxu0
  %v6906 = vadd.f32 %v6715, %v6905
  %6907 = vmatprep.mubr.bf16.mxu0 %v1882
  %6908 = vmatmul.mubr.bf16.gmra.mxu0 %v1881
  %v6909 = vpop.f32.mrf.mxu0
  %v6910 = vadd.f32 %v6719, %v6909
  %v6911 = vpop.f32.mrf.mxu0
  %v6912 = vadd.f32 %v6721, %v6911
  %v6913 = vpop.f32.mrf.mxu0
  %v6914 = vadd.f32 %v6723, %v6913
  %v6915 = vpop.f32.mrf.mxu0
  %v6916 = vadd.f32 %v6725, %v6915
  %6917 = vmatprep.mubr.bf16.mxu0 %v1896
  %6918 = vmatmul.mubr.bf16.gmra.mxu0 %v1895
  %v6919 = vpop.f32.mrf.mxu0
  %v6920 = vadd.f32 %v6729, %v6919
  %v6921 = vpop.f32.mrf.mxu0
  %v6922 = vadd.f32 %v6731, %v6921
  %v6923 = vpop.f32.mrf.mxu0
  %v6924 = vadd.f32 %v6733, %v6923
  %v6925 = vpop.f32.mrf.mxu0
  %v6926 = vadd.f32 %v6735, %v6925
  %6927 = vmatprep.mubr.bf16.mxu0 %v1910
  %6928 = vmatmul.mubr.bf16.gmra.mxu0 %v1909
  %v6929 = vpop.f32.mrf.mxu0
  %v6930 = vadd.f32 %v6739, %v6929
  %v6931 = vpop.f32.mrf.mxu0
  %v6932 = vadd.f32 %v6741, %v6931
  %v6933 = vpop.f32.mrf.mxu0
  %v6934 = vadd.f32 %v6743, %v6933
  %v6935 = vpop.f32.mrf.mxu0
  %v6936 = vadd.f32 %v6745, %v6935
  %6937 = vmatprep.mubr.bf16.mxu0 %v1924
  %6938 = vmatmul.mubr.bf16.gmra.mxu0 %v1923
  %v6939 = vpop.f32.mrf.mxu0
  %v6940 = vadd.f32 %v6749, %v6939
  %v6941 = vpop.f32.mrf.mxu0
  %v6942 = vadd.f32 %v6751, %v6941
  %v6943 = vpop.f32.mrf.mxu0
  %v6944 = vadd.f32 %v6753, %v6943
  %v6945 = vpop.f32.mrf.mxu0
  %v6946 = vadd.f32 %v6755, %v6945
  %6947 = vmatprep.mubr.bf16.mxu0 %v1938
  %6948 = vmatmul.mubr.bf16.gmra.mxu0 %v1937
  %v6949 = vpop.f32.mrf.mxu0
  %v6950 = vadd.f32 %v6759, %v6949
  %v6951 = vpop.f32.mrf.mxu0
  %v6952 = vadd.f32 %v6761, %v6951
  %v6953 = vpop.f32.mrf.mxu0
  %v6954 = vadd.f32 %v6763, %v6953
  %v6955 = vpop.f32.mrf.mxu0
  %v6956 = vadd.f32 %v6765, %v6955
  %6957 = vmatprep.mubr.bf16.mxu0 %v1952
  %6958 = vmatmul.mubr.bf16.gmra.mxu0 %v1951
  %v6959 = vpop.f32.mrf.mxu0
  %v6960 = vadd.f32 %v6769, %v6959
  %v6961 = vpop.f32.mrf.mxu0
  %v6962 = vadd.f32 %v6771, %v6961
  %v6963 = vpop.f32.mrf.mxu0
  %v6964 = vadd.f32 %v6773, %v6963
  %v6965 = vpop.f32.mrf.mxu0
  %v6966 = vadd.f32 %v6775, %v6965
  %6967 = vmatprep.mubr.bf16.mxu0 %v1966
  %6968 = vmatmul.mubr.bf16.gmra.mxu0 %v1965
  %v6969 = vpop.f32.mrf.mxu0
  %v6970 = vadd.f32 %v6779, %v6969
  %v6971 = vpop.f32.mrf.mxu0
  %v6972 = vadd.f32 %v6781, %v6971
  %v6973 = vpop.f32.mrf.mxu0
  %v6974 = vadd.f32 %v6783, %v6973
  %v6975 = vpop.f32.mrf.mxu0
  %v6976 = vadd.f32 %v6785, %v6975
  %6977 = vmatprep.mubr.bf16.mxu0 %v1980
  %6978 = vmatmul.mubr.bf16.gmra.mxu0 %v1979
  %v6979 = vpop.f32.mrf.mxu0
  %v6980 = vadd.f32 %v6789, %v6979
  %v6981 = vpop.f32.mrf.mxu0
  %v6982 = vadd.f32 %v6791, %v6981
  %v6983 = vpop.f32.mrf.mxu0
  %v6984 = vpop.f32.mrf.mxu0
  %6985 = vdwg.mxu0
  %6986 = vmatprep.subr.bf16.mxu0 %v5113
  %6987 = vmatpush1.bf16.msra.mxu0 %v5112
  %6988 = vmatprep.subr.bf16.mxu0 %v5106
  %6989 = vmatpush1.bf16.msra.mxu0 %v5105
  %6990 = vmatprep.subr.bf16.mxu0 %v5099
  %6991 = vmatpush1.bf16.msra.mxu0 %v5098
  %6992 = vmatprep.subr.bf16.mxu0 %v5092
  %6993 = vmatpush1.bf16.msra.mxu0 %v5091
  %6994 = vmatprep.subr.bf16.mxu0 %v5085
  %6995 = vmatpush1.bf16.msra.mxu0 %v5084
  %6996 = vmatprep.subr.bf16.mxu0 %v5078
  %6997 = vmatpush1.bf16.msra.mxu0 %v5077
  %6998 = vmatprep.subr.bf16.mxu0 %v5071
  %6999 = vmatpush1.bf16.msra.mxu0 %v5070
  %7000 = vmatprep.subr.bf16.mxu0 %v5064
  %7001 = vmatpush1.bf16.msra.mxu0 %v5063
  %7002 = vmatprep.subr.bf16.mxu0 %v5169
  %7003 = vmatpush2.bf16.msra.mxu0 %v5168
  %7004 = vmatprep.subr.bf16.mxu0 %v5162
  %7005 = vmatpush2.bf16.msra.mxu0 %v5161
  %7006 = vmatprep.subr.bf16.mxu0 %v5155
  %7007 = vmatpush2.bf16.msra.mxu0 %v5154
  %7008 = vmatprep.subr.bf16.mxu0 %v5148
  %7009 = vmatpush2.bf16.msra.mxu0 %v5147
  %7010 = vmatprep.subr.bf16.mxu0 %v5141
  %7011 = vmatpush2.bf16.msra.mxu0 %v5140
  %7012 = vmatprep.subr.bf16.mxu0 %v5134
  %7013 = vmatpush2.bf16.msra.mxu0 %v5133
  %7014 = vmatprep.subr.bf16.mxu0 %v5127
  %7015 = vmatpush2.bf16.msra.mxu0 %v5126
  %7016 = vmatprep.subr.bf16.mxu0 %v5120
  %7017 = vmatpush2.bf16.msra.mxu0 %v5119
  %7018 = vmatprep.mubr.bf16.mxu0 %v1772
  %7019 = vmatmul.mubr.bf16.gmra.mxu0 %v1771
  %v7020 = vpop.f32.mrf.mxu0
  %v7021 = vadd.f32 %v6830, %v7020
  %v7022 = vpop.f32.mrf.mxu0
  %v7023 = vadd.f32 %v6832, %v7022
  %v7024 = vpop.f32.mrf.mxu0
  %v7025 = vadd.f32 %v6834, %v7024
  %v7026 = vpop.f32.mrf.mxu0
  %v7027 = vadd.f32 %v6836, %v7026
  %7028 = vmatprep.mubr.bf16.mxu0 %v1786
  %7029 = vmatmul.mubr.bf16.gmra.mxu0 %v1785
  %v7030 = vpop.f32.mrf.mxu0
  %v7031 = vadd.f32 %v6840, %v7030
  %v7032 = vpop.f32.mrf.mxu0
  %v7033 = vadd.f32 %v6842, %v7032
  %v7034 = vpop.f32.mrf.mxu0
  %v7035 = vadd.f32 %v6844, %v7034
  %v7036 = vpop.f32.mrf.mxu0
  %v7037 = vadd.f32 %v6846, %v7036
  %7038 = vmatprep.mubr.bf16.mxu0 %v1800
  %7039 = vmatmul.mubr.bf16.gmra.mxu0 %v1799
  %v7040 = vpop.f32.mrf.mxu0
  %v7041 = vadd.f32 %v6850, %v7040
  %v7042 = vpop.f32.mrf.mxu0
  %v7043 = vadd.f32 %v6852, %v7042
  %v7044 = vpop.f32.mrf.mxu0
  %v7045 = vadd.f32 %v6854, %v7044
  %v7046 = vpop.f32.mrf.mxu0
  %v7047 = vadd.f32 %v6856, %v7046
  %7048 = vmatprep.mubr.bf16.mxu0 %v1814
  %7049 = vmatmul.mubr.bf16.gmra.mxu0 %v1813
  %v7050 = vpop.f32.mrf.mxu0
  %v7051 = vadd.f32 %v6860, %v7050
  %v7052 = vpop.f32.mrf.mxu0
  %v7053 = vadd.f32 %v6862, %v7052
  %v7054 = vpop.f32.mrf.mxu0
  %v7055 = vadd.f32 %v6864, %v7054
  %v7056 = vpop.f32.mrf.mxu0
  %v7057 = vadd.f32 %v6866, %v7056
  %7058 = vmatprep.mubr.bf16.mxu0 %v1828
  %7059 = vmatmul.mubr.bf16.gmra.mxu0 %v1827
  %v7060 = vpop.f32.mrf.mxu0
  %v7061 = vadd.f32 %v6870, %v7060
  %v7062 = vpop.f32.mrf.mxu0
  %v7063 = vadd.f32 %v6872, %v7062
  %v7064 = vpop.f32.mrf.mxu0
  %v7065 = vadd.f32 %v6874, %v7064
  %v7066 = vpop.f32.mrf.mxu0
  %v7067 = vadd.f32 %v6876, %v7066
  %7068 = vmatprep.mubr.bf16.mxu0 %v1842
  %7069 = vmatmul.mubr.bf16.gmra.mxu0 %v1841
  %v7070 = vpop.f32.mrf.mxu0
  %v7071 = vadd.f32 %v6880, %v7070
  %v7072 = vpop.f32.mrf.mxu0
  %v7073 = vadd.f32 %v6882, %v7072
  %v7074 = vpop.f32.mrf.mxu0
  %v7075 = vadd.f32 %v6884, %v7074
  %v7076 = vpop.f32.mrf.mxu0
  %v7077 = vadd.f32 %v6886, %v7076
  %7078 = vmatprep.mubr.bf16.mxu0 %v1856
  %7079 = vmatmul.mubr.bf16.gmra.mxu0 %v1855
  %v7080 = vpop.f32.mrf.mxu0
  %v7081 = vadd.f32 %v6890, %v7080
  %v7082 = vpop.f32.mrf.mxu0
  %v7083 = vadd.f32 %v6892, %v7082
  %v7084 = vpop.f32.mrf.mxu0
  %v7085 = vadd.f32 %v6894, %v7084
  %v7086 = vpop.f32.mrf.mxu0
  %v7087 = vadd.f32 %v6896, %v7086
  %7088 = vmatprep.mubr.bf16.mxu0 %v1870
  %7089 = vmatmul.mubr.bf16.gmra.mxu0 %v1869
  %v7090 = vpop.f32.mrf.mxu0
  %v7091 = vadd.f32 %v6900, %v7090
  %v7092 = vpop.f32.mrf.mxu0
  %v7093 = vadd.f32 %v6902, %v7092
  %v7094 = vpop.f32.mrf.mxu0
  %v7095 = vadd.f32 %v6904, %v7094
  %v7096 = vpop.f32.mrf.mxu0
  %v7097 = vadd.f32 %v6906, %v7096
  %7098 = vmatprep.mubr.bf16.mxu0 %v1884
  %7099 = vmatmul.mubr.bf16.gmra.mxu0 %v1883
  %v7100 = vpop.f32.mrf.mxu0
  %v7101 = vadd.f32 %v6910, %v7100
  %v7102 = vpop.f32.mrf.mxu0
  %v7103 = vadd.f32 %v6912, %v7102
  %v7104 = vpop.f32.mrf.mxu0
  %v7105 = vadd.f32 %v6914, %v7104
  %v7106 = vpop.f32.mrf.mxu0
  %v7107 = vadd.f32 %v6916, %v7106
  %7108 = vmatprep.mubr.bf16.mxu0 %v1898
  %7109 = vmatmul.mubr.bf16.gmra.mxu0 %v1897
  %v7110 = vpop.f32.mrf.mxu0
  %v7111 = vadd.f32 %v6920, %v7110
  %v7112 = vpop.f32.mrf.mxu0
  %v7113 = vadd.f32 %v6922, %v7112
  %v7114 = vpop.f32.mrf.mxu0
  %v7115 = vadd.f32 %v6924, %v7114
  %v7116 = vpop.f32.mrf.mxu0
  %v7117 = vadd.f32 %v6926, %v7116
  %7118 = vmatprep.mubr.bf16.mxu0 %v1912
  %7119 = vmatmul.mubr.bf16.gmra.mxu0 %v1911
  %v7120 = vpop.f32.mrf.mxu0
  %v7121 = vadd.f32 %v6930, %v7120
  %v7122 = vpop.f32.mrf.mxu0
  %v7123 = vadd.f32 %v6932, %v7122
  %v7124 = vpop.f32.mrf.mxu0
  %v7125 = vadd.f32 %v6934, %v7124
  %v7126 = vpop.f32.mrf.mxu0
  %v7127 = vadd.f32 %v6936, %v7126
  %7128 = vmatprep.mubr.bf16.mxu0 %v1926
  %7129 = vmatmul.mubr.bf16.gmra.mxu0 %v1925
  %v7130 = vpop.f32.mrf.mxu0
  %v7131 = vadd.f32 %v6940, %v7130
  %v7132 = vpop.f32.mrf.mxu0
  %v7133 = vadd.f32 %v6942, %v7132
  %v7134 = vpop.f32.mrf.mxu0
  %v7135 = vadd.f32 %v6944, %v7134
  %v7136 = vpop.f32.mrf.mxu0
  %v7137 = vadd.f32 %v6946, %v7136
  %7138 = vmatprep.mubr.bf16.mxu0 %v1940
  %7139 = vmatmul.mubr.bf16.gmra.mxu0 %v1939
  %v7140 = vpop.f32.mrf.mxu0
  %v7141 = vadd.f32 %v6950, %v7140
  %v7142 = vpop.f32.mrf.mxu0
  %v7143 = vadd.f32 %v6952, %v7142
  %v7144 = vpop.f32.mrf.mxu0
  %v7145 = vadd.f32 %v6954, %v7144
  %v7146 = vpop.f32.mrf.mxu0
  %v7147 = vadd.f32 %v6956, %v7146
  %7148 = vmatprep.mubr.bf16.mxu0 %v1954
  %7149 = vmatmul.mubr.bf16.gmra.mxu0 %v1953
  %v7150 = vpop.f32.mrf.mxu0
  %v7151 = vadd.f32 %v6960, %v7150
  %v7152 = vpop.f32.mrf.mxu0
  %v7153 = vadd.f32 %v6962, %v7152
  %v7154 = vpop.f32.mrf.mxu0
  %v7155 = vadd.f32 %v6964, %v7154
  %v7156 = vpop.f32.mrf.mxu0
  %v7157 = vadd.f32 %v6966, %v7156
  %7158 = vmatprep.mubr.bf16.mxu0 %v1968
  %7159 = vmatmul.mubr.bf16.gmra.mxu0 %v1967
  %v7160 = vpop.f32.mrf.mxu0
  %v7161 = vadd.f32 %v6970, %v7160
  %v7162 = vpop.f32.mrf.mxu0
  %v7163 = vadd.f32 %v6972, %v7162
  %v7164 = vpop.f32.mrf.mxu0
  %v7165 = vadd.f32 %v6974, %v7164
  %v7166 = vpop.f32.mrf.mxu0
  %v7167 = vadd.f32 %v6976, %v7166
  %7168 = vmatprep.mubr.bf16.mxu0 %v1982
  %7169 = vmatmul.mubr.bf16.gmra.mxu0 %v1981
  %v7170 = vpop.f32.mrf.mxu0
  %v7171 = vadd.f32 %v6980, %v7170
  %v7172 = vpop.f32.mrf.mxu0
  %v7173 = vadd.f32 %v6982, %v7172
  %v7174 = vpop.f32.mrf.mxu0
  %v7175 = vpop.f32.mrf.mxu0
  %7176 = vdwg.mxu0
  %7177 = vmatprep.subr.bf16.mxu0 %v5225
  %7178 = vmatpush1.bf16.msra.mxu0 %v5224
  %7179 = vmatprep.subr.bf16.mxu0 %v5218
  %7180 = vmatpush1.bf16.msra.mxu0 %v5217
  %7181 = vmatprep.subr.bf16.mxu0 %v5211
  %7182 = vmatpush1.bf16.msra.mxu0 %v5210
  %7183 = vmatprep.subr.bf16.mxu0 %v5204
  %7184 = vmatpush1.bf16.msra.mxu0 %v5203
  %7185 = vmatprep.subr.bf16.mxu0 %v5197
  %7186 = vmatpush1.bf16.msra.mxu0 %v5196
  %7187 = vmatprep.subr.bf16.mxu0 %v5190
  %7188 = vmatpush1.bf16.msra.mxu0 %v5189
  %7189 = vmatprep.subr.bf16.mxu0 %v5183
  %7190 = vmatpush1.bf16.msra.mxu0 %v5182
  %7191 = vmatprep.subr.bf16.mxu0 %v5176
  %7192 = vmatpush1.bf16.msra.mxu0 %v5175
  %7193 = vmatprep.subr.bf16.mxu0 %v5281
  %7194 = vmatpush2.bf16.msra.mxu0 %v5280
  %7195 = vmatprep.subr.bf16.mxu0 %v5274
  %7196 = vmatpush2.bf16.msra.mxu0 %v5273
  %7197 = vmatprep.subr.bf16.mxu0 %v5267
  %7198 = vmatpush2.bf16.msra.mxu0 %v5266
  %7199 = vmatprep.subr.bf16.mxu0 %v5260
  %7200 = vmatpush2.bf16.msra.mxu0 %v5259
  %7201 = vmatprep.subr.bf16.mxu0 %v5253
  %7202 = vmatpush2.bf16.msra.mxu0 %v5252
  %7203 = vmatprep.subr.bf16.mxu0 %v5246
  %7204 = vmatpush2.bf16.msra.mxu0 %v5245
  %7205 = vmatprep.subr.bf16.mxu0 %v5239
  %7206 = vmatpush2.bf16.msra.mxu0 %v5238
  %7207 = vmatprep.subr.bf16.mxu0 %v5232
  %7208 = vmatpush2.bf16.msra.mxu0 %v5231
  %7209 = vmatprep.mubr.bf16.mxu0 %v1774
  %7210 = vmatmul.mubr.bf16.gmra.mxu0 %v1773
  %v7211 = vpop.f32.mrf.mxu0
  %v7212 = vadd.f32 %v7021, %v7211
  %v7213 = vpop.f32.mrf.mxu0
  %v7214 = vadd.f32 %v7023, %v7213
  %v7215 = vpop.f32.mrf.mxu0
  %v7216 = vadd.f32 %v7025, %v7215
  %v7217 = vpop.f32.mrf.mxu0
  %v7218 = vadd.f32 %v7027, %v7217
  %7219 = vmatprep.mubr.bf16.mxu0 %v1788
  %7220 = vmatmul.mubr.bf16.gmra.mxu0 %v1787
  %v7221 = vpop.f32.mrf.mxu0
  %v7222 = vadd.f32 %v7031, %v7221
  %v7223 = vpop.f32.mrf.mxu0
  %v7224 = vadd.f32 %v7033, %v7223
  %v7225 = vpop.f32.mrf.mxu0
  %v7226 = vadd.f32 %v7035, %v7225
  %v7227 = vpop.f32.mrf.mxu0
  %v7228 = vadd.f32 %v7037, %v7227
  %7229 = vmatprep.mubr.bf16.mxu0 %v1802
  %7230 = vmatmul.mubr.bf16.gmra.mxu0 %v1801
  %v7231 = vpop.f32.mrf.mxu0
  %v7232 = vadd.f32 %v7041, %v7231
  %v7233 = vpop.f32.mrf.mxu0
  %v7234 = vadd.f32 %v7043, %v7233
  %v7235 = vpop.f32.mrf.mxu0
  %v7236 = vadd.f32 %v7045, %v7235
  %v7237 = vpop.f32.mrf.mxu0
  %v7238 = vadd.f32 %v7047, %v7237
  %7239 = vmatprep.mubr.bf16.mxu0 %v1816
  %7240 = vmatmul.mubr.bf16.gmra.mxu0 %v1815
  %v7241 = vpop.f32.mrf.mxu0
  %v7242 = vadd.f32 %v7051, %v7241
  %v7243 = vpop.f32.mrf.mxu0
  %v7244 = vadd.f32 %v7053, %v7243
  %v7245 = vpop.f32.mrf.mxu0
  %v7246 = vadd.f32 %v7055, %v7245
  %v7247 = vpop.f32.mrf.mxu0
  %v7248 = vadd.f32 %v7057, %v7247
  %7249 = vmatprep.mubr.bf16.mxu0 %v1830
  %7250 = vmatmul.mubr.bf16.gmra.mxu0 %v1829
  %v7251 = vpop.f32.mrf.mxu0
  %v7252 = vadd.f32 %v7061, %v7251
  %v7253 = vpop.f32.mrf.mxu0
  %v7254 = vadd.f32 %v7063, %v7253
  %v7255 = vpop.f32.mrf.mxu0
  %v7256 = vadd.f32 %v7065, %v7255
  %v7257 = vpop.f32.mrf.mxu0
  %v7258 = vadd.f32 %v7067, %v7257
  %7259 = vmatprep.mubr.bf16.mxu0 %v1844
  %7260 = vmatmul.mubr.bf16.gmra.mxu0 %v1843
  %v7261 = vpop.f32.mrf.mxu0
  %v7262 = vadd.f32 %v7071, %v7261
  %v7263 = vpop.f32.mrf.mxu0
  %v7264 = vadd.f32 %v7073, %v7263
  %v7265 = vpop.f32.mrf.mxu0
  %v7266 = vadd.f32 %v7075, %v7265
  %v7267 = vpop.f32.mrf.mxu0
  %v7268 = vadd.f32 %v7077, %v7267
  %7269 = vmatprep.mubr.bf16.mxu0 %v1858
  %7270 = vmatmul.mubr.bf16.gmra.mxu0 %v1857
  %v7271 = vpop.f32.mrf.mxu0
  %v7272 = vadd.f32 %v7081, %v7271
  %v7273 = vpop.f32.mrf.mxu0
  %v7274 = vadd.f32 %v7083, %v7273
  %v7275 = vpop.f32.mrf.mxu0
  %v7276 = vadd.f32 %v7085, %v7275
  %v7277 = vpop.f32.mrf.mxu0
  %v7278 = vadd.f32 %v7087, %v7277
  %7279 = vmatprep.mubr.bf16.mxu0 %v1872
  %7280 = vmatmul.mubr.bf16.gmra.mxu0 %v1871
  %v7281 = vpop.f32.mrf.mxu0
  %v7282 = vadd.f32 %v7091, %v7281
  %v7283 = vpop.f32.mrf.mxu0
  %v7284 = vadd.f32 %v7093, %v7283
  %v7285 = vpop.f32.mrf.mxu0
  %v7286 = vadd.f32 %v7095, %v7285
  %v7287 = vpop.f32.mrf.mxu0
  %v7288 = vadd.f32 %v7097, %v7287
  %7289 = vmatprep.mubr.bf16.mxu0 %v1886
  %7290 = vmatmul.mubr.bf16.gmra.mxu0 %v1885
  %v7291 = vpop.f32.mrf.mxu0
  %v7292 = vadd.f32 %v7101, %v7291
  %v7293 = vpop.f32.mrf.mxu0
  %v7294 = vadd.f32 %v7103, %v7293
  %v7295 = vpop.f32.mrf.mxu0
  %v7296 = vadd.f32 %v7105, %v7295
  %v7297 = vpop.f32.mrf.mxu0
  %v7298 = vadd.f32 %v7107, %v7297
  %7299 = vmatprep.mubr.bf16.mxu0 %v1900
  %7300 = vmatmul.mubr.bf16.gmra.mxu0 %v1899
  %v7301 = vpop.f32.mrf.mxu0
  %v7302 = vadd.f32 %v7111, %v7301
  %v7303 = vpop.f32.mrf.mxu0
  %v7304 = vadd.f32 %v7113, %v7303
  %v7305 = vpop.f32.mrf.mxu0
  %v7306 = vadd.f32 %v7115, %v7305
  %v7307 = vpop.f32.mrf.mxu0
  %v7308 = vadd.f32 %v7117, %v7307
  %7309 = vmatprep.mubr.bf16.mxu0 %v1914
  %7310 = vmatmul.mubr.bf16.gmra.mxu0 %v1913
  %v7311 = vpop.f32.mrf.mxu0
  %v7312 = vadd.f32 %v7121, %v7311
  %v7313 = vpop.f32.mrf.mxu0
  %v7314 = vadd.f32 %v7123, %v7313
  %v7315 = vpop.f32.mrf.mxu0
  %v7316 = vadd.f32 %v7125, %v7315
  %v7317 = vpop.f32.mrf.mxu0
  %v7318 = vadd.f32 %v7127, %v7317
  %7319 = vmatprep.mubr.bf16.mxu0 %v1928
  %7320 = vmatmul.mubr.bf16.gmra.mxu0 %v1927
  %v7321 = vpop.f32.mrf.mxu0
  %v7322 = vadd.f32 %v7131, %v7321
  %v7323 = vpop.f32.mrf.mxu0
  %v7324 = vadd.f32 %v7133, %v7323
  %v7325 = vpop.f32.mrf.mxu0
  %v7326 = vadd.f32 %v7135, %v7325
  %v7327 = vpop.f32.mrf.mxu0
  %v7328 = vadd.f32 %v7137, %v7327
  %7329 = vmatprep.mubr.bf16.mxu0 %v1942
  %7330 = vmatmul.mubr.bf16.gmra.mxu0 %v1941
  %v7331 = vpop.f32.mrf.mxu0
  %v7332 = vadd.f32 %v7141, %v7331
  %v7333 = vpop.f32.mrf.mxu0
  %v7334 = vadd.f32 %v7143, %v7333
  %v7335 = vpop.f32.mrf.mxu0
  %v7336 = vadd.f32 %v7145, %v7335
  %v7337 = vpop.f32.mrf.mxu0
  %v7338 = vadd.f32 %v7147, %v7337
  %7339 = vmatprep.mubr.bf16.mxu0 %v1956
  %7340 = vmatmul.mubr.bf16.gmra.mxu0 %v1955
  %v7341 = vpop.f32.mrf.mxu0
  %v7342 = vadd.f32 %v7151, %v7341
  %v7343 = vpop.f32.mrf.mxu0
  %v7344 = vadd.f32 %v7153, %v7343
  %v7345 = vpop.f32.mrf.mxu0
  %v7346 = vadd.f32 %v7155, %v7345
  %v7347 = vpop.f32.mrf.mxu0
  %v7348 = vadd.f32 %v7157, %v7347
  %7349 = vmatprep.mubr.bf16.mxu0 %v1970
  %7350 = vmatmul.mubr.bf16.gmra.mxu0 %v1969
  %v7351 = vpop.f32.mrf.mxu0
  %v7352 = vadd.f32 %v7161, %v7351
  %v7353 = vpop.f32.mrf.mxu0
  %v7354 = vadd.f32 %v7163, %v7353
  %v7355 = vpop.f32.mrf.mxu0
  %v7356 = vadd.f32 %v7165, %v7355
  %v7357 = vpop.f32.mrf.mxu0
  %v7358 = vadd.f32 %v7167, %v7357
  %7359 = vmatprep.mubr.bf16.mxu0 %v1984
  %7360 = vmatmul.mubr.bf16.gmra.mxu0 %v1983
  %v7361 = vpop.f32.mrf.mxu0
  %v7362 = vadd.f32 %v7171, %v7361
  %v7363 = vpop.f32.mrf.mxu0
  %v7364 = vadd.f32 %v7173, %v7363
  %v7365 = vpop.f32.mrf.mxu0
  %v7366 = vpop.f32.mrf.mxu0
  %7367 = vdwg.mxu0
  %7368 = vmatprep.subr.bf16.mxu0 %v5337
  %7369 = vmatpush1.bf16.msra.mxu0 %v5336
  %7370 = vmatprep.subr.bf16.mxu0 %v5330
  %7371 = vmatpush1.bf16.msra.mxu0 %v5329
  %7372 = vmatprep.subr.bf16.mxu0 %v5323
  %7373 = vmatpush1.bf16.msra.mxu0 %v5322
  %7374 = vmatprep.subr.bf16.mxu0 %v5316
  %7375 = vmatpush1.bf16.msra.mxu0 %v5315
  %7376 = vmatprep.subr.bf16.mxu0 %v5309
  %7377 = vmatpush1.bf16.msra.mxu0 %v5308
  %7378 = vmatprep.subr.bf16.mxu0 %v5302
  %7379 = vmatpush1.bf16.msra.mxu0 %v5301
  %7380 = vmatprep.subr.bf16.mxu0 %v5295
  %7381 = vmatpush1.bf16.msra.mxu0 %v5294
  %7382 = vmatprep.subr.bf16.mxu0 %v5288
  %7383 = vmatpush1.bf16.msra.mxu0 %v5287
  %7384 = vmatprep.subr.bf16.mxu0 0
  %7385 = vmatpush2.bf16.msra.mxu0 0
  %7386 = vmatprep.subr.bf16.mxu0 0
  %7387 = vmatpush2.bf16.msra.mxu0 0
  %7388 = vmatprep.subr.bf16.mxu0 %v6205
  %7389 = vmatpush2.bf16.msra.mxu0 %v6202
  %7390 = vmatprep.subr.bf16.mxu0 %v5372
  %7391 = vmatpush2.bf16.msra.mxu0 %v5371
  %7392 = vmatprep.subr.bf16.mxu0 %v5365
  %7393 = vmatpush2.bf16.msra.mxu0 %v5364
  %7394 = vmatprep.subr.bf16.mxu0 %v5358
  %7395 = vmatpush2.bf16.msra.mxu0 %v5357
  %7396 = vmatprep.subr.bf16.mxu0 %v5351
  %7397 = vmatpush2.bf16.msra.mxu0 %v5350
  %7398 = vmatprep.subr.bf16.mxu0 %v5344
  %7399 = vmatpush2.bf16.msra.mxu0 %v5343
  %7400 = vmatprep.mubr.bf16.mxu0 %v6150
  %7401 = vmatmul.mubr.bf16.gmra.mxu0 %v1775
  %v7402 = vpop.f32.mrf.mxu0
  %v7403 = vadd.f32 %v7212, %v7402
  %v7404 = vpop.f32.mrf.mxu0
  %v7405 = vadd.f32 %v7214, %v7404
  %v7406 = vpop.f32.mrf.mxu0
  %v7407 = vadd.f32 %v7216, %v7406
  %v7408 = vpop.f32.mrf.mxu0
  %v7409 = vadd.f32 %v7218, %v7408
  %7410 = vmatprep.mubr.bf16.mxu0 %v6153
  %7411 = vmatmul.mubr.bf16.gmra.mxu0 %v1789
  %v7412 = vpop.f32.mrf.mxu0
  %v7413 = vadd.f32 %v7222, %v7412
  %v7414 = vpop.f32.mrf.mxu0
  %v7415 = vadd.f32 %v7224, %v7414
  %v7416 = vpop.f32.mrf.mxu0
  %v7417 = vadd.f32 %v7226, %v7416
  %v7418 = vpop.f32.mrf.mxu0
  %v7419 = vadd.f32 %v7228, %v7418
  %7420 = vmatprep.mubr.bf16.mxu0 %v6156
  %7421 = vmatmul.mubr.bf16.gmra.mxu0 %v1803
  %v7422 = vpop.f32.mrf.mxu0
  %v7423 = vadd.f32 %v7232, %v7422
  %v7424 = vpop.f32.mrf.mxu0
  %v7425 = vadd.f32 %v7234, %v7424
  %v7426 = vpop.f32.mrf.mxu0
  %v7427 = vadd.f32 %v7236, %v7426
  %v7428 = vpop.f32.mrf.mxu0
  %v7429 = vadd.f32 %v7238, %v7428
  %7430 = vmatprep.mubr.bf16.mxu0 %v6159
  %7431 = vmatmul.mubr.bf16.gmra.mxu0 %v1817
  %v7432 = vpop.f32.mrf.mxu0
  %v7433 = vadd.f32 %v7242, %v7432
  %v7434 = vpop.f32.mrf.mxu0
  %v7435 = vadd.f32 %v7244, %v7434
  %v7436 = vpop.f32.mrf.mxu0
  %v7437 = vadd.f32 %v7246, %v7436
  %v7438 = vpop.f32.mrf.mxu0
  %v7439 = vadd.f32 %v7248, %v7438
  %7440 = vmatprep.mubr.bf16.mxu0 %v6162
  %7441 = vmatmul.mubr.bf16.gmra.mxu0 %v1831
  %v7442 = vpop.f32.mrf.mxu0
  %v7443 = vadd.f32 %v7252, %v7442
  %v7444 = vpop.f32.mrf.mxu0
  %v7445 = vadd.f32 %v7254, %v7444
  %v7446 = vpop.f32.mrf.mxu0
  %v7447 = vadd.f32 %v7256, %v7446
  %v7448 = vpop.f32.mrf.mxu0
  %v7449 = vadd.f32 %v7258, %v7448
  %7450 = vmatprep.mubr.bf16.mxu0 %v6165
  %7451 = vmatmul.mubr.bf16.gmra.mxu0 %v1845
  %v7452 = vpop.f32.mrf.mxu0
  %v7453 = vadd.f32 %v7262, %v7452
  %v7454 = vpop.f32.mrf.mxu0
  %v7455 = vadd.f32 %v7264, %v7454
  %v7456 = vpop.f32.mrf.mxu0
  %v7457 = vadd.f32 %v7266, %v7456
  %v7458 = vpop.f32.mrf.mxu0
  %v7459 = vadd.f32 %v7268, %v7458
  %7460 = vmatprep.mubr.bf16.mxu0 %v6168
  %7461 = vmatmul.mubr.bf16.gmra.mxu0 %v1859
  %v7462 = vpop.f32.mrf.mxu0
  %v7463 = vadd.f32 %v7272, %v7462
  %v7464 = vpop.f32.mrf.mxu0
  %v7465 = vadd.f32 %v7274, %v7464
  %v7466 = vpop.f32.mrf.mxu0
  %v7467 = vadd.f32 %v7276, %v7466
  %v7468 = vpop.f32.mrf.mxu0
  %v7469 = vadd.f32 %v7278, %v7468
  %7470 = vmatprep.mubr.bf16.mxu0 %v6171
  %7471 = vmatmul.mubr.bf16.gmra.mxu0 %v1873
  %v7472 = vpop.f32.mrf.mxu0
  %v7473 = vadd.f32 %v7282, %v7472
  %v7474 = vpop.f32.mrf.mxu0
  %v7475 = vadd.f32 %v7284, %v7474
  %v7476 = vpop.f32.mrf.mxu0
  %v7477 = vadd.f32 %v7286, %v7476
  %v7478 = vpop.f32.mrf.mxu0
  %v7479 = vadd.f32 %v7288, %v7478
  %7480 = vmatprep.mubr.bf16.mxu0 %v6174
  %7481 = vmatmul.mubr.bf16.gmra.mxu0 %v1887
  %v7482 = vpop.f32.mrf.mxu0
  %v7483 = vadd.f32 %v7292, %v7482
  %v7484 = vpop.f32.mrf.mxu0
  %v7485 = vadd.f32 %v7294, %v7484
  %v7486 = vpop.f32.mrf.mxu0
  %v7487 = vadd.f32 %v7296, %v7486
  %v7488 = vpop.f32.mrf.mxu0
  %v7489 = vadd.f32 %v7298, %v7488
  %7490 = vmatprep.mubr.bf16.mxu0 %v6177
  %7491 = vmatmul.mubr.bf16.gmra.mxu0 %v1901
  %v7492 = vpop.f32.mrf.mxu0
  %v7493 = vadd.f32 %v7302, %v7492
  %v7494 = vpop.f32.mrf.mxu0
  %v7495 = vadd.f32 %v7304, %v7494
  %v7496 = vpop.f32.mrf.mxu0
  %v7497 = vadd.f32 %v7306, %v7496
  %v7498 = vpop.f32.mrf.mxu0
  %v7499 = vadd.f32 %v7308, %v7498
  %7500 = vmatprep.mubr.bf16.mxu0 %v6180
  %7501 = vmatmul.mubr.bf16.gmra.mxu0 %v1915
  %v7502 = vpop.f32.mrf.mxu0
  %v7503 = vadd.f32 %v7312, %v7502
  %v7504 = vpop.f32.mrf.mxu0
  %v7505 = vadd.f32 %v7314, %v7504
  %v7506 = vpop.f32.mrf.mxu0
  %v7507 = vadd.f32 %v7316, %v7506
  %v7508 = vpop.f32.mrf.mxu0
  %v7509 = vadd.f32 %v7318, %v7508
  %7510 = vmatprep.mubr.bf16.mxu0 %v6183
  %7511 = vmatmul.mubr.bf16.gmra.mxu0 %v1929
  %v7512 = vpop.f32.mrf.mxu0
  %v7513 = vadd.f32 %v7322, %v7512
  %v7514 = vpop.f32.mrf.mxu0
  %v7515 = vadd.f32 %v7324, %v7514
  %v7516 = vpop.f32.mrf.mxu0
  %v7517 = vadd.f32 %v7326, %v7516
  %v7518 = vpop.f32.mrf.mxu0
  %v7519 = vadd.f32 %v7328, %v7518
  %7520 = vmatprep.mubr.bf16.mxu0 %v6186
  %7521 = vmatmul.mubr.bf16.gmra.mxu0 %v1943
  %v7522 = vpop.f32.mrf.mxu0
  %v7523 = vadd.f32 %v7332, %v7522
  %v7524 = vpop.f32.mrf.mxu0
  %v7525 = vadd.f32 %v7334, %v7524
  %v7526 = vpop.f32.mrf.mxu0
  %v7527 = vadd.f32 %v7336, %v7526
  %v7528 = vpop.f32.mrf.mxu0
  %v7529 = vadd.f32 %v7338, %v7528
  %7530 = vmatprep.mubr.bf16.mxu0 %v6189
  %7531 = vmatmul.mubr.bf16.gmra.mxu0 %v1957
  %v7532 = vpop.f32.mrf.mxu0
  %v7533 = vadd.f32 %v7342, %v7532
  %v7534 = vpop.f32.mrf.mxu0
  %v7535 = vadd.f32 %v7344, %v7534
  %v7536 = vpop.f32.mrf.mxu0
  %v7537 = vadd.f32 %v7346, %v7536
  %v7538 = vpop.f32.mrf.mxu0
  %v7539 = vadd.f32 %v7348, %v7538
  %7540 = vmatprep.mubr.bf16.mxu0 %v6192
  %7541 = vmatmul.mubr.bf16.gmra.mxu0 %v1971
  %v7542 = vpop.f32.mrf.mxu0
  %v7543 = vadd.f32 %v7352, %v7542
  %v7544 = vpop.f32.mrf.mxu0
  %v7545 = vadd.f32 %v7354, %v7544
  %v7546 = vpop.f32.mrf.mxu0
  %v7547 = vadd.f32 %v7356, %v7546
  %v7548 = vpop.f32.mrf.mxu0
  %v7549 = vadd.f32 %v7358, %v7548
  %7550 = vmatprep.mubr.bf16.mxu0 %v6195
  %7551 = vmatmul.mubr.bf16.gmra.mxu0 %v1985
  %v7552 = vpop.f32.mrf.mxu0
  %v7553 = vadd.f32 %v7362, %v7552
  %v7554 = vpop.f32.mrf.mxu0
  %v7555 = vadd.f32 %v7364, %v7554
  %v7556 = vpop.f32.mrf.mxu0
  %v7557 = vpop.f32.mrf.mxu0
  %7558 = vdwg.mxu0
  %7559 = vmatprep.subr.bf16.mxu0 %v4667
  %7560 = vmatpush1.bf16.msra.mxu0 %v4666
  %7561 = vmatprep.subr.bf16.mxu0 %v4660
  %7562 = vmatpush1.bf16.msra.mxu0 %v4659
  %7563 = vmatprep.subr.bf16.mxu0 %v4653
  %7564 = vmatpush1.bf16.msra.mxu0 %v4652
  %7565 = vmatprep.subr.bf16.mxu0 %v4646
  %7566 = vmatpush1.bf16.msra.mxu0 %v4645
  %7567 = vmatprep.subr.bf16.mxu0 %v4639
  %7568 = vmatpush1.bf16.msra.mxu0 %v4638
  %7569 = vmatprep.subr.bf16.mxu0 %v4632
  %7570 = vmatpush1.bf16.msra.mxu0 %v4631
  %7571 = vmatprep.subr.bf16.mxu0 %v4625
  %7572 = vmatpush1.bf16.msra.mxu0 %v4624
  %7573 = vmatprep.subr.bf16.mxu0 %v4618
  %7574 = vmatpush1.bf16.msra.mxu0 %v4617
  %7575 = vmatprep.subr.bf16.mxu0 %v4723
  %7576 = vmatpush2.bf16.msra.mxu0 %v4722
  %7577 = vmatprep.subr.bf16.mxu0 %v4716
  %7578 = vmatpush2.bf16.msra.mxu0 %v4715
  %7579 = vmatprep.subr.bf16.mxu0 %v4709
  %7580 = vmatpush2.bf16.msra.mxu0 %v4708
  %7581 = vmatprep.subr.bf16.mxu0 %v4702
  %7582 = vmatpush2.bf16.msra.mxu0 %v4701
  %7583 = vmatprep.subr.bf16.mxu0 %v4695
  %7584 = vmatpush2.bf16.msra.mxu0 %v4694
  %7585 = vmatprep.subr.bf16.mxu0 %v4688
  %7586 = vmatpush2.bf16.msra.mxu0 %v4687
  %7587 = vmatprep.subr.bf16.mxu0 %v4681
  %7588 = vmatpush2.bf16.msra.mxu0 %v4680
  %7589 = vmatprep.subr.bf16.mxu0 %v4674
  %7590 = vmatpush2.bf16.msra.mxu0 %v4673
  %7591 = vmatprep.mubr.bf16.mxu0 %v1764
  %7592 = vmatmul.mubr.bf16.gmra.mxu0 %v1763
  %v7593 = vpop.f32.mrf.mxu0
  %v7594 = vadd.f32 0.0, %v7593
  %v7595 = vpop.f32.mrf.mxu0
  %v7596 = vadd.f32 0.0, %v7595
  %v7597 = vpop.f32.mrf.mxu0
  %v7598 = vadd.f32 0.0, %v7597
  %v7599 = vpop.f32.mrf.mxu0
  %v7600 = vadd.f32 0.0, %v7599
  %7601 = vmatprep.mubr.bf16.mxu0 %v1778
  %7602 = vmatmul.mubr.bf16.gmra.mxu0 %v1777
  %v7603 = vpop.f32.mrf.mxu0
  %v7604 = vadd.f32 0.0, %v7603
  %v7605 = vpop.f32.mrf.mxu0
  %v7606 = vadd.f32 0.0, %v7605
  %v7607 = vpop.f32.mrf.mxu0
  %v7608 = vadd.f32 0.0, %v7607
  %v7609 = vpop.f32.mrf.mxu0
  %v7610 = vadd.f32 0.0, %v7609
  %7611 = vmatprep.mubr.bf16.mxu0 %v1792
  %7612 = vmatmul.mubr.bf16.gmra.mxu0 %v1791
  %v7613 = vpop.f32.mrf.mxu0
  %v7614 = vadd.f32 0.0, %v7613
  %v7615 = vpop.f32.mrf.mxu0
  %v7616 = vadd.f32 0.0, %v7615
  %v7617 = vpop.f32.mrf.mxu0
  %v7618 = vadd.f32 0.0, %v7617
  %v7619 = vpop.f32.mrf.mxu0
  %v7620 = vadd.f32 0.0, %v7619
  %7621 = vmatprep.mubr.bf16.mxu0 %v1806
  %7622 = vmatmul.mubr.bf16.gmra.mxu0 %v1805
  %v7623 = vpop.f32.mrf.mxu0
  %v7624 = vadd.f32 0.0, %v7623
  %v7625 = vpop.f32.mrf.mxu0
  %v7626 = vadd.f32 0.0, %v7625
  %v7627 = vpop.f32.mrf.mxu0
  %v7628 = vadd.f32 0.0, %v7627
  %v7629 = vpop.f32.mrf.mxu0
  %v7630 = vadd.f32 0.0, %v7629
  %7631 = vmatprep.mubr.bf16.mxu0 %v1820
  %7632 = vmatmul.mubr.bf16.gmra.mxu0 %v1819
  %v7633 = vpop.f32.mrf.mxu0
  %v7634 = vadd.f32 0.0, %v7633
  %v7635 = vpop.f32.mrf.mxu0
  %v7636 = vadd.f32 0.0, %v7635
  %v7637 = vpop.f32.mrf.mxu0
  %v7638 = vadd.f32 0.0, %v7637
  %v7639 = vpop.f32.mrf.mxu0
  %v7640 = vadd.f32 0.0, %v7639
  %7641 = vmatprep.mubr.bf16.mxu0 %v1834
  %7642 = vmatmul.mubr.bf16.gmra.mxu0 %v1833
  %v7643 = vpop.f32.mrf.mxu0
  %v7644 = vadd.f32 0.0, %v7643
  %v7645 = vpop.f32.mrf.mxu0
  %v7646 = vadd.f32 0.0, %v7645
  %v7647 = vpop.f32.mrf.mxu0
  %v7648 = vadd.f32 0.0, %v7647
  %v7649 = vpop.f32.mrf.mxu0
  %v7650 = vadd.f32 0.0, %v7649
  %7651 = vmatprep.mubr.bf16.mxu0 %v1848
  %7652 = vmatmul.mubr.bf16.gmra.mxu0 %v1847
  %v7653 = vpop.f32.mrf.mxu0
  %v7654 = vadd.f32 0.0, %v7653
  %v7655 = vpop.f32.mrf.mxu0
  %v7656 = vadd.f32 0.0, %v7655
  %v7657 = vpop.f32.mrf.mxu0
  %v7658 = vadd.f32 0.0, %v7657
  %v7659 = vpop.f32.mrf.mxu0
  %v7660 = vadd.f32 0.0, %v7659
  %7661 = vmatprep.mubr.bf16.mxu0 %v1862
  %7662 = vmatmul.mubr.bf16.gmra.mxu0 %v1861
  %v7663 = vpop.f32.mrf.mxu0
  %v7664 = vadd.f32 0.0, %v7663
  %v7665 = vpop.f32.mrf.mxu0
  %v7666 = vadd.f32 0.0, %v7665
  %v7667 = vpop.f32.mrf.mxu0
  %v7668 = vadd.f32 0.0, %v7667
  %v7669 = vpop.f32.mrf.mxu0
  %v7670 = vadd.f32 0.0, %v7669
  %7671 = vmatprep.mubr.bf16.mxu0 %v1876
  %7672 = vmatmul.mubr.bf16.gmra.mxu0 %v1875
  %v7673 = vpop.f32.mrf.mxu0
  %v7674 = vadd.f32 0.0, %v7673
  %v7675 = vpop.f32.mrf.mxu0
  %v7676 = vadd.f32 0.0, %v7675
  %v7677 = vpop.f32.mrf.mxu0
  %v7678 = vadd.f32 0.0, %v7677
  %v7679 = vpop.f32.mrf.mxu0
  %v7680 = vadd.f32 0.0, %v7679
  %7681 = vmatprep.mubr.bf16.mxu0 %v1890
  %7682 = vmatmul.mubr.bf16.gmra.mxu0 %v1889
  %v7683 = vpop.f32.mrf.mxu0
  %v7684 = vadd.f32 0.0, %v7683
  %v7685 = vpop.f32.mrf.mxu0
  %v7686 = vadd.f32 0.0, %v7685
  %v7687 = vpop.f32.mrf.mxu0
  %v7688 = vadd.f32 0.0, %v7687
  %v7689 = vpop.f32.mrf.mxu0
  %v7690 = vadd.f32 0.0, %v7689
  %7691 = vmatprep.mubr.bf16.mxu0 %v1904
  %7692 = vmatmul.mubr.bf16.gmra.mxu0 %v1903
  %v7693 = vpop.f32.mrf.mxu0
  %v7694 = vadd.f32 0.0, %v7693
  %v7695 = vpop.f32.mrf.mxu0
  %v7696 = vadd.f32 0.0, %v7695
  %v7697 = vpop.f32.mrf.mxu0
  %v7698 = vadd.f32 0.0, %v7697
  %v7699 = vpop.f32.mrf.mxu0
  %v7700 = vadd.f32 0.0, %v7699
  %7701 = vmatprep.mubr.bf16.mxu0 %v1918
  %7702 = vmatmul.mubr.bf16.gmra.mxu0 %v1917
  %v7703 = vpop.f32.mrf.mxu0
  %v7704 = vadd.f32 0.0, %v7703
  %v7705 = vpop.f32.mrf.mxu0
  %v7706 = vadd.f32 0.0, %v7705
  %v7707 = vpop.f32.mrf.mxu0
  %v7708 = vadd.f32 0.0, %v7707
  %v7709 = vpop.f32.mrf.mxu0
  %v7710 = vadd.f32 0.0, %v7709
  %7711 = vmatprep.mubr.bf16.mxu0 %v1932
  %7712 = vmatmul.mubr.bf16.gmra.mxu0 %v1931
  %v7713 = vpop.f32.mrf.mxu0
  %v7714 = vadd.f32 0.0, %v7713
  %v7715 = vpop.f32.mrf.mxu0
  %v7716 = vadd.f32 0.0, %v7715
  %v7717 = vpop.f32.mrf.mxu0
  %v7718 = vadd.f32 0.0, %v7717
  %v7719 = vpop.f32.mrf.mxu0
  %v7720 = vadd.f32 0.0, %v7719
  %7721 = vmatprep.mubr.bf16.mxu0 %v1946
  %7722 = vmatmul.mubr.bf16.gmra.mxu0 %v1945
  %v7723 = vpop.f32.mrf.mxu0
  %v7724 = vadd.f32 0.0, %v7723
  %v7725 = vpop.f32.mrf.mxu0
  %v7726 = vadd.f32 0.0, %v7725
  %v7727 = vpop.f32.mrf.mxu0
  %v7728 = vadd.f32 0.0, %v7727
  %v7729 = vpop.f32.mrf.mxu0
  %v7730 = vadd.f32 0.0, %v7729
  %7731 = vmatprep.mubr.bf16.mxu0 %v1960
  %7732 = vmatmul.mubr.bf16.gmra.mxu0 %v1959
  %v7733 = vpop.f32.mrf.mxu0
  %v7734 = vadd.f32 0.0, %v7733
  %v7735 = vpop.f32.mrf.mxu0
  %v7736 = vadd.f32 0.0, %v7735
  %v7737 = vpop.f32.mrf.mxu0
  %v7738 = vadd.f32 0.0, %v7737
  %v7739 = vpop.f32.mrf.mxu0
  %v7740 = vadd.f32 0.0, %v7739
  %7741 = vmatprep.mubr.bf16.mxu0 %v1974
  %7742 = vmatmul.mubr.bf16.gmra.mxu0 %v1973
  %v7743 = vpop.f32.mrf.mxu0
  %v7744 = vadd.f32 0.0, %v7743
  %v7745 = vpop.f32.mrf.mxu0
  %v7746 = vadd.f32 0.0, %v7745
  %v7747 = vpop.f32.mrf.mxu0
  %v7748 = vpop.f32.mrf.mxu0
  %7749 = vdwg.mxu0
  %7750 = vmatprep.subr.bf16.mxu0 %v4779
  %7751 = vmatpush1.bf16.msra.mxu0 %v4778
  %7752 = vmatprep.subr.bf16.mxu0 %v4772
  %7753 = vmatpush1.bf16.msra.mxu0 %v4771
  %7754 = vmatprep.subr.bf16.mxu0 %v4765
  %7755 = vmatpush1.bf16.msra.mxu0 %v4764
  %7756 = vmatprep.subr.bf16.mxu0 %v4758
  %7757 = vmatpush1.bf16.msra.mxu0 %v4757
  %7758 = vmatprep.subr.bf16.mxu0 %v4751
  %7759 = vmatpush1.bf16.msra.mxu0 %v4750
  %7760 = vmatprep.subr.bf16.mxu0 %v4744
  %7761 = vmatpush1.bf16.msra.mxu0 %v4743
  %7762 = vmatprep.subr.bf16.mxu0 %v4737
  %7763 = vmatpush1.bf16.msra.mxu0 %v4736
  %7764 = vmatprep.subr.bf16.mxu0 %v4730
  %7765 = vmatpush1.bf16.msra.mxu0 %v4729
  %7766 = vmatprep.subr.bf16.mxu0 %v4835
  %7767 = vmatpush2.bf16.msra.mxu0 %v4834
  %7768 = vmatprep.subr.bf16.mxu0 %v4828
  %7769 = vmatpush2.bf16.msra.mxu0 %v4827
  %7770 = vmatprep.subr.bf16.mxu0 %v4821
  %7771 = vmatpush2.bf16.msra.mxu0 %v4820
  %7772 = vmatprep.subr.bf16.mxu0 %v4814
  %7773 = vmatpush2.bf16.msra.mxu0 %v4813
  %7774 = vmatprep.subr.bf16.mxu0 %v4807
  %7775 = vmatpush2.bf16.msra.mxu0 %v4806
  %7776 = vmatprep.subr.bf16.mxu0 %v4800
  %7777 = vmatpush2.bf16.msra.mxu0 %v4799
  %7778 = vmatprep.subr.bf16.mxu0 %v4793
  %7779 = vmatpush2.bf16.msra.mxu0 %v4792
  %7780 = vmatprep.subr.bf16.mxu0 %v4786
  %7781 = vmatpush2.bf16.msra.mxu0 %v4785
  %7782 = vmatprep.mubr.bf16.mxu0 %v1766
  %7783 = vmatmul.mubr.bf16.gmra.mxu0 %v1765
  %v7784 = vpop.f32.mrf.mxu0
  %v7785 = vadd.f32 %v7594, %v7784
  %v7786 = vpop.f32.mrf.mxu0
  %v7787 = vadd.f32 %v7596, %v7786
  %v7788 = vpop.f32.mrf.mxu0
  %v7789 = vadd.f32 %v7598, %v7788
  %v7790 = vpop.f32.mrf.mxu0
  %v7791 = vadd.f32 %v7600, %v7790
  %7792 = vmatprep.mubr.bf16.mxu0 %v1780
  %7793 = vmatmul.mubr.bf16.gmra.mxu0 %v1779
  %v7794 = vpop.f32.mrf.mxu0
  %v7795 = vadd.f32 %v7604, %v7794
  %v7796 = vpop.f32.mrf.mxu0
  %v7797 = vadd.f32 %v7606, %v7796
  %v7798 = vpop.f32.mrf.mxu0
  %v7799 = vadd.f32 %v7608, %v7798
  %v7800 = vpop.f32.mrf.mxu0
  %v7801 = vadd.f32 %v7610, %v7800
  %7802 = vmatprep.mubr.bf16.mxu0 %v1794
  %7803 = vmatmul.mubr.bf16.gmra.mxu0 %v1793
  %v7804 = vpop.f32.mrf.mxu0
  %v7805 = vadd.f32 %v7614, %v7804
  %v7806 = vpop.f32.mrf.mxu0
  %v7807 = vadd.f32 %v7616, %v7806
  %v7808 = vpop.f32.mrf.mxu0
  %v7809 = vadd.f32 %v7618, %v7808
  %v7810 = vpop.f32.mrf.mxu0
  %v7811 = vadd.f32 %v7620, %v7810
  %7812 = vmatprep.mubr.bf16.mxu0 %v1808
  %7813 = vmatmul.mubr.bf16.gmra.mxu0 %v1807
  %v7814 = vpop.f32.mrf.mxu0
  %v7815 = vadd.f32 %v7624, %v7814
  %v7816 = vpop.f32.mrf.mxu0
  %v7817 = vadd.f32 %v7626, %v7816
  %v7818 = vpop.f32.mrf.mxu0
  %v7819 = vadd.f32 %v7628, %v7818
  %v7820 = vpop.f32.mrf.mxu0
  %v7821 = vadd.f32 %v7630, %v7820
  %7822 = vmatprep.mubr.bf16.mxu0 %v1822
  %7823 = vmatmul.mubr.bf16.gmra.mxu0 %v1821
  %v7824 = vpop.f32.mrf.mxu0
  %v7825 = vadd.f32 %v7634, %v7824
  %v7826 = vpop.f32.mrf.mxu0
  %v7827 = vadd.f32 %v7636, %v7826
  %v7828 = vpop.f32.mrf.mxu0
  %v7829 = vadd.f32 %v7638, %v7828
  %v7830 = vpop.f32.mrf.mxu0
  %v7831 = vadd.f32 %v7640, %v7830
  %7832 = vmatprep.mubr.bf16.mxu0 %v1836
  %7833 = vmatmul.mubr.bf16.gmra.mxu0 %v1835
  %v7834 = vpop.f32.mrf.mxu0
  %v7835 = vadd.f32 %v7644, %v7834
  %v7836 = vpop.f32.mrf.mxu0
  %v7837 = vadd.f32 %v7646, %v7836
  %v7838 = vpop.f32.mrf.mxu0
  %v7839 = vadd.f32 %v7648, %v7838
  %v7840 = vpop.f32.mrf.mxu0
  %v7841 = vadd.f32 %v7650, %v7840
  %7842 = vmatprep.mubr.bf16.mxu0 %v1850
  %7843 = vmatmul.mubr.bf16.gmra.mxu0 %v1849
  %v7844 = vpop.f32.mrf.mxu0
  %v7845 = vadd.f32 %v7654, %v7844
  %v7846 = vpop.f32.mrf.mxu0
  %v7847 = vadd.f32 %v7656, %v7846
  %v7848 = vpop.f32.mrf.mxu0
  %v7849 = vadd.f32 %v7658, %v7848
  %v7850 = vpop.f32.mrf.mxu0
  %v7851 = vadd.f32 %v7660, %v7850
  %7852 = vmatprep.mubr.bf16.mxu0 %v1864
  %7853 = vmatmul.mubr.bf16.gmra.mxu0 %v1863
  %v7854 = vpop.f32.mrf.mxu0
  %v7855 = vadd.f32 %v7664, %v7854
  %v7856 = vpop.f32.mrf.mxu0
  %v7857 = vadd.f32 %v7666, %v7856
  %v7858 = vpop.f32.mrf.mxu0
  %v7859 = vadd.f32 %v7668, %v7858
  %v7860 = vpop.f32.mrf.mxu0
  %v7861 = vadd.f32 %v7670, %v7860
  %7862 = vmatprep.mubr.bf16.mxu0 %v1878
  %7863 = vmatmul.mubr.bf16.gmra.mxu0 %v1877
  %v7864 = vpop.f32.mrf.mxu0
  %v7865 = vadd.f32 %v7674, %v7864
  %v7866 = vpop.f32.mrf.mxu0
  %v7867 = vadd.f32 %v7676, %v7866
  %v7868 = vpop.f32.mrf.mxu0
  %v7869 = vadd.f32 %v7678, %v7868
  %v7870 = vpop.f32.mrf.mxu0
  %v7871 = vadd.f32 %v7680, %v7870
  %7872 = vmatprep.mubr.bf16.mxu0 %v1892
  %7873 = vmatmul.mubr.bf16.gmra.mxu0 %v1891
  %v7874 = vpop.f32.mrf.mxu0
  %v7875 = vadd.f32 %v7684, %v7874
  %v7876 = vpop.f32.mrf.mxu0
  %v7877 = vadd.f32 %v7686, %v7876
  %v7878 = vpop.f32.mrf.mxu0
  %v7879 = vadd.f32 %v7688, %v7878
  %v7880 = vpop.f32.mrf.mxu0
  %v7881 = vadd.f32 %v7690, %v7880
  %7882 = vmatprep.mubr.bf16.mxu0 %v1906
  %7883 = vmatmul.mubr.bf16.gmra.mxu0 %v1905
  %v7884 = vpop.f32.mrf.mxu0
  %v7885 = vadd.f32 %v7694, %v7884
  %v7886 = vpop.f32.mrf.mxu0
  %v7887 = vadd.f32 %v7696, %v7886
  %v7888 = vpop.f32.mrf.mxu0
  %v7889 = vadd.f32 %v7698, %v7888
  %v7890 = vpop.f32.mrf.mxu0
  %v7891 = vadd.f32 %v7700, %v7890
  %7892 = vmatprep.mubr.bf16.mxu0 %v1920
  %7893 = vmatmul.mubr.bf16.gmra.mxu0 %v1919
  %v7894 = vpop.f32.mrf.mxu0
  %v7895 = vadd.f32 %v7704, %v7894
  %v7896 = vpop.f32.mrf.mxu0
  %v7897 = vadd.f32 %v7706, %v7896
  %v7898 = vpop.f32.mrf.mxu0
  %v7899 = vadd.f32 %v7708, %v7898
  %v7900 = vpop.f32.mrf.mxu0
  %v7901 = vadd.f32 %v7710, %v7900
  %7902 = vmatprep.mubr.bf16.mxu0 %v1934
  %7903 = vmatmul.mubr.bf16.gmra.mxu0 %v1933
  %v7904 = vpop.f32.mrf.mxu0
  %v7905 = vadd.f32 %v7714, %v7904
  %v7906 = vpop.f32.mrf.mxu0
  %v7907 = vadd.f32 %v7716, %v7906
  %v7908 = vpop.f32.mrf.mxu0
  %v7909 = vadd.f32 %v7718, %v7908
  %v7910 = vpop.f32.mrf.mxu0
  %v7911 = vadd.f32 %v7720, %v7910
  %7912 = vmatprep.mubr.bf16.mxu0 %v1948
  %7913 = vmatmul.mubr.bf16.gmra.mxu0 %v1947
  %v7914 = vpop.f32.mrf.mxu0
  %v7915 = vadd.f32 %v7724, %v7914
  %v7916 = vpop.f32.mrf.mxu0
  %v7917 = vadd.f32 %v7726, %v7916
  %v7918 = vpop.f32.mrf.mxu0
  %v7919 = vadd.f32 %v7728, %v7918
  %v7920 = vpop.f32.mrf.mxu0
  %v7921 = vadd.f32 %v7730, %v7920
  %7922 = vmatprep.mubr.bf16.mxu0 %v1962
  %7923 = vmatmul.mubr.bf16.gmra.mxu0 %v1961
  %v7924 = vpop.f32.mrf.mxu0
  %v7925 = vadd.f32 %v7734, %v7924
  %v7926 = vpop.f32.mrf.mxu0
  %v7927 = vadd.f32 %v7736, %v7926
  %v7928 = vpop.f32.mrf.mxu0
  %v7929 = vadd.f32 %v7738, %v7928
  %v7930 = vpop.f32.mrf.mxu0
  %v7931 = vadd.f32 %v7740, %v7930
  %7932 = vmatprep.mubr.bf16.mxu0 %v1976
  %7933 = vmatmul.mubr.bf16.gmra.mxu0 %v1975
  %v7934 = vpop.f32.mrf.mxu0
  %v7935 = vadd.f32 %v7744, %v7934
  %v7936 = vpop.f32.mrf.mxu0
  %v7937 = vadd.f32 %v7746, %v7936
  %v7938 = vpop.f32.mrf.mxu0
  %v7939 = vpop.f32.mrf.mxu0
  %7940 = vdwg.mxu0
  %7941 = vmatprep.subr.bf16.mxu0 %v4891
  %7942 = vmatpush1.bf16.msra.mxu0 %v4890
  %7943 = vmatprep.subr.bf16.mxu0 %v4884
  %7944 = vmatpush1.bf16.msra.mxu0 %v4883
  %7945 = vmatprep.subr.bf16.mxu0 %v4877
  %7946 = vmatpush1.bf16.msra.mxu0 %v4876
  %7947 = vmatprep.subr.bf16.mxu0 %v4870
  %7948 = vmatpush1.bf16.msra.mxu0 %v4869
  %7949 = vmatprep.subr.bf16.mxu0 %v4863
  %7950 = vmatpush1.bf16.msra.mxu0 %v4862
  %7951 = vmatprep.subr.bf16.mxu0 %v4856
  %7952 = vmatpush1.bf16.msra.mxu0 %v4855
  %7953 = vmatprep.subr.bf16.mxu0 %v4849
  %7954 = vmatpush1.bf16.msra.mxu0 %v4848
  %7955 = vmatprep.subr.bf16.mxu0 %v4842
  %7956 = vmatpush1.bf16.msra.mxu0 %v4841
  %7957 = vmatprep.subr.bf16.mxu0 %v4947
  %7958 = vmatpush2.bf16.msra.mxu0 %v4946
  %7959 = vmatprep.subr.bf16.mxu0 %v4940
  %7960 = vmatpush2.bf16.msra.mxu0 %v4939
  %7961 = vmatprep.subr.bf16.mxu0 %v4933
  %7962 = vmatpush2.bf16.msra.mxu0 %v4932
  %7963 = vmatprep.subr.bf16.mxu0 %v4926
  %7964 = vmatpush2.bf16.msra.mxu0 %v4925
  %7965 = vmatprep.subr.bf16.mxu0 %v4919
  %7966 = vmatpush2.bf16.msra.mxu0 %v4918
  %7967 = vmatprep.subr.bf16.mxu0 %v4912
  %7968 = vmatpush2.bf16.msra.mxu0 %v4911
  %7969 = vmatprep.subr.bf16.mxu0 %v4905
  %7970 = vmatpush2.bf16.msra.mxu0 %v4904
  %7971 = vmatprep.subr.bf16.mxu0 %v4898
  %7972 = vmatpush2.bf16.msra.mxu0 %v4897
  %7973 = vmatprep.mubr.bf16.mxu0 %v1768
  %7974 = vmatmul.mubr.bf16.gmra.mxu0 %v1767
  %v7975 = vpop.f32.mrf.mxu0
  %v7976 = vadd.f32 %v7785, %v7975
  %v7977 = vpop.f32.mrf.mxu0
  %v7978 = vadd.f32 %v7787, %v7977
  %v7979 = vpop.f32.mrf.mxu0
  %v7980 = vadd.f32 %v7789, %v7979
  %v7981 = vpop.f32.mrf.mxu0
  %v7982 = vadd.f32 %v7791, %v7981
  %7983 = vmatprep.mubr.bf16.mxu0 %v1782
  %7984 = vmatmul.mubr.bf16.gmra.mxu0 %v1781
  %v7985 = vpop.f32.mrf.mxu0
  %v7986 = vadd.f32 %v7795, %v7985
  %v7987 = vpop.f32.mrf.mxu0
  %v7988 = vadd.f32 %v7797, %v7987
  %v7989 = vpop.f32.mrf.mxu0
  %v7990 = vadd.f32 %v7799, %v7989
  %v7991 = vpop.f32.mrf.mxu0
  %v7992 = vadd.f32 %v7801, %v7991
  %7993 = vmatprep.mubr.bf16.mxu0 %v1796
  %7994 = vmatmul.mubr.bf16.gmra.mxu0 %v1795
  %v7995 = vpop.f32.mrf.mxu0
  %v7996 = vadd.f32 %v7805, %v7995
  %v7997 = vpop.f32.mrf.mxu0
  %v7998 = vadd.f32 %v7807, %v7997
  %v7999 = vpop.f32.mrf.mxu0
  %v8000 = vadd.f32 %v7809, %v7999
  %v8001 = vpop.f32.mrf.mxu0
  %v8002 = vadd.f32 %v7811, %v8001
  %8003 = vmatprep.mubr.bf16.mxu0 %v1810
  %8004 = vmatmul.mubr.bf16.gmra.mxu0 %v1809
  %v8005 = vpop.f32.mrf.mxu0
  %v8006 = vadd.f32 %v7815, %v8005
  %v8007 = vpop.f32.mrf.mxu0
  %v8008 = vadd.f32 %v7817, %v8007
  %v8009 = vpop.f32.mrf.mxu0
  %v8010 = vadd.f32 %v7819, %v8009
  %v8011 = vpop.f32.mrf.mxu0
  %v8012 = vadd.f32 %v7821, %v8011
  %8013 = vmatprep.mubr.bf16.mxu0 %v1824
  %8014 = vmatmul.mubr.bf16.gmra.mxu0 %v1823
  %v8015 = vpop.f32.mrf.mxu0
  %v8016 = vadd.f32 %v7825, %v8015
  %v8017 = vpop.f32.mrf.mxu0
  %v8018 = vadd.f32 %v7827, %v8017
  %v8019 = vpop.f32.mrf.mxu0
  %v8020 = vadd.f32 %v7829, %v8019
  %v8021 = vpop.f32.mrf.mxu0
  %v8022 = vadd.f32 %v7831, %v8021
  %8023 = vmatprep.mubr.bf16.mxu0 %v1838
  %8024 = vmatmul.mubr.bf16.gmra.mxu0 %v1837
  %v8025 = vpop.f32.mrf.mxu0
  %v8026 = vadd.f32 %v7835, %v8025
  %v8027 = vpop.f32.mrf.mxu0
  %v8028 = vadd.f32 %v7837, %v8027
  %v8029 = vpop.f32.mrf.mxu0
  %v8030 = vadd.f32 %v7839, %v8029
  %v8031 = vpop.f32.mrf.mxu0
  %v8032 = vadd.f32 %v7841, %v8031
  %8033 = vmatprep.mubr.bf16.mxu0 %v1852
  %8034 = vmatmul.mubr.bf16.gmra.mxu0 %v1851
  %v8035 = vpop.f32.mrf.mxu0
  %v8036 = vadd.f32 %v7845, %v8035
  %v8037 = vpop.f32.mrf.mxu0
  %v8038 = vadd.f32 %v7847, %v8037
  %v8039 = vpop.f32.mrf.mxu0
  %v8040 = vadd.f32 %v7849, %v8039
  %v8041 = vpop.f32.mrf.mxu0
  %v8042 = vadd.f32 %v7851, %v8041
  %8043 = vmatprep.mubr.bf16.mxu0 %v1866
  %8044 = vmatmul.mubr.bf16.gmra.mxu0 %v1865
  %v8045 = vpop.f32.mrf.mxu0
  %v8046 = vadd.f32 %v7855, %v8045
  %v8047 = vpop.f32.mrf.mxu0
  %v8048 = vadd.f32 %v7857, %v8047
  %v8049 = vpop.f32.mrf.mxu0
  %v8050 = vadd.f32 %v7859, %v8049
  %v8051 = vpop.f32.mrf.mxu0
  %v8052 = vadd.f32 %v7861, %v8051
  %8053 = vmatprep.mubr.bf16.mxu0 %v1880
  %8054 = vmatmul.mubr.bf16.gmra.mxu0 %v1879
  %v8055 = vpop.f32.mrf.mxu0
  %v8056 = vadd.f32 %v7865, %v8055
  %v8057 = vpop.f32.mrf.mxu0
  %v8058 = vadd.f32 %v7867, %v8057
  %v8059 = vpop.f32.mrf.mxu0
  %v8060 = vadd.f32 %v7869, %v8059
  %v8061 = vpop.f32.mrf.mxu0
  %v8062 = vadd.f32 %v7871, %v8061
  %8063 = vmatprep.mubr.bf16.mxu0 %v1894
  %8064 = vmatmul.mubr.bf16.gmra.mxu0 %v1893
  %v8065 = vpop.f32.mrf.mxu0
  %v8066 = vadd.f32 %v7875, %v8065
  %v8067 = vpop.f32.mrf.mxu0
  %v8068 = vadd.f32 %v7877, %v8067
  %v8069 = vpop.f32.mrf.mxu0
  %v8070 = vadd.f32 %v7879, %v8069
  %v8071 = vpop.f32.mrf.mxu0
  %v8072 = vadd.f32 %v7881, %v8071
  %8073 = vmatprep.mubr.bf16.mxu0 %v1908
  %8074 = vmatmul.mubr.bf16.gmra.mxu0 %v1907
  %v8075 = vpop.f32.mrf.mxu0
  %v8076 = vadd.f32 %v7885, %v8075
  %v8077 = vpop.f32.mrf.mxu0
  %v8078 = vadd.f32 %v7887, %v8077
  %v8079 = vpop.f32.mrf.mxu0
  %v8080 = vadd.f32 %v7889, %v8079
  %v8081 = vpop.f32.mrf.mxu0
  %v8082 = vadd.f32 %v7891, %v8081
  %8083 = vmatprep.mubr.bf16.mxu0 %v1922
  %8084 = vmatmul.mubr.bf16.gmra.mxu0 %v1921
  %v8085 = vpop.f32.mrf.mxu0
  %v8086 = vadd.f32 %v7895, %v8085
  %v8087 = vpop.f32.mrf.mxu0
  %v8088 = vadd.f32 %v7897, %v8087
  %v8089 = vpop.f32.mrf.mxu0
  %v8090 = vadd.f32 %v7899, %v8089
  %v8091 = vpop.f32.mrf.mxu0
  %v8092 = vadd.f32 %v7901, %v8091
  %8093 = vmatprep.mubr.bf16.mxu0 %v1936
  %8094 = vmatmul.mubr.bf16.gmra.mxu0 %v1935
  %v8095 = vpop.f32.mrf.mxu0
  %v8096 = vadd.f32 %v7905, %v8095
  %v8097 = vpop.f32.mrf.mxu0
  %v8098 = vadd.f32 %v7907, %v8097
  %v8099 = vpop.f32.mrf.mxu0
  %v8100 = vadd.f32 %v7909, %v8099
  %v8101 = vpop.f32.mrf.mxu0
  %v8102 = vadd.f32 %v7911, %v8101
  %8103 = vmatprep.mubr.bf16.mxu0 %v1950
  %8104 = vmatmul.mubr.bf16.gmra.mxu0 %v1949
  %v8105 = vpop.f32.mrf.mxu0
  %v8106 = vadd.f32 %v7915, %v8105
  %v8107 = vpop.f32.mrf.mxu0
  %v8108 = vadd.f32 %v7917, %v8107
  %v8109 = vpop.f32.mrf.mxu0
  %v8110 = vadd.f32 %v7919, %v8109
  %v8111 = vpop.f32.mrf.mxu0
  %v8112 = vadd.f32 %v7921, %v8111
  %8113 = vmatprep.mubr.bf16.mxu0 %v1964
  %8114 = vmatmul.mubr.bf16.gmra.mxu0 %v1963
  %v8115 = vpop.f32.mrf.mxu0
  %v8116 = vadd.f32 %v7925, %v8115
  %v8117 = vpop.f32.mrf.mxu0
  %v8118 = vadd.f32 %v7927, %v8117
  %v8119 = vpop.f32.mrf.mxu0
  %v8120 = vadd.f32 %v7929, %v8119
  %v8121 = vpop.f32.mrf.mxu0
  %v8122 = vadd.f32 %v7931, %v8121
  %8123 = vmatprep.mubr.bf16.mxu0 %v1978
  %8124 = vmatmul.mubr.bf16.gmra.mxu0 %v1977
  %v8125 = vpop.f32.mrf.mxu0
  %v8126 = vadd.f32 %v7935, %v8125
  %v8127 = vpop.f32.mrf.mxu0
  %v8128 = vadd.f32 %v7937, %v8127
  %v8129 = vpop.f32.mrf.mxu0
  %v8130 = vpop.f32.mrf.mxu0
  %8131 = vdwg.mxu0
  %8132 = vmatprep.subr.bf16.mxu0 %v5003
  %8133 = vmatpush1.bf16.msra.mxu0 %v5002
  %8134 = vmatprep.subr.bf16.mxu0 %v4996
  %8135 = vmatpush1.bf16.msra.mxu0 %v4995
  %8136 = vmatprep.subr.bf16.mxu0 %v4989
  %8137 = vmatpush1.bf16.msra.mxu0 %v4988
  %8138 = vmatprep.subr.bf16.mxu0 %v4982
  %8139 = vmatpush1.bf16.msra.mxu0 %v4981
  %8140 = vmatprep.subr.bf16.mxu0 %v4975
  %8141 = vmatpush1.bf16.msra.mxu0 %v4974
  %8142 = vmatprep.subr.bf16.mxu0 %v4968
  %8143 = vmatpush1.bf16.msra.mxu0 %v4967
  %8144 = vmatprep.subr.bf16.mxu0 %v4961
  %8145 = vmatpush1.bf16.msra.mxu0 %v4960
  %8146 = vmatprep.subr.bf16.mxu0 %v4954
  %8147 = vmatpush1.bf16.msra.mxu0 %v4953
  %8148 = vmatprep.subr.bf16.mxu0 %v5059
  %8149 = vmatpush2.bf16.msra.mxu0 %v5058
  %8150 = vmatprep.subr.bf16.mxu0 %v5052
  %8151 = vmatpush2.bf16.msra.mxu0 %v5051
  %8152 = vmatprep.subr.bf16.mxu0 %v5045
  %8153 = vmatpush2.bf16.msra.mxu0 %v5044
  %8154 = vmatprep.subr.bf16.mxu0 %v5038
  %8155 = vmatpush2.bf16.msra.mxu0 %v5037
  %8156 = vmatprep.subr.bf16.mxu0 %v5031
  %8157 = vmatpush2.bf16.msra.mxu0 %v5030
  %8158 = vmatprep.subr.bf16.mxu0 %v5024
  %8159 = vmatpush2.bf16.msra.mxu0 %v5023
  %8160 = vmatprep.subr.bf16.mxu0 %v5017
  %8161 = vmatpush2.bf16.msra.mxu0 %v5016
  %8162 = vmatprep.subr.bf16.mxu0 %v5010
  %8163 = vmatpush2.bf16.msra.mxu0 %v5009
  %8164 = vmatprep.mubr.bf16.mxu0 %v1770
  %8165 = vmatmul.mubr.bf16.gmra.mxu0 %v1769
  %v8166 = vpop.f32.mrf.mxu0
  %v8167 = vadd.f32 %v7976, %v8166
  %v8168 = vpop.f32.mrf.mxu0
  %v8169 = vadd.f32 %v7978, %v8168
  %v8170 = vpop.f32.mrf.mxu0
  %v8171 = vadd.f32 %v7980, %v8170
  %v8172 = vpop.f32.mrf.mxu0
  %v8173 = vadd.f32 %v7982, %v8172
  %8174 = vmatprep.mubr.bf16.mxu0 %v1784
  %8175 = vmatmul.mubr.bf16.gmra.mxu0 %v1783
  %v8176 = vpop.f32.mrf.mxu0
  %v8177 = vadd.f32 %v7986, %v8176
  %v8178 = vpop.f32.mrf.mxu0
  %v8179 = vadd.f32 %v7988, %v8178
  %v8180 = vpop.f32.mrf.mxu0
  %v8181 = vadd.f32 %v7990, %v8180
  %v8182 = vpop.f32.mrf.mxu0
  %v8183 = vadd.f32 %v7992, %v8182
  %8184 = vmatprep.mubr.bf16.mxu0 %v1798
  %8185 = vmatmul.mubr.bf16.gmra.mxu0 %v1797
  %v8186 = vpop.f32.mrf.mxu0
  %v8187 = vadd.f32 %v7996, %v8186
  %v8188 = vpop.f32.mrf.mxu0
  %v8189 = vadd.f32 %v7998, %v8188
  %v8190 = vpop.f32.mrf.mxu0
  %v8191 = vadd.f32 %v8000, %v8190
  %v8192 = vpop.f32.mrf.mxu0
  %v8193 = vadd.f32 %v8002, %v8192
  %8194 = vmatprep.mubr.bf16.mxu0 %v1812
  %8195 = vmatmul.mubr.bf16.gmra.mxu0 %v1811
  %v8196 = vpop.f32.mrf.mxu0
  %v8197 = vadd.f32 %v8006, %v8196
  %v8198 = vpop.f32.mrf.mxu0
  %v8199 = vadd.f32 %v8008, %v8198
  %v8200 = vpop.f32.mrf.mxu0
  %v8201 = vadd.f32 %v8010, %v8200
  %v8202 = vpop.f32.mrf.mxu0
  %v8203 = vadd.f32 %v8012, %v8202
  %8204 = vmatprep.mubr.bf16.mxu0 %v1826
  %8205 = vmatmul.mubr.bf16.gmra.mxu0 %v1825
  %v8206 = vpop.f32.mrf.mxu0
  %v8207 = vadd.f32 %v8016, %v8206
  %v8208 = vpop.f32.mrf.mxu0
  %v8209 = vadd.f32 %v8018, %v8208
  %v8210 = vpop.f32.mrf.mxu0
  %v8211 = vadd.f32 %v8020, %v8210
  %v8212 = vpop.f32.mrf.mxu0
  %v8213 = vadd.f32 %v8022, %v8212
  %8214 = vmatprep.mubr.bf16.mxu0 %v1840
  %8215 = vmatmul.mubr.bf16.gmra.mxu0 %v1839
  %v8216 = vpop.f32.mrf.mxu0
  %v8217 = vadd.f32 %v8026, %v8216
  %v8218 = vpop.f32.mrf.mxu0
  %v8219 = vadd.f32 %v8028, %v8218
  %v8220 = vpop.f32.mrf.mxu0
  %v8221 = vadd.f32 %v8030, %v8220
  %v8222 = vpop.f32.mrf.mxu0
  %v8223 = vadd.f32 %v8032, %v8222
  %8224 = vmatprep.mubr.bf16.mxu0 %v1854
  %8225 = vmatmul.mubr.bf16.gmra.mxu0 %v1853
  %v8226 = vpop.f32.mrf.mxu0
  %v8227 = vadd.f32 %v8036, %v8226
  %v8228 = vpop.f32.mrf.mxu0
  %v8229 = vadd.f32 %v8038, %v8228
  %v8230 = vpop.f32.mrf.mxu0
  %v8231 = vadd.f32 %v8040, %v8230
  %v8232 = vpop.f32.mrf.mxu0
  %v8233 = vadd.f32 %v8042, %v8232
  %8234 = vmatprep.mubr.bf16.mxu0 %v1868
  %8235 = vmatmul.mubr.bf16.gmra.mxu0 %v1867
  %v8236 = vpop.f32.mrf.mxu0
  %v8237 = vadd.f32 %v8046, %v8236
  %v8238 = vpop.f32.mrf.mxu0
  %v8239 = vadd.f32 %v8048, %v8238
  %v8240 = vpop.f32.mrf.mxu0
  %v8241 = vadd.f32 %v8050, %v8240
  %v8242 = vpop.f32.mrf.mxu0
  %v8243 = vadd.f32 %v8052, %v8242
  %8244 = vmatprep.mubr.bf16.mxu0 %v1882
  %8245 = vmatmul.mubr.bf16.gmra.mxu0 %v1881
  %v8246 = vpop.f32.mrf.mxu0
  %v8247 = vadd.f32 %v8056, %v8246
  %v8248 = vpop.f32.mrf.mxu0
  %v8249 = vadd.f32 %v8058, %v8248
  %v8250 = vpop.f32.mrf.mxu0
  %v8251 = vadd.f32 %v8060, %v8250
  %v8252 = vpop.f32.mrf.mxu0
  %v8253 = vadd.f32 %v8062, %v8252
  %8254 = vmatprep.mubr.bf16.mxu0 %v1896
  %8255 = vmatmul.mubr.bf16.gmra.mxu0 %v1895
  %v8256 = vpop.f32.mrf.mxu0
  %v8257 = vadd.f32 %v8066, %v8256
  %v8258 = vpop.f32.mrf.mxu0
  %v8259 = vadd.f32 %v8068, %v8258
  %v8260 = vpop.f32.mrf.mxu0
  %v8261 = vadd.f32 %v8070, %v8260
  %v8262 = vpop.f32.mrf.mxu0
  %v8263 = vadd.f32 %v8072, %v8262
  %8264 = vmatprep.mubr.bf16.mxu0 %v1910
  %8265 = vmatmul.mubr.bf16.gmra.mxu0 %v1909
  %v8266 = vpop.f32.mrf.mxu0
  %v8267 = vadd.f32 %v8076, %v8266
  %v8268 = vpop.f32.mrf.mxu0
  %v8269 = vadd.f32 %v8078, %v8268
  %v8270 = vpop.f32.mrf.mxu0
  %v8271 = vadd.f32 %v8080, %v8270
  %v8272 = vpop.f32.mrf.mxu0
  %v8273 = vadd.f32 %v8082, %v8272
  %8274 = vmatprep.mubr.bf16.mxu0 %v1924
  %8275 = vmatmul.mubr.bf16.gmra.mxu0 %v1923
  %v8276 = vpop.f32.mrf.mxu0
  %v8277 = vadd.f32 %v8086, %v8276
  %v8278 = vpop.f32.mrf.mxu0
  %v8279 = vadd.f32 %v8088, %v8278
  %v8280 = vpop.f32.mrf.mxu0
  %v8281 = vadd.f32 %v8090, %v8280
  %v8282 = vpop.f32.mrf.mxu0
  %v8283 = vadd.f32 %v8092, %v8282
  %8284 = vmatprep.mubr.bf16.mxu0 %v1938
  %8285 = vmatmul.mubr.bf16.gmra.mxu0 %v1937
  %v8286 = vpop.f32.mrf.mxu0
  %v8287 = vadd.f32 %v8096, %v8286
  %v8288 = vpop.f32.mrf.mxu0
  %v8289 = vadd.f32 %v8098, %v8288
  %v8290 = vpop.f32.mrf.mxu0
  %v8291 = vadd.f32 %v8100, %v8290
  %v8292 = vpop.f32.mrf.mxu0
  %v8293 = vadd.f32 %v8102, %v8292
  %8294 = vmatprep.mubr.bf16.mxu0 %v1952
  %8295 = vmatmul.mubr.bf16.gmra.mxu0 %v1951
  %v8296 = vpop.f32.mrf.mxu0
  %v8297 = vadd.f32 %v8106, %v8296
  %v8298 = vpop.f32.mrf.mxu0
  %v8299 = vadd.f32 %v8108, %v8298
  %v8300 = vpop.f32.mrf.mxu0
  %v8301 = vadd.f32 %v8110, %v8300
  %v8302 = vpop.f32.mrf.mxu0
  %v8303 = vadd.f32 %v8112, %v8302
  %8304 = vmatprep.mubr.bf16.mxu0 %v1966
  %8305 = vmatmul.mubr.bf16.gmra.mxu0 %v1965
  %v8306 = vpop.f32.mrf.mxu0
  %v8307 = vadd.f32 %v8116, %v8306
  %v8308 = vpop.f32.mrf.mxu0
  %v8309 = vadd.f32 %v8118, %v8308
  %v8310 = vpop.f32.mrf.mxu0
  %v8311 = vadd.f32 %v8120, %v8310
  %v8312 = vpop.f32.mrf.mxu0
  %v8313 = vadd.f32 %v8122, %v8312
  %8314 = vmatprep.mubr.bf16.mxu0 %v1980
  %8315 = vmatmul.mubr.bf16.gmra.mxu0 %v1979
  %v8316 = vpop.f32.mrf.mxu0
  %v8317 = vadd.f32 %v8126, %v8316
  %v8318 = vpop.f32.mrf.mxu0
  %v8319 = vadd.f32 %v8128, %v8318
  %v8320 = vpop.f32.mrf.mxu0
  %v8321 = vpop.f32.mrf.mxu0
  %8322 = vdwg.mxu0
  %8323 = vmatprep.subr.bf16.mxu0 %v5115
  %8324 = vmatpush1.bf16.msra.mxu0 %v5114
  %8325 = vmatprep.subr.bf16.mxu0 %v5108
  %8326 = vmatpush1.bf16.msra.mxu0 %v5107
  %8327 = vmatprep.subr.bf16.mxu0 %v5101
  %8328 = vmatpush1.bf16.msra.mxu0 %v5100
  %8329 = vmatprep.subr.bf16.mxu0 %v5094
  %8330 = vmatpush1.bf16.msra.mxu0 %v5093
  %8331 = vmatprep.subr.bf16.mxu0 %v5087
  %8332 = vmatpush1.bf16.msra.mxu0 %v5086
  %8333 = vmatprep.subr.bf16.mxu0 %v5080
  %8334 = vmatpush1.bf16.msra.mxu0 %v5079
  %8335 = vmatprep.subr.bf16.mxu0 %v5073
  %8336 = vmatpush1.bf16.msra.mxu0 %v5072
  %8337 = vmatprep.subr.bf16.mxu0 %v5066
  %8338 = vmatpush1.bf16.msra.mxu0 %v5065
  %8339 = vmatprep.subr.bf16.mxu0 %v5171
  %8340 = vmatpush2.bf16.msra.mxu0 %v5170
  %8341 = vmatprep.subr.bf16.mxu0 %v5164
  %8342 = vmatpush2.bf16.msra.mxu0 %v5163
  %8343 = vmatprep.subr.bf16.mxu0 %v5157
  %8344 = vmatpush2.bf16.msra.mxu0 %v5156
  %8345 = vmatprep.subr.bf16.mxu0 %v5150
  %8346 = vmatpush2.bf16.msra.mxu0 %v5149
  %8347 = vmatprep.subr.bf16.mxu0 %v5143
  %8348 = vmatpush2.bf16.msra.mxu0 %v5142
  %8349 = vmatprep.subr.bf16.mxu0 %v5136
  %8350 = vmatpush2.bf16.msra.mxu0 %v5135
  %8351 = vmatprep.subr.bf16.mxu0 %v5129
  %8352 = vmatpush2.bf16.msra.mxu0 %v5128
  %8353 = vmatprep.subr.bf16.mxu0 %v5122
  %8354 = vmatpush2.bf16.msra.mxu0 %v5121
  %8355 = vmatprep.mubr.bf16.mxu0 %v1772
  %8356 = vmatmul.mubr.bf16.gmra.mxu0 %v1771
  %v8357 = vpop.f32.mrf.mxu0
  %v8358 = vadd.f32 %v8167, %v8357
  %v8359 = vpop.f32.mrf.mxu0
  %v8360 = vadd.f32 %v8169, %v8359
  %v8361 = vpop.f32.mrf.mxu0
  %v8362 = vadd.f32 %v8171, %v8361
  %v8363 = vpop.f32.mrf.mxu0
  %v8364 = vadd.f32 %v8173, %v8363
  %8365 = vmatprep.mubr.bf16.mxu0 %v1786
  %8366 = vmatmul.mubr.bf16.gmra.mxu0 %v1785
  %v8367 = vpop.f32.mrf.mxu0
  %v8368 = vadd.f32 %v8177, %v8367
  %v8369 = vpop.f32.mrf.mxu0
  %v8370 = vadd.f32 %v8179, %v8369
  %v8371 = vpop.f32.mrf.mxu0
  %v8372 = vadd.f32 %v8181, %v8371
  %v8373 = vpop.f32.mrf.mxu0
  %v8374 = vadd.f32 %v8183, %v8373
  %8375 = vmatprep.mubr.bf16.mxu0 %v1800
  %8376 = vmatmul.mubr.bf16.gmra.mxu0 %v1799
  %v8377 = vpop.f32.mrf.mxu0
  %v8378 = vadd.f32 %v8187, %v8377
  %v8379 = vpop.f32.mrf.mxu0
  %v8380 = vadd.f32 %v8189, %v8379
  %v8381 = vpop.f32.mrf.mxu0
  %v8382 = vadd.f32 %v8191, %v8381
  %v8383 = vpop.f32.mrf.mxu0
  %v8384 = vadd.f32 %v8193, %v8383
  %8385 = vmatprep.mubr.bf16.mxu0 %v1814
  %8386 = vmatmul.mubr.bf16.gmra.mxu0 %v1813
  %v8387 = vpop.f32.mrf.mxu0
  %v8388 = vadd.f32 %v8197, %v8387
  %v8389 = vpop.f32.mrf.mxu0
  %v8390 = vadd.f32 %v8199, %v8389
  %v8391 = vpop.f32.mrf.mxu0
  %v8392 = vadd.f32 %v8201, %v8391
  %v8393 = vpop.f32.mrf.mxu0
  %v8394 = vadd.f32 %v8203, %v8393
  %8395 = vmatprep.mubr.bf16.mxu0 %v1828
  %8396 = vmatmul.mubr.bf16.gmra.mxu0 %v1827
  %v8397 = vpop.f32.mrf.mxu0
  %v8398 = vadd.f32 %v8207, %v8397
  %v8399 = vpop.f32.mrf.mxu0
  %v8400 = vadd.f32 %v8209, %v8399
  %v8401 = vpop.f32.mrf.mxu0
  %v8402 = vadd.f32 %v8211, %v8401
  %v8403 = vpop.f32.mrf.mxu0
  %v8404 = vadd.f32 %v8213, %v8403
  %8405 = vmatprep.mubr.bf16.mxu0 %v1842
  %8406 = vmatmul.mubr.bf16.gmra.mxu0 %v1841
  %v8407 = vpop.f32.mrf.mxu0
  %v8408 = vadd.f32 %v8217, %v8407
  %v8409 = vpop.f32.mrf.mxu0
  %v8410 = vadd.f32 %v8219, %v8409
  %v8411 = vpop.f32.mrf.mxu0
  %v8412 = vadd.f32 %v8221, %v8411
  %v8413 = vpop.f32.mrf.mxu0
  %v8414 = vadd.f32 %v8223, %v8413
  %8415 = vmatprep.mubr.bf16.mxu0 %v1856
  %8416 = vmatmul.mubr.bf16.gmra.mxu0 %v1855
  %v8417 = vpop.f32.mrf.mxu0
  %v8418 = vadd.f32 %v8227, %v8417
  %v8419 = vpop.f32.mrf.mxu0
  %v8420 = vadd.f32 %v8229, %v8419
  %v8421 = vpop.f32.mrf.mxu0
  %v8422 = vadd.f32 %v8231, %v8421
  %v8423 = vpop.f32.mrf.mxu0
  %v8424 = vadd.f32 %v8233, %v8423
  %8425 = vmatprep.mubr.bf16.mxu0 %v1870
  %8426 = vmatmul.mubr.bf16.gmra.mxu0 %v1869
  %v8427 = vpop.f32.mrf.mxu0
  %v8428 = vadd.f32 %v8237, %v8427
  %v8429 = vpop.f32.mrf.mxu0
  %v8430 = vadd.f32 %v8239, %v8429
  %v8431 = vpop.f32.mrf.mxu0
  %v8432 = vadd.f32 %v8241, %v8431
  %v8433 = vpop.f32.mrf.mxu0
  %v8434 = vadd.f32 %v8243, %v8433
  %8435 = vmatprep.mubr.bf16.mxu0 %v1884
  %8436 = vmatmul.mubr.bf16.gmra.mxu0 %v1883
  %v8437 = vpop.f32.mrf.mxu0
  %v8438 = vadd.f32 %v8247, %v8437
  %v8439 = vpop.f32.mrf.mxu0
  %v8440 = vadd.f32 %v8249, %v8439
  %v8441 = vpop.f32.mrf.mxu0
  %v8442 = vadd.f32 %v8251, %v8441
  %v8443 = vpop.f32.mrf.mxu0
  %v8444 = vadd.f32 %v8253, %v8443
  %8445 = vmatprep.mubr.bf16.mxu0 %v1898
  %8446 = vmatmul.mubr.bf16.gmra.mxu0 %v1897
  %v8447 = vpop.f32.mrf.mxu0
  %v8448 = vadd.f32 %v8257, %v8447
  %v8449 = vpop.f32.mrf.mxu0
  %v8450 = vadd.f32 %v8259, %v8449
  %v8451 = vpop.f32.mrf.mxu0
  %v8452 = vadd.f32 %v8261, %v8451
  %v8453 = vpop.f32.mrf.mxu0
  %v8454 = vadd.f32 %v8263, %v8453
  %8455 = vmatprep.mubr.bf16.mxu0 %v1912
  %8456 = vmatmul.mubr.bf16.gmra.mxu0 %v1911
  %v8457 = vpop.f32.mrf.mxu0
  %v8458 = vadd.f32 %v8267, %v8457
  %v8459 = vpop.f32.mrf.mxu0
  %v8460 = vadd.f32 %v8269, %v8459
  %v8461 = vpop.f32.mrf.mxu0
  %v8462 = vadd.f32 %v8271, %v8461
  %v8463 = vpop.f32.mrf.mxu0
  %v8464 = vadd.f32 %v8273, %v8463
  %8465 = vmatprep.mubr.bf16.mxu0 %v1926
  %8466 = vmatmul.mubr.bf16.gmra.mxu0 %v1925
  %v8467 = vpop.f32.mrf.mxu0
  %v8468 = vadd.f32 %v8277, %v8467
  %v8469 = vpop.f32.mrf.mxu0
  %v8470 = vadd.f32 %v8279, %v8469
  %v8471 = vpop.f32.mrf.mxu0
  %v8472 = vadd.f32 %v8281, %v8471
  %v8473 = vpop.f32.mrf.mxu0
  %v8474 = vadd.f32 %v8283, %v8473
  %8475 = vmatprep.mubr.bf16.mxu0 %v1940
  %8476 = vmatmul.mubr.bf16.gmra.mxu0 %v1939
  %v8477 = vpop.f32.mrf.mxu0
  %v8478 = vadd.f32 %v8287, %v8477
  %v8479 = vpop.f32.mrf.mxu0
  %v8480 = vadd.f32 %v8289, %v8479
  %v8481 = vpop.f32.mrf.mxu0
  %v8482 = vadd.f32 %v8291, %v8481
  %v8483 = vpop.f32.mrf.mxu0
  %v8484 = vadd.f32 %v8293, %v8483
  %8485 = vmatprep.mubr.bf16.mxu0 %v1954
  %8486 = vmatmul.mubr.bf16.gmra.mxu0 %v1953
  %v8487 = vpop.f32.mrf.mxu0
  %v8488 = vadd.f32 %v8297, %v8487
  %v8489 = vpop.f32.mrf.mxu0
  %v8490 = vadd.f32 %v8299, %v8489
  %v8491 = vpop.f32.mrf.mxu0
  %v8492 = vadd.f32 %v8301, %v8491
  %v8493 = vpop.f32.mrf.mxu0
  %v8494 = vadd.f32 %v8303, %v8493
  %8495 = vmatprep.mubr.bf16.mxu0 %v1968
  %8496 = vmatmul.mubr.bf16.gmra.mxu0 %v1967
  %v8497 = vpop.f32.mrf.mxu0
  %v8498 = vadd.f32 %v8307, %v8497
  %v8499 = vpop.f32.mrf.mxu0
  %v8500 = vadd.f32 %v8309, %v8499
  %v8501 = vpop.f32.mrf.mxu0
  %v8502 = vadd.f32 %v8311, %v8501
  %v8503 = vpop.f32.mrf.mxu0
  %v8504 = vadd.f32 %v8313, %v8503
  %8505 = vmatprep.mubr.bf16.mxu0 %v1982
  %8506 = vmatmul.mubr.bf16.gmra.mxu0 %v1981
  %v8507 = vpop.f32.mrf.mxu0
  %v8508 = vadd.f32 %v8317, %v8507
  %v8509 = vpop.f32.mrf.mxu0
  %v8510 = vadd.f32 %v8319, %v8509
  %v8511 = vpop.f32.mrf.mxu0
  %v8512 = vpop.f32.mrf.mxu0
  %8513 = vdwg.mxu0
  %8514 = vmatprep.subr.bf16.mxu0 %v5227
  %8515 = vmatpush1.bf16.msra.mxu0 %v5226
  %8516 = vmatprep.subr.bf16.mxu0 %v5220
  %8517 = vmatpush1.bf16.msra.mxu0 %v5219
  %8518 = vmatprep.subr.bf16.mxu0 %v5213
  %8519 = vmatpush1.bf16.msra.mxu0 %v5212
  %8520 = vmatprep.subr.bf16.mxu0 %v5206
  %8521 = vmatpush1.bf16.msra.mxu0 %v5205
  %8522 = vmatprep.subr.bf16.mxu0 %v5199
  %8523 = vmatpush1.bf16.msra.mxu0 %v5198
  %8524 = vmatprep.subr.bf16.mxu0 %v5192
  %8525 = vmatpush1.bf16.msra.mxu0 %v5191
  %8526 = vmatprep.subr.bf16.mxu0 %v5185
  %8527 = vmatpush1.bf16.msra.mxu0 %v5184
  %8528 = vmatprep.subr.bf16.mxu0 %v5178
  %8529 = vmatpush1.bf16.msra.mxu0 %v5177
  %8530 = vmatprep.subr.bf16.mxu0 %v5283
  %8531 = vmatpush2.bf16.msra.mxu0 %v5282
  %8532 = vmatprep.subr.bf16.mxu0 %v5276
  %8533 = vmatpush2.bf16.msra.mxu0 %v5275
  %8534 = vmatprep.subr.bf16.mxu0 %v5269
  %8535 = vmatpush2.bf16.msra.mxu0 %v5268
  %8536 = vmatprep.subr.bf16.mxu0 %v5262
  %8537 = vmatpush2.bf16.msra.mxu0 %v5261
  %8538 = vmatprep.subr.bf16.mxu0 %v5255
  %8539 = vmatpush2.bf16.msra.mxu0 %v5254
  %8540 = vmatprep.subr.bf16.mxu0 %v5248
  %8541 = vmatpush2.bf16.msra.mxu0 %v5247
  %8542 = vmatprep.subr.bf16.mxu0 %v5241
  %8543 = vmatpush2.bf16.msra.mxu0 %v5240
  %8544 = vmatprep.subr.bf16.mxu0 %v5234
  %8545 = vmatpush2.bf16.msra.mxu0 %v5233
  %8546 = vmatprep.mubr.bf16.mxu0 %v1774
  %8547 = vmatmul.mubr.bf16.gmra.mxu0 %v1773
  %v8548 = vpop.f32.mrf.mxu0
  %v8549 = vadd.f32 %v8358, %v8548
  %v8550 = vpop.f32.mrf.mxu0
  %v8551 = vadd.f32 %v8360, %v8550
  %v8552 = vpop.f32.mrf.mxu0
  %v8553 = vadd.f32 %v8362, %v8552
  %v8554 = vpop.f32.mrf.mxu0
  %v8555 = vadd.f32 %v8364, %v8554
  %8556 = vmatprep.mubr.bf16.mxu0 %v1788
  %8557 = vmatmul.mubr.bf16.gmra.mxu0 %v1787
  %v8558 = vpop.f32.mrf.mxu0
  %v8559 = vadd.f32 %v8368, %v8558
  %v8560 = vpop.f32.mrf.mxu0
  %v8561 = vadd.f32 %v8370, %v8560
  %v8562 = vpop.f32.mrf.mxu0
  %v8563 = vadd.f32 %v8372, %v8562
  %v8564 = vpop.f32.mrf.mxu0
  %v8565 = vadd.f32 %v8374, %v8564
  %8566 = vmatprep.mubr.bf16.mxu0 %v1802
  %8567 = vmatmul.mubr.bf16.gmra.mxu0 %v1801
  %v8568 = vpop.f32.mrf.mxu0
  %v8569 = vadd.f32 %v8378, %v8568
  %v8570 = vpop.f32.mrf.mxu0
  %v8571 = vadd.f32 %v8380, %v8570
  %v8572 = vpop.f32.mrf.mxu0
  %v8573 = vadd.f32 %v8382, %v8572
  %v8574 = vpop.f32.mrf.mxu0
  %v8575 = vadd.f32 %v8384, %v8574
  %8576 = vmatprep.mubr.bf16.mxu0 %v1816
  %8577 = vmatmul.mubr.bf16.gmra.mxu0 %v1815
  %v8578 = vpop.f32.mrf.mxu0
  %v8579 = vadd.f32 %v8388, %v8578
  %v8580 = vpop.f32.mrf.mxu0
  %v8581 = vadd.f32 %v8390, %v8580
  %v8582 = vpop.f32.mrf.mxu0
  %v8583 = vadd.f32 %v8392, %v8582
  %v8584 = vpop.f32.mrf.mxu0
  %v8585 = vadd.f32 %v8394, %v8584
  %8586 = vmatprep.mubr.bf16.mxu0 %v1830
  %8587 = vmatmul.mubr.bf16.gmra.mxu0 %v1829
  %v8588 = vpop.f32.mrf.mxu0
  %v8589 = vadd.f32 %v8398, %v8588
  %v8590 = vpop.f32.mrf.mxu0
  %v8591 = vadd.f32 %v8400, %v8590
  %v8592 = vpop.f32.mrf.mxu0
  %v8593 = vadd.f32 %v8402, %v8592
  %v8594 = vpop.f32.mrf.mxu0
  %v8595 = vadd.f32 %v8404, %v8594
  %8596 = vmatprep.mubr.bf16.mxu0 %v1844
  %8597 = vmatmul.mubr.bf16.gmra.mxu0 %v1843
  %v8598 = vpop.f32.mrf.mxu0
  %v8599 = vadd.f32 %v8408, %v8598
  %v8600 = vpop.f32.mrf.mxu0
  %v8601 = vadd.f32 %v8410, %v8600
  %v8602 = vpop.f32.mrf.mxu0
  %v8603 = vadd.f32 %v8412, %v8602
  %v8604 = vpop.f32.mrf.mxu0
  %v8605 = vadd.f32 %v8414, %v8604
  %8606 = vmatprep.mubr.bf16.mxu0 %v1858
  %8607 = vmatmul.mubr.bf16.gmra.mxu0 %v1857
  %v8608 = vpop.f32.mrf.mxu0
  %v8609 = vadd.f32 %v8418, %v8608
  %v8610 = vpop.f32.mrf.mxu0
  %v8611 = vadd.f32 %v8420, %v8610
  %v8612 = vpop.f32.mrf.mxu0
  %v8613 = vadd.f32 %v8422, %v8612
  %v8614 = vpop.f32.mrf.mxu0
  %v8615 = vadd.f32 %v8424, %v8614
  %8616 = vmatprep.mubr.bf16.mxu0 %v1872
  %8617 = vmatmul.mubr.bf16.gmra.mxu0 %v1871
  %v8618 = vpop.f32.mrf.mxu0
  %v8619 = vadd.f32 %v8428, %v8618
  %v8620 = vpop.f32.mrf.mxu0
  %v8621 = vadd.f32 %v8430, %v8620
  %v8622 = vpop.f32.mrf.mxu0
  %v8623 = vadd.f32 %v8432, %v8622
  %v8624 = vpop.f32.mrf.mxu0
  %v8625 = vadd.f32 %v8434, %v8624
  %8626 = vmatprep.mubr.bf16.mxu0 %v1886
  %8627 = vmatmul.mubr.bf16.gmra.mxu0 %v1885
  %v8628 = vpop.f32.mrf.mxu0
  %v8629 = vadd.f32 %v8438, %v8628
  %v8630 = vpop.f32.mrf.mxu0
  %v8631 = vadd.f32 %v8440, %v8630
  %v8632 = vpop.f32.mrf.mxu0
  %v8633 = vadd.f32 %v8442, %v8632
  %v8634 = vpop.f32.mrf.mxu0
  %v8635 = vadd.f32 %v8444, %v8634
  %8636 = vmatprep.mubr.bf16.mxu0 %v1900
  %8637 = vmatmul.mubr.bf16.gmra.mxu0 %v1899
  %v8638 = vpop.f32.mrf.mxu0
  %v8639 = vadd.f32 %v8448, %v8638
  %v8640 = vpop.f32.mrf.mxu0
  %v8641 = vadd.f32 %v8450, %v8640
  %v8642 = vpop.f32.mrf.mxu0
  %v8643 = vadd.f32 %v8452, %v8642
  %v8644 = vpop.f32.mrf.mxu0
  %v8645 = vadd.f32 %v8454, %v8644
  %8646 = vmatprep.mubr.bf16.mxu0 %v1914
  %8647 = vmatmul.mubr.bf16.gmra.mxu0 %v1913
  %v8648 = vpop.f32.mrf.mxu0
  %v8649 = vadd.f32 %v8458, %v8648
  %v8650 = vpop.f32.mrf.mxu0
  %v8651 = vadd.f32 %v8460, %v8650
  %v8652 = vpop.f32.mrf.mxu0
  %v8653 = vadd.f32 %v8462, %v8652
  %v8654 = vpop.f32.mrf.mxu0
  %v8655 = vadd.f32 %v8464, %v8654
  %8656 = vmatprep.mubr.bf16.mxu0 %v1928
  %8657 = vmatmul.mubr.bf16.gmra.mxu0 %v1927
  %v8658 = vpop.f32.mrf.mxu0
  %v8659 = vadd.f32 %v8468, %v8658
  %v8660 = vpop.f32.mrf.mxu0
  %v8661 = vadd.f32 %v8470, %v8660
  %v8662 = vpop.f32.mrf.mxu0
  %v8663 = vadd.f32 %v8472, %v8662
  %v8664 = vpop.f32.mrf.mxu0
  %v8665 = vadd.f32 %v8474, %v8664
  %8666 = vmatprep.mubr.bf16.mxu0 %v1942
  %8667 = vmatmul.mubr.bf16.gmra.mxu0 %v1941
  %v8668 = vpop.f32.mrf.mxu0
  %v8669 = vadd.f32 %v8478, %v8668
  %v8670 = vpop.f32.mrf.mxu0
  %v8671 = vadd.f32 %v8480, %v8670
  %v8672 = vpop.f32.mrf.mxu0
  %v8673 = vadd.f32 %v8482, %v8672
  %v8674 = vpop.f32.mrf.mxu0
  %v8675 = vadd.f32 %v8484, %v8674
  %8676 = vmatprep.mubr.bf16.mxu0 %v1956
  %8677 = vmatmul.mubr.bf16.gmra.mxu0 %v1955
  %v8678 = vpop.f32.mrf.mxu0
  %v8679 = vadd.f32 %v8488, %v8678
  %v8680 = vpop.f32.mrf.mxu0
  %v8681 = vadd.f32 %v8490, %v8680
  %v8682 = vpop.f32.mrf.mxu0
  %v8683 = vadd.f32 %v8492, %v8682
  %v8684 = vpop.f32.mrf.mxu0
  %v8685 = vadd.f32 %v8494, %v8684
  %8686 = vmatprep.mubr.bf16.mxu0 %v1970
  %8687 = vmatmul.mubr.bf16.gmra.mxu0 %v1969
  %v8688 = vpop.f32.mrf.mxu0
  %v8689 = vadd.f32 %v8498, %v8688
  %v8690 = vpop.f32.mrf.mxu0
  %v8691 = vadd.f32 %v8500, %v8690
  %v8692 = vpop.f32.mrf.mxu0
  %v8693 = vadd.f32 %v8502, %v8692
  %v8694 = vpop.f32.mrf.mxu0
  %v8695 = vadd.f32 %v8504, %v8694
  %8696 = vmatprep.mubr.bf16.mxu0 %v1984
  %8697 = vmatmul.mubr.bf16.gmra.mxu0 %v1983
  %v8698 = vpop.f32.mrf.mxu0
  %v8699 = vadd.f32 %v8508, %v8698
  %v8700 = vpop.f32.mrf.mxu0
  %v8701 = vadd.f32 %v8510, %v8700
  %v8702 = vpop.f32.mrf.mxu0
  %v8703 = vpop.f32.mrf.mxu0
  %8704 = vdwg.mxu0
  %8705 = vmatprep.subr.bf16.mxu0 %v5339
  %8706 = vmatpush1.bf16.msra.mxu0 %v5338
  %8707 = vmatprep.subr.bf16.mxu0 %v5332
  %8708 = vmatpush1.bf16.msra.mxu0 %v5331
  %8709 = vmatprep.subr.bf16.mxu0 %v5325
  %8710 = vmatpush1.bf16.msra.mxu0 %v5324
  %8711 = vmatprep.subr.bf16.mxu0 %v5318
  %8712 = vmatpush1.bf16.msra.mxu0 %v5317
  %8713 = vmatprep.subr.bf16.mxu0 %v5311
  %8714 = vmatpush1.bf16.msra.mxu0 %v5310
  %8715 = vmatprep.subr.bf16.mxu0 %v5304
  %8716 = vmatpush1.bf16.msra.mxu0 %v5303
  %8717 = vmatprep.subr.bf16.mxu0 %v5297
  %8718 = vmatpush1.bf16.msra.mxu0 %v5296
  %8719 = vmatprep.subr.bf16.mxu0 %v5290
  %8720 = vmatpush1.bf16.msra.mxu0 %v5289
  %8721 = vmatprep.subr.bf16.mxu0 0
  %8722 = vmatpush2.bf16.msra.mxu0 0
  %8723 = vmatprep.subr.bf16.mxu0 0
  %8724 = vmatpush2.bf16.msra.mxu0 0
  %8725 = vmatprep.subr.bf16.mxu0 %v6211
  %8726 = vmatpush2.bf16.msra.mxu0 %v6208
  %8727 = vmatprep.subr.bf16.mxu0 %v5374
  %8728 = vmatpush2.bf16.msra.mxu0 %v5373
  %8729 = vmatprep.subr.bf16.mxu0 %v5367
  %8730 = vmatpush2.bf16.msra.mxu0 %v5366
  %8731 = vmatprep.subr.bf16.mxu0 %v5360
  %8732 = vmatpush2.bf16.msra.mxu0 %v5359
  %8733 = vmatprep.subr.bf16.mxu0 %v5353
  %8734 = vmatpush2.bf16.msra.mxu0 %v5352
  %8735 = vmatprep.subr.bf16.mxu0 %v5346
  %8736 = vmatpush2.bf16.msra.mxu0 %v5345
  %8737 = vmatprep.mubr.bf16.mxu0 %v6150
  %8738 = vmatmul.mubr.bf16.gmra.mxu0 %v1775
  %v8739 = vpop.f32.mrf.mxu0
  %v8740 = vadd.f32 %v8549, %v8739
  %v8741 = vpop.f32.mrf.mxu0
  %v8742 = vadd.f32 %v8551, %v8741
  %v8743 = vpop.f32.mrf.mxu0
  %v8744 = vadd.f32 %v8553, %v8743
  %v8745 = vpop.f32.mrf.mxu0
  %v8746 = vadd.f32 %v8555, %v8745
  %8747 = vmatprep.mubr.bf16.mxu0 %v6153
  %8748 = vmatmul.mubr.bf16.gmra.mxu0 %v1789
  %v8749 = vpop.f32.mrf.mxu0
  %v8750 = vadd.f32 %v8559, %v8749
  %v8751 = vpop.f32.mrf.mxu0
  %v8752 = vadd.f32 %v8561, %v8751
  %v8753 = vpop.f32.mrf.mxu0
  %v8754 = vadd.f32 %v8563, %v8753
  %v8755 = vpop.f32.mrf.mxu0
  %v8756 = vadd.f32 %v8565, %v8755
  %8757 = vmatprep.mubr.bf16.mxu0 %v6156
  %8758 = vmatmul.mubr.bf16.gmra.mxu0 %v1803
  %v8759 = vpop.f32.mrf.mxu0
  %v8760 = vadd.f32 %v8569, %v8759
  %v8761 = vpop.f32.mrf.mxu0
  %v8762 = vadd.f32 %v8571, %v8761
  %v8763 = vpop.f32.mrf.mxu0
  %v8764 = vadd.f32 %v8573, %v8763
  %v8765 = vpop.f32.mrf.mxu0
  %v8766 = vadd.f32 %v8575, %v8765
  %8767 = vmatprep.mubr.bf16.mxu0 %v6159
  %8768 = vmatmul.mubr.bf16.gmra.mxu0 %v1817
  %v8769 = vpop.f32.mrf.mxu0
  %v8770 = vadd.f32 %v8579, %v8769
  %v8771 = vpop.f32.mrf.mxu0
  %v8772 = vadd.f32 %v8581, %v8771
  %v8773 = vpop.f32.mrf.mxu0
  %v8774 = vadd.f32 %v8583, %v8773
  %v8775 = vpop.f32.mrf.mxu0
  %v8776 = vadd.f32 %v8585, %v8775
  %8777 = vmatprep.mubr.bf16.mxu0 %v6162
  %8778 = vmatmul.mubr.bf16.gmra.mxu0 %v1831
  %v8779 = vpop.f32.mrf.mxu0
  %v8780 = vadd.f32 %v8589, %v8779
  %v8781 = vpop.f32.mrf.mxu0
  %v8782 = vadd.f32 %v8591, %v8781
  %v8783 = vpop.f32.mrf.mxu0
  %v8784 = vadd.f32 %v8593, %v8783
  %v8785 = vpop.f32.mrf.mxu0
  %v8786 = vadd.f32 %v8595, %v8785
  %8787 = vmatprep.mubr.bf16.mxu0 %v6165
  %8788 = vmatmul.mubr.bf16.gmra.mxu0 %v1845
  %v8789 = vpop.f32.mrf.mxu0
  %v8790 = vadd.f32 %v8599, %v8789
  %v8791 = vpop.f32.mrf.mxu0
  %v8792 = vadd.f32 %v8601, %v8791
  %v8793 = vpop.f32.mrf.mxu0
  %v8794 = vadd.f32 %v8603, %v8793
  %v8795 = vpop.f32.mrf.mxu0
  %v8796 = vadd.f32 %v8605, %v8795
  %8797 = vmatprep.mubr.bf16.mxu0 %v6168
  %8798 = vmatmul.mubr.bf16.gmra.mxu0 %v1859
  %v8799 = vpop.f32.mrf.mxu0
  %v8800 = vadd.f32 %v8609, %v8799
  %v8801 = vpop.f32.mrf.mxu0
  %v8802 = vadd.f32 %v8611, %v8801
  %v8803 = vpop.f32.mrf.mxu0
  %v8804 = vadd.f32 %v8613, %v8803
  %v8805 = vpop.f32.mrf.mxu0
  %v8806 = vadd.f32 %v8615, %v8805
  %8807 = vmatprep.mubr.bf16.mxu0 %v6171
  %8808 = vmatmul.mubr.bf16.gmra.mxu0 %v1873
  %v8809 = vpop.f32.mrf.mxu0
  %v8810 = vadd.f32 %v8619, %v8809
  %v8811 = vpop.f32.mrf.mxu0
  %v8812 = vadd.f32 %v8621, %v8811
  %v8813 = vpop.f32.mrf.mxu0
  %v8814 = vadd.f32 %v8623, %v8813
  %v8815 = vpop.f32.mrf.mxu0
  %v8816 = vadd.f32 %v8625, %v8815
  %8817 = vmatprep.mubr.bf16.mxu0 %v6174
  %8818 = vmatmul.mubr.bf16.gmra.mxu0 %v1887
  %v8819 = vpop.f32.mrf.mxu0
  %v8820 = vadd.f32 %v8629, %v8819
  %v8821 = vpop.f32.mrf.mxu0
  %v8822 = vadd.f32 %v8631, %v8821
  %v8823 = vpop.f32.mrf.mxu0
  %v8824 = vadd.f32 %v8633, %v8823
  %v8825 = vpop.f32.mrf.mxu0
  %v8826 = vadd.f32 %v8635, %v8825
  %8827 = vmatprep.mubr.bf16.mxu0 %v6177
  %8828 = vmatmul.mubr.bf16.gmra.mxu0 %v1901
  %v8829 = vpop.f32.mrf.mxu0
  %v8830 = vadd.f32 %v8639, %v8829
  %v8831 = vpop.f32.mrf.mxu0
  %v8832 = vadd.f32 %v8641, %v8831
  %v8833 = vpop.f32.mrf.mxu0
  %v8834 = vadd.f32 %v8643, %v8833
  %v8835 = vpop.f32.mrf.mxu0
  %v8836 = vadd.f32 %v8645, %v8835
  %8837 = vmatprep.mubr.bf16.mxu0 %v6180
  %8838 = vmatmul.mubr.bf16.gmra.mxu0 %v1915
  %v8839 = vpop.f32.mrf.mxu0
  %v8840 = vadd.f32 %v8649, %v8839
  %v8841 = vpop.f32.mrf.mxu0
  %v8842 = vadd.f32 %v8651, %v8841
  %v8843 = vpop.f32.mrf.mxu0
  %v8844 = vadd.f32 %v8653, %v8843
  %v8845 = vpop.f32.mrf.mxu0
  %v8846 = vadd.f32 %v8655, %v8845
  %8847 = vmatprep.mubr.bf16.mxu0 %v6183
  %8848 = vmatmul.mubr.bf16.gmra.mxu0 %v1929
  %v8849 = vpop.f32.mrf.mxu0
  %v8850 = vadd.f32 %v8659, %v8849
  %v8851 = vpop.f32.mrf.mxu0
  %v8852 = vadd.f32 %v8661, %v8851
  %v8853 = vpop.f32.mrf.mxu0
  %v8854 = vadd.f32 %v8663, %v8853
  %v8855 = vpop.f32.mrf.mxu0
  %v8856 = vadd.f32 %v8665, %v8855
  %8857 = vmatprep.mubr.bf16.mxu0 %v6186
  %8858 = vmatmul.mubr.bf16.gmra.mxu0 %v1943
  %v8859 = vpop.f32.mrf.mxu0
  %v8860 = vadd.f32 %v8669, %v8859
  %v8861 = vpop.f32.mrf.mxu0
  %v8862 = vadd.f32 %v8671, %v8861
  %v8863 = vpop.f32.mrf.mxu0
  %v8864 = vadd.f32 %v8673, %v8863
  %v8865 = vpop.f32.mrf.mxu0
  %v8866 = vadd.f32 %v8675, %v8865
  %8867 = vmatprep.mubr.bf16.mxu0 %v6189
  %8868 = vmatmul.mubr.bf16.gmra.mxu0 %v1957
  %v8869 = vpop.f32.mrf.mxu0
  %v8870 = vadd.f32 %v8679, %v8869
  %v8871 = vpop.f32.mrf.mxu0
  %v8872 = vadd.f32 %v8681, %v8871
  %v8873 = vpop.f32.mrf.mxu0
  %v8874 = vadd.f32 %v8683, %v8873
  %v8875 = vpop.f32.mrf.mxu0
  %v8876 = vadd.f32 %v8685, %v8875
  %8877 = vmatprep.mubr.bf16.mxu0 %v6192
  %8878 = vmatmul.mubr.bf16.gmra.mxu0 %v1971
  %v8879 = vpop.f32.mrf.mxu0
  %v8880 = vadd.f32 %v8689, %v8879
  %v8881 = vpop.f32.mrf.mxu0
  %v8882 = vadd.f32 %v8691, %v8881
  %v8883 = vpop.f32.mrf.mxu0
  %v8884 = vadd.f32 %v8693, %v8883
  %v8885 = vpop.f32.mrf.mxu0
  %v8886 = vadd.f32 %v8695, %v8885
  %8887 = vmatprep.mubr.bf16.mxu0 %v6195
  %8888 = vmatmul.mubr.bf16.gmra.mxu0 %v1985
  %v8889 = vpop.f32.mrf.mxu0
  %v8890 = vadd.f32 %v8699, %v8889
  %v8891 = vpop.f32.mrf.mxu0
  %v8892 = vadd.f32 %v8701, %v8891
  %v8893 = vpop.f32.mrf.mxu0
  %v8894 = vpop.f32.mrf.mxu0
  %8895 = vdwg.mxu0
  %8896 = vmatprep.subr.bf16.mxu0 %v4669
  %8897 = vmatpush1.bf16.msra.mxu0 %v4668
  %8898 = vmatprep.subr.bf16.mxu0 %v4662
  %8899 = vmatpush1.bf16.msra.mxu0 %v4661
  %8900 = vmatprep.subr.bf16.mxu0 %v4655
  %8901 = vmatpush1.bf16.msra.mxu0 %v4654
  %8902 = vmatprep.subr.bf16.mxu0 %v4648
  %8903 = vmatpush1.bf16.msra.mxu0 %v4647
  %8904 = vmatprep.subr.bf16.mxu0 %v4641
  %8905 = vmatpush1.bf16.msra.mxu0 %v4640
  %8906 = vmatprep.subr.bf16.mxu0 %v4634
  %8907 = vmatpush1.bf16.msra.mxu0 %v4633
  %8908 = vmatprep.subr.bf16.mxu0 %v4627
  %8909 = vmatpush1.bf16.msra.mxu0 %v4626
  %8910 = vmatprep.subr.bf16.mxu0 %v4620
  %8911 = vmatpush1.bf16.msra.mxu0 %v4619
  %8912 = vmatprep.subr.bf16.mxu0 %v4725
  %8913 = vmatpush2.bf16.msra.mxu0 %v4724
  %8914 = vmatprep.subr.bf16.mxu0 %v4718
  %8915 = vmatpush2.bf16.msra.mxu0 %v4717
  %8916 = vmatprep.subr.bf16.mxu0 %v4711
  %8917 = vmatpush2.bf16.msra.mxu0 %v4710
  %8918 = vmatprep.subr.bf16.mxu0 %v4704
  %8919 = vmatpush2.bf16.msra.mxu0 %v4703
  %8920 = vmatprep.subr.bf16.mxu0 %v4697
  %8921 = vmatpush2.bf16.msra.mxu0 %v4696
  %8922 = vmatprep.subr.bf16.mxu0 %v4690
  %8923 = vmatpush2.bf16.msra.mxu0 %v4689
  %8924 = vmatprep.subr.bf16.mxu0 %v4683
  %8925 = vmatpush2.bf16.msra.mxu0 %v4682
  %8926 = vmatprep.subr.bf16.mxu0 %v4676
  %8927 = vmatpush2.bf16.msra.mxu0 %v4675
  %8928 = vmatprep.mubr.bf16.mxu0 %v1764
  %8929 = vmatmul.mubr.bf16.gmra.mxu0 %v1763
  %v8930 = vpop.f32.mrf.mxu0
  %v8931 = vadd.f32 0.0, %v8930
  %v8932 = vpop.f32.mrf.mxu0
  %v8933 = vadd.f32 0.0, %v8932
  %v8934 = vpop.f32.mrf.mxu0
  %v8935 = vadd.f32 0.0, %v8934
  %v8936 = vpop.f32.mrf.mxu0
  %v8937 = vadd.f32 0.0, %v8936
  %8938 = vmatprep.mubr.bf16.mxu0 %v1778
  %8939 = vmatmul.mubr.bf16.gmra.mxu0 %v1777
  %v8940 = vpop.f32.mrf.mxu0
  %v8941 = vadd.f32 0.0, %v8940
  %v8942 = vpop.f32.mrf.mxu0
  %v8943 = vadd.f32 0.0, %v8942
  %v8944 = vpop.f32.mrf.mxu0
  %v8945 = vadd.f32 0.0, %v8944
  %v8946 = vpop.f32.mrf.mxu0
  %v8947 = vadd.f32 0.0, %v8946
  %8948 = vmatprep.mubr.bf16.mxu0 %v1792
  %8949 = vmatmul.mubr.bf16.gmra.mxu0 %v1791
  %v8950 = vpop.f32.mrf.mxu0
  %v8951 = vadd.f32 0.0, %v8950
  %v8952 = vpop.f32.mrf.mxu0
  %v8953 = vadd.f32 0.0, %v8952
  %v8954 = vpop.f32.mrf.mxu0
  %v8955 = vadd.f32 0.0, %v8954
  %v8956 = vpop.f32.mrf.mxu0
  %v8957 = vadd.f32 0.0, %v8956
  %8958 = vmatprep.mubr.bf16.mxu0 %v1806
  %8959 = vmatmul.mubr.bf16.gmra.mxu0 %v1805
  %v8960 = vpop.f32.mrf.mxu0
  %v8961 = vadd.f32 0.0, %v8960
  %v8962 = vpop.f32.mrf.mxu0
  %v8963 = vadd.f32 0.0, %v8962
  %v8964 = vpop.f32.mrf.mxu0
  %v8965 = vadd.f32 0.0, %v8964
  %v8966 = vpop.f32.mrf.mxu0
  %v8967 = vadd.f32 0.0, %v8966
  %8968 = vmatprep.mubr.bf16.mxu0 %v1820
  %8969 = vmatmul.mubr.bf16.gmra.mxu0 %v1819
  %v8970 = vpop.f32.mrf.mxu0
  %v8971 = vadd.f32 0.0, %v8970
  %v8972 = vpop.f32.mrf.mxu0
  %v8973 = vadd.f32 0.0, %v8972
  %v8974 = vpop.f32.mrf.mxu0
  %v8975 = vadd.f32 0.0, %v8974
  %v8976 = vpop.f32.mrf.mxu0
  %v8977 = vadd.f32 0.0, %v8976
  %8978 = vmatprep.mubr.bf16.mxu0 %v1834
  %8979 = vmatmul.mubr.bf16.gmra.mxu0 %v1833
  %v8980 = vpop.f32.mrf.mxu0
  %v8981 = vadd.f32 0.0, %v8980
  %v8982 = vpop.f32.mrf.mxu0
  %v8983 = vadd.f32 0.0, %v8982
  %v8984 = vpop.f32.mrf.mxu0
  %v8985 = vadd.f32 0.0, %v8984
  %v8986 = vpop.f32.mrf.mxu0
  %v8987 = vadd.f32 0.0, %v8986
  %8988 = vmatprep.mubr.bf16.mxu0 %v1848
  %8989 = vmatmul.mubr.bf16.gmra.mxu0 %v1847
  %v8990 = vpop.f32.mrf.mxu0
  %v8991 = vadd.f32 0.0, %v8990
  %v8992 = vpop.f32.mrf.mxu0
  %v8993 = vadd.f32 0.0, %v8992
  %v8994 = vpop.f32.mrf.mxu0
  %v8995 = vadd.f32 0.0, %v8994
  %v8996 = vpop.f32.mrf.mxu0
  %v8997 = vadd.f32 0.0, %v8996
  %8998 = vmatprep.mubr.bf16.mxu0 %v1862
  %8999 = vmatmul.mubr.bf16.gmra.mxu0 %v1861
  %v9000 = vpop.f32.mrf.mxu0
  %v9001 = vadd.f32 0.0, %v9000
  %v9002 = vpop.f32.mrf.mxu0
  %v9003 = vadd.f32 0.0, %v9002
  %v9004 = vpop.f32.mrf.mxu0
  %v9005 = vadd.f32 0.0, %v9004
  %v9006 = vpop.f32.mrf.mxu0
  %v9007 = vadd.f32 0.0, %v9006
  %9008 = vmatprep.mubr.bf16.mxu0 %v1876
  %9009 = vmatmul.mubr.bf16.gmra.mxu0 %v1875
  %v9010 = vpop.f32.mrf.mxu0
  %v9011 = vadd.f32 0.0, %v9010
  %v9012 = vpop.f32.mrf.mxu0
  %v9013 = vadd.f32 0.0, %v9012
  %v9014 = vpop.f32.mrf.mxu0
  %v9015 = vadd.f32 0.0, %v9014
  %v9016 = vpop.f32.mrf.mxu0
  %v9017 = vadd.f32 0.0, %v9016
  %9018 = vmatprep.mubr.bf16.mxu0 %v1890
  %9019 = vmatmul.mubr.bf16.gmra.mxu0 %v1889
  %v9020 = vpop.f32.mrf.mxu0
  %v9021 = vadd.f32 0.0, %v9020
  %v9022 = vpop.f32.mrf.mxu0
  %v9023 = vadd.f32 0.0, %v9022
  %v9024 = vpop.f32.mrf.mxu0
  %v9025 = vadd.f32 0.0, %v9024
  %v9026 = vpop.f32.mrf.mxu0
  %v9027 = vadd.f32 0.0, %v9026
  %9028 = vmatprep.mubr.bf16.mxu0 %v1904
  %9029 = vmatmul.mubr.bf16.gmra.mxu0 %v1903
  %v9030 = vpop.f32.mrf.mxu0
  %v9031 = vadd.f32 0.0, %v9030
  %v9032 = vpop.f32.mrf.mxu0
  %v9033 = vadd.f32 0.0, %v9032
  %v9034 = vpop.f32.mrf.mxu0
  %v9035 = vadd.f32 0.0, %v9034
  %v9036 = vpop.f32.mrf.mxu0
  %v9037 = vadd.f32 0.0, %v9036
  %9038 = vmatprep.mubr.bf16.mxu0 %v1918
  %9039 = vmatmul.mubr.bf16.gmra.mxu0 %v1917
  %v9040 = vpop.f32.mrf.mxu0
  %v9041 = vadd.f32 0.0, %v9040
  %v9042 = vpop.f32.mrf.mxu0
  %v9043 = vadd.f32 0.0, %v9042
  %v9044 = vpop.f32.mrf.mxu0
  %v9045 = vadd.f32 0.0, %v9044
  %v9046 = vpop.f32.mrf.mxu0
  %v9047 = vadd.f32 0.0, %v9046
  %9048 = vmatprep.mubr.bf16.mxu0 %v1932
  %9049 = vmatmul.mubr.bf16.gmra.mxu0 %v1931
  %v9050 = vpop.f32.mrf.mxu0
  %v9051 = vadd.f32 0.0, %v9050
  %v9052 = vpop.f32.mrf.mxu0
  %v9053 = vadd.f32 0.0, %v9052
  %v9054 = vpop.f32.mrf.mxu0
  %v9055 = vadd.f32 0.0, %v9054
  %v9056 = vpop.f32.mrf.mxu0
  %v9057 = vadd.f32 0.0, %v9056
  %9058 = vmatprep.mubr.bf16.mxu0 %v1946
  %9059 = vmatmul.mubr.bf16.gmra.mxu0 %v1945
  %v9060 = vpop.f32.mrf.mxu0
  %v9061 = vadd.f32 0.0, %v9060
  %v9062 = vpop.f32.mrf.mxu0
  %v9063 = vadd.f32 0.0, %v9062
  %v9064 = vpop.f32.mrf.mxu0
  %v9065 = vadd.f32 0.0, %v9064
  %v9066 = vpop.f32.mrf.mxu0
  %v9067 = vadd.f32 0.0, %v9066
  %9068 = vmatprep.mubr.bf16.mxu0 %v1960
  %9069 = vmatmul.mubr.bf16.gmra.mxu0 %v1959
  %v9070 = vpop.f32.mrf.mxu0
  %v9071 = vadd.f32 0.0, %v9070
  %v9072 = vpop.f32.mrf.mxu0
  %v9073 = vadd.f32 0.0, %v9072
  %v9074 = vpop.f32.mrf.mxu0
  %v9075 = vadd.f32 0.0, %v9074
  %v9076 = vpop.f32.mrf.mxu0
  %v9077 = vadd.f32 0.0, %v9076
  %9078 = vmatprep.mubr.bf16.mxu0 %v1974
  %9079 = vmatmul.mubr.bf16.gmra.mxu0 %v1973
  %v9080 = vpop.f32.mrf.mxu0
  %v9081 = vadd.f32 0.0, %v9080
  %v9082 = vpop.f32.mrf.mxu0
  %v9083 = vadd.f32 0.0, %v9082
  %v9084 = vpop.f32.mrf.mxu0
  %v9085 = vpop.f32.mrf.mxu0
  %9086 = vdwg.mxu0
  %9087 = vmatprep.subr.bf16.mxu0 %v4781
  %9088 = vmatpush1.bf16.msra.mxu0 %v4780
  %9089 = vmatprep.subr.bf16.mxu0 %v4774
  %9090 = vmatpush1.bf16.msra.mxu0 %v4773
  %9091 = vmatprep.subr.bf16.mxu0 %v4767
  %9092 = vmatpush1.bf16.msra.mxu0 %v4766
  %9093 = vmatprep.subr.bf16.mxu0 %v4760
  %9094 = vmatpush1.bf16.msra.mxu0 %v4759
  %9095 = vmatprep.subr.bf16.mxu0 %v4753
  %9096 = vmatpush1.bf16.msra.mxu0 %v4752
  %9097 = vmatprep.subr.bf16.mxu0 %v4746
  %9098 = vmatpush1.bf16.msra.mxu0 %v4745
  %9099 = vmatprep.subr.bf16.mxu0 %v4739
  %9100 = vmatpush1.bf16.msra.mxu0 %v4738
  %9101 = vmatprep.subr.bf16.mxu0 %v4732
  %9102 = vmatpush1.bf16.msra.mxu0 %v4731
  %9103 = vmatprep.subr.bf16.mxu0 %v4837
  %9104 = vmatpush2.bf16.msra.mxu0 %v4836
  %9105 = vmatprep.subr.bf16.mxu0 %v4830
  %9106 = vmatpush2.bf16.msra.mxu0 %v4829
  %9107 = vmatprep.subr.bf16.mxu0 %v4823
  %9108 = vmatpush2.bf16.msra.mxu0 %v4822
  %9109 = vmatprep.subr.bf16.mxu0 %v4816
  %9110 = vmatpush2.bf16.msra.mxu0 %v4815
  %9111 = vmatprep.subr.bf16.mxu0 %v4809
  %9112 = vmatpush2.bf16.msra.mxu0 %v4808
  %9113 = vmatprep.subr.bf16.mxu0 %v4802
  %9114 = vmatpush2.bf16.msra.mxu0 %v4801
  %9115 = vmatprep.subr.bf16.mxu0 %v4795
  %9116 = vmatpush2.bf16.msra.mxu0 %v4794
  %9117 = vmatprep.subr.bf16.mxu0 %v4788
  %9118 = vmatpush2.bf16.msra.mxu0 %v4787
  %9119 = vmatprep.mubr.bf16.mxu0 %v1766
  %9120 = vmatmul.mubr.bf16.gmra.mxu0 %v1765
  %v9121 = vpop.f32.mrf.mxu0
  %v9122 = vadd.f32 %v8931, %v9121
  %v9123 = vpop.f32.mrf.mxu0
  %v9124 = vadd.f32 %v8933, %v9123
  %v9125 = vpop.f32.mrf.mxu0
  %v9126 = vadd.f32 %v8935, %v9125
  %v9127 = vpop.f32.mrf.mxu0
  %v9128 = vadd.f32 %v8937, %v9127
  %9129 = vmatprep.mubr.bf16.mxu0 %v1780
  %9130 = vmatmul.mubr.bf16.gmra.mxu0 %v1779
  %v9131 = vpop.f32.mrf.mxu0
  %v9132 = vadd.f32 %v8941, %v9131
  %v9133 = vpop.f32.mrf.mxu0
  %v9134 = vadd.f32 %v8943, %v9133
  %v9135 = vpop.f32.mrf.mxu0
  %v9136 = vadd.f32 %v8945, %v9135
  %v9137 = vpop.f32.mrf.mxu0
  %v9138 = vadd.f32 %v8947, %v9137
  %9139 = vmatprep.mubr.bf16.mxu0 %v1794
  %9140 = vmatmul.mubr.bf16.gmra.mxu0 %v1793
  %v9141 = vpop.f32.mrf.mxu0
  %v9142 = vadd.f32 %v8951, %v9141
  %v9143 = vpop.f32.mrf.mxu0
  %v9144 = vadd.f32 %v8953, %v9143
  %v9145 = vpop.f32.mrf.mxu0
  %v9146 = vadd.f32 %v8955, %v9145
  %v9147 = vpop.f32.mrf.mxu0
  %v9148 = vadd.f32 %v8957, %v9147
  %9149 = vmatprep.mubr.bf16.mxu0 %v1808
  %9150 = vmatmul.mubr.bf16.gmra.mxu0 %v1807
  %v9151 = vpop.f32.mrf.mxu0
  %v9152 = vadd.f32 %v8961, %v9151
  %v9153 = vpop.f32.mrf.mxu0
  %v9154 = vadd.f32 %v8963, %v9153
  %v9155 = vpop.f32.mrf.mxu0
  %v9156 = vadd.f32 %v8965, %v9155
  %v9157 = vpop.f32.mrf.mxu0
  %v9158 = vadd.f32 %v8967, %v9157
  %9159 = vmatprep.mubr.bf16.mxu0 %v1822
  %9160 = vmatmul.mubr.bf16.gmra.mxu0 %v1821
  %v9161 = vpop.f32.mrf.mxu0
  %v9162 = vadd.f32 %v8971, %v9161
  %v9163 = vpop.f32.mrf.mxu0
  %v9164 = vadd.f32 %v8973, %v9163
  %v9165 = vpop.f32.mrf.mxu0
  %v9166 = vadd.f32 %v8975, %v9165
  %v9167 = vpop.f32.mrf.mxu0
  %v9168 = vadd.f32 %v8977, %v9167
  %9169 = vmatprep.mubr.bf16.mxu0 %v1836
  %9170 = vmatmul.mubr.bf16.gmra.mxu0 %v1835
  %v9171 = vpop.f32.mrf.mxu0
  %v9172 = vadd.f32 %v8981, %v9171
  %v9173 = vpop.f32.mrf.mxu0
  %v9174 = vadd.f32 %v8983, %v9173
  %v9175 = vpop.f32.mrf.mxu0
  %v9176 = vadd.f32 %v8985, %v9175
  %v9177 = vpop.f32.mrf.mxu0
  %v9178 = vadd.f32 %v8987, %v9177
  %9179 = vmatprep.mubr.bf16.mxu0 %v1850
  %9180 = vmatmul.mubr.bf16.gmra.mxu0 %v1849
  %v9181 = vpop.f32.mrf.mxu0
  %v9182 = vadd.f32 %v8991, %v9181
  %v9183 = vpop.f32.mrf.mxu0
  %v9184 = vadd.f32 %v8993, %v9183
  %v9185 = vpop.f32.mrf.mxu0
  %v9186 = vadd.f32 %v8995, %v9185
  %v9187 = vpop.f32.mrf.mxu0
  %v9188 = vadd.f32 %v8997, %v9187
  %9189 = vmatprep.mubr.bf16.mxu0 %v1864
  %9190 = vmatmul.mubr.bf16.gmra.mxu0 %v1863
  %v9191 = vpop.f32.mrf.mxu0
  %v9192 = vadd.f32 %v9001, %v9191
  %v9193 = vpop.f32.mrf.mxu0
  %v9194 = vadd.f32 %v9003, %v9193
  %v9195 = vpop.f32.mrf.mxu0
  %v9196 = vadd.f32 %v9005, %v9195
  %v9197 = vpop.f32.mrf.mxu0
  %v9198 = vadd.f32 %v9007, %v9197
  %9199 = vmatprep.mubr.bf16.mxu0 %v1878
  %9200 = vmatmul.mubr.bf16.gmra.mxu0 %v1877
  %v9201 = vpop.f32.mrf.mxu0
  %v9202 = vadd.f32 %v9011, %v9201
  %v9203 = vpop.f32.mrf.mxu0
  %v9204 = vadd.f32 %v9013, %v9203
  %v9205 = vpop.f32.mrf.mxu0
  %v9206 = vadd.f32 %v9015, %v9205
  %v9207 = vpop.f32.mrf.mxu0
  %v9208 = vadd.f32 %v9017, %v9207
  %9209 = vmatprep.mubr.bf16.mxu0 %v1892
  %9210 = vmatmul.mubr.bf16.gmra.mxu0 %v1891
  %v9211 = vpop.f32.mrf.mxu0
  %v9212 = vadd.f32 %v9021, %v9211
  %v9213 = vpop.f32.mrf.mxu0
  %v9214 = vadd.f32 %v9023, %v9213
  %v9215 = vpop.f32.mrf.mxu0
  %v9216 = vadd.f32 %v9025, %v9215
  %v9217 = vpop.f32.mrf.mxu0
  %v9218 = vadd.f32 %v9027, %v9217
  %9219 = vmatprep.mubr.bf16.mxu0 %v1906
  %9220 = vmatmul.mubr.bf16.gmra.mxu0 %v1905
  %v9221 = vpop.f32.mrf.mxu0
  %v9222 = vadd.f32 %v9031, %v9221
  %v9223 = vpop.f32.mrf.mxu0
  %v9224 = vadd.f32 %v9033, %v9223
  %v9225 = vpop.f32.mrf.mxu0
  %v9226 = vadd.f32 %v9035, %v9225
  %v9227 = vpop.f32.mrf.mxu0
  %v9228 = vadd.f32 %v9037, %v9227
  %9229 = vmatprep.mubr.bf16.mxu0 %v1920
  %9230 = vmatmul.mubr.bf16.gmra.mxu0 %v1919
  %v9231 = vpop.f32.mrf.mxu0
  %v9232 = vadd.f32 %v9041, %v9231
  %v9233 = vpop.f32.mrf.mxu0
  %v9234 = vadd.f32 %v9043, %v9233
  %v9235 = vpop.f32.mrf.mxu0
  %v9236 = vadd.f32 %v9045, %v9235
  %v9237 = vpop.f32.mrf.mxu0
  %v9238 = vadd.f32 %v9047, %v9237
  %9239 = vmatprep.mubr.bf16.mxu0 %v1934
  %9240 = vmatmul.mubr.bf16.gmra.mxu0 %v1933
  %v9241 = vpop.f32.mrf.mxu0
  %v9242 = vadd.f32 %v9051, %v9241
  %v9243 = vpop.f32.mrf.mxu0
  %v9244 = vadd.f32 %v9053, %v9243
  %v9245 = vpop.f32.mrf.mxu0
  %v9246 = vadd.f32 %v9055, %v9245
  %v9247 = vpop.f32.mrf.mxu0
  %v9248 = vadd.f32 %v9057, %v9247
  %9249 = vmatprep.mubr.bf16.mxu0 %v1948
  %9250 = vmatmul.mubr.bf16.gmra.mxu0 %v1947
  %v9251 = vpop.f32.mrf.mxu0
  %v9252 = vadd.f32 %v9061, %v9251
  %v9253 = vpop.f32.mrf.mxu0
  %v9254 = vadd.f32 %v9063, %v9253
  %v9255 = vpop.f32.mrf.mxu0
  %v9256 = vadd.f32 %v9065, %v9255
  %v9257 = vpop.f32.mrf.mxu0
  %v9258 = vadd.f32 %v9067, %v9257
  %9259 = vmatprep.mubr.bf16.mxu0 %v1962
  %9260 = vmatmul.mubr.bf16.gmra.mxu0 %v1961
  %v9261 = vpop.f32.mrf.mxu0
  %v9262 = vadd.f32 %v9071, %v9261
  %v9263 = vpop.f32.mrf.mxu0
  %v9264 = vadd.f32 %v9073, %v9263
  %v9265 = vpop.f32.mrf.mxu0
  %v9266 = vadd.f32 %v9075, %v9265
  %v9267 = vpop.f32.mrf.mxu0
  %v9268 = vadd.f32 %v9077, %v9267
  %9269 = vmatprep.mubr.bf16.mxu0 %v1976
  %9270 = vmatmul.mubr.bf16.gmra.mxu0 %v1975
  %v9271 = vpop.f32.mrf.mxu0
  %v9272 = vadd.f32 %v9081, %v9271
  %v9273 = vpop.f32.mrf.mxu0
  %v9274 = vadd.f32 %v9083, %v9273
  %v9275 = vpop.f32.mrf.mxu0
  %v9276 = vpop.f32.mrf.mxu0
  %9277 = vdwg.mxu0
  %9278 = vmatprep.subr.bf16.mxu0 %v4893
  %9279 = vmatpush1.bf16.msra.mxu0 %v4892
  %9280 = vmatprep.subr.bf16.mxu0 %v4886
  %9281 = vmatpush1.bf16.msra.mxu0 %v4885
  %9282 = vmatprep.subr.bf16.mxu0 %v4879
  %9283 = vmatpush1.bf16.msra.mxu0 %v4878
  %9284 = vmatprep.subr.bf16.mxu0 %v4872
  %9285 = vmatpush1.bf16.msra.mxu0 %v4871
  %9286 = vmatprep.subr.bf16.mxu0 %v4865
  %9287 = vmatpush1.bf16.msra.mxu0 %v4864
  %9288 = vmatprep.subr.bf16.mxu0 %v4858
  %9289 = vmatpush1.bf16.msra.mxu0 %v4857
  %9290 = vmatprep.subr.bf16.mxu0 %v4851
  %9291 = vmatpush1.bf16.msra.mxu0 %v4850
  %9292 = vmatprep.subr.bf16.mxu0 %v4844
  %9293 = vmatpush1.bf16.msra.mxu0 %v4843
  %9294 = vmatprep.subr.bf16.mxu0 %v4949
  %9295 = vmatpush2.bf16.msra.mxu0 %v4948
  %9296 = vmatprep.subr.bf16.mxu0 %v4942
  %9297 = vmatpush2.bf16.msra.mxu0 %v4941
  %9298 = vmatprep.subr.bf16.mxu0 %v4935
  %9299 = vmatpush2.bf16.msra.mxu0 %v4934
  %9300 = vmatprep.subr.bf16.mxu0 %v4928
  %9301 = vmatpush2.bf16.msra.mxu0 %v4927
  %9302 = vmatprep.subr.bf16.mxu0 %v4921
  %9303 = vmatpush2.bf16.msra.mxu0 %v4920
  %9304 = vmatprep.subr.bf16.mxu0 %v4914
  %9305 = vmatpush2.bf16.msra.mxu0 %v4913
  %9306 = vmatprep.subr.bf16.mxu0 %v4907
  %9307 = vmatpush2.bf16.msra.mxu0 %v4906
  %9308 = vmatprep.subr.bf16.mxu0 %v4900
  %9309 = vmatpush2.bf16.msra.mxu0 %v4899
  %9310 = vmatprep.mubr.bf16.mxu0 %v1768
  %9311 = vmatmul.mubr.bf16.gmra.mxu0 %v1767
  %v9312 = vpop.f32.mrf.mxu0
  %v9313 = vadd.f32 %v9122, %v9312
  %v9314 = vpop.f32.mrf.mxu0
  %v9315 = vadd.f32 %v9124, %v9314
  %v9316 = vpop.f32.mrf.mxu0
  %v9317 = vadd.f32 %v9126, %v9316
  %v9318 = vpop.f32.mrf.mxu0
  %v9319 = vadd.f32 %v9128, %v9318
  %9320 = vmatprep.mubr.bf16.mxu0 %v1782
  %9321 = vmatmul.mubr.bf16.gmra.mxu0 %v1781
  %v9322 = vpop.f32.mrf.mxu0
  %v9323 = vadd.f32 %v9132, %v9322
  %v9324 = vpop.f32.mrf.mxu0
  %v9325 = vadd.f32 %v9134, %v9324
  %v9326 = vpop.f32.mrf.mxu0
  %v9327 = vadd.f32 %v9136, %v9326
  %v9328 = vpop.f32.mrf.mxu0
  %v9329 = vadd.f32 %v9138, %v9328
  %9330 = vmatprep.mubr.bf16.mxu0 %v1796
  %9331 = vmatmul.mubr.bf16.gmra.mxu0 %v1795
  %v9332 = vpop.f32.mrf.mxu0
  %v9333 = vadd.f32 %v9142, %v9332
  %v9334 = vpop.f32.mrf.mxu0
  %v9335 = vadd.f32 %v9144, %v9334
  %v9336 = vpop.f32.mrf.mxu0
  %v9337 = vadd.f32 %v9146, %v9336
  %v9338 = vpop.f32.mrf.mxu0
  %v9339 = vadd.f32 %v9148, %v9338
  %9340 = vmatprep.mubr.bf16.mxu0 %v1810
  %9341 = vmatmul.mubr.bf16.gmra.mxu0 %v1809
  %v9342 = vpop.f32.mrf.mxu0
  %v9343 = vadd.f32 %v9152, %v9342
  %v9344 = vpop.f32.mrf.mxu0
  %v9345 = vadd.f32 %v9154, %v9344
  %v9346 = vpop.f32.mrf.mxu0
  %v9347 = vadd.f32 %v9156, %v9346
  %v9348 = vpop.f32.mrf.mxu0
  %v9349 = vadd.f32 %v9158, %v9348
  %9350 = vmatprep.mubr.bf16.mxu0 %v1824
  %9351 = vmatmul.mubr.bf16.gmra.mxu0 %v1823
  %v9352 = vpop.f32.mrf.mxu0
  %v9353 = vadd.f32 %v9162, %v9352
  %v9354 = vpop.f32.mrf.mxu0
  %v9355 = vadd.f32 %v9164, %v9354
  %v9356 = vpop.f32.mrf.mxu0
  %v9357 = vadd.f32 %v9166, %v9356
  %v9358 = vpop.f32.mrf.mxu0
  %v9359 = vadd.f32 %v9168, %v9358
  %9360 = vmatprep.mubr.bf16.mxu0 %v1838
  %9361 = vmatmul.mubr.bf16.gmra.mxu0 %v1837
  %v9362 = vpop.f32.mrf.mxu0
  %v9363 = vadd.f32 %v9172, %v9362
  %v9364 = vpop.f32.mrf.mxu0
  %v9365 = vadd.f32 %v9174, %v9364
  %v9366 = vpop.f32.mrf.mxu0
  %v9367 = vadd.f32 %v9176, %v9366
  %v9368 = vpop.f32.mrf.mxu0
  %v9369 = vadd.f32 %v9178, %v9368
  %9370 = vmatprep.mubr.bf16.mxu0 %v1852
  %9371 = vmatmul.mubr.bf16.gmra.mxu0 %v1851
  %v9372 = vpop.f32.mrf.mxu0
  %v9373 = vadd.f32 %v9182, %v9372
  %v9374 = vpop.f32.mrf.mxu0
  %v9375 = vadd.f32 %v9184, %v9374
  %v9376 = vpop.f32.mrf.mxu0
  %v9377 = vadd.f32 %v9186, %v9376
  %v9378 = vpop.f32.mrf.mxu0
  %v9379 = vadd.f32 %v9188, %v9378
  %9380 = vmatprep.mubr.bf16.mxu0 %v1866
  %9381 = vmatmul.mubr.bf16.gmra.mxu0 %v1865
  %v9382 = vpop.f32.mrf.mxu0
  %v9383 = vadd.f32 %v9192, %v9382
  %v9384 = vpop.f32.mrf.mxu0
  %v9385 = vadd.f32 %v9194, %v9384
  %v9386 = vpop.f32.mrf.mxu0
  %v9387 = vadd.f32 %v9196, %v9386
  %v9388 = vpop.f32.mrf.mxu0
  %v9389 = vadd.f32 %v9198, %v9388
  %9390 = vmatprep.mubr.bf16.mxu0 %v1880
  %9391 = vmatmul.mubr.bf16.gmra.mxu0 %v1879
  %v9392 = vpop.f32.mrf.mxu0
  %v9393 = vadd.f32 %v9202, %v9392
  %v9394 = vpop.f32.mrf.mxu0
  %v9395 = vadd.f32 %v9204, %v9394
  %v9396 = vpop.f32.mrf.mxu0
  %v9397 = vadd.f32 %v9206, %v9396
  %v9398 = vpop.f32.mrf.mxu0
  %v9399 = vadd.f32 %v9208, %v9398
  %9400 = vmatprep.mubr.bf16.mxu0 %v1894
  %9401 = vmatmul.mubr.bf16.gmra.mxu0 %v1893
  %v9402 = vpop.f32.mrf.mxu0
  %v9403 = vadd.f32 %v9212, %v9402
  %v9404 = vpop.f32.mrf.mxu0
  %v9405 = vadd.f32 %v9214, %v9404
  %v9406 = vpop.f32.mrf.mxu0
  %v9407 = vadd.f32 %v9216, %v9406
  %v9408 = vpop.f32.mrf.mxu0
  %v9409 = vadd.f32 %v9218, %v9408
  %9410 = vmatprep.mubr.bf16.mxu0 %v1908
  %9411 = vmatmul.mubr.bf16.gmra.mxu0 %v1907
  %v9412 = vpop.f32.mrf.mxu0
  %v9413 = vadd.f32 %v9222, %v9412
  %v9414 = vpop.f32.mrf.mxu0
  %v9415 = vadd.f32 %v9224, %v9414
  %v9416 = vpop.f32.mrf.mxu0
  %v9417 = vadd.f32 %v9226, %v9416
  %v9418 = vpop.f32.mrf.mxu0
  %v9419 = vadd.f32 %v9228, %v9418
  %9420 = vmatprep.mubr.bf16.mxu0 %v1922
  %9421 = vmatmul.mubr.bf16.gmra.mxu0 %v1921
  %v9422 = vpop.f32.mrf.mxu0
  %v9423 = vadd.f32 %v9232, %v9422
  %v9424 = vpop.f32.mrf.mxu0
  %v9425 = vadd.f32 %v9234, %v9424
  %v9426 = vpop.f32.mrf.mxu0
  %v9427 = vadd.f32 %v9236, %v9426
  %v9428 = vpop.f32.mrf.mxu0
  %v9429 = vadd.f32 %v9238, %v9428
  %9430 = vmatprep.mubr.bf16.mxu0 %v1936
  %9431 = vmatmul.mubr.bf16.gmra.mxu0 %v1935
  %v9432 = vpop.f32.mrf.mxu0
  %v9433 = vadd.f32 %v9242, %v9432
  %v9434 = vpop.f32.mrf.mxu0
  %v9435 = vadd.f32 %v9244, %v9434
  %v9436 = vpop.f32.mrf.mxu0
  %v9437 = vadd.f32 %v9246, %v9436
  %v9438 = vpop.f32.mrf.mxu0
  %v9439 = vadd.f32 %v9248, %v9438
  %9440 = vmatprep.mubr.bf16.mxu0 %v1950
  %9441 = vmatmul.mubr.bf16.gmra.mxu0 %v1949
  %v9442 = vpop.f32.mrf.mxu0
  %v9443 = vadd.f32 %v9252, %v9442
  %v9444 = vpop.f32.mrf.mxu0
  %v9445 = vadd.f32 %v9254, %v9444
  %v9446 = vpop.f32.mrf.mxu0
  %v9447 = vadd.f32 %v9256, %v9446
  %v9448 = vpop.f32.mrf.mxu0
  %v9449 = vadd.f32 %v9258, %v9448
  %9450 = vmatprep.mubr.bf16.mxu0 %v1964
  %9451 = vmatmul.mubr.bf16.gmra.mxu0 %v1963
  %v9452 = vpop.f32.mrf.mxu0
  %v9453 = vadd.f32 %v9262, %v9452
  %v9454 = vpop.f32.mrf.mxu0
  %v9455 = vadd.f32 %v9264, %v9454
  %v9456 = vpop.f32.mrf.mxu0
  %v9457 = vadd.f32 %v9266, %v9456
  %v9458 = vpop.f32.mrf.mxu0
  %v9459 = vadd.f32 %v9268, %v9458
  %9460 = vmatprep.mubr.bf16.mxu0 %v1978
  %9461 = vmatmul.mubr.bf16.gmra.mxu0 %v1977
  %v9462 = vpop.f32.mrf.mxu0
  %v9463 = vadd.f32 %v9272, %v9462
  %v9464 = vpop.f32.mrf.mxu0
  %v9465 = vadd.f32 %v9274, %v9464
  %v9466 = vpop.f32.mrf.mxu0
  %v9467 = vpop.f32.mrf.mxu0
  %9468 = vdwg.mxu0
  %9469 = vmatprep.subr.bf16.mxu0 %v5005
  %9470 = vmatpush1.bf16.msra.mxu0 %v5004
  %9471 = vmatprep.subr.bf16.mxu0 %v4998
  %9472 = vmatpush1.bf16.msra.mxu0 %v4997
  %9473 = vmatprep.subr.bf16.mxu0 %v4991
  %9474 = vmatpush1.bf16.msra.mxu0 %v4990
  %9475 = vmatprep.subr.bf16.mxu0 %v4984
  %9476 = vmatpush1.bf16.msra.mxu0 %v4983
  %9477 = vmatprep.subr.bf16.mxu0 %v4977
  %9478 = vmatpush1.bf16.msra.mxu0 %v4976
  %9479 = vmatprep.subr.bf16.mxu0 %v4970
  %9480 = vmatpush1.bf16.msra.mxu0 %v4969
  %9481 = vmatprep.subr.bf16.mxu0 %v4963
  %9482 = vmatpush1.bf16.msra.mxu0 %v4962
  %9483 = vmatprep.subr.bf16.mxu0 %v4956
  %9484 = vmatpush1.bf16.msra.mxu0 %v4955
  %9485 = vmatprep.subr.bf16.mxu0 %v5061
  %9486 = vmatpush2.bf16.msra.mxu0 %v5060
  %9487 = vmatprep.subr.bf16.mxu0 %v5054
  %9488 = vmatpush2.bf16.msra.mxu0 %v5053
  %9489 = vmatprep.subr.bf16.mxu0 %v5047
  %9490 = vmatpush2.bf16.msra.mxu0 %v5046
  %9491 = vmatprep.subr.bf16.mxu0 %v5040
  %9492 = vmatpush2.bf16.msra.mxu0 %v5039
  %9493 = vmatprep.subr.bf16.mxu0 %v5033
  %9494 = vmatpush2.bf16.msra.mxu0 %v5032
  %9495 = vmatprep.subr.bf16.mxu0 %v5026
  %9496 = vmatpush2.bf16.msra.mxu0 %v5025
  %9497 = vmatprep.subr.bf16.mxu0 %v5019
  %9498 = vmatpush2.bf16.msra.mxu0 %v5018
  %9499 = vmatprep.subr.bf16.mxu0 %v5012
  %9500 = vmatpush2.bf16.msra.mxu0 %v5011
  %9501 = vmatprep.mubr.bf16.mxu0 %v1770
  %9502 = vmatmul.mubr.bf16.gmra.mxu0 %v1769
  %v9503 = vpop.f32.mrf.mxu0
  %v9504 = vadd.f32 %v9313, %v9503
  %v9505 = vpop.f32.mrf.mxu0
  %v9506 = vadd.f32 %v9315, %v9505
  %v9507 = vpop.f32.mrf.mxu0
  %v9508 = vadd.f32 %v9317, %v9507
  %v9509 = vpop.f32.mrf.mxu0
  %v9510 = vadd.f32 %v9319, %v9509
  %9511 = vmatprep.mubr.bf16.mxu0 %v1784
  %9512 = vmatmul.mubr.bf16.gmra.mxu0 %v1783
  %v9513 = vpop.f32.mrf.mxu0
  %v9514 = vadd.f32 %v9323, %v9513
  %v9515 = vpop.f32.mrf.mxu0
  %v9516 = vadd.f32 %v9325, %v9515
  %v9517 = vpop.f32.mrf.mxu0
  %v9518 = vadd.f32 %v9327, %v9517
  %v9519 = vpop.f32.mrf.mxu0
  %v9520 = vadd.f32 %v9329, %v9519
  %9521 = vmatprep.mubr.bf16.mxu0 %v1798
  %9522 = vmatmul.mubr.bf16.gmra.mxu0 %v1797
  %v9523 = vpop.f32.mrf.mxu0
  %v9524 = vadd.f32 %v9333, %v9523
  %v9525 = vpop.f32.mrf.mxu0
  %v9526 = vadd.f32 %v9335, %v9525
  %v9527 = vpop.f32.mrf.mxu0
  %v9528 = vadd.f32 %v9337, %v9527
  %v9529 = vpop.f32.mrf.mxu0
  %v9530 = vadd.f32 %v9339, %v9529
  %9531 = vmatprep.mubr.bf16.mxu0 %v1812
  %9532 = vmatmul.mubr.bf16.gmra.mxu0 %v1811
  %v9533 = vpop.f32.mrf.mxu0
  %v9534 = vadd.f32 %v9343, %v9533
  %v9535 = vpop.f32.mrf.mxu0
  %v9536 = vadd.f32 %v9345, %v9535
  %v9537 = vpop.f32.mrf.mxu0
  %v9538 = vadd.f32 %v9347, %v9537
  %v9539 = vpop.f32.mrf.mxu0
  %v9540 = vadd.f32 %v9349, %v9539
  %9541 = vmatprep.mubr.bf16.mxu0 %v1826
  %9542 = vmatmul.mubr.bf16.gmra.mxu0 %v1825
  %v9543 = vpop.f32.mrf.mxu0
  %v9544 = vadd.f32 %v9353, %v9543
  %v9545 = vpop.f32.mrf.mxu0
  %v9546 = vadd.f32 %v9355, %v9545
  %v9547 = vpop.f32.mrf.mxu0
  %v9548 = vadd.f32 %v9357, %v9547
  %v9549 = vpop.f32.mrf.mxu0
  %v9550 = vadd.f32 %v9359, %v9549
  %9551 = vmatprep.mubr.bf16.mxu0 %v1840
  %9552 = vmatmul.mubr.bf16.gmra.mxu0 %v1839
  %v9553 = vpop.f32.mrf.mxu0
  %v9554 = vadd.f32 %v9363, %v9553
  %v9555 = vpop.f32.mrf.mxu0
  %v9556 = vadd.f32 %v9365, %v9555
  %v9557 = vpop.f32.mrf.mxu0
  %v9558 = vadd.f32 %v9367, %v9557
  %v9559 = vpop.f32.mrf.mxu0
  %v9560 = vadd.f32 %v9369, %v9559
  %9561 = vmatprep.mubr.bf16.mxu0 %v1854
  %9562 = vmatmul.mubr.bf16.gmra.mxu0 %v1853
  %v9563 = vpop.f32.mrf.mxu0
  %v9564 = vadd.f32 %v9373, %v9563
  %v9565 = vpop.f32.mrf.mxu0
  %v9566 = vadd.f32 %v9375, %v9565
  %v9567 = vpop.f32.mrf.mxu0
  %v9568 = vadd.f32 %v9377, %v9567
  %v9569 = vpop.f32.mrf.mxu0
  %v9570 = vadd.f32 %v9379, %v9569
  %9571 = vmatprep.mubr.bf16.mxu0 %v1868
  %9572 = vmatmul.mubr.bf16.gmra.mxu0 %v1867
  %v9573 = vpop.f32.mrf.mxu0
  %v9574 = vadd.f32 %v9383, %v9573
  %v9575 = vpop.f32.mrf.mxu0
  %v9576 = vadd.f32 %v9385, %v9575
  %v9577 = vpop.f32.mrf.mxu0
  %v9578 = vadd.f32 %v9387, %v9577
  %v9579 = vpop.f32.mrf.mxu0
  %v9580 = vadd.f32 %v9389, %v9579
  %9581 = vmatprep.mubr.bf16.mxu0 %v1882
  %9582 = vmatmul.mubr.bf16.gmra.mxu0 %v1881
  %v9583 = vpop.f32.mrf.mxu0
  %v9584 = vadd.f32 %v9393, %v9583
  %v9585 = vpop.f32.mrf.mxu0
  %v9586 = vadd.f32 %v9395, %v9585
  %v9587 = vpop.f32.mrf.mxu0
  %v9588 = vadd.f32 %v9397, %v9587
  %v9589 = vpop.f32.mrf.mxu0
  %v9590 = vadd.f32 %v9399, %v9589
  %9591 = vmatprep.mubr.bf16.mxu0 %v1896
  %9592 = vmatmul.mubr.bf16.gmra.mxu0 %v1895
  %v9593 = vpop.f32.mrf.mxu0
  %v9594 = vadd.f32 %v9403, %v9593
  %v9595 = vpop.f32.mrf.mxu0
  %v9596 = vadd.f32 %v9405, %v9595
  %v9597 = vpop.f32.mrf.mxu0
  %v9598 = vadd.f32 %v9407, %v9597
  %v9599 = vpop.f32.mrf.mxu0
  %v9600 = vadd.f32 %v9409, %v9599
  %9601 = vmatprep.mubr.bf16.mxu0 %v1910
  %9602 = vmatmul.mubr.bf16.gmra.mxu0 %v1909
  %v9603 = vpop.f32.mrf.mxu0
  %v9604 = vadd.f32 %v9413, %v9603
  %v9605 = vpop.f32.mrf.mxu0
  %v9606 = vadd.f32 %v9415, %v9605
  %v9607 = vpop.f32.mrf.mxu0
  %v9608 = vadd.f32 %v9417, %v9607
  %v9609 = vpop.f32.mrf.mxu0
  %v9610 = vadd.f32 %v9419, %v9609
  %9611 = vmatprep.mubr.bf16.mxu0 %v1924
  %9612 = vmatmul.mubr.bf16.gmra.mxu0 %v1923
  %v9613 = vpop.f32.mrf.mxu0
  %v9614 = vadd.f32 %v9423, %v9613
  %v9615 = vpop.f32.mrf.mxu0
  %v9616 = vadd.f32 %v9425, %v9615
  %v9617 = vpop.f32.mrf.mxu0
  %v9618 = vadd.f32 %v9427, %v9617
  %v9619 = vpop.f32.mrf.mxu0
  %v9620 = vadd.f32 %v9429, %v9619
  %9621 = vmatprep.mubr.bf16.mxu0 %v1938
  %9622 = vmatmul.mubr.bf16.gmra.mxu0 %v1937
  %v9623 = vpop.f32.mrf.mxu0
  %v9624 = vadd.f32 %v9433, %v9623
  %v9625 = vpop.f32.mrf.mxu0
  %v9626 = vadd.f32 %v9435, %v9625
  %v9627 = vpop.f32.mrf.mxu0
  %v9628 = vadd.f32 %v9437, %v9627
  %v9629 = vpop.f32.mrf.mxu0
  %v9630 = vadd.f32 %v9439, %v9629
  %9631 = vmatprep.mubr.bf16.mxu0 %v1952
  %9632 = vmatmul.mubr.bf16.gmra.mxu0 %v1951
  %v9633 = vpop.f32.mrf.mxu0
  %v9634 = vadd.f32 %v9443, %v9633
  %v9635 = vpop.f32.mrf.mxu0
  %v9636 = vadd.f32 %v9445, %v9635
  %v9637 = vpop.f32.mrf.mxu0
  %v9638 = vadd.f32 %v9447, %v9637
  %v9639 = vpop.f32.mrf.mxu0
  %v9640 = vadd.f32 %v9449, %v9639
  %9641 = vmatprep.mubr.bf16.mxu0 %v1966
  %9642 = vmatmul.mubr.bf16.gmra.mxu0 %v1965
  %v9643 = vpop.f32.mrf.mxu0
  %v9644 = vadd.f32 %v9453, %v9643
  %v9645 = vpop.f32.mrf.mxu0
  %v9646 = vadd.f32 %v9455, %v9645
  %v9647 = vpop.f32.mrf.mxu0
  %v9648 = vadd.f32 %v9457, %v9647
  %v9649 = vpop.f32.mrf.mxu0
  %v9650 = vadd.f32 %v9459, %v9649
  %9651 = vmatprep.mubr.bf16.mxu0 %v1980
  %9652 = vmatmul.mubr.bf16.gmra.mxu0 %v1979
  %v9653 = vpop.f32.mrf.mxu0
  %v9654 = vadd.f32 %v9463, %v9653
  %v9655 = vpop.f32.mrf.mxu0
  %v9656 = vadd.f32 %v9465, %v9655
  %v9657 = vpop.f32.mrf.mxu0
  %v9658 = vpop.f32.mrf.mxu0
  %9659 = vdwg.mxu0
  %9660 = vmatprep.subr.bf16.mxu0 %v5117
  %9661 = vmatpush1.bf16.msra.mxu0 %v5116
  %9662 = vmatprep.subr.bf16.mxu0 %v5110
  %9663 = vmatpush1.bf16.msra.mxu0 %v5109
  %9664 = vmatprep.subr.bf16.mxu0 %v5103
  %9665 = vmatpush1.bf16.msra.mxu0 %v5102
  %9666 = vmatprep.subr.bf16.mxu0 %v5096
  %9667 = vmatpush1.bf16.msra.mxu0 %v5095
  %9668 = vmatprep.subr.bf16.mxu0 %v5089
  %9669 = vmatpush1.bf16.msra.mxu0 %v5088
  %9670 = vmatprep.subr.bf16.mxu0 %v5082
  %9671 = vmatpush1.bf16.msra.mxu0 %v5081
  %9672 = vmatprep.subr.bf16.mxu0 %v5075
  %9673 = vmatpush1.bf16.msra.mxu0 %v5074
  %9674 = vmatprep.subr.bf16.mxu0 %v5068
  %9675 = vmatpush1.bf16.msra.mxu0 %v5067
  %9676 = vmatprep.subr.bf16.mxu0 %v5173
  %9677 = vmatpush2.bf16.msra.mxu0 %v5172
  %9678 = vmatprep.subr.bf16.mxu0 %v5166
  %9679 = vmatpush2.bf16.msra.mxu0 %v5165
  %9680 = vmatprep.subr.bf16.mxu0 %v5159
  %9681 = vmatpush2.bf16.msra.mxu0 %v5158
  %9682 = vmatprep.subr.bf16.mxu0 %v5152
  %9683 = vmatpush2.bf16.msra.mxu0 %v5151
  %9684 = vmatprep.subr.bf16.mxu0 %v5145
  %9685 = vmatpush2.bf16.msra.mxu0 %v5144
  %9686 = vmatprep.subr.bf16.mxu0 %v5138
  %9687 = vmatpush2.bf16.msra.mxu0 %v5137
  %9688 = vmatprep.subr.bf16.mxu0 %v5131
  %9689 = vmatpush2.bf16.msra.mxu0 %v5130
  %9690 = vmatprep.subr.bf16.mxu0 %v5124
  %9691 = vmatpush2.bf16.msra.mxu0 %v5123
  %9692 = vmatprep.mubr.bf16.mxu0 %v1772
  %9693 = vmatmul.mubr.bf16.gmra.mxu0 %v1771
  %v9694 = vpop.f32.mrf.mxu0
  %v9695 = vadd.f32 %v9504, %v9694
  %v9696 = vpop.f32.mrf.mxu0
  %v9697 = vadd.f32 %v9506, %v9696
  %v9698 = vpop.f32.mrf.mxu0
  %v9699 = vadd.f32 %v9508, %v9698
  %v9700 = vpop.f32.mrf.mxu0
  %v9701 = vadd.f32 %v9510, %v9700
  %9702 = vmatprep.mubr.bf16.mxu0 %v1786
  %9703 = vmatmul.mubr.bf16.gmra.mxu0 %v1785
  %v9704 = vpop.f32.mrf.mxu0
  %v9705 = vadd.f32 %v9514, %v9704
  %v9706 = vpop.f32.mrf.mxu0
  %v9707 = vadd.f32 %v9516, %v9706
  %v9708 = vpop.f32.mrf.mxu0
  %v9709 = vadd.f32 %v9518, %v9708
  %v9710 = vpop.f32.mrf.mxu0
  %v9711 = vadd.f32 %v9520, %v9710
  %9712 = vmatprep.mubr.bf16.mxu0 %v1800
  %9713 = vmatmul.mubr.bf16.gmra.mxu0 %v1799
  %v9714 = vpop.f32.mrf.mxu0
  %v9715 = vadd.f32 %v9524, %v9714
  %v9716 = vpop.f32.mrf.mxu0
  %v9717 = vadd.f32 %v9526, %v9716
  %v9718 = vpop.f32.mrf.mxu0
  %v9719 = vadd.f32 %v9528, %v9718
  %v9720 = vpop.f32.mrf.mxu0
  %v9721 = vadd.f32 %v9530, %v9720
  %9722 = vmatprep.mubr.bf16.mxu0 %v1814
  %9723 = vmatmul.mubr.bf16.gmra.mxu0 %v1813
  %v9724 = vpop.f32.mrf.mxu0
  %v9725 = vadd.f32 %v9534, %v9724
  %v9726 = vpop.f32.mrf.mxu0
  %v9727 = vadd.f32 %v9536, %v9726
  %v9728 = vpop.f32.mrf.mxu0
  %v9729 = vadd.f32 %v9538, %v9728
  %v9730 = vpop.f32.mrf.mxu0
  %v9731 = vadd.f32 %v9540, %v9730
  %9732 = vmatprep.mubr.bf16.mxu0 %v1828
  %9733 = vmatmul.mubr.bf16.gmra.mxu0 %v1827
  %v9734 = vpop.f32.mrf.mxu0
  %v9735 = vadd.f32 %v9544, %v9734
  %v9736 = vpop.f32.mrf.mxu0
  %v9737 = vadd.f32 %v9546, %v9736
  %v9738 = vpop.f32.mrf.mxu0
  %v9739 = vadd.f32 %v9548, %v9738
  %v9740 = vpop.f32.mrf.mxu0
  %v9741 = vadd.f32 %v9550, %v9740
  %9742 = vmatprep.mubr.bf16.mxu0 %v1842
  %9743 = vmatmul.mubr.bf16.gmra.mxu0 %v1841
  %v9744 = vpop.f32.mrf.mxu0
  %v9745 = vadd.f32 %v9554, %v9744
  %v9746 = vpop.f32.mrf.mxu0
  %v9747 = vadd.f32 %v9556, %v9746
  %v9748 = vpop.f32.mrf.mxu0
  %v9749 = vadd.f32 %v9558, %v9748
  %v9750 = vpop.f32.mrf.mxu0
  %v9751 = vadd.f32 %v9560, %v9750
  %9752 = vmatprep.mubr.bf16.mxu0 %v1856
  %9753 = vmatmul.mubr.bf16.gmra.mxu0 %v1855
  %v9754 = vpop.f32.mrf.mxu0
  %v9755 = vadd.f32 %v9564, %v9754
  %v9756 = vpop.f32.mrf.mxu0
  %v9757 = vadd.f32 %v9566, %v9756
  %v9758 = vpop.f32.mrf.mxu0
  %v9759 = vadd.f32 %v9568, %v9758
  %v9760 = vpop.f32.mrf.mxu0
  %v9761 = vadd.f32 %v9570, %v9760
  %9762 = vmatprep.mubr.bf16.mxu0 %v1870
  %9763 = vmatmul.mubr.bf16.gmra.mxu0 %v1869
  %v9764 = vpop.f32.mrf.mxu0
  %v9765 = vadd.f32 %v9574, %v9764
  %v9766 = vpop.f32.mrf.mxu0
  %v9767 = vadd.f32 %v9576, %v9766
  %v9768 = vpop.f32.mrf.mxu0
  %v9769 = vadd.f32 %v9578, %v9768
  %v9770 = vpop.f32.mrf.mxu0
  %v9771 = vadd.f32 %v9580, %v9770
  %9772 = vmatprep.mubr.bf16.mxu0 %v1884
  %9773 = vmatmul.mubr.bf16.gmra.mxu0 %v1883
  %v9774 = vpop.f32.mrf.mxu0
  %v9775 = vadd.f32 %v9584, %v9774
  %v9776 = vpop.f32.mrf.mxu0
  %v9777 = vadd.f32 %v9586, %v9776
  %v9778 = vpop.f32.mrf.mxu0
  %v9779 = vadd.f32 %v9588, %v9778
  %v9780 = vpop.f32.mrf.mxu0
  %v9781 = vadd.f32 %v9590, %v9780
  %9782 = vmatprep.mubr.bf16.mxu0 %v1898
  %9783 = vmatmul.mubr.bf16.gmra.mxu0 %v1897
  %v9784 = vpop.f32.mrf.mxu0
  %v9785 = vadd.f32 %v9594, %v9784
  %v9786 = vpop.f32.mrf.mxu0
  %v9787 = vadd.f32 %v9596, %v9786
  %v9788 = vpop.f32.mrf.mxu0
  %v9789 = vadd.f32 %v9598, %v9788
  %v9790 = vpop.f32.mrf.mxu0
  %v9791 = vadd.f32 %v9600, %v9790
  %9792 = vmatprep.mubr.bf16.mxu0 %v1912
  %9793 = vmatmul.mubr.bf16.gmra.mxu0 %v1911
  %v9794 = vpop.f32.mrf.mxu0
  %v9795 = vadd.f32 %v9604, %v9794
  %v9796 = vpop.f32.mrf.mxu0
  %v9797 = vadd.f32 %v9606, %v9796
  %v9798 = vpop.f32.mrf.mxu0
  %v9799 = vadd.f32 %v9608, %v9798
  %v9800 = vpop.f32.mrf.mxu0
  %v9801 = vadd.f32 %v9610, %v9800
  %9802 = vmatprep.mubr.bf16.mxu0 %v1926
  %9803 = vmatmul.mubr.bf16.gmra.mxu0 %v1925
  %v9804 = vpop.f32.mrf.mxu0
  %v9805 = vadd.f32 %v9614, %v9804
  %v9806 = vpop.f32.mrf.mxu0
  %v9807 = vadd.f32 %v9616, %v9806
  %v9808 = vpop.f32.mrf.mxu0
  %v9809 = vadd.f32 %v9618, %v9808
  %v9810 = vpop.f32.mrf.mxu0
  %v9811 = vadd.f32 %v9620, %v9810
  %9812 = vmatprep.mubr.bf16.mxu0 %v1940
  %9813 = vmatmul.mubr.bf16.gmra.mxu0 %v1939
  %v9814 = vpop.f32.mrf.mxu0
  %v9815 = vadd.f32 %v9624, %v9814
  %v9816 = vpop.f32.mrf.mxu0
  %v9817 = vadd.f32 %v9626, %v9816
  %v9818 = vpop.f32.mrf.mxu0
  %v9819 = vadd.f32 %v9628, %v9818
  %v9820 = vpop.f32.mrf.mxu0
  %v9821 = vadd.f32 %v9630, %v9820
  %9822 = vmatprep.mubr.bf16.mxu0 %v1954
  %9823 = vmatmul.mubr.bf16.gmra.mxu0 %v1953
  %v9824 = vpop.f32.mrf.mxu0
  %v9825 = vadd.f32 %v9634, %v9824
  %v9826 = vpop.f32.mrf.mxu0
  %v9827 = vadd.f32 %v9636, %v9826
  %v9828 = vpop.f32.mrf.mxu0
  %v9829 = vadd.f32 %v9638, %v9828
  %v9830 = vpop.f32.mrf.mxu0
  %v9831 = vadd.f32 %v9640, %v9830
  %9832 = vmatprep.mubr.bf16.mxu0 %v1968
  %9833 = vmatmul.mubr.bf16.gmra.mxu0 %v1967
  %v9834 = vpop.f32.mrf.mxu0
  %v9835 = vadd.f32 %v9644, %v9834
  %v9836 = vpop.f32.mrf.mxu0
  %v9837 = vadd.f32 %v9646, %v9836
  %v9838 = vpop.f32.mrf.mxu0
  %v9839 = vadd.f32 %v9648, %v9838
  %v9840 = vpop.f32.mrf.mxu0
  %v9841 = vadd.f32 %v9650, %v9840
  %9842 = vmatprep.mubr.bf16.mxu0 %v1982
  %9843 = vmatmul.mubr.bf16.gmra.mxu0 %v1981
  %v9844 = vpop.f32.mrf.mxu0
  %v9845 = vadd.f32 %v9654, %v9844
  %v9846 = vpop.f32.mrf.mxu0
  %v9847 = vadd.f32 %v9656, %v9846
  %v9848 = vpop.f32.mrf.mxu0
  %v9849 = vpop.f32.mrf.mxu0
  %9850 = vdwg.mxu0
  %9851 = vmatprep.subr.bf16.mxu0 %v5229
  %9852 = vmatpush1.bf16.msra.mxu0 %v5228
  %9853 = vmatprep.subr.bf16.mxu0 %v5222
  %9854 = vmatpush1.bf16.msra.mxu0 %v5221
  %9855 = vmatprep.subr.bf16.mxu0 %v5215
  %9856 = vmatpush1.bf16.msra.mxu0 %v5214
  %9857 = vmatprep.subr.bf16.mxu0 %v5208
  %9858 = vmatpush1.bf16.msra.mxu0 %v5207
  %9859 = vmatprep.subr.bf16.mxu0 %v5201
  %9860 = vmatpush1.bf16.msra.mxu0 %v5200
  %9861 = vmatprep.subr.bf16.mxu0 %v5194
  %9862 = vmatpush1.bf16.msra.mxu0 %v5193
  %9863 = vmatprep.subr.bf16.mxu0 %v5187
  %9864 = vmatpush1.bf16.msra.mxu0 %v5186
  %9865 = vmatprep.subr.bf16.mxu0 %v5180
  %9866 = vmatpush1.bf16.msra.mxu0 %v5179
  %9867 = vmatprep.subr.bf16.mxu0 %v5285
  %9868 = vmatpush2.bf16.msra.mxu0 %v5284
  %9869 = vmatprep.subr.bf16.mxu0 %v5278
  %9870 = vmatpush2.bf16.msra.mxu0 %v5277
  %9871 = vmatprep.subr.bf16.mxu0 %v5271
  %9872 = vmatpush2.bf16.msra.mxu0 %v5270
  %9873 = vmatprep.subr.bf16.mxu0 %v5264
  %9874 = vmatpush2.bf16.msra.mxu0 %v5263
  %9875 = vmatprep.subr.bf16.mxu0 %v5257
  %9876 = vmatpush2.bf16.msra.mxu0 %v5256
  %9877 = vmatprep.subr.bf16.mxu0 %v5250
  %9878 = vmatpush2.bf16.msra.mxu0 %v5249
  %9879 = vmatprep.subr.bf16.mxu0 %v5243
  %9880 = vmatpush2.bf16.msra.mxu0 %v5242
  %9881 = vmatprep.subr.bf16.mxu0 %v5236
  %9882 = vmatpush2.bf16.msra.mxu0 %v5235
  %9883 = vmatprep.mubr.bf16.mxu0 %v1774
  %9884 = vmatmul.mubr.bf16.gmra.mxu0 %v1773
  %v9885 = vpop.f32.mrf.mxu0
  %v9886 = vadd.f32 %v9695, %v9885
  %v9887 = vpop.f32.mrf.mxu0
  %v9888 = vadd.f32 %v9697, %v9887
  %v9889 = vpop.f32.mrf.mxu0
  %v9890 = vadd.f32 %v9699, %v9889
  %v9891 = vpop.f32.mrf.mxu0
  %v9892 = vadd.f32 %v9701, %v9891
  %9893 = vmatprep.mubr.bf16.mxu0 %v1788
  %9894 = vmatmul.mubr.bf16.gmra.mxu0 %v1787
  %v9895 = vpop.f32.mrf.mxu0
  %v9896 = vadd.f32 %v9705, %v9895
  %v9897 = vpop.f32.mrf.mxu0
  %v9898 = vadd.f32 %v9707, %v9897
  %v9899 = vpop.f32.mrf.mxu0
  %v9900 = vadd.f32 %v9709, %v9899
  %v9901 = vpop.f32.mrf.mxu0
  %v9902 = vadd.f32 %v9711, %v9901
  %9903 = vmatprep.mubr.bf16.mxu0 %v1802
  %9904 = vmatmul.mubr.bf16.gmra.mxu0 %v1801
  %v9905 = vpop.f32.mrf.mxu0
  %v9906 = vadd.f32 %v9715, %v9905
  %v9907 = vpop.f32.mrf.mxu0
  %v9908 = vadd.f32 %v9717, %v9907
  %v9909 = vpop.f32.mrf.mxu0
  %v9910 = vadd.f32 %v9719, %v9909
  %v9911 = vpop.f32.mrf.mxu0
  %v9912 = vadd.f32 %v9721, %v9911
  %9913 = vmatprep.mubr.bf16.mxu0 %v1816
  %9914 = vmatmul.mubr.bf16.gmra.mxu0 %v1815
  %v9915 = vpop.f32.mrf.mxu0
  %v9916 = vadd.f32 %v9725, %v9915
  %v9917 = vpop.f32.mrf.mxu0
  %v9918 = vadd.f32 %v9727, %v9917
  %v9919 = vpop.f32.mrf.mxu0
  %v9920 = vadd.f32 %v9729, %v9919
  %v9921 = vpop.f32.mrf.mxu0
  %v9922 = vadd.f32 %v9731, %v9921
  %9923 = vmatprep.mubr.bf16.mxu0 %v1830
  %9924 = vmatmul.mubr.bf16.gmra.mxu0 %v1829
  %v9925 = vpop.f32.mrf.mxu0
  %v9926 = vadd.f32 %v9735, %v9925
  %v9927 = vpop.f32.mrf.mxu0
  %v9928 = vadd.f32 %v9737, %v9927
  %v9929 = vpop.f32.mrf.mxu0
  %v9930 = vadd.f32 %v9739, %v9929
  %v9931 = vpop.f32.mrf.mxu0
  %v9932 = vadd.f32 %v9741, %v9931
  %9933 = vmatprep.mubr.bf16.mxu0 %v1844
  %9934 = vmatmul.mubr.bf16.gmra.mxu0 %v1843
  %v9935 = vpop.f32.mrf.mxu0
  %v9936 = vadd.f32 %v9745, %v9935
  %v9937 = vpop.f32.mrf.mxu0
  %v9938 = vadd.f32 %v9747, %v9937
  %v9939 = vpop.f32.mrf.mxu0
  %v9940 = vadd.f32 %v9749, %v9939
  %v9941 = vpop.f32.mrf.mxu0
  %v9942 = vadd.f32 %v9751, %v9941
  %9943 = vmatprep.mubr.bf16.mxu0 %v1858
  %9944 = vmatmul.mubr.bf16.gmra.mxu0 %v1857
  %v9945 = vpop.f32.mrf.mxu0
  %v9946 = vadd.f32 %v9755, %v9945
  %v9947 = vpop.f32.mrf.mxu0
  %v9948 = vadd.f32 %v9757, %v9947
  %v9949 = vpop.f32.mrf.mxu0
  %v9950 = vadd.f32 %v9759, %v9949
  %v9951 = vpop.f32.mrf.mxu0
  %v9952 = vadd.f32 %v9761, %v9951
  %9953 = vmatprep.mubr.bf16.mxu0 %v1872
  %9954 = vmatmul.mubr.bf16.gmra.mxu0 %v1871
  %v9955 = vpop.f32.mrf.mxu0
  %v9956 = vadd.f32 %v9765, %v9955
  %v9957 = vpop.f32.mrf.mxu0
  %v9958 = vadd.f32 %v9767, %v9957
  %v9959 = vpop.f32.mrf.mxu0
  %v9960 = vadd.f32 %v9769, %v9959
  %v9961 = vpop.f32.mrf.mxu0
  %v9962 = vadd.f32 %v9771, %v9961
  %9963 = vmatprep.mubr.bf16.mxu0 %v1886
  %9964 = vmatmul.mubr.bf16.gmra.mxu0 %v1885
  %v9965 = vpop.f32.mrf.mxu0
  %v9966 = vadd.f32 %v9775, %v9965
  %v9967 = vpop.f32.mrf.mxu0
  %v9968 = vadd.f32 %v9777, %v9967
  %v9969 = vpop.f32.mrf.mxu0
  %v9970 = vadd.f32 %v9779, %v9969
  %v9971 = vpop.f32.mrf.mxu0
  %v9972 = vadd.f32 %v9781, %v9971
  %9973 = vmatprep.mubr.bf16.mxu0 %v1900
  %9974 = vmatmul.mubr.bf16.gmra.mxu0 %v1899
  %v9975 = vpop.f32.mrf.mxu0
  %v9976 = vadd.f32 %v9785, %v9975
  %v9977 = vpop.f32.mrf.mxu0
  %v9978 = vadd.f32 %v9787, %v9977
  %v9979 = vpop.f32.mrf.mxu0
  %v9980 = vadd.f32 %v9789, %v9979
  %v9981 = vpop.f32.mrf.mxu0
  %v9982 = vadd.f32 %v9791, %v9981
  %9983 = vmatprep.mubr.bf16.mxu0 %v1914
  %9984 = vmatmul.mubr.bf16.gmra.mxu0 %v1913
  %v9985 = vpop.f32.mrf.mxu0
  %v9986 = vadd.f32 %v9795, %v9985
  %v9987 = vpop.f32.mrf.mxu0
  %v9988 = vadd.f32 %v9797, %v9987
  %v9989 = vpop.f32.mrf.mxu0
  %v9990 = vadd.f32 %v9799, %v9989
  %v9991 = vpop.f32.mrf.mxu0
  %v9992 = vadd.f32 %v9801, %v9991
  %9993 = vmatprep.mubr.bf16.mxu0 %v1928
  %9994 = vmatmul.mubr.bf16.gmra.mxu0 %v1927
  %v9995 = vpop.f32.mrf.mxu0
  %v9996 = vadd.f32 %v9805, %v9995
  %v9997 = vpop.f32.mrf.mxu0
  %v9998 = vadd.f32 %v9807, %v9997
  %v9999 = vpop.f32.mrf.mxu0
  %v10000 = vadd.f32 %v9809, %v9999
  %v10001 = vpop.f32.mrf.mxu0
  %v10002 = vadd.f32 %v9811, %v10001
  %10003 = vmatprep.mubr.bf16.mxu0 %v1942
  %10004 = vmatmul.mubr.bf16.gmra.mxu0 %v1941
  %v10005 = vpop.f32.mrf.mxu0
  %v10006 = vadd.f32 %v9815, %v10005
  %v10007 = vpop.f32.mrf.mxu0
  %v10008 = vadd.f32 %v9817, %v10007
  %v10009 = vpop.f32.mrf.mxu0
  %v10010 = vadd.f32 %v9819, %v10009
  %v10011 = vpop.f32.mrf.mxu0
  %v10012 = vadd.f32 %v9821, %v10011
  %10013 = vmatprep.mubr.bf16.mxu0 %v1956
  %10014 = vmatmul.mubr.bf16.gmra.mxu0 %v1955
  %v10015 = vpop.f32.mrf.mxu0
  %v10016 = vadd.f32 %v9825, %v10015
  %v10017 = vpop.f32.mrf.mxu0
  %v10018 = vadd.f32 %v9827, %v10017
  %v10019 = vpop.f32.mrf.mxu0
  %v10020 = vadd.f32 %v9829, %v10019
  %v10021 = vpop.f32.mrf.mxu0
  %v10022 = vadd.f32 %v9831, %v10021
  %10023 = vmatprep.mubr.bf16.mxu0 %v1970
  %10024 = vmatmul.mubr.bf16.gmra.mxu0 %v1969
  %v10025 = vpop.f32.mrf.mxu0
  %v10026 = vadd.f32 %v9835, %v10025
  %v10027 = vpop.f32.mrf.mxu0
  %v10028 = vadd.f32 %v9837, %v10027
  %v10029 = vpop.f32.mrf.mxu0
  %v10030 = vadd.f32 %v9839, %v10029
  %v10031 = vpop.f32.mrf.mxu0
  %v10032 = vadd.f32 %v9841, %v10031
  %10033 = vmatprep.mubr.bf16.mxu0 %v1984
  %10034 = vmatmul.mubr.bf16.gmra.mxu0 %v1983
  %v10035 = vpop.f32.mrf.mxu0
  %v10036 = vadd.f32 %v9845, %v10035
  %v10037 = vpop.f32.mrf.mxu0
  %v10038 = vadd.f32 %v9847, %v10037
  %v10039 = vpop.f32.mrf.mxu0
  %v10040 = vpop.f32.mrf.mxu0
  %10041 = vdwg.mxu0
  %10042 = vmatprep.subr.bf16.mxu0 %v5341
  %10043 = vmatpush1.bf16.msra.mxu0 %v5340
  %10044 = vmatprep.subr.bf16.mxu0 %v5334
  %10045 = vmatpush1.bf16.msra.mxu0 %v5333
  %10046 = vmatprep.subr.bf16.mxu0 %v5327
  %10047 = vmatpush1.bf16.msra.mxu0 %v5326
  %10048 = vmatprep.subr.bf16.mxu0 %v5320
  %10049 = vmatpush1.bf16.msra.mxu0 %v5319
  %10050 = vmatprep.subr.bf16.mxu0 %v5313
  %10051 = vmatpush1.bf16.msra.mxu0 %v5312
  %10052 = vmatprep.subr.bf16.mxu0 %v5306
  %10053 = vmatpush1.bf16.msra.mxu0 %v5305
  %10054 = vmatprep.subr.bf16.mxu0 %v5299
  %10055 = vmatpush1.bf16.msra.mxu0 %v5298
  %10056 = vmatprep.subr.bf16.mxu0 %v5292
  %10057 = vmatpush1.bf16.msra.mxu0 %v5291
  %10058 = vmatprep.subr.bf16.mxu0 0
  %10059 = vmatpush2.bf16.msra.mxu0 0
  %10060 = vmatprep.subr.bf16.mxu0 0
  %10061 = vmatpush2.bf16.msra.mxu0 0
  %10062 = vmatprep.subr.bf16.mxu0 %v6217
  %10063 = vmatpush2.bf16.msra.mxu0 %v6214
  %10064 = vmatprep.subr.bf16.mxu0 %v5376
  %10065 = vmatpush2.bf16.msra.mxu0 %v5375
  %10066 = vmatprep.subr.bf16.mxu0 %v5369
  %10067 = vmatpush2.bf16.msra.mxu0 %v5368
  %10068 = vmatprep.subr.bf16.mxu0 %v5362
  %10069 = vmatpush2.bf16.msra.mxu0 %v5361
  %10070 = vmatprep.subr.bf16.mxu0 %v5355
  %10071 = vmatpush2.bf16.msra.mxu0 %v5354
  %10072 = vmatprep.subr.bf16.mxu0 %v5348
  %10073 = vmatpush2.bf16.msra.mxu0 %v5347
  %10074 = vmatprep.mubr.bf16.mxu0 %v6150
  %10075 = vmatmul.mubr.bf16.gmra.mxu0 %v1775
  %v10076 = vpop.f32.mrf.mxu0
  %v10077 = vadd.f32 %v9886, %v10076
  %v10078 = vpop.f32.mrf.mxu0
  %v10079 = vadd.f32 %v9888, %v10078
  %v10080 = vpop.f32.mrf.mxu0
  %v10081 = vadd.f32 %v9890, %v10080
  %v10082 = vpop.f32.mrf.mxu0
  %v10083 = vadd.f32 %v9892, %v10082
  %10084 = vmatprep.mubr.bf16.mxu0 %v6153
  %10085 = vmatmul.mubr.bf16.gmra.mxu0 %v1789
  %v10086 = vpop.f32.mrf.mxu0
  %v10087 = vadd.f32 %v9896, %v10086
  %v10088 = vpop.f32.mrf.mxu0
  %v10089 = vadd.f32 %v9898, %v10088
  %v10090 = vpop.f32.mrf.mxu0
  %v10091 = vadd.f32 %v9900, %v10090
  %v10092 = vpop.f32.mrf.mxu0
  %v10093 = vadd.f32 %v9902, %v10092
  %10094 = vmatprep.mubr.bf16.mxu0 %v6156
  %10095 = vmatmul.mubr.bf16.gmra.mxu0 %v1803
  %v10096 = vpop.f32.mrf.mxu0
  %v10097 = vadd.f32 %v9906, %v10096
  %v10098 = vpop.f32.mrf.mxu0
  %v10099 = vadd.f32 %v9908, %v10098
  %v10100 = vpop.f32.mrf.mxu0
  %v10101 = vadd.f32 %v9910, %v10100
  %v10102 = vpop.f32.mrf.mxu0
  %v10103 = vadd.f32 %v9912, %v10102
  %10104 = vmatprep.mubr.bf16.mxu0 %v6159
  %10105 = vmatmul.mubr.bf16.gmra.mxu0 %v1817
  %v10106 = vpop.f32.mrf.mxu0
  %v10107 = vadd.f32 %v9916, %v10106
  %v10108 = vpop.f32.mrf.mxu0
  %v10109 = vadd.f32 %v9918, %v10108
  %v10110 = vpop.f32.mrf.mxu0
  %v10111 = vadd.f32 %v9920, %v10110
  %v10112 = vpop.f32.mrf.mxu0
  %v10113 = vadd.f32 %v9922, %v10112
  %10114 = vmatprep.mubr.bf16.mxu0 %v6162
  %10115 = vmatmul.mubr.bf16.gmra.mxu0 %v1831
  %v10116 = vpop.f32.mrf.mxu0
  %v10117 = vadd.f32 %v9926, %v10116
  %v10118 = vpop.f32.mrf.mxu0
  %v10119 = vadd.f32 %v9928, %v10118
  %v10120 = vpop.f32.mrf.mxu0
  %v10121 = vadd.f32 %v9930, %v10120
  %v10122 = vpop.f32.mrf.mxu0
  %v10123 = vadd.f32 %v9932, %v10122
  %10124 = vmatprep.mubr.bf16.mxu0 %v6165
  %10125 = vmatmul.mubr.bf16.gmra.mxu0 %v1845
  %v10126 = vpop.f32.mrf.mxu0
  %v10127 = vadd.f32 %v9936, %v10126
  %v10128 = vpop.f32.mrf.mxu0
  %v10129 = vadd.f32 %v9938, %v10128
  %v10130 = vpop.f32.mrf.mxu0
  %v10131 = vadd.f32 %v9940, %v10130
  %v10132 = vpop.f32.mrf.mxu0
  %v10133 = vadd.f32 %v9942, %v10132
  %10134 = vmatprep.mubr.bf16.mxu0 %v6168
  %10135 = vmatmul.mubr.bf16.gmra.mxu0 %v1859
  %v10136 = vpop.f32.mrf.mxu0
  %v10137 = vadd.f32 %v9946, %v10136
  %v10138 = vpop.f32.mrf.mxu0
  %v10139 = vadd.f32 %v9948, %v10138
  %v10140 = vpop.f32.mrf.mxu0
  %v10141 = vadd.f32 %v9950, %v10140
  %v10142 = vpop.f32.mrf.mxu0
  %v10143 = vadd.f32 %v9952, %v10142
  %10144 = vmatprep.mubr.bf16.mxu0 %v6171
  %10145 = vmatmul.mubr.bf16.gmra.mxu0 %v1873
  %v10146 = vpop.f32.mrf.mxu0
  %v10147 = vadd.f32 %v9956, %v10146
  %v10148 = vpop.f32.mrf.mxu0
  %v10149 = vadd.f32 %v9958, %v10148
  %v10150 = vpop.f32.mrf.mxu0
  %v10151 = vadd.f32 %v9960, %v10150
  %v10152 = vpop.f32.mrf.mxu0
  %v10153 = vadd.f32 %v9962, %v10152
  %10154 = vmatprep.mubr.bf16.mxu0 %v6174
  %10155 = vmatmul.mubr.bf16.gmra.mxu0 %v1887
  %v10156 = vpop.f32.mrf.mxu0
  %v10157 = vadd.f32 %v9966, %v10156
  %v10158 = vpop.f32.mrf.mxu0
  %v10159 = vadd.f32 %v9968, %v10158
  %v10160 = vpop.f32.mrf.mxu0
  %v10161 = vadd.f32 %v9970, %v10160
  %v10162 = vpop.f32.mrf.mxu0
  %v10163 = vadd.f32 %v9972, %v10162
  %10164 = vmatprep.mubr.bf16.mxu0 %v6177
  %10165 = vmatmul.mubr.bf16.gmra.mxu0 %v1901
  %v10166 = vpop.f32.mrf.mxu0
  %v10167 = vadd.f32 %v9976, %v10166
  %v10168 = vpop.f32.mrf.mxu0
  %v10169 = vadd.f32 %v9978, %v10168
  %v10170 = vpop.f32.mrf.mxu0
  %v10171 = vadd.f32 %v9980, %v10170
  %v10172 = vpop.f32.mrf.mxu0
  %v10173 = vadd.f32 %v9982, %v10172
  %10174 = vmatprep.mubr.bf16.mxu0 %v6180
  %10175 = vmatmul.mubr.bf16.gmra.mxu0 %v1915
  %v10176 = vpop.f32.mrf.mxu0
  %v10177 = vadd.f32 %v9986, %v10176
  %v10178 = vpop.f32.mrf.mxu0
  %v10179 = vadd.f32 %v9988, %v10178
  %v10180 = vpop.f32.mrf.mxu0
  %v10181 = vadd.f32 %v9990, %v10180
  %v10182 = vpop.f32.mrf.mxu0
  %v10183 = vadd.f32 %v9992, %v10182
  %10184 = vmatprep.mubr.bf16.mxu0 %v6183
  %10185 = vmatmul.mubr.bf16.gmra.mxu0 %v1929
  %v10186 = vpop.f32.mrf.mxu0
  %v10187 = vadd.f32 %v9996, %v10186
  %v10188 = vpop.f32.mrf.mxu0
  %v10189 = vadd.f32 %v9998, %v10188
  %v10190 = vpop.f32.mrf.mxu0
  %v10191 = vadd.f32 %v10000, %v10190
  %v10192 = vpop.f32.mrf.mxu0
  %v10193 = vadd.f32 %v10002, %v10192
  %10194 = vmatprep.mubr.bf16.mxu0 %v6186
  %10195 = vmatmul.mubr.bf16.gmra.mxu0 %v1943
  %v10196 = vpop.f32.mrf.mxu0
  %v10197 = vadd.f32 %v10006, %v10196
  %v10198 = vpop.f32.mrf.mxu0
  %v10199 = vadd.f32 %v10008, %v10198
  %v10200 = vpop.f32.mrf.mxu0
  %v10201 = vadd.f32 %v10010, %v10200
  %v10202 = vpop.f32.mrf.mxu0
  %v10203 = vadd.f32 %v10012, %v10202
  %10204 = vmatprep.mubr.bf16.mxu0 %v6189
  %10205 = vmatmul.mubr.bf16.gmra.mxu0 %v1957
  %v10206 = vpop.f32.mrf.mxu0
  %v10207 = vadd.f32 %v10016, %v10206
  %v10208 = vpop.f32.mrf.mxu0
  %v10209 = vadd.f32 %v10018, %v10208
  %v10210 = vpop.f32.mrf.mxu0
  %v10211 = vadd.f32 %v10020, %v10210
  %v10212 = vpop.f32.mrf.mxu0
  %v10213 = vadd.f32 %v10022, %v10212
  %10214 = vmatprep.mubr.bf16.mxu0 %v6192
  %10215 = vmatmul.mubr.bf16.gmra.mxu0 %v1971
  %v10216 = vpop.f32.mrf.mxu0
  %v10217 = vadd.f32 %v10026, %v10216
  %v10218 = vpop.f32.mrf.mxu0
  %v10219 = vadd.f32 %v10028, %v10218
  %v10220 = vpop.f32.mrf.mxu0
  %v10221 = vadd.f32 %v10030, %v10220
  %v10222 = vpop.f32.mrf.mxu0
  %v10223 = vadd.f32 %v10032, %v10222
  %10224 = vmatprep.mubr.bf16.mxu0 %v6195
  %10225 = vmatmul.mubr.bf16.gmra.mxu0 %v1985
  %v10226 = vpop.f32.mrf.mxu0
  %v10227 = vadd.f32 %v10036, %v10226
  %v10228 = vpop.f32.mrf.mxu0
  %v10229 = vadd.f32 %v10038, %v10228
  %v10230 = vpop.f32.mrf.mxu0
  %v10231 = vpop.f32.mrf.mxu0
  %10232 = vdwg.mxu0
  %10233 = vmatprep.subr.bf16.mxu0 0
  %10234 = vmatpush1.bf16.msra.mxu0 %v4670
  %10235 = vmatprep.subr.bf16.mxu0 0
  %10236 = vmatpush1.bf16.msra.mxu0 %v4663
  %10237 = vmatprep.subr.bf16.mxu0 0
  %10238 = vmatpush1.bf16.msra.mxu0 %v4656
  %10239 = vmatprep.subr.bf16.mxu0 0
  %10240 = vmatpush1.bf16.msra.mxu0 %v4649
  %10241 = vmatprep.subr.bf16.mxu0 0
  %10242 = vmatpush1.bf16.msra.mxu0 %v4642
  %10243 = vmatprep.subr.bf16.mxu0 0
  %10244 = vmatpush1.bf16.msra.mxu0 %v4635
  %10245 = vmatprep.subr.bf16.mxu0 0
  %10246 = vmatpush1.bf16.msra.mxu0 %v4628
  %10247 = vmatprep.subr.bf16.mxu0 0
  %10248 = vmatpush1.bf16.msra.mxu0 %v4621
  %10249 = vmatprep.subr.bf16.mxu0 0
  %10250 = vmatpush2.bf16.msra.mxu0 %v4726
  %10251 = vmatprep.subr.bf16.mxu0 0
  %10252 = vmatpush2.bf16.msra.mxu0 %v4719
  %10253 = vmatprep.subr.bf16.mxu0 0
  %10254 = vmatpush2.bf16.msra.mxu0 %v4712
  %10255 = vmatprep.subr.bf16.mxu0 0
  %10256 = vmatpush2.bf16.msra.mxu0 %v4705
  %10257 = vmatprep.subr.bf16.mxu0 0
  %10258 = vmatpush2.bf16.msra.mxu0 %v4698
  %10259 = vmatprep.subr.bf16.mxu0 0
  %10260 = vmatpush2.bf16.msra.mxu0 %v4691
  %10261 = vmatprep.subr.bf16.mxu0 0
  %10262 = vmatpush2.bf16.msra.mxu0 %v4684
  %10263 = vmatprep.subr.bf16.mxu0 0
  %10264 = vmatpush2.bf16.msra.mxu0 %v4677
  %10265 = vmatprep.mubr.bf16.mxu0 %v1764
  %10266 = vmatmul.mubr.bf16.gmra.mxu0 %v1763
  %v10267 = vpop.f32.mrf.mxu0
  %v10268 = vadd.f32 0.0, %v10267
  %v10269 = vpop.f32.mrf.mxu0
  %v10270 = vpop.f32.mrf.mxu0
  %v10271 = vadd.f32 0.0, %v10270
  %v10272 = vpop.f32.mrf.mxu0
  %10273 = vmatprep.mubr.bf16.mxu0 %v1778
  %10274 = vmatmul.mubr.bf16.gmra.mxu0 %v1777
  %v10275 = vpop.f32.mrf.mxu0
  %v10276 = vadd.f32 0.0, %v10275
  %v10277 = vpop.f32.mrf.mxu0
  %v10278 = vpop.f32.mrf.mxu0
  %v10279 = vadd.f32 0.0, %v10278
  %v10280 = vpop.f32.mrf.mxu0
  %10281 = vmatprep.mubr.bf16.mxu0 %v1792
  %10282 = vmatmul.mubr.bf16.gmra.mxu0 %v1791
  %v10283 = vpop.f32.mrf.mxu0
  %v10284 = vadd.f32 0.0, %v10283
  %v10285 = vpop.f32.mrf.mxu0
  %v10286 = vpop.f32.mrf.mxu0
  %v10287 = vadd.f32 0.0, %v10286
  %v10288 = vpop.f32.mrf.mxu0
  %10289 = vmatprep.mubr.bf16.mxu0 %v1806
  %10290 = vmatmul.mubr.bf16.gmra.mxu0 %v1805
  %v10291 = vpop.f32.mrf.mxu0
  %v10292 = vadd.f32 0.0, %v10291
  %v10293 = vpop.f32.mrf.mxu0
  %v10294 = vpop.f32.mrf.mxu0
  %v10295 = vadd.f32 0.0, %v10294
  %v10296 = vpop.f32.mrf.mxu0
  %10297 = vmatprep.mubr.bf16.mxu0 %v1820
  %10298 = vmatmul.mubr.bf16.gmra.mxu0 %v1819
  %v10299 = vpop.f32.mrf.mxu0
  %v10300 = vadd.f32 0.0, %v10299
  %v10301 = vpop.f32.mrf.mxu0
  %v10302 = vpop.f32.mrf.mxu0
  %v10303 = vadd.f32 0.0, %v10302
  %v10304 = vpop.f32.mrf.mxu0
  %10305 = vmatprep.mubr.bf16.mxu0 %v1834
  %10306 = vmatmul.mubr.bf16.gmra.mxu0 %v1833
  %v10307 = vpop.f32.mrf.mxu0
  %v10308 = vadd.f32 0.0, %v10307
  %v10309 = vpop.f32.mrf.mxu0
  %v10310 = vpop.f32.mrf.mxu0
  %v10311 = vadd.f32 0.0, %v10310
  %v10312 = vpop.f32.mrf.mxu0
  %10313 = vmatprep.mubr.bf16.mxu0 %v1848
  %10314 = vmatmul.mubr.bf16.gmra.mxu0 %v1847
  %v10315 = vpop.f32.mrf.mxu0
  %v10316 = vadd.f32 0.0, %v10315
  %v10317 = vpop.f32.mrf.mxu0
  %v10318 = vpop.f32.mrf.mxu0
  %v10319 = vadd.f32 0.0, %v10318
  %v10320 = vpop.f32.mrf.mxu0
  %10321 = vmatprep.mubr.bf16.mxu0 %v1862
  %10322 = vmatmul.mubr.bf16.gmra.mxu0 %v1861
  %v10323 = vpop.f32.mrf.mxu0
  %v10324 = vadd.f32 0.0, %v10323
  %v10325 = vpop.f32.mrf.mxu0
  %v10326 = vpop.f32.mrf.mxu0
  %v10327 = vadd.f32 0.0, %v10326
  %v10328 = vpop.f32.mrf.mxu0
  %10329 = vmatprep.mubr.bf16.mxu0 %v1876
  %10330 = vmatmul.mubr.bf16.gmra.mxu0 %v1875
  %v10331 = vpop.f32.mrf.mxu0
  %v10332 = vadd.f32 0.0, %v10331
  %v10333 = vpop.f32.mrf.mxu0
  %v10334 = vpop.f32.mrf.mxu0
  %v10335 = vadd.f32 0.0, %v10334
  %v10336 = vpop.f32.mrf.mxu0
  %10337 = vmatprep.mubr.bf16.mxu0 %v1890
  %10338 = vmatmul.mubr.bf16.gmra.mxu0 %v1889
  %v10339 = vpop.f32.mrf.mxu0
  %v10340 = vadd.f32 0.0, %v10339
  %v10341 = vpop.f32.mrf.mxu0
  %v10342 = vpop.f32.mrf.mxu0
  %v10343 = vadd.f32 0.0, %v10342
  %v10344 = vpop.f32.mrf.mxu0
  %10345 = vmatprep.mubr.bf16.mxu0 %v1904
  %10346 = vmatmul.mubr.bf16.gmra.mxu0 %v1903
  %v10347 = vpop.f32.mrf.mxu0
  %v10348 = vadd.f32 0.0, %v10347
  %v10349 = vpop.f32.mrf.mxu0
  %v10350 = vpop.f32.mrf.mxu0
  %v10351 = vadd.f32 0.0, %v10350
  %v10352 = vpop.f32.mrf.mxu0
  %10353 = vmatprep.mubr.bf16.mxu0 %v1918
  %10354 = vmatmul.mubr.bf16.gmra.mxu0 %v1917
  %v10355 = vpop.f32.mrf.mxu0
  %v10356 = vadd.f32 0.0, %v10355
  %v10357 = vpop.f32.mrf.mxu0
  %v10358 = vpop.f32.mrf.mxu0
  %v10359 = vadd.f32 0.0, %v10358
  %v10360 = vpop.f32.mrf.mxu0
  %10361 = vmatprep.mubr.bf16.mxu0 %v1932
  %10362 = vmatmul.mubr.bf16.gmra.mxu0 %v1931
  %v10363 = vpop.f32.mrf.mxu0
  %v10364 = vadd.f32 0.0, %v10363
  %v10365 = vpop.f32.mrf.mxu0
  %v10366 = vpop.f32.mrf.mxu0
  %v10367 = vadd.f32 0.0, %v10366
  %v10368 = vpop.f32.mrf.mxu0
  %10369 = vmatprep.mubr.bf16.mxu0 %v1946
  %10370 = vmatmul.mubr.bf16.gmra.mxu0 %v1945
  %v10371 = vpop.f32.mrf.mxu0
  %v10372 = vadd.f32 0.0, %v10371
  %v10373 = vpop.f32.mrf.mxu0
  %v10374 = vpop.f32.mrf.mxu0
  %v10375 = vadd.f32 0.0, %v10374
  %v10376 = vpop.f32.mrf.mxu0
  %10377 = vmatprep.mubr.bf16.mxu0 %v1960
  %10378 = vmatmul.mubr.bf16.gmra.mxu0 %v1959
  %v10379 = vpop.f32.mrf.mxu0
  %v10380 = vadd.f32 0.0, %v10379
  %v10381 = vpop.f32.mrf.mxu0
  %v10382 = vpop.f32.mrf.mxu0
  %v10383 = vadd.f32 0.0, %v10382
  %v10384 = vpop.f32.mrf.mxu0
  %10385 = vmatprep.mubr.bf16.mxu0 %v1974
  %10386 = vmatmul.mubr.bf16.gmra.mxu0 %v1973
  %v10387 = vpop.f32.mrf.mxu0
  %v10388 = vadd.f32 0.0, %v10387
  %v10389 = vpop.f32.mrf.mxu0
  %v10390 = vpop.f32.mrf.mxu0
  %v10391 = vpop.f32.mrf.mxu0
  %10392 = vdwg.mxu0
  %10393 = vmatprep.subr.bf16.mxu0 0
  %10394 = vmatpush1.bf16.msra.mxu0 %v4782
  %10395 = vmatprep.subr.bf16.mxu0 0
  %10396 = vmatpush1.bf16.msra.mxu0 %v4775
  %10397 = vmatprep.subr.bf16.mxu0 0
  %10398 = vmatpush1.bf16.msra.mxu0 %v4768
  %10399 = vmatprep.subr.bf16.mxu0 0
  %10400 = vmatpush1.bf16.msra.mxu0 %v4761
  %10401 = vmatprep.subr.bf16.mxu0 0
  %10402 = vmatpush1.bf16.msra.mxu0 %v4754
  %10403 = vmatprep.subr.bf16.mxu0 0
  %10404 = vmatpush1.bf16.msra.mxu0 %v4747
  %10405 = vmatprep.subr.bf16.mxu0 0
  %10406 = vmatpush1.bf16.msra.mxu0 %v4740
  %10407 = vmatprep.subr.bf16.mxu0 0
  %10408 = vmatpush1.bf16.msra.mxu0 %v4733
  %10409 = vmatprep.subr.bf16.mxu0 0
  %10410 = vmatpush2.bf16.msra.mxu0 %v4838
  %10411 = vmatprep.subr.bf16.mxu0 0
  %10412 = vmatpush2.bf16.msra.mxu0 %v4831
  %10413 = vmatprep.subr.bf16.mxu0 0
  %10414 = vmatpush2.bf16.msra.mxu0 %v4824
  %10415 = vmatprep.subr.bf16.mxu0 0
  %10416 = vmatpush2.bf16.msra.mxu0 %v4817
  %10417 = vmatprep.subr.bf16.mxu0 0
  %10418 = vmatpush2.bf16.msra.mxu0 %v4810
  %10419 = vmatprep.subr.bf16.mxu0 0
  %10420 = vmatpush2.bf16.msra.mxu0 %v4803
  %10421 = vmatprep.subr.bf16.mxu0 0
  %10422 = vmatpush2.bf16.msra.mxu0 %v4796
  %10423 = vmatprep.subr.bf16.mxu0 0
  %10424 = vmatpush2.bf16.msra.mxu0 %v4789
  %10425 = vmatprep.mubr.bf16.mxu0 %v1766
  %10426 = vmatmul.mubr.bf16.gmra.mxu0 %v1765
  %v10427 = vpop.f32.mrf.mxu0
  %v10428 = vadd.f32 %v10268, %v10427
  %v10429 = vpop.f32.mrf.mxu0
  %v10430 = vpop.f32.mrf.mxu0
  %v10431 = vadd.f32 %v10271, %v10430
  %v10432 = vpop.f32.mrf.mxu0
  %10433 = vmatprep.mubr.bf16.mxu0 %v1780
  %10434 = vmatmul.mubr.bf16.gmra.mxu0 %v1779
  %v10435 = vpop.f32.mrf.mxu0
  %v10436 = vadd.f32 %v10276, %v10435
  %v10437 = vpop.f32.mrf.mxu0
  %v10438 = vpop.f32.mrf.mxu0
  %v10439 = vadd.f32 %v10279, %v10438
  %v10440 = vpop.f32.mrf.mxu0
  %10441 = vmatprep.mubr.bf16.mxu0 %v1794
  %10442 = vmatmul.mubr.bf16.gmra.mxu0 %v1793
  %v10443 = vpop.f32.mrf.mxu0
  %v10444 = vadd.f32 %v10284, %v10443
  %v10445 = vpop.f32.mrf.mxu0
  %v10446 = vpop.f32.mrf.mxu0
  %v10447 = vadd.f32 %v10287, %v10446
  %v10448 = vpop.f32.mrf.mxu0
  %10449 = vmatprep.mubr.bf16.mxu0 %v1808
  %10450 = vmatmul.mubr.bf16.gmra.mxu0 %v1807
  %v10451 = vpop.f32.mrf.mxu0
  %v10452 = vadd.f32 %v10292, %v10451
  %v10453 = vpop.f32.mrf.mxu0
  %v10454 = vpop.f32.mrf.mxu0
  %v10455 = vadd.f32 %v10295, %v10454
  %v10456 = vpop.f32.mrf.mxu0
  %10457 = vmatprep.mubr.bf16.mxu0 %v1822
  %10458 = vmatmul.mubr.bf16.gmra.mxu0 %v1821
  %v10459 = vpop.f32.mrf.mxu0
  %v10460 = vadd.f32 %v10300, %v10459
  %v10461 = vpop.f32.mrf.mxu0
  %v10462 = vpop.f32.mrf.mxu0
  %v10463 = vadd.f32 %v10303, %v10462
  %v10464 = vpop.f32.mrf.mxu0
  %10465 = vmatprep.mubr.bf16.mxu0 %v1836
  %10466 = vmatmul.mubr.bf16.gmra.mxu0 %v1835
  %v10467 = vpop.f32.mrf.mxu0
  %v10468 = vadd.f32 %v10308, %v10467
  %v10469 = vpop.f32.mrf.mxu0
  %v10470 = vpop.f32.mrf.mxu0
  %v10471 = vadd.f32 %v10311, %v10470
  %v10472 = vpop.f32.mrf.mxu0
  %10473 = vmatprep.mubr.bf16.mxu0 %v1850
  %10474 = vmatmul.mubr.bf16.gmra.mxu0 %v1849
  %v10475 = vpop.f32.mrf.mxu0
  %v10476 = vadd.f32 %v10316, %v10475
  %v10477 = vpop.f32.mrf.mxu0
  %v10478 = vpop.f32.mrf.mxu0
  %v10479 = vadd.f32 %v10319, %v10478
  %v10480 = vpop.f32.mrf.mxu0
  %10481 = vmatprep.mubr.bf16.mxu0 %v1864
  %10482 = vmatmul.mubr.bf16.gmra.mxu0 %v1863
  %v10483 = vpop.f32.mrf.mxu0
  %v10484 = vadd.f32 %v10324, %v10483
  %v10485 = vpop.f32.mrf.mxu0
  %v10486 = vpop.f32.mrf.mxu0
  %v10487 = vadd.f32 %v10327, %v10486
  %v10488 = vpop.f32.mrf.mxu0
  %10489 = vmatprep.mubr.bf16.mxu0 %v1878
  %10490 = vmatmul.mubr.bf16.gmra.mxu0 %v1877
  %v10491 = vpop.f32.mrf.mxu0
  %v10492 = vadd.f32 %v10332, %v10491
  %v10493 = vpop.f32.mrf.mxu0
  %v10494 = vpop.f32.mrf.mxu0
  %v10495 = vadd.f32 %v10335, %v10494
  %v10496 = vpop.f32.mrf.mxu0
  %10497 = vmatprep.mubr.bf16.mxu0 %v1892
  %10498 = vmatmul.mubr.bf16.gmra.mxu0 %v1891
  %v10499 = vpop.f32.mrf.mxu0
  %v10500 = vadd.f32 %v10340, %v10499
  %v10501 = vpop.f32.mrf.mxu0
  %v10502 = vpop.f32.mrf.mxu0
  %v10503 = vadd.f32 %v10343, %v10502
  %v10504 = vpop.f32.mrf.mxu0
  %10505 = vmatprep.mubr.bf16.mxu0 %v1906
  %10506 = vmatmul.mubr.bf16.gmra.mxu0 %v1905
  %v10507 = vpop.f32.mrf.mxu0
  %v10508 = vadd.f32 %v10348, %v10507
  %v10509 = vpop.f32.mrf.mxu0
  %v10510 = vpop.f32.mrf.mxu0
  %v10511 = vadd.f32 %v10351, %v10510
  %v10512 = vpop.f32.mrf.mxu0
  %10513 = vmatprep.mubr.bf16.mxu0 %v1920
  %10514 = vmatmul.mubr.bf16.gmra.mxu0 %v1919
  %v10515 = vpop.f32.mrf.mxu0
  %v10516 = vadd.f32 %v10356, %v10515
  %v10517 = vpop.f32.mrf.mxu0
  %v10518 = vpop.f32.mrf.mxu0
  %v10519 = vadd.f32 %v10359, %v10518
  %v10520 = vpop.f32.mrf.mxu0
  %10521 = vmatprep.mubr.bf16.mxu0 %v1934
  %10522 = vmatmul.mubr.bf16.gmra.mxu0 %v1933
  %v10523 = vpop.f32.mrf.mxu0
  %v10524 = vadd.f32 %v10364, %v10523
  %v10525 = vpop.f32.mrf.mxu0
  %v10526 = vpop.f32.mrf.mxu0
  %v10527 = vadd.f32 %v10367, %v10526
  %v10528 = vpop.f32.mrf.mxu0
  %10529 = vmatprep.mubr.bf16.mxu0 %v1948
  %10530 = vmatmul.mubr.bf16.gmra.mxu0 %v1947
  %v10531 = vpop.f32.mrf.mxu0
  %v10532 = vadd.f32 %v10372, %v10531
  %v10533 = vpop.f32.mrf.mxu0
  %v10534 = vpop.f32.mrf.mxu0
  %v10535 = vadd.f32 %v10375, %v10534
  %v10536 = vpop.f32.mrf.mxu0
  %10537 = vmatprep.mubr.bf16.mxu0 %v1962
  %10538 = vmatmul.mubr.bf16.gmra.mxu0 %v1961
  %v10539 = vpop.f32.mrf.mxu0
  %v10540 = vadd.f32 %v10380, %v10539
  %v10541 = vpop.f32.mrf.mxu0
  %v10542 = vpop.f32.mrf.mxu0
  %v10543 = vadd.f32 %v10383, %v10542
  %v10544 = vpop.f32.mrf.mxu0
  %10545 = vmatprep.mubr.bf16.mxu0 %v1976
  %10546 = vmatmul.mubr.bf16.gmra.mxu0 %v1975
  %v10547 = vpop.f32.mrf.mxu0
  %v10548 = vadd.f32 %v10388, %v10547
  %v10549 = vpop.f32.mrf.mxu0
  %v10550 = vpop.f32.mrf.mxu0
  %v10551 = vpop.f32.mrf.mxu0
  %10552 = vdwg.mxu0
  %10553 = vmatprep.subr.bf16.mxu0 0
  %10554 = vmatpush1.bf16.msra.mxu0 %v4894
  %10555 = vmatprep.subr.bf16.mxu0 0
  %10556 = vmatpush1.bf16.msra.mxu0 %v4887
  %10557 = vmatprep.subr.bf16.mxu0 0
  %10558 = vmatpush1.bf16.msra.mxu0 %v4880
  %10559 = vmatprep.subr.bf16.mxu0 0
  %10560 = vmatpush1.bf16.msra.mxu0 %v4873
  %10561 = vmatprep.subr.bf16.mxu0 0
  %10562 = vmatpush1.bf16.msra.mxu0 %v4866
  %10563 = vmatprep.subr.bf16.mxu0 0
  %10564 = vmatpush1.bf16.msra.mxu0 %v4859
  %10565 = vmatprep.subr.bf16.mxu0 0
  %10566 = vmatpush1.bf16.msra.mxu0 %v4852
  %10567 = vmatprep.subr.bf16.mxu0 0
  %10568 = vmatpush1.bf16.msra.mxu0 %v4845
  %10569 = vmatprep.subr.bf16.mxu0 0
  %10570 = vmatpush2.bf16.msra.mxu0 %v4950
  %10571 = vmatprep.subr.bf16.mxu0 0
  %10572 = vmatpush2.bf16.msra.mxu0 %v4943
  %10573 = vmatprep.subr.bf16.mxu0 0
  %10574 = vmatpush2.bf16.msra.mxu0 %v4936
  %10575 = vmatprep.subr.bf16.mxu0 0
  %10576 = vmatpush2.bf16.msra.mxu0 %v4929
  %10577 = vmatprep.subr.bf16.mxu0 0
  %10578 = vmatpush2.bf16.msra.mxu0 %v4922
  %10579 = vmatprep.subr.bf16.mxu0 0
  %10580 = vmatpush2.bf16.msra.mxu0 %v4915
  %10581 = vmatprep.subr.bf16.mxu0 0
  %10582 = vmatpush2.bf16.msra.mxu0 %v4908
  %10583 = vmatprep.subr.bf16.mxu0 0
  %10584 = vmatpush2.bf16.msra.mxu0 %v4901
  %10585 = vmatprep.mubr.bf16.mxu0 %v1768
  %10586 = vmatmul.mubr.bf16.gmra.mxu0 %v1767
  %v10587 = vpop.f32.mrf.mxu0
  %v10588 = vadd.f32 %v10428, %v10587
  %v10589 = vpop.f32.mrf.mxu0
  %v10590 = vpop.f32.mrf.mxu0
  %v10591 = vadd.f32 %v10431, %v10590
  %v10592 = vpop.f32.mrf.mxu0
  %10593 = vmatprep.mubr.bf16.mxu0 %v1782
  %10594 = vmatmul.mubr.bf16.gmra.mxu0 %v1781
  %v10595 = vpop.f32.mrf.mxu0
  %v10596 = vadd.f32 %v10436, %v10595
  %v10597 = vpop.f32.mrf.mxu0
  %v10598 = vpop.f32.mrf.mxu0
  %v10599 = vadd.f32 %v10439, %v10598
  %v10600 = vpop.f32.mrf.mxu0
  %10601 = vmatprep.mubr.bf16.mxu0 %v1796
  %10602 = vmatmul.mubr.bf16.gmra.mxu0 %v1795
  %v10603 = vpop.f32.mrf.mxu0
  %v10604 = vadd.f32 %v10444, %v10603
  %v10605 = vpop.f32.mrf.mxu0
  %v10606 = vpop.f32.mrf.mxu0
  %v10607 = vadd.f32 %v10447, %v10606
  %v10608 = vpop.f32.mrf.mxu0
  %10609 = vmatprep.mubr.bf16.mxu0 %v1810
  %10610 = vmatmul.mubr.bf16.gmra.mxu0 %v1809
  %v10611 = vpop.f32.mrf.mxu0
  %v10612 = vadd.f32 %v10452, %v10611
  %v10613 = vpop.f32.mrf.mxu0
  %v10614 = vpop.f32.mrf.mxu0
  %v10615 = vadd.f32 %v10455, %v10614
  %v10616 = vpop.f32.mrf.mxu0
  %10617 = vmatprep.mubr.bf16.mxu0 %v1824
  %10618 = vmatmul.mubr.bf16.gmra.mxu0 %v1823
  %v10619 = vpop.f32.mrf.mxu0
  %v10620 = vadd.f32 %v10460, %v10619
  %v10621 = vpop.f32.mrf.mxu0
  %v10622 = vpop.f32.mrf.mxu0
  %v10623 = vadd.f32 %v10463, %v10622
  %v10624 = vpop.f32.mrf.mxu0
  %10625 = vmatprep.mubr.bf16.mxu0 %v1838
  %10626 = vmatmul.mubr.bf16.gmra.mxu0 %v1837
  %v10627 = vpop.f32.mrf.mxu0
  %v10628 = vadd.f32 %v10468, %v10627
  %v10629 = vpop.f32.mrf.mxu0
  %v10630 = vpop.f32.mrf.mxu0
  %v10631 = vadd.f32 %v10471, %v10630
  %v10632 = vpop.f32.mrf.mxu0
  %10633 = vmatprep.mubr.bf16.mxu0 %v1852
  %10634 = vmatmul.mubr.bf16.gmra.mxu0 %v1851
  %v10635 = vpop.f32.mrf.mxu0
  %v10636 = vadd.f32 %v10476, %v10635
  %v10637 = vpop.f32.mrf.mxu0
  %v10638 = vpop.f32.mrf.mxu0
  %v10639 = vadd.f32 %v10479, %v10638
  %v10640 = vpop.f32.mrf.mxu0
  %10641 = vmatprep.mubr.bf16.mxu0 %v1866
  %10642 = vmatmul.mubr.bf16.gmra.mxu0 %v1865
  %v10643 = vpop.f32.mrf.mxu0
  %v10644 = vadd.f32 %v10484, %v10643
  %v10645 = vpop.f32.mrf.mxu0
  %v10646 = vpop.f32.mrf.mxu0
  %v10647 = vadd.f32 %v10487, %v10646
  %v10648 = vpop.f32.mrf.mxu0
  %10649 = vmatprep.mubr.bf16.mxu0 %v1880
  %10650 = vmatmul.mubr.bf16.gmra.mxu0 %v1879
  %v10651 = vpop.f32.mrf.mxu0
  %v10652 = vadd.f32 %v10492, %v10651
  %v10653 = vpop.f32.mrf.mxu0
  %v10654 = vpop.f32.mrf.mxu0
  %v10655 = vadd.f32 %v10495, %v10654
  %v10656 = vpop.f32.mrf.mxu0
  %10657 = vmatprep.mubr.bf16.mxu0 %v1894
  %10658 = vmatmul.mubr.bf16.gmra.mxu0 %v1893
  %v10659 = vpop.f32.mrf.mxu0
  %v10660 = vadd.f32 %v10500, %v10659
  %v10661 = vpop.f32.mrf.mxu0
  %v10662 = vpop.f32.mrf.mxu0
  %v10663 = vadd.f32 %v10503, %v10662
  %v10664 = vpop.f32.mrf.mxu0
  %10665 = vmatprep.mubr.bf16.mxu0 %v1908
  %10666 = vmatmul.mubr.bf16.gmra.mxu0 %v1907
  %v10667 = vpop.f32.mrf.mxu0
  %v10668 = vadd.f32 %v10508, %v10667
  %v10669 = vpop.f32.mrf.mxu0
  %v10670 = vpop.f32.mrf.mxu0
  %v10671 = vadd.f32 %v10511, %v10670
  %v10672 = vpop.f32.mrf.mxu0
  %10673 = vmatprep.mubr.bf16.mxu0 %v1922
  %10674 = vmatmul.mubr.bf16.gmra.mxu0 %v1921
  %v10675 = vpop.f32.mrf.mxu0
  %v10676 = vadd.f32 %v10516, %v10675
  %v10677 = vpop.f32.mrf.mxu0
  %v10678 = vpop.f32.mrf.mxu0
  %v10679 = vadd.f32 %v10519, %v10678
  %v10680 = vpop.f32.mrf.mxu0
  %10681 = vmatprep.mubr.bf16.mxu0 %v1936
  %10682 = vmatmul.mubr.bf16.gmra.mxu0 %v1935
  %v10683 = vpop.f32.mrf.mxu0
  %v10684 = vadd.f32 %v10524, %v10683
  %v10685 = vpop.f32.mrf.mxu0
  %v10686 = vpop.f32.mrf.mxu0
  %v10687 = vadd.f32 %v10527, %v10686
  %v10688 = vpop.f32.mrf.mxu0
  %10689 = vmatprep.mubr.bf16.mxu0 %v1950
  %10690 = vmatmul.mubr.bf16.gmra.mxu0 %v1949
  %v10691 = vpop.f32.mrf.mxu0
  %v10692 = vadd.f32 %v10532, %v10691
  %v10693 = vpop.f32.mrf.mxu0
  %v10694 = vpop.f32.mrf.mxu0
  %v10695 = vadd.f32 %v10535, %v10694
  %v10696 = vpop.f32.mrf.mxu0
  %10697 = vmatprep.mubr.bf16.mxu0 %v1964
  %10698 = vmatmul.mubr.bf16.gmra.mxu0 %v1963
  %v10699 = vpop.f32.mrf.mxu0
  %v10700 = vadd.f32 %v10540, %v10699
  %v10701 = vpop.f32.mrf.mxu0
  %v10702 = vpop.f32.mrf.mxu0
  %v10703 = vadd.f32 %v10543, %v10702
  %v10704 = vpop.f32.mrf.mxu0
  %10705 = vmatprep.mubr.bf16.mxu0 %v1978
  %10706 = vmatmul.mubr.bf16.gmra.mxu0 %v1977
  %v10707 = vpop.f32.mrf.mxu0
  %v10708 = vadd.f32 %v10548, %v10707
  %v10709 = vpop.f32.mrf.mxu0
  %v10710 = vpop.f32.mrf.mxu0
  %v10711 = vpop.f32.mrf.mxu0
  %10712 = vdwg.mxu0
  %10713 = vmatprep.subr.bf16.mxu0 0
  %10714 = vmatpush1.bf16.msra.mxu0 %v5006
  %10715 = vmatprep.subr.bf16.mxu0 0
  %10716 = vmatpush1.bf16.msra.mxu0 %v4999
  %10717 = vmatprep.subr.bf16.mxu0 0
  %10718 = vmatpush1.bf16.msra.mxu0 %v4992
  %10719 = vmatprep.subr.bf16.mxu0 0
  %10720 = vmatpush1.bf16.msra.mxu0 %v4985
  %10721 = vmatprep.subr.bf16.mxu0 0
  %10722 = vmatpush1.bf16.msra.mxu0 %v4978
  %10723 = vmatprep.subr.bf16.mxu0 0
  %10724 = vmatpush1.bf16.msra.mxu0 %v4971
  %10725 = vmatprep.subr.bf16.mxu0 0
  %10726 = vmatpush1.bf16.msra.mxu0 %v4964
  %10727 = vmatprep.subr.bf16.mxu0 0
  %10728 = vmatpush1.bf16.msra.mxu0 %v4957
  %10729 = vmatprep.subr.bf16.mxu0 0
  %10730 = vmatpush2.bf16.msra.mxu0 %v5062
  %10731 = vmatprep.subr.bf16.mxu0 0
  %10732 = vmatpush2.bf16.msra.mxu0 %v5055
  %10733 = vmatprep.subr.bf16.mxu0 0
  %10734 = vmatpush2.bf16.msra.mxu0 %v5048
  %10735 = vmatprep.subr.bf16.mxu0 0
  %10736 = vmatpush2.bf16.msra.mxu0 %v5041
  %10737 = vmatprep.subr.bf16.mxu0 0
  %10738 = vmatpush2.bf16.msra.mxu0 %v5034
  %10739 = vmatprep.subr.bf16.mxu0 0
  %10740 = vmatpush2.bf16.msra.mxu0 %v5027
  %10741 = vmatprep.subr.bf16.mxu0 0
  %10742 = vmatpush2.bf16.msra.mxu0 %v5020
  %10743 = vmatprep.subr.bf16.mxu0 0
  %10744 = vmatpush2.bf16.msra.mxu0 %v5013
  %10745 = vmatprep.mubr.bf16.mxu0 %v1770
  %10746 = vmatmul.mubr.bf16.gmra.mxu0 %v1769
  %v10747 = vpop.f32.mrf.mxu0
  %v10748 = vadd.f32 %v10588, %v10747
  %v10749 = vpop.f32.mrf.mxu0
  %v10750 = vpop.f32.mrf.mxu0
  %v10751 = vadd.f32 %v10591, %v10750
  %v10752 = vpop.f32.mrf.mxu0
  %10753 = vmatprep.mubr.bf16.mxu0 %v1784
  %10754 = vmatmul.mubr.bf16.gmra.mxu0 %v1783
  %v10755 = vpop.f32.mrf.mxu0
  %v10756 = vadd.f32 %v10596, %v10755
  %v10757 = vpop.f32.mrf.mxu0
  %v10758 = vpop.f32.mrf.mxu0
  %v10759 = vadd.f32 %v10599, %v10758
  %v10760 = vpop.f32.mrf.mxu0
  %10761 = vmatprep.mubr.bf16.mxu0 %v1798
  %10762 = vmatmul.mubr.bf16.gmra.mxu0 %v1797
  %v10763 = vpop.f32.mrf.mxu0
  %v10764 = vadd.f32 %v10604, %v10763
  %v10765 = vpop.f32.mrf.mxu0
  %v10766 = vpop.f32.mrf.mxu0
  %v10767 = vadd.f32 %v10607, %v10766
  %v10768 = vpop.f32.mrf.mxu0
  %10769 = vmatprep.mubr.bf16.mxu0 %v1812
  %10770 = vmatmul.mubr.bf16.gmra.mxu0 %v1811
  %v10771 = vpop.f32.mrf.mxu0
  %v10772 = vadd.f32 %v10612, %v10771
  %v10773 = vpop.f32.mrf.mxu0
  %v10774 = vpop.f32.mrf.mxu0
  %v10775 = vadd.f32 %v10615, %v10774
  %v10776 = vpop.f32.mrf.mxu0
  %10777 = vmatprep.mubr.bf16.mxu0 %v1826
  %10778 = vmatmul.mubr.bf16.gmra.mxu0 %v1825
  %v10779 = vpop.f32.mrf.mxu0
  %v10780 = vadd.f32 %v10620, %v10779
  %v10781 = vpop.f32.mrf.mxu0
  %v10782 = vpop.f32.mrf.mxu0
  %v10783 = vadd.f32 %v10623, %v10782
  %v10784 = vpop.f32.mrf.mxu0
  %10785 = vmatprep.mubr.bf16.mxu0 %v1840
  %10786 = vmatmul.mubr.bf16.gmra.mxu0 %v1839
  %v10787 = vpop.f32.mrf.mxu0
  %v10788 = vadd.f32 %v10628, %v10787
  %v10789 = vpop.f32.mrf.mxu0
  %v10790 = vpop.f32.mrf.mxu0
  %v10791 = vadd.f32 %v10631, %v10790
  %v10792 = vpop.f32.mrf.mxu0
  %10793 = vmatprep.mubr.bf16.mxu0 %v1854
  %10794 = vmatmul.mubr.bf16.gmra.mxu0 %v1853
  %v10795 = vpop.f32.mrf.mxu0
  %v10796 = vadd.f32 %v10636, %v10795
  %v10797 = vpop.f32.mrf.mxu0
  %v10798 = vpop.f32.mrf.mxu0
  %v10799 = vadd.f32 %v10639, %v10798
  %v10800 = vpop.f32.mrf.mxu0
  %10801 = vmatprep.mubr.bf16.mxu0 %v1868
  %10802 = vmatmul.mubr.bf16.gmra.mxu0 %v1867
  %v10803 = vpop.f32.mrf.mxu0
  %v10804 = vadd.f32 %v10644, %v10803
  %v10805 = vpop.f32.mrf.mxu0
  %v10806 = vpop.f32.mrf.mxu0
  %v10807 = vadd.f32 %v10647, %v10806
  %v10808 = vpop.f32.mrf.mxu0
  %10809 = vmatprep.mubr.bf16.mxu0 %v1882
  %10810 = vmatmul.mubr.bf16.gmra.mxu0 %v1881
  %v10811 = vpop.f32.mrf.mxu0
  %v10812 = vadd.f32 %v10652, %v10811
  %v10813 = vpop.f32.mrf.mxu0
  %v10814 = vpop.f32.mrf.mxu0
  %v10815 = vadd.f32 %v10655, %v10814
  %v10816 = vpop.f32.mrf.mxu0
  %10817 = vmatprep.mubr.bf16.mxu0 %v1896
  %10818 = vmatmul.mubr.bf16.gmra.mxu0 %v1895
  %v10819 = vpop.f32.mrf.mxu0
  %v10820 = vadd.f32 %v10660, %v10819
  %v10821 = vpop.f32.mrf.mxu0
  %v10822 = vpop.f32.mrf.mxu0
  %v10823 = vadd.f32 %v10663, %v10822
  %v10824 = vpop.f32.mrf.mxu0
  %10825 = vmatprep.mubr.bf16.mxu0 %v1910
  %10826 = vmatmul.mubr.bf16.gmra.mxu0 %v1909
  %v10827 = vpop.f32.mrf.mxu0
  %v10828 = vadd.f32 %v10668, %v10827
  %v10829 = vpop.f32.mrf.mxu0
  %v10830 = vpop.f32.mrf.mxu0
  %v10831 = vadd.f32 %v10671, %v10830
  %v10832 = vpop.f32.mrf.mxu0
  %10833 = vmatprep.mubr.bf16.mxu0 %v1924
  %10834 = vmatmul.mubr.bf16.gmra.mxu0 %v1923
  %v10835 = vpop.f32.mrf.mxu0
  %v10836 = vadd.f32 %v10676, %v10835
  %v10837 = vpop.f32.mrf.mxu0
  %v10838 = vpop.f32.mrf.mxu0
  %v10839 = vadd.f32 %v10679, %v10838
  %v10840 = vpop.f32.mrf.mxu0
  %10841 = vmatprep.mubr.bf16.mxu0 %v1938
  %10842 = vmatmul.mubr.bf16.gmra.mxu0 %v1937
  %v10843 = vpop.f32.mrf.mxu0
  %v10844 = vadd.f32 %v10684, %v10843
  %v10845 = vpop.f32.mrf.mxu0
  %v10846 = vpop.f32.mrf.mxu0
  %v10847 = vadd.f32 %v10687, %v10846
  %v10848 = vpop.f32.mrf.mxu0
  %10849 = vmatprep.mubr.bf16.mxu0 %v1952
  %10850 = vmatmul.mubr.bf16.gmra.mxu0 %v1951
  %v10851 = vpop.f32.mrf.mxu0
  %v10852 = vadd.f32 %v10692, %v10851
  %v10853 = vpop.f32.mrf.mxu0
  %v10854 = vpop.f32.mrf.mxu0
  %v10855 = vadd.f32 %v10695, %v10854
  %v10856 = vpop.f32.mrf.mxu0
  %10857 = vmatprep.mubr.bf16.mxu0 %v1966
  %10858 = vmatmul.mubr.bf16.gmra.mxu0 %v1965
  %v10859 = vpop.f32.mrf.mxu0
  %v10860 = vadd.f32 %v10700, %v10859
  %v10861 = vpop.f32.mrf.mxu0
  %v10862 = vpop.f32.mrf.mxu0
  %v10863 = vadd.f32 %v10703, %v10862
  %v10864 = vpop.f32.mrf.mxu0
  %10865 = vmatprep.mubr.bf16.mxu0 %v1980
  %10866 = vmatmul.mubr.bf16.gmra.mxu0 %v1979
  %v10867 = vpop.f32.mrf.mxu0
  %v10868 = vadd.f32 %v10708, %v10867
  %v10869 = vpop.f32.mrf.mxu0
  %v10870 = vpop.f32.mrf.mxu0
  %v10871 = vpop.f32.mrf.mxu0
  %10872 = vdwg.mxu0
  %10873 = vmatprep.subr.bf16.mxu0 0
  %10874 = vmatpush1.bf16.msra.mxu0 %v5118
  %10875 = vmatprep.subr.bf16.mxu0 0
  %10876 = vmatpush1.bf16.msra.mxu0 %v5111
  %10877 = vmatprep.subr.bf16.mxu0 0
  %10878 = vmatpush1.bf16.msra.mxu0 %v5104
  %10879 = vmatprep.subr.bf16.mxu0 0
  %10880 = vmatpush1.bf16.msra.mxu0 %v5097
  %10881 = vmatprep.subr.bf16.mxu0 0
  %10882 = vmatpush1.bf16.msra.mxu0 %v5090
  %10883 = vmatprep.subr.bf16.mxu0 0
  %10884 = vmatpush1.bf16.msra.mxu0 %v5083
  %10885 = vmatprep.subr.bf16.mxu0 0
  %10886 = vmatpush1.bf16.msra.mxu0 %v5076
  %10887 = vmatprep.subr.bf16.mxu0 0
  %10888 = vmatpush1.bf16.msra.mxu0 %v5069
  %10889 = vmatprep.subr.bf16.mxu0 0
  %10890 = vmatpush2.bf16.msra.mxu0 %v5174
  %10891 = vmatprep.subr.bf16.mxu0 0
  %10892 = vmatpush2.bf16.msra.mxu0 %v5167
  %10893 = vmatprep.subr.bf16.mxu0 0
  %10894 = vmatpush2.bf16.msra.mxu0 %v5160
  %10895 = vmatprep.subr.bf16.mxu0 0
  %10896 = vmatpush2.bf16.msra.mxu0 %v5153
  %10897 = vmatprep.subr.bf16.mxu0 0
  %10898 = vmatpush2.bf16.msra.mxu0 %v5146
  %10899 = vmatprep.subr.bf16.mxu0 0
  %10900 = vmatpush2.bf16.msra.mxu0 %v5139
  %10901 = vmatprep.subr.bf16.mxu0 0
  %10902 = vmatpush2.bf16.msra.mxu0 %v5132
  %10903 = vmatprep.subr.bf16.mxu0 0
  %10904 = vmatpush2.bf16.msra.mxu0 %v5125
  %10905 = vmatprep.mubr.bf16.mxu0 %v1772
  %10906 = vmatmul.mubr.bf16.gmra.mxu0 %v1771
  %v10907 = vpop.f32.mrf.mxu0
  %v10908 = vadd.f32 %v10748, %v10907
  %v10909 = vpop.f32.mrf.mxu0
  %v10910 = vpop.f32.mrf.mxu0
  %v10911 = vadd.f32 %v10751, %v10910
  %v10912 = vpop.f32.mrf.mxu0
  %10913 = vmatprep.mubr.bf16.mxu0 %v1786
  %10914 = vmatmul.mubr.bf16.gmra.mxu0 %v1785
  %v10915 = vpop.f32.mrf.mxu0
  %v10916 = vadd.f32 %v10756, %v10915
  %v10917 = vpop.f32.mrf.mxu0
  %v10918 = vpop.f32.mrf.mxu0
  %v10919 = vadd.f32 %v10759, %v10918
  %v10920 = vpop.f32.mrf.mxu0
  %10921 = vmatprep.mubr.bf16.mxu0 %v1800
  %10922 = vmatmul.mubr.bf16.gmra.mxu0 %v1799
  %v10923 = vpop.f32.mrf.mxu0
  %v10924 = vadd.f32 %v10764, %v10923
  %v10925 = vpop.f32.mrf.mxu0
  %v10926 = vpop.f32.mrf.mxu0
  %v10927 = vadd.f32 %v10767, %v10926
  %v10928 = vpop.f32.mrf.mxu0
  %10929 = vmatprep.mubr.bf16.mxu0 %v1814
  %10930 = vmatmul.mubr.bf16.gmra.mxu0 %v1813
  %v10931 = vpop.f32.mrf.mxu0
  %v10932 = vadd.f32 %v10772, %v10931
  %v10933 = vpop.f32.mrf.mxu0
  %v10934 = vpop.f32.mrf.mxu0
  %v10935 = vadd.f32 %v10775, %v10934
  %v10936 = vpop.f32.mrf.mxu0
  %10937 = vmatprep.mubr.bf16.mxu0 %v1828
  %10938 = vmatmul.mubr.bf16.gmra.mxu0 %v1827
  %v10939 = vpop.f32.mrf.mxu0
  %v10940 = vadd.f32 %v10780, %v10939
  %v10941 = vpop.f32.mrf.mxu0
  %v10942 = vpop.f32.mrf.mxu0
  %v10943 = vadd.f32 %v10783, %v10942
  %v10944 = vpop.f32.mrf.mxu0
  %10945 = vmatprep.mubr.bf16.mxu0 %v1842
  %10946 = vmatmul.mubr.bf16.gmra.mxu0 %v1841
  %v10947 = vpop.f32.mrf.mxu0
  %v10948 = vadd.f32 %v10788, %v10947
  %v10949 = vpop.f32.mrf.mxu0
  %v10950 = vpop.f32.mrf.mxu0
  %v10951 = vadd.f32 %v10791, %v10950
  %v10952 = vpop.f32.mrf.mxu0
  %10953 = vmatprep.mubr.bf16.mxu0 %v1856
  %10954 = vmatmul.mubr.bf16.gmra.mxu0 %v1855
  %v10955 = vpop.f32.mrf.mxu0
  %v10956 = vadd.f32 %v10796, %v10955
  %v10957 = vpop.f32.mrf.mxu0
  %v10958 = vpop.f32.mrf.mxu0
  %v10959 = vadd.f32 %v10799, %v10958
  %v10960 = vpop.f32.mrf.mxu0
  %10961 = vmatprep.mubr.bf16.mxu0 %v1870
  %10962 = vmatmul.mubr.bf16.gmra.mxu0 %v1869
  %v10963 = vpop.f32.mrf.mxu0
  %v10964 = vadd.f32 %v10804, %v10963
  %v10965 = vpop.f32.mrf.mxu0
  %v10966 = vpop.f32.mrf.mxu0
  %v10967 = vadd.f32 %v10807, %v10966
  %v10968 = vpop.f32.mrf.mxu0
  %10969 = vmatprep.mubr.bf16.mxu0 %v1884
  %10970 = vmatmul.mubr.bf16.gmra.mxu0 %v1883
  %v10971 = vpop.f32.mrf.mxu0
  %v10972 = vadd.f32 %v10812, %v10971
  %v10973 = vpop.f32.mrf.mxu0
  %v10974 = vpop.f32.mrf.mxu0
  %v10975 = vadd.f32 %v10815, %v10974
  %v10976 = vpop.f32.mrf.mxu0
  %10977 = vmatprep.mubr.bf16.mxu0 %v1898
  %10978 = vmatmul.mubr.bf16.gmra.mxu0 %v1897
  %v10979 = vpop.f32.mrf.mxu0
  %v10980 = vadd.f32 %v10820, %v10979
  %v10981 = vpop.f32.mrf.mxu0
  %v10982 = vpop.f32.mrf.mxu0
  %v10983 = vadd.f32 %v10823, %v10982
  %v10984 = vpop.f32.mrf.mxu0
  %10985 = vmatprep.mubr.bf16.mxu0 %v1912
  %10986 = vmatmul.mubr.bf16.gmra.mxu0 %v1911
  %v10987 = vpop.f32.mrf.mxu0
  %v10988 = vadd.f32 %v10828, %v10987
  %v10989 = vpop.f32.mrf.mxu0
  %v10990 = vpop.f32.mrf.mxu0
  %v10991 = vadd.f32 %v10831, %v10990
  %v10992 = vpop.f32.mrf.mxu0
  %10993 = vmatprep.mubr.bf16.mxu0 %v1926
  %10994 = vmatmul.mubr.bf16.gmra.mxu0 %v1925
  %v10995 = vpop.f32.mrf.mxu0
  %v10996 = vadd.f32 %v10836, %v10995
  %v10997 = vpop.f32.mrf.mxu0
  %v10998 = vpop.f32.mrf.mxu0
  %v10999 = vadd.f32 %v10839, %v10998
  %v11000 = vpop.f32.mrf.mxu0
  %11001 = vmatprep.mubr.bf16.mxu0 %v1940
  %11002 = vmatmul.mubr.bf16.gmra.mxu0 %v1939
  %v11003 = vpop.f32.mrf.mxu0
  %v11004 = vadd.f32 %v10844, %v11003
  %v11005 = vpop.f32.mrf.mxu0
  %v11006 = vpop.f32.mrf.mxu0
  %v11007 = vadd.f32 %v10847, %v11006
  %v11008 = vpop.f32.mrf.mxu0
  %11009 = vmatprep.mubr.bf16.mxu0 %v1954
  %11010 = vmatmul.mubr.bf16.gmra.mxu0 %v1953
  %v11011 = vpop.f32.mrf.mxu0
  %v11012 = vadd.f32 %v10852, %v11011
  %v11013 = vpop.f32.mrf.mxu0
  %v11014 = vpop.f32.mrf.mxu0
  %v11015 = vadd.f32 %v10855, %v11014
  %v11016 = vpop.f32.mrf.mxu0
  %11017 = vmatprep.mubr.bf16.mxu0 %v1968
  %11018 = vmatmul.mubr.bf16.gmra.mxu0 %v1967
  %v11019 = vpop.f32.mrf.mxu0
  %v11020 = vadd.f32 %v10860, %v11019
  %v11021 = vpop.f32.mrf.mxu0
  %v11022 = vpop.f32.mrf.mxu0
  %v11023 = vadd.f32 %v10863, %v11022
  %v11024 = vpop.f32.mrf.mxu0
  %11025 = vmatprep.mubr.bf16.mxu0 %v1982
  %11026 = vmatmul.mubr.bf16.gmra.mxu0 %v1981
  %v11027 = vpop.f32.mrf.mxu0
  %v11028 = vadd.f32 %v10868, %v11027
  %v11029 = vpop.f32.mrf.mxu0
  %v11030 = vpop.f32.mrf.mxu0
  %v11031 = vpop.f32.mrf.mxu0
  %11032 = vdwg.mxu0
  %11033 = vmatprep.subr.bf16.mxu0 0
  %11034 = vmatpush1.bf16.msra.mxu0 %v5230
  %11035 = vmatprep.subr.bf16.mxu0 0
  %11036 = vmatpush1.bf16.msra.mxu0 %v5223
  %11037 = vmatprep.subr.bf16.mxu0 0
  %11038 = vmatpush1.bf16.msra.mxu0 %v5216
  %11039 = vmatprep.subr.bf16.mxu0 0
  %11040 = vmatpush1.bf16.msra.mxu0 %v5209
  %11041 = vmatprep.subr.bf16.mxu0 0
  %11042 = vmatpush1.bf16.msra.mxu0 %v5202
  %11043 = vmatprep.subr.bf16.mxu0 0
  %11044 = vmatpush1.bf16.msra.mxu0 %v5195
  %11045 = vmatprep.subr.bf16.mxu0 0
  %11046 = vmatpush1.bf16.msra.mxu0 %v5188
  %11047 = vmatprep.subr.bf16.mxu0 0
  %11048 = vmatpush1.bf16.msra.mxu0 %v5181
  %11049 = vmatprep.subr.bf16.mxu0 0
  %11050 = vmatpush2.bf16.msra.mxu0 %v5286
  %11051 = vmatprep.subr.bf16.mxu0 0
  %11052 = vmatpush2.bf16.msra.mxu0 %v5279
  %11053 = vmatprep.subr.bf16.mxu0 0
  %11054 = vmatpush2.bf16.msra.mxu0 %v5272
  %11055 = vmatprep.subr.bf16.mxu0 0
  %11056 = vmatpush2.bf16.msra.mxu0 %v5265
  %11057 = vmatprep.subr.bf16.mxu0 0
  %11058 = vmatpush2.bf16.msra.mxu0 %v5258
  %11059 = vmatprep.subr.bf16.mxu0 0
  %11060 = vmatpush2.bf16.msra.mxu0 %v5251
  %11061 = vmatprep.subr.bf16.mxu0 0
  %11062 = vmatpush2.bf16.msra.mxu0 %v5244
  %11063 = vmatprep.subr.bf16.mxu0 0
  %11064 = vmatpush2.bf16.msra.mxu0 %v5237
  %11065 = vmatprep.mubr.bf16.mxu0 %v1774
  %11066 = vmatmul.mubr.bf16.gmra.mxu0 %v1773
  %v11067 = vpop.f32.mrf.mxu0
  %v11068 = vadd.f32 %v10908, %v11067
  %v11069 = vpop.f32.mrf.mxu0
  %v11070 = vpop.f32.mrf.mxu0
  %v11071 = vadd.f32 %v10911, %v11070
  %v11072 = vpop.f32.mrf.mxu0
  %11073 = vmatprep.mubr.bf16.mxu0 %v1788
  %11074 = vmatmul.mubr.bf16.gmra.mxu0 %v1787
  %v11075 = vpop.f32.mrf.mxu0
  %v11076 = vadd.f32 %v10916, %v11075
  %v11077 = vpop.f32.mrf.mxu0
  %v11078 = vpop.f32.mrf.mxu0
  %v11079 = vadd.f32 %v10919, %v11078
  %v11080 = vpop.f32.mrf.mxu0
  %11081 = vmatprep.mubr.bf16.mxu0 %v1802
  %11082 = vmatmul.mubr.bf16.gmra.mxu0 %v1801
  %v11083 = vpop.f32.mrf.mxu0
  %v11084 = vadd.f32 %v10924, %v11083
  %v11085 = vpop.f32.mrf.mxu0
  %v11086 = vpop.f32.mrf.mxu0
  %v11087 = vadd.f32 %v10927, %v11086
  %v11088 = vpop.f32.mrf.mxu0
  %11089 = vmatprep.mubr.bf16.mxu0 %v1816
  %11090 = vmatmul.mubr.bf16.gmra.mxu0 %v1815
  %v11091 = vpop.f32.mrf.mxu0
  %v11092 = vadd.f32 %v10932, %v11091
  %v11093 = vpop.f32.mrf.mxu0
  %v11094 = vpop.f32.mrf.mxu0
  %v11095 = vadd.f32 %v10935, %v11094
  %v11096 = vpop.f32.mrf.mxu0
  %11097 = vmatprep.mubr.bf16.mxu0 %v1830
  %11098 = vmatmul.mubr.bf16.gmra.mxu0 %v1829
  %v11099 = vpop.f32.mrf.mxu0
  %v11100 = vadd.f32 %v10940, %v11099
  %v11101 = vpop.f32.mrf.mxu0
  %v11102 = vpop.f32.mrf.mxu0
  %v11103 = vadd.f32 %v10943, %v11102
  %v11104 = vpop.f32.mrf.mxu0
  %11105 = vmatprep.mubr.bf16.mxu0 %v1844
  %11106 = vmatmul.mubr.bf16.gmra.mxu0 %v1843
  %v11107 = vpop.f32.mrf.mxu0
  %v11108 = vadd.f32 %v10948, %v11107
  %v11109 = vpop.f32.mrf.mxu0
  %v11110 = vpop.f32.mrf.mxu0
  %v11111 = vadd.f32 %v10951, %v11110
  %v11112 = vpop.f32.mrf.mxu0
  %11113 = vmatprep.mubr.bf16.mxu0 %v1858
  %11114 = vmatmul.mubr.bf16.gmra.mxu0 %v1857
  %v11115 = vpop.f32.mrf.mxu0
  %v11116 = vadd.f32 %v10956, %v11115
  %v11117 = vpop.f32.mrf.mxu0
  %v11118 = vpop.f32.mrf.mxu0
  %v11119 = vadd.f32 %v10959, %v11118
  %v11120 = vpop.f32.mrf.mxu0
  %11121 = vmatprep.mubr.bf16.mxu0 %v1872
  %11122 = vmatmul.mubr.bf16.gmra.mxu0 %v1871
  %v11123 = vpop.f32.mrf.mxu0
  %v11124 = vadd.f32 %v10964, %v11123
  %v11125 = vpop.f32.mrf.mxu0
  %v11126 = vpop.f32.mrf.mxu0
  %v11127 = vadd.f32 %v10967, %v11126
  %v11128 = vpop.f32.mrf.mxu0
  %11129 = vmatprep.mubr.bf16.mxu0 %v1886
  %11130 = vmatmul.mubr.bf16.gmra.mxu0 %v1885
  %v11131 = vpop.f32.mrf.mxu0
  %v11132 = vadd.f32 %v10972, %v11131
  %v11133 = vpop.f32.mrf.mxu0
  %v11134 = vpop.f32.mrf.mxu0
  %v11135 = vadd.f32 %v10975, %v11134
  %v11136 = vpop.f32.mrf.mxu0
  %11137 = vmatprep.mubr.bf16.mxu0 %v1900
  %11138 = vmatmul.mubr.bf16.gmra.mxu0 %v1899
  %v11139 = vpop.f32.mrf.mxu0
  %v11140 = vadd.f32 %v10980, %v11139
  %v11141 = vpop.f32.mrf.mxu0
  %v11142 = vpop.f32.mrf.mxu0
  %v11143 = vadd.f32 %v10983, %v11142
  %v11144 = vpop.f32.mrf.mxu0
  %11145 = vmatprep.mubr.bf16.mxu0 %v1914
  %11146 = vmatmul.mubr.bf16.gmra.mxu0 %v1913
  %v11147 = vpop.f32.mrf.mxu0
  %v11148 = vadd.f32 %v10988, %v11147
  %v11149 = vpop.f32.mrf.mxu0
  %v11150 = vpop.f32.mrf.mxu0
  %v11151 = vadd.f32 %v10991, %v11150
  %v11152 = vpop.f32.mrf.mxu0
  %11153 = vmatprep.mubr.bf16.mxu0 %v1928
  %11154 = vmatmul.mubr.bf16.gmra.mxu0 %v1927
  %v11155 = vpop.f32.mrf.mxu0
  %v11156 = vadd.f32 %v10996, %v11155
  %v11157 = vpop.f32.mrf.mxu0
  %v11158 = vpop.f32.mrf.mxu0
  %v11159 = vadd.f32 %v10999, %v11158
  %v11160 = vpop.f32.mrf.mxu0
  %11161 = vmatprep.mubr.bf16.mxu0 %v1942
  %11162 = vmatmul.mubr.bf16.gmra.mxu0 %v1941
  %v11163 = vpop.f32.mrf.mxu0
  %v11164 = vadd.f32 %v11004, %v11163
  %v11165 = vpop.f32.mrf.mxu0
  %v11166 = vpop.f32.mrf.mxu0
  %v11167 = vadd.f32 %v11007, %v11166
  %v11168 = vpop.f32.mrf.mxu0
  %11169 = vmatprep.mubr.bf16.mxu0 %v1956
  %11170 = vmatmul.mubr.bf16.gmra.mxu0 %v1955
  %v11171 = vpop.f32.mrf.mxu0
  %v11172 = vadd.f32 %v11012, %v11171
  %v11173 = vpop.f32.mrf.mxu0
  %v11174 = vpop.f32.mrf.mxu0
  %v11175 = vadd.f32 %v11015, %v11174
  %v11176 = vpop.f32.mrf.mxu0
  %11177 = vmatprep.mubr.bf16.mxu0 %v1970
  %11178 = vmatmul.mubr.bf16.gmra.mxu0 %v1969
  %v11179 = vpop.f32.mrf.mxu0
  %v11180 = vadd.f32 %v11020, %v11179
  %v11181 = vpop.f32.mrf.mxu0
  %v11182 = vpop.f32.mrf.mxu0
  %v11183 = vadd.f32 %v11023, %v11182
  %v11184 = vpop.f32.mrf.mxu0
  %11185 = vmatprep.mubr.bf16.mxu0 %v1984
  %11186 = vmatmul.mubr.bf16.gmra.mxu0 %v1983
  %v11187 = vpop.f32.mrf.mxu0
  %v11188 = vadd.f32 %v11028, %v11187
  %v11189 = vpop.f32.mrf.mxu0
  %v11190 = vpop.f32.mrf.mxu0
  %v11191 = vpop.f32.mrf.mxu0
  %11192 = vdwg.mxu0
  %11193 = vmatprep.subr.bf16.mxu0 0
  %11194 = vmatpush1.bf16.msra.mxu0 %v5342
  %11195 = vmatprep.subr.bf16.mxu0 0
  %11196 = vmatpush1.bf16.msra.mxu0 %v5335
  %11197 = vmatprep.subr.bf16.mxu0 0
  %11198 = vmatpush1.bf16.msra.mxu0 %v5328
  %11199 = vmatprep.subr.bf16.mxu0 0
  %11200 = vmatpush1.bf16.msra.mxu0 %v5321
  %11201 = vmatprep.subr.bf16.mxu0 0
  %11202 = vmatpush1.bf16.msra.mxu0 %v5314
  %11203 = vmatprep.subr.bf16.mxu0 0
  %11204 = vmatpush1.bf16.msra.mxu0 %v5307
  %11205 = vmatprep.subr.bf16.mxu0 0
  %11206 = vmatpush1.bf16.msra.mxu0 %v5300
  %11207 = vmatprep.subr.bf16.mxu0 0
  %11208 = vmatpush1.bf16.msra.mxu0 %v5293
  %11209 = vmatprep.subr.bf16.mxu0 0
  %11210 = vmatpush2.bf16.msra.mxu0 0
  %11211 = vmatprep.subr.bf16.mxu0 0
  %11212 = vmatpush2.bf16.msra.mxu0 0
  %11213 = vmatprep.subr.bf16.mxu0 0
  %11214 = vmatpush2.bf16.msra.mxu0 %v6220
  %11215 = vmatprep.subr.bf16.mxu0 0
  %11216 = vmatpush2.bf16.msra.mxu0 %v5377
  %11217 = vmatprep.subr.bf16.mxu0 0
  %11218 = vmatpush2.bf16.msra.mxu0 %v5370
  %11219 = vmatprep.subr.bf16.mxu0 0
  %11220 = vmatpush2.bf16.msra.mxu0 %v5363
  %11221 = vmatprep.subr.bf16.mxu0 0
  %11222 = vmatpush2.bf16.msra.mxu0 %v5356
  %11223 = vmatprep.subr.bf16.mxu0 0
  %11224 = vmatpush2.bf16.msra.mxu0 %v5349
  %11225 = vmatprep.mubr.bf16.mxu0 %v6150
  %11226 = vmatmul.mubr.bf16.gmra.mxu0 %v1775
  %v11227 = vpop.f32.mrf.mxu0
  %v11228 = vadd.f32 %v11068, %v11227
  %v11229 = vpop.f32.mrf.mxu0
  %v11230 = vpop.f32.mrf.mxu0
  %v11231 = vadd.f32 %v11071, %v11230
  %v11232 = vpop.f32.mrf.mxu0
  %11233 = vmatprep.mubr.bf16.mxu0 %v6153
  %11234 = vmatmul.mubr.bf16.gmra.mxu0 %v1789
  %v11235 = vpop.f32.mrf.mxu0
  %v11236 = vadd.f32 %v11076, %v11235
  %v11237 = vpop.f32.mrf.mxu0
  %v11238 = vpop.f32.mrf.mxu0
  %v11239 = vadd.f32 %v11079, %v11238
  %v11240 = vpop.f32.mrf.mxu0
  %11241 = vmatprep.mubr.bf16.mxu0 %v6156
  %11242 = vmatmul.mubr.bf16.gmra.mxu0 %v1803
  %v11243 = vpop.f32.mrf.mxu0
  %v11244 = vadd.f32 %v11084, %v11243
  %v11245 = vpop.f32.mrf.mxu0
  %v11246 = vpop.f32.mrf.mxu0
  %v11247 = vadd.f32 %v11087, %v11246
  %v11248 = vpop.f32.mrf.mxu0
  %11249 = vmatprep.mubr.bf16.mxu0 %v6159
  %11250 = vmatmul.mubr.bf16.gmra.mxu0 %v1817
  %v11251 = vpop.f32.mrf.mxu0
  %v11252 = vadd.f32 %v11092, %v11251
  %v11253 = vpop.f32.mrf.mxu0
  %v11254 = vpop.f32.mrf.mxu0
  %v11255 = vadd.f32 %v11095, %v11254
  %v11256 = vpop.f32.mrf.mxu0
  %11257 = vmatprep.mubr.bf16.mxu0 %v6162
  %11258 = vmatmul.mubr.bf16.gmra.mxu0 %v1831
  %v11259 = vpop.f32.mrf.mxu0
  %v11260 = vadd.f32 %v11100, %v11259
  %v11261 = vpop.f32.mrf.mxu0
  %v11262 = vpop.f32.mrf.mxu0
  %v11263 = vadd.f32 %v11103, %v11262
  %v11264 = vpop.f32.mrf.mxu0
  %11265 = vmatprep.mubr.bf16.mxu0 %v6165
  %11266 = vmatmul.mubr.bf16.gmra.mxu0 %v1845
  %v11267 = vpop.f32.mrf.mxu0
  %v11268 = vadd.f32 %v11108, %v11267
  %v11269 = vpop.f32.mrf.mxu0
  %v11270 = vpop.f32.mrf.mxu0
  %v11271 = vadd.f32 %v11111, %v11270
  %v11272 = vpop.f32.mrf.mxu0
  %11273 = vmatprep.mubr.bf16.mxu0 %v6168
  %11274 = vmatmul.mubr.bf16.gmra.mxu0 %v1859
  %v11275 = vpop.f32.mrf.mxu0
  %v11276 = vadd.f32 %v11116, %v11275
  %v11277 = vpop.f32.mrf.mxu0
  %v11278 = vpop.f32.mrf.mxu0
  %v11279 = vadd.f32 %v11119, %v11278
  %v11280 = vpop.f32.mrf.mxu0
  %11281 = vmatprep.mubr.bf16.mxu0 %v6171
  %11282 = vmatmul.mubr.bf16.gmra.mxu0 %v1873
  %v11283 = vpop.f32.mrf.mxu0
  %v11284 = vadd.f32 %v11124, %v11283
  %v11285 = vpop.f32.mrf.mxu0
  %v11286 = vpop.f32.mrf.mxu0
  %v11287 = vadd.f32 %v11127, %v11286
  %v11288 = vpop.f32.mrf.mxu0
  %11289 = vmatprep.mubr.bf16.mxu0 %v6174
  %11290 = vmatmul.mubr.bf16.gmra.mxu0 %v1887
  %v11291 = vpop.f32.mrf.mxu0
  %v11292 = vadd.f32 %v11132, %v11291
  %v11293 = vpop.f32.mrf.mxu0
  %v11294 = vpop.f32.mrf.mxu0
  %v11295 = vadd.f32 %v11135, %v11294
  %v11296 = vpop.f32.mrf.mxu0
  %11297 = vmatprep.mubr.bf16.mxu0 %v6177
  %11298 = vmatmul.mubr.bf16.gmra.mxu0 %v1901
  %v11299 = vpop.f32.mrf.mxu0
  %v11300 = vadd.f32 %v11140, %v11299
  %v11301 = vpop.f32.mrf.mxu0
  %v11302 = vpop.f32.mrf.mxu0
  %v11303 = vadd.f32 %v11143, %v11302
  %v11304 = vpop.f32.mrf.mxu0
  %11305 = vmatprep.mubr.bf16.mxu0 %v6180
  %11306 = vmatmul.mubr.bf16.gmra.mxu0 %v1915
  %v11307 = vpop.f32.mrf.mxu0
  %v11308 = vadd.f32 %v11148, %v11307
  %v11309 = vpop.f32.mrf.mxu0
  %v11310 = vpop.f32.mrf.mxu0
  %v11311 = vadd.f32 %v11151, %v11310
  %v11312 = vpop.f32.mrf.mxu0
  %11313 = vmatprep.mubr.bf16.mxu0 %v6183
  %11314 = vmatmul.mubr.bf16.gmra.mxu0 %v1929
  %v11315 = vpop.f32.mrf.mxu0
  %v11316 = vadd.f32 %v11156, %v11315
  %v11317 = vpop.f32.mrf.mxu0
  %v11318 = vpop.f32.mrf.mxu0
  %v11319 = vadd.f32 %v11159, %v11318
  %v11320 = vpop.f32.mrf.mxu0
  %11321 = vmatprep.mubr.bf16.mxu0 %v6186
  %11322 = vmatmul.mubr.bf16.gmra.mxu0 %v1943
  %v11323 = vpop.f32.mrf.mxu0
  %v11324 = vadd.f32 %v11164, %v11323
  %v11325 = vpop.f32.mrf.mxu0
  %v11326 = vpop.f32.mrf.mxu0
  %v11327 = vadd.f32 %v11167, %v11326
  %v11328 = vpop.f32.mrf.mxu0
  %11329 = vmatprep.mubr.bf16.mxu0 %v6189
  %11330 = vmatmul.mubr.bf16.gmra.mxu0 %v1957
  %v11331 = vpop.f32.mrf.mxu0
  %v11332 = vadd.f32 %v11172, %v11331
  %v11333 = vpop.f32.mrf.mxu0
  %v11334 = vpop.f32.mrf.mxu0
  %v11335 = vadd.f32 %v11175, %v11334
  %v11336 = vpop.f32.mrf.mxu0
  %11337 = vmatprep.mubr.bf16.mxu0 %v6192
  %11338 = vmatmul.mubr.bf16.gmra.mxu0 %v1971
  %v11339 = vpop.f32.mrf.mxu0
  %v11340 = vadd.f32 %v11180, %v11339
  %v11341 = vpop.f32.mrf.mxu0
  %v11342 = vpop.f32.mrf.mxu0
  %v11343 = vadd.f32 %v11183, %v11342
  %v11344 = vpop.f32.mrf.mxu0
  %11345 = vmatprep.mubr.bf16.mxu0 %v6195
  %11346 = vmatmul.mubr.bf16.gmra.mxu0 %v1985
  %v11347 = vpop.f32.mrf.mxu0
  %v11348 = vadd.f32 %v11188, %v11347
  %v11349 = vpop.f32.mrf.mxu0
  %v11350 = vpop.f32.mrf.mxu0
  %v11351 = vpop.f32.mrf.mxu0
  %11352 = vdwg.mxu0
  %11353 = vst [vmem:[#allocation2] sm:$0xff] %v7403
  %11354 = vst [vmem:[#allocation2 + $0x8] sm:$0xff] %v7405
  %11355 = vst [vmem:[#allocation2 + $0x10] sm:$0xff] %v8740
  %11356 = vst [vmem:[#allocation2 + $0x18] sm:$0xff] %v8742
  %11357 = vst [vmem:[#allocation2 + $0x20] sm:$0xff] %v10077
  %11358 = vst [vmem:[#allocation2 + $0x28] sm:$0xff] %v10079
  %vm11359 = vcmask 711680
  %11360 = vst.msk [vmem:[#allocation2 + $0x30] sm:$0xff] %vm11359, %v11228
  %11361 = vst [vmem:[#allocation2 + $0x38] sm:$0xff] %v7407
  %11362 = vst [vmem:[#allocation2 + $0x40] sm:$0xff] %v7409
  %11363 = vst [vmem:[#allocation2 + $0x48] sm:$0xff] %v8744
  %11364 = vst [vmem:[#allocation2 + $0x50] sm:$0xff] %v8746
  %11365 = vst [vmem:[#allocation2 + $0x58] sm:$0xff] %v10081
  %11366 = vst [vmem:[#allocation2 + $0x60] sm:$0xff] %v10083
  %11367 = vst.msk [vmem:[#allocation2 + $0x68] sm:$0xff] %vm11359, %v11231
  %11368 = vst [vmem:[#allocation2 + $0x70] sm:$0xff] %v7413
  %11369 = vst [vmem:[#allocation2 + $0x78] sm:$0xff] %v7415
  %11370 = vst [vmem:[#allocation2 + $0x80] sm:$0xff] %v8750
  %11371 = vst [vmem:[#allocation2 + $0x88] sm:$0xff] %v8752
  %11372 = vst [vmem:[#allocation2 + $0x90] sm:$0xff] %v10087
  %11373 = vst [vmem:[#allocation2 + $0x98] sm:$0xff] %v10089
  %11374 = vst.msk [vmem:[#allocation2 + $0xa0] sm:$0xff] %vm11359, %v11236
  %11375 = vst [vmem:[#allocation2 + $0xa8] sm:$0xff] %v7417
  %11376 = vst [vmem:[#allocation2 + $0xb0] sm:$0xff] %v7419
  %11377 = vst [vmem:[#allocation2 + $0xb8] sm:$0xff] %v8754
  %11378 = vst [vmem:[#allocation2 + $0xc0] sm:$0xff] %v8756
  %11379 = vst [vmem:[#allocation2 + $0xc8] sm:$0xff] %v10091
  %11380 = vst [vmem:[#allocation2 + $0xd0] sm:$0xff] %v10093
  %11381 = vst.msk [vmem:[#allocation2 + $0xd8] sm:$0xff] %vm11359, %v11239
  %11382 = vst [vmem:[#allocation2 + $0xe0] sm:$0xff] %v7423
  %11383 = vst [vmem:[#allocation2 + $0xe8] sm:$0xff] %v7425
  %11384 = vst [vmem:[#allocation2 + $0xf0] sm:$0xff] %v8760
  %11385 = vst [vmem:[#allocation2 + $0xf8] sm:$0xff] %v8762
  %11386 = vst [vmem:[#allocation2 + $0x100] sm:$0xff] %v10097
  %11387 = vst [vmem:[#allocation2 + $0x108] sm:$0xff] %v10099
  %11388 = vst.msk [vmem:[#allocation2 + $0x110] sm:$0xff] %vm11359, %v11244
  %11389 = vst [vmem:[#allocation2 + $0x118] sm:$0xff] %v7427
  %11390 = vst [vmem:[#allocation2 + $0x120] sm:$0xff] %v7429
  %11391 = vst [vmem:[#allocation2 + $0x128] sm:$0xff] %v8764
  %11392 = vst [vmem:[#allocation2 + $0x130] sm:$0xff] %v8766
  %11393 = vst [vmem:[#allocation2 + $0x138] sm:$0xff] %v10101
  %11394 = vst [vmem:[#allocation2 + $0x140] sm:$0xff] %v10103
  %11395 = vst.msk [vmem:[#allocation2 + $0x148] sm:$0xff] %vm11359, %v11247
  %11396 = vst [vmem:[#allocation2 + $0x150] sm:$0xff] %v7433
  %11397 = vst [vmem:[#allocation2 + $0x158] sm:$0xff] %v7435
  %11398 = vst [vmem:[#allocation2 + $0x160] sm:$0xff] %v8770
  %11399 = vst [vmem:[#allocation2 + $0x168] sm:$0xff] %v8772
  %11400 = vst [vmem:[#allocation2 + $0x170] sm:$0xff] %v10107
  %11401 = vst [vmem:[#allocation2 + $0x178] sm:$0xff] %v10109
  %11402 = vst.msk [vmem:[#allocation2 + $0x180] sm:$0xff] %vm11359, %v11252
  %11403 = vst [vmem:[#allocation2 + $0x188] sm:$0xff] %v7437
  %11404 = vst [vmem:[#allocation2 + $0x190] sm:$0xff] %v7439
  %11405 = vst [vmem:[#allocation2 + $0x198] sm:$0xff] %v8774
  %11406 = vst [vmem:[#allocation2 + $0x1a0] sm:$0xff] %v8776
  %11407 = vst [vmem:[#allocation2 + $0x1a8] sm:$0xff] %v10111
  %11408 = vst [vmem:[#allocation2 + $0x1b0] sm:$0xff] %v10113
  %11409 = vst.msk [vmem:[#allocation2 + $0x1b8] sm:$0xff] %vm11359, %v11255
  %11410 = vst [vmem:[#allocation2 + $0x1c0] sm:$0xff] %v7443
  %11411 = vst [vmem:[#allocation2 + $0x1c8] sm:$0xff] %v7445
  %11412 = vst [vmem:[#allocation2 + $0x1d0] sm:$0xff] %v8780
  %11413 = vst [vmem:[#allocation2 + $0x1d8] sm:$0xff] %v8782
  %11414 = vst [vmem:[#allocation2 + $0x1e0] sm:$0xff] %v10117
  %11415 = vst [vmem:[#allocation2 + $0x1e8] sm:$0xff] %v10119
  %11416 = vst.msk [vmem:[#allocation2 + $0x1f0] sm:$0xff] %vm11359, %v11260
  %11417 = vst [vmem:[#allocation2 + $0x1f8] sm:$0xff] %v7447
  %11418 = vst [vmem:[#allocation2 + $0x200] sm:$0xff] %v7449
  %11419 = vst [vmem:[#allocation2 + $0x208] sm:$0xff] %v8784
  %11420 = vst [vmem:[#allocation2 + $0x210] sm:$0xff] %v8786
  %11421 = vst [vmem:[#allocation2 + $0x218] sm:$0xff] %v10121
  %11422 = vst [vmem:[#allocation2 + $0x220] sm:$0xff] %v10123
  %11423 = vst.msk [vmem:[#allocation2 + $0x228] sm:$0xff] %vm11359, %v11263
  %11424 = vst [vmem:[#allocation2 + $0x230] sm:$0xff] %v7453
  %11425 = vst [vmem:[#allocation2 + $0x238] sm:$0xff] %v7455
  %11426 = vst [vmem:[#allocation2 + $0x240] sm:$0xff] %v8790
  %11427 = vst [vmem:[#allocation2 + $0x248] sm:$0xff] %v8792
  %11428 = vst [vmem:[#allocation2 + $0x250] sm:$0xff] %v10127
  %11429 = vst [vmem:[#allocation2 + $0x258] sm:$0xff] %v10129
  %11430 = vst.msk [vmem:[#allocation2 + $0x260] sm:$0xff] %vm11359, %v11268
  %11431 = vst [vmem:[#allocation2 + $0x268] sm:$0xff] %v7457
  %11432 = vst [vmem:[#allocation2 + $0x270] sm:$0xff] %v7459
  %11433 = vst [vmem:[#allocation2 + $0x278] sm:$0xff] %v8794
  %11434 = vst [vmem:[#allocation2 + $0x280] sm:$0xff] %v8796
  %11435 = vst [vmem:[#allocation2 + $0x288] sm:$0xff] %v10131
  %11436 = vst [vmem:[#allocation2 + $0x290] sm:$0xff] %v10133
  %11437 = vst.msk [vmem:[#allocation2 + $0x298] sm:$0xff] %vm11359, %v11271
  %11438 = vst [vmem:[#allocation2 + $0x2a0] sm:$0xff] %v7463
  %11439 = vst [vmem:[#allocation2 + $0x2a8] sm:$0xff] %v7465
  %11440 = vst [vmem:[#allocation2 + $0x2b0] sm:$0xff] %v8800
  %11441 = vst [vmem:[#allocation2 + $0x2b8] sm:$0xff] %v8802
  %11442 = vst [vmem:[#allocation2 + $0x2c0] sm:$0xff] %v10137
  %11443 = vst [vmem:[#allocation2 + $0x2c8] sm:$0xff] %v10139
  %11444 = vst.msk [vmem:[#allocation2 + $0x2d0] sm:$0xff] %vm11359, %v11276
  %11445 = vst [vmem:[#allocation2 + $0x2d8] sm:$0xff] %v7467
  %11446 = vst [vmem:[#allocation2 + $0x2e0] sm:$0xff] %v7469
  %11447 = vst [vmem:[#allocation2 + $0x2e8] sm:$0xff] %v8804
  %11448 = vst [vmem:[#allocation2 + $0x2f0] sm:$0xff] %v8806
  %11449 = vst [vmem:[#allocation2 + $0x2f8] sm:$0xff] %v10141
  %11450 = vst [vmem:[#allocation2 + $0x300] sm:$0xff] %v10143
  %11451 = vst.msk [vmem:[#allocation2 + $0x308] sm:$0xff] %vm11359, %v11279
  %11452 = vst [vmem:[#allocation2 + $0x310] sm:$0xff] %v7473
  %11453 = vst [vmem:[#allocation2 + $0x318] sm:$0xff] %v7475
  %11454 = vst [vmem:[#allocation2 + $0x320] sm:$0xff] %v8810
  %11455 = vst [vmem:[#allocation2 + $0x328] sm:$0xff] %v8812
  %11456 = vst [vmem:[#allocation2 + $0x330] sm:$0xff] %v10147
  %11457 = vst [vmem:[#allocation2 + $0x338] sm:$0xff] %v10149
  %11458 = vst.msk [vmem:[#allocation2 + $0x340] sm:$0xff] %vm11359, %v11284
  %11459 = vst [vmem:[#allocation2 + $0x348] sm:$0xff] %v7477
  %11460 = vst [vmem:[#allocation2 + $0x350] sm:$0xff] %v7479
  %11461 = vst [vmem:[#allocation2 + $0x358] sm:$0xff] %v8814
  %11462 = vst [vmem:[#allocation2 + $0x360] sm:$0xff] %v8816
  %11463 = vst [vmem:[#allocation2 + $0x368] sm:$0xff] %v10151
  %11464 = vst [vmem:[#allocation2 + $0x370] sm:$0xff] %v10153
  %11465 = vst.msk [vmem:[#allocation2 + $0x378] sm:$0xff] %vm11359, %v11287
  %11466 = vst [vmem:[#allocation2 + $0x380] sm:$0xff] %v7483
  %11467 = vst [vmem:[#allocation2 + $0x388] sm:$0xff] %v7485
  %11468 = vst [vmem:[#allocation2 + $0x390] sm:$0xff] %v8820
  %11469 = vst [vmem:[#allocation2 + $0x398] sm:$0xff] %v8822
  %11470 = vst [vmem:[#allocation2 + $0x3a0] sm:$0xff] %v10157
  %11471 = vst [vmem:[#allocation2 + $0x3a8] sm:$0xff] %v10159
  %11472 = vst.msk [vmem:[#allocation2 + $0x3b0] sm:$0xff] %vm11359, %v11292
  %11473 = vst [vmem:[#allocation2 + $0x3b8] sm:$0xff] %v7487
  %11474 = vst [vmem:[#allocation2 + $0x3c0] sm:$0xff] %v7489
  %11475 = vst [vmem:[#allocation2 + $0x3c8] sm:$0xff] %v8824
  %11476 = vst [vmem:[#allocation2 + $0x3d0] sm:$0xff] %v8826
  %11477 = vst [vmem:[#allocation2 + $0x3d8] sm:$0xff] %v10161
  %11478 = vst [vmem:[#allocation2 + $0x3e0] sm:$0xff] %v10163
  %11479 = vst.msk [vmem:[#allocation2 + $0x3e8] sm:$0xff] %vm11359, %v11295
  %11480 = vst [vmem:[#allocation2 + $0x3f0] sm:$0xff] %v7493
  %11481 = vst [vmem:[#allocation2 + $0x3f8] sm:$0xff] %v7495
  %11482 = vst [vmem:[#allocation2 + $0x400] sm:$0xff] %v8830
  %11483 = vst [vmem:[#allocation2 + $0x408] sm:$0xff] %v8832
  %11484 = vst [vmem:[#allocation2 + $0x410] sm:$0xff] %v10167
  %11485 = vst [vmem:[#allocation2 + $0x418] sm:$0xff] %v10169
  %11486 = vst.msk [vmem:[#allocation2 + $0x420] sm:$0xff] %vm11359, %v11300
  %11487 = vst [vmem:[#allocation2 + $0x428] sm:$0xff] %v7497
  %11488 = vst [vmem:[#allocation2 + $0x430] sm:$0xff] %v7499
  %11489 = vst [vmem:[#allocation2 + $0x438] sm:$0xff] %v8834
  %11490 = vst [vmem:[#allocation2 + $0x440] sm:$0xff] %v8836
  %11491 = vst [vmem:[#allocation2 + $0x448] sm:$0xff] %v10171
  %11492 = vst [vmem:[#allocation2 + $0x450] sm:$0xff] %v10173
  %11493 = vst.msk [vmem:[#allocation2 + $0x458] sm:$0xff] %vm11359, %v11303
  %11494 = vst [vmem:[#allocation2 + $0x460] sm:$0xff] %v7503
  %11495 = vst [vmem:[#allocation2 + $0x468] sm:$0xff] %v7505
  %11496 = vst [vmem:[#allocation2 + $0x470] sm:$0xff] %v8840
  %11497 = vst [vmem:[#allocation2 + $0x478] sm:$0xff] %v8842
  %11498 = vst [vmem:[#allocation2 + $0x480] sm:$0xff] %v10177
  %11499 = vst [vmem:[#allocation2 + $0x488] sm:$0xff] %v10179
  %11500 = vst.msk [vmem:[#allocation2 + $0x490] sm:$0xff] %vm11359, %v11308
  %11501 = vst [vmem:[#allocation2 + $0x498] sm:$0xff] %v7507
  %11502 = vst [vmem:[#allocation2 + $0x4a0] sm:$0xff] %v7509
  %11503 = vst [vmem:[#allocation2 + $0x4a8] sm:$0xff] %v8844
  %11504 = vst [vmem:[#allocation2 + $0x4b0] sm:$0xff] %v8846
  %11505 = vst [vmem:[#allocation2 + $0x4b8] sm:$0xff] %v10181
  %11506 = vst [vmem:[#allocation2 + $0x4c0] sm:$0xff] %v10183
  %11507 = vst.msk [vmem:[#allocation2 + $0x4c8] sm:$0xff] %vm11359, %v11311
  %11508 = vst [vmem:[#allocation2 + $0x4d0] sm:$0xff] %v7513
  %11509 = vst [vmem:[#allocation2 + $0x4d8] sm:$0xff] %v7515
  %11510 = vst [vmem:[#allocation2 + $0x4e0] sm:$0xff] %v8850
  %11511 = vst [vmem:[#allocation2 + $0x4e8] sm:$0xff] %v8852
  %11512 = vst [vmem:[#allocation2 + $0x4f0] sm:$0xff] %v10187
  %11513 = vst [vmem:[#allocation2 + $0x4f8] sm:$0xff] %v10189
  %11514 = vst.msk [vmem:[#allocation2 + $0x500] sm:$0xff] %vm11359, %v11316
  %11515 = vst [vmem:[#allocation2 + $0x508] sm:$0xff] %v7517
  %11516 = vst [vmem:[#allocation2 + $0x510] sm:$0xff] %v7519
  %11517 = vst [vmem:[#allocation2 + $0x518] sm:$0xff] %v8854
  %11518 = vst [vmem:[#allocation2 + $0x520] sm:$0xff] %v8856
  %11519 = vst [vmem:[#allocation2 + $0x528] sm:$0xff] %v10191
  %11520 = vst [vmem:[#allocation2 + $0x530] sm:$0xff] %v10193
  %11521 = vst.msk [vmem:[#allocation2 + $0x538] sm:$0xff] %vm11359, %v11319
  %11522 = vst [vmem:[#allocation2 + $0x540] sm:$0xff] %v7523
  %11523 = vst [vmem:[#allocation2 + $0x548] sm:$0xff] %v7525
  %11524 = vst [vmem:[#allocation2 + $0x550] sm:$0xff] %v8860
  %11525 = vst [vmem:[#allocation2 + $0x558] sm:$0xff] %v8862
  %11526 = vst [vmem:[#allocation2 + $0x560] sm:$0xff] %v10197
  %11527 = vst [vmem:[#allocation2 + $0x568] sm:$0xff] %v10199
  %11528 = vst.msk [vmem:[#allocation2 + $0x570] sm:$0xff] %vm11359, %v11324
  %11529 = vst [vmem:[#allocation2 + $0x578] sm:$0xff] %v7527
  %11530 = vst [vmem:[#allocation2 + $0x580] sm:$0xff] %v7529
  %11531 = vst [vmem:[#allocation2 + $0x588] sm:$0xff] %v8864
  %11532 = vst [vmem:[#allocation2 + $0x590] sm:$0xff] %v8866
  %11533 = vst [vmem:[#allocation2 + $0x598] sm:$0xff] %v10201
  %11534 = vst [vmem:[#allocation2 + $0x5a0] sm:$0xff] %v10203
  %11535 = vst.msk [vmem:[#allocation2 + $0x5a8] sm:$0xff] %vm11359, %v11327
  %11536 = vst [vmem:[#allocation2 + $0x5b0] sm:$0xff] %v7533
  %11537 = vst [vmem:[#allocation2 + $0x5b8] sm:$0xff] %v7535
  %11538 = vst [vmem:[#allocation2 + $0x5c0] sm:$0xff] %v8870
  %11539 = vst [vmem:[#allocation2 + $0x5c8] sm:$0xff] %v8872
  %11540 = vst [vmem:[#allocation2 + $0x5d0] sm:$0xff] %v10207
  %11541 = vst [vmem:[#allocation2 + $0x5d8] sm:$0xff] %v10209
  %11542 = vst.msk [vmem:[#allocation2 + $0x5e0] sm:$0xff] %vm11359, %v11332
  %11543 = vst [vmem:[#allocation2 + $0x5e8] sm:$0xff] %v7537
  %11544 = vst [vmem:[#allocation2 + $0x5f0] sm:$0xff] %v7539
  %11545 = vst [vmem:[#allocation2 + $0x5f8] sm:$0xff] %v8874
  %11546 = vst [vmem:[#allocation2 + $0x600] sm:$0xff] %v8876
  %11547 = vst [vmem:[#allocation2 + $0x608] sm:$0xff] %v10211
  %11548 = vst [vmem:[#allocation2 + $0x610] sm:$0xff] %v10213
  %11549 = vst.msk [vmem:[#allocation2 + $0x618] sm:$0xff] %vm11359, %v11335
  %11550 = vst [vmem:[#allocation2 + $0x620] sm:$0xff] %v7543
  %11551 = vst [vmem:[#allocation2 + $0x628] sm:$0xff] %v7545
  %11552 = vst [vmem:[#allocation2 + $0x630] sm:$0xff] %v8880
  %11553 = vst [vmem:[#allocation2 + $0x638] sm:$0xff] %v8882
  %11554 = vst [vmem:[#allocation2 + $0x640] sm:$0xff] %v10217
  %11555 = vst [vmem:[#allocation2 + $0x648] sm:$0xff] %v10219
  %11556 = vst.msk [vmem:[#allocation2 + $0x650] sm:$0xff] %vm11359, %v11340
  %11557 = vst [vmem:[#allocation2 + $0x658] sm:$0xff] %v7547
  %11558 = vst [vmem:[#allocation2 + $0x660] sm:$0xff] %v7549
  %11559 = vst [vmem:[#allocation2 + $0x668] sm:$0xff] %v8884
  %11560 = vst [vmem:[#allocation2 + $0x670] sm:$0xff] %v8886
  %11561 = vst [vmem:[#allocation2 + $0x678] sm:$0xff] %v10221
  %11562 = vst [vmem:[#allocation2 + $0x680] sm:$0xff] %v10223
  %11563 = vst.msk [vmem:[#allocation2 + $0x688] sm:$0xff] %vm11359, %v11343
  %11564 = vst [vmem:[#allocation2 + $0x690] sm:$0x1f] %v7553
  %11565 = vst [vmem:[#allocation2 + $0x698] sm:$0x1f] %v7555
  %11566 = vst [vmem:[#allocation2 + $0x6a0] sm:$0x1f] %v8890
  %11567 = vst [vmem:[#allocation2 + $0x6a8] sm:$0x1f] %v8892
  %11568 = vst [vmem:[#allocation2 + $0x6b0] sm:$0x1f] %v10227
  %11569 = vst [vmem:[#allocation2 + $0x6b8] sm:$0x1f] %v10229
  %vm11570 = vcmask 708608
  %11571 = vst.msk [vmem:[#allocation2 + $0x6c0] sm:$0x1f] %vm11570, %v11348
  %v11572 = vld [vmem:[#allocation2] sm:$0xff]
  %v11573 = vld [vmem:[#allocation2 + $0x38] sm:$0xff]
  %v11574 = vld [vmem:[#allocation2 + $0x70] sm:$0xff]
  %v11575 = vld [vmem:[#allocation2 + $0xa8] sm:$0x1]
  %v11576 = vadd.f32 %v11572, 0.0
  %v11577 = vadd.f32 %v11573, 0.0
  %v11578 = vadd.f32 %v11574, 0.0
  %v11579 = vadd.f32 %v11575, 0.0
  %v11580 = vld [vmem:[#allocation2] sm:$0xe0]
  %v11581 = vld [vmem:[#allocation2 + $0xa8] sm:$0x3f]
  %vm11586 = vcmask 1042432
  %v11587 = vrot.slane %v11580, 5
  %v11588 = vrot.slane %v11573, 5
  %v11589 = vsel %vm11586, %v11587, %v11588
  %v11590 = vrot.slane %v11574, 5
  %v11591 = vsel %vm11586, %v11588, %v11590
  %v11592 = vrot.slane %v11581, 5
  %v11593 = vsel %vm11586, %v11590, %v11592
  %11594 = vrot.lane.b32.xlu0 %v11589, 109
  %v11595 = vpop.permute.xlu0 %11594
  %11596 = vrot.lane.b32.xlu0 %v11591, 109
  %v11597 = vpop.permute.xlu0 %11596
  %11598 = vrot.lane.b32.xlu0 %v11593, 109
  %v11599 = vpop.permute.xlu0 %11598
  %11600 = vrot.lane.b32.xlu0 %v11592, 109
  %v11601 = vpop.permute.xlu0 %11600
  %v11606 = vadd.f32 %v11576, %v11595
  %v11607 = vadd.f32 %v11577, %v11597
  %v11608 = vadd.f32 %v11578, %v11599
  %v11609 = vadd.f32 %v11579, %v11601
  %v11610 = vld [vmem:[#allocation2 + $0x38] sm:$0xfc]
  %v11611 = vld [vmem:[#allocation2 + $0xa8] sm:$0xff]
  %v11612 = vld [vmem:[#allocation2 + $0xe0] sm:$0x7]
  %v11616 = vrot.slane %v11610, 2
  %v11617 = vrot.slane %v11574, 2
  %v11618 = vsel %vm6198, %v11616, %v11617
  %v11619 = vrot.slane %v11611, 2
  %v11620 = vsel %vm6198, %v11617, %v11619
  %v11621 = vrot.slane %v11612, 2
  %v11622 = vsel %vm6198, %v11619, %v11621
  %11623 = vrot.lane.b32.xlu0 %v11618, 90
  %v11624 = vpop.permute.xlu0 %11623
  %11625 = vrot.lane.b32.xlu0 %v11620, 90
  %v11626 = vpop.permute.xlu0 %11625
  %11627 = vrot.lane.b32.xlu0 %v11622, 90
  %v11628 = vpop.permute.xlu0 %11627
  %11629 = vrot.lane.b32.xlu0 %v11621, 90
  %v11630 = vpop.permute.xlu0 %11629
  %v11635 = vadd.f32 %v11606, %v11624
  %v11636 = vadd.f32 %v11607, %v11626
  %v11637 = vadd.f32 %v11608, %v11628
  %v11638 = vadd.f32 %v11609, %v11630
  %v11639 = vld [vmem:[#allocation2 + $0x38] sm:$0x80]
  %v11640 = vld [vmem:[#allocation2 + $0xe0] sm:$0xff]
  %vm11643 = vcmask 1040384
  %v11644 = vrot.slane %v11639, 7
  %v11645 = vrot.slane %v11574, 7
  %v11646 = vsel %vm11643, %v11644, %v11645
  %v11647 = vrot.slane %v11611, 7
  %v11648 = vsel %vm11643, %v11645, %v11647
  %v11649 = vrot.slane %v11640, 7
  %v11650 = vsel %vm11643, %v11647, %v11649
  %11651 = vrot.lane.b32.xlu0 %v11646, 71
  %v11652 = vpop.permute.xlu0 %11651
  %11653 = vrot.lane.b32.xlu0 %v11648, 71
  %v11654 = vpop.permute.xlu0 %11653
  %11655 = vrot.lane.b32.xlu0 %v11650, 71
  %v11656 = vpop.permute.xlu0 %11655
  %11657 = vrot.lane.b32.xlu0 %v11649, 71
  %v11658 = vpop.permute.xlu0 %11657
  %v11663 = vadd.f32 %v11635, %v11652
  %v11664 = vadd.f32 %v11636, %v11654
  %v11665 = vadd.f32 %v11637, %v11656
  %v11666 = vadd.f32 %v11638, %v11658
  %v11667 = vld [vmem:[#allocation2 + $0x70] sm:$0xf0]
  %v11668 = vld [vmem:[#allocation2 + $0x118] sm:$0x1f]
  %vm11671 = vcmask 1043456
  %v11672 = vrot.slane %v11667, 4
  %v11673 = vrot.slane %v11611, 4
  %v11674 = vsel %vm11671, %v11672, %v11673
  %v11675 = vrot.slane %v11640, 4
  %v11676 = vsel %vm11671, %v11673, %v11675
  %v11677 = vrot.slane %v11668, 4
  %v11678 = vsel %vm11671, %v11675, %v11677
  %11679 = vrot.lane.b32.xlu0 %v11674, 52
  %v11680 = vpop.permute.xlu0 %11679
  %11681 = vrot.lane.b32.xlu0 %v11676, 52
  %v11682 = vpop.permute.xlu0 %11681
  %11683 = vrot.lane.b32.xlu0 %v11678, 52
  %v11684 = vpop.permute.xlu0 %11683
  %11685 = vrot.lane.b32.xlu0 %v11677, 52
  %v11686 = vpop.permute.xlu0 %11685
  %v11691 = vadd.f32 %v11663, %v11680
  %v11692 = vadd.f32 %v11664, %v11682
  %v11693 = vadd.f32 %v11665, %v11684
  %v11694 = vadd.f32 %v11666, %v11686
  %v11695 = vld [vmem:[#allocation2 + $0xa8] sm:$0xfe]
  %v11696 = vld [vmem:[#allocation2 + $0x118] sm:$0xff]
  %v11697 = vld [vmem:[#allocation2 + $0x150] sm:$0x3]
  %vm11701 = vcmask 1046528
  %v11702 = vrot.slane %v11695, 1
  %v11703 = vrot.slane %v11640, 1
  %v11704 = vsel %vm11701, %v11702, %v11703
  %v11705 = vrot.slane %v11696, 1
  %v11706 = vsel %vm11701, %v11703, %v11705
  %v11707 = vrot.slane %v11697, 1
  %v11708 = vsel %vm11701, %v11705, %v11707
  %11709 = vrot.lane.b32.xlu0 %v11704, 33
  %v11710 = vpop.permute.xlu0 %11709
  %11711 = vrot.lane.b32.xlu0 %v11706, 33
  %v11712 = vpop.permute.xlu0 %11711
  %11713 = vrot.lane.b32.xlu0 %v11708, 33
  %v11714 = vpop.permute.xlu0 %11713
  %11715 = vrot.lane.b32.xlu0 %v11707, 33
  %v11716 = vpop.permute.xlu0 %11715
  %v11721 = vadd.f32 %v11691, %v11710
  %v11722 = vadd.f32 %v11692, %v11712
  %v11723 = vadd.f32 %v11693, %v11714
  %v11724 = vadd.f32 %v11694, %v11716
  %v11725 = vld [vmem:[#allocation2 + $0xa8] sm:$0xc0]
  %v11726 = vld [vmem:[#allocation2 + $0xb0] sm:$0xc0]
  %v11727 = vld [vmem:[#allocation2 + $0xe8] sm:$0xff]
  %v11728 = vld [vmem:[#allocation2 + $0x120] sm:$0xff]
  %v11729 = vld [vmem:[#allocation2 + $0x150] sm:$0x7f]
  %v11730 = vld [vmem:[#allocation2 + $0x158] sm:$0x7f]
  %vm11737 = vcmask 1041408
  %v11738 = vrot.slane %v11725, 6
  %v11739 = vrot.slane %v11640, 6
  %v11740 = vsel %vm11737, %v11738, %v11739
  %v11741 = vrot.slane %v11726, 6
  %v11742 = vrot.slane %v11727, 6
  %v11743 = vsel %vm11737, %v11741, %v11742
  %v11744 = vrot.slane %v11696, 6
  %v11745 = vsel %vm11737, %v11739, %v11744
  %v11746 = vrot.slane %v11728, 6
  %v11747 = vsel %vm11737, %v11742, %v11746
  %v11748 = vrot.slane %v11729, 6
  %v11749 = vsel %vm11737, %v11744, %v11748
  %v11750 = vrot.slane %v11730, 6
  %v11751 = vsel %vm11737, %v11746, %v11750
  %11752 = vrot.lane.b32.xlu0 %v11740, 14
  %v11753 = vpop.permute.xlu0 %11752
  %11754 = vrot.lane.b32.xlu0 %v11743, 14
  %v11755 = vpop.permute.xlu0 %11754
  %11756 = vrot.lane.b32.xlu0 %v11745, 14
  %v11757 = vpop.permute.xlu0 %11756
  %11758 = vrot.lane.b32.xlu0 %v11747, 14
  %v11759 = vpop.permute.xlu0 %11758
  %11760 = vrot.lane.b32.xlu0 %v11749, 14
  %v11761 = vpop.permute.xlu0 %11760
  %11762 = vrot.lane.b32.xlu0 %v11751, 14
  %v11763 = vpop.permute.xlu0 %11762
  %11764 = vrot.lane.b32.xlu0 %v11748, 14
  %v11765 = vpop.permute.xlu0 %11764
  %11766 = vrot.lane.b32.xlu0 %v11750, 14
  %v11767 = vpop.permute.xlu0 %11766
  %vm11768 = vcmask 113664
  %v11769 = vsel %vm11768, %v11753, %v11755
  %v11770 = vsel %vm11768, %v11757, %v11759
  %v11771 = vsel %vm11768, %v11761, %v11763
  %v11772 = vsel %vm11768, %v11765, %v11767
  %v11777 = vadd.f32 %v11721, %v11769
  %v11778 = vadd.f32 %v11722, %v11770
  %v11779 = vadd.f32 %v11723, %v11771
  %v11780 = vadd.f32 %v11724, %v11772
  %v11781 = vld [vmem:[#allocation2 + $0xe8] sm:$0xf8]
  %v11782 = vld [vmem:[#allocation2 + $0x158] sm:$0xff]
  %v11783 = vld [vmem:[#allocation2 + $0x190] sm:$0xf]
  %v11787 = vrot.slane %v11781, 3
  %v11788 = vrot.slane %v11728, 3
  %v11789 = vsel %vm6197, %v11787, %v11788
  %v11790 = vrot.slane %v11782, 3
  %v11791 = vsel %vm6197, %v11788, %v11790
  %v11792 = vrot.slane %v11783, 3
  %v11793 = vsel %vm6197, %v11790, %v11792
  %11794 = vrot.lane.b32.xlu0 %v11789, 123
  %v11795 = vpop.permute.xlu0 %11794
  %11796 = vrot.lane.b32.xlu0 %v11791, 123
  %v11797 = vpop.permute.xlu0 %11796
  %11798 = vrot.lane.b32.xlu0 %v11793, 123
  %v11799 = vpop.permute.xlu0 %11798
  %11800 = vrot.lane.b32.xlu0 %v11792, 123
  %v11801 = vpop.permute.xlu0 %11800
  %v11806 = vadd.f32 %v11777, %v11795
  %v11807 = vadd.f32 %v11778, %v11797
  %v11808 = vadd.f32 %v11779, %v11799
  %v11809 = vadd.f32 %v11780, %v11801
  %v11810 = vld [vmem:[#allocation2 + $0x190] sm:$0xff]
  %v11811 = vld [vmem:[#allocation2 + $0x1c8] sm:$0x1]
  %11814 = vrot.lane.b32.xlu0 %v11728, 104
  %v11815 = vpop.permute.xlu0 %11814
  %11816 = vrot.lane.b32.xlu0 %v11782, 104
  %v11817 = vpop.permute.xlu0 %11816
  %11818 = vrot.lane.b32.xlu0 %v11810, 104
  %v11819 = vpop.permute.xlu0 %11818
  %11820 = vrot.lane.b32.xlu0 %v11811, 104
  %v11821 = vpop.permute.xlu0 %11820
  %v11826 = vadd.f32 %v11806, %v11815
  %v11827 = vadd.f32 %v11807, %v11817
  %v11828 = vadd.f32 %v11808, %v11819
  %v11829 = vadd.f32 %v11809, %v11821
  %v11830 = vld [vmem:[#allocation2 + $0x120] sm:$0xe0]
  %v11831 = vld [vmem:[#allocation2 + $0x1c8] sm:$0x3f]
  %v11834 = vrot.slane %v11830, 5
  %v11835 = vrot.slane %v11782, 5
  %v11836 = vsel %vm11586, %v11834, %v11835
  %v11837 = vrot.slane %v11810, 5
  %v11838 = vsel %vm11586, %v11835, %v11837
  %v11839 = vrot.slane %v11831, 5
  %v11840 = vsel %vm11586, %v11837, %v11839
  %11841 = vrot.lane.b32.xlu0 %v11836, 85
  %v11842 = vpop.permute.xlu0 %11841
  %11843 = vrot.lane.b32.xlu0 %v11838, 85
  %v11844 = vpop.permute.xlu0 %11843
  %11845 = vrot.lane.b32.xlu0 %v11840, 85
  %v11846 = vpop.permute.xlu0 %11845
  %11847 = vrot.lane.b32.xlu0 %v11839, 85
  %v11848 = vpop.permute.xlu0 %11847
  %v11853 = vadd.f32 %v11826, %v11842
  %v11854 = vadd.f32 %v11827, %v11844
  %v11855 = vadd.f32 %v11828, %v11846
  %v11856 = vadd.f32 %v11829, %v11848
  %v11857 = vld [vmem:[#allocation2 + $0x158] sm:$0xfc]
  %v11858 = vld [vmem:[#allocation2 + $0x1c8] sm:$0xff]
  %v11859 = vld [vmem:[#allocation2 + $0x200] sm:$0x7]
  %v11863 = vrot.slane %v11857, 2
  %v11864 = vrot.slane %v11810, 2
  %v11865 = vsel %vm6198, %v11863, %v11864
  %v11866 = vrot.slane %v11858, 2
  %v11867 = vsel %vm6198, %v11864, %v11866
  %v11868 = vrot.slane %v11859, 2
  %v11869 = vsel %vm6198, %v11866, %v11868
  %11870 = vrot.lane.b32.xlu0 %v11865, 66
  %v11871 = vpop.permute.xlu0 %11870
  %11872 = vrot.lane.b32.xlu0 %v11867, 66
  %v11873 = vpop.permute.xlu0 %11872
  %11874 = vrot.lane.b32.xlu0 %v11869, 66
  %v11875 = vpop.permute.xlu0 %11874
  %11876 = vrot.lane.b32.xlu0 %v11868, 66
  %v11877 = vpop.permute.xlu0 %11876
  %v11882 = vadd.f32 %v11853, %v11871
  %v11883 = vadd.f32 %v11854, %v11873
  %v11884 = vadd.f32 %v11855, %v11875
  %v11885 = vadd.f32 %v11856, %v11877
  %v11886 = vld [vmem:[#allocation2 + $0x158] sm:$0x80]
  %v11887 = vld [vmem:[#allocation2 + $0x200] sm:$0xff]
  %v11890 = vrot.slane %v11886, 7
  %v11891 = vrot.slane %v11810, 7
  %v11892 = vsel %vm11643, %v11890, %v11891
  %v11893 = vrot.slane %v11858, 7
  %v11894 = vsel %vm11643, %v11891, %v11893
  %v11895 = vrot.slane %v11887, 7
  %v11896 = vsel %vm11643, %v11893, %v11895
  %11897 = vrot.lane.b32.xlu0 %v11892, 47
  %v11898 = vpop.permute.xlu0 %11897
  %11899 = vrot.lane.b32.xlu0 %v11894, 47
  %v11900 = vpop.permute.xlu0 %11899
  %11901 = vrot.lane.b32.xlu0 %v11896, 47
  %v11902 = vpop.permute.xlu0 %11901
  %11903 = vrot.lane.b32.xlu0 %v11895, 47
  %v11904 = vpop.permute.xlu0 %11903
  %v11909 = vadd.f32 %v11882, %v11898
  %v11910 = vadd.f32 %v11883, %v11900
  %v11911 = vadd.f32 %v11884, %v11902
  %v11912 = vadd.f32 %v11885, %v11904
  %v11913 = vld [vmem:[#allocation2 + $0x190] sm:$0xf0]
  %v11914 = vld [vmem:[#allocation2 + $0x238] sm:$0x1f]
  %v11917 = vrot.slane %v11913, 4
  %v11918 = vrot.slane %v11858, 4
  %v11919 = vsel %vm11671, %v11917, %v11918
  %v11920 = vrot.slane %v11887, 4
  %v11921 = vsel %vm11671, %v11918, %v11920
  %v11922 = vrot.slane %v11914, 4
  %v11923 = vsel %vm11671, %v11920, %v11922
  %11924 = vrot.lane.b32.xlu0 %v11919, 28
  %v11925 = vpop.permute.xlu0 %11924
  %11926 = vrot.lane.b32.xlu0 %v11921, 28
  %v11927 = vpop.permute.xlu0 %11926
  %11928 = vrot.lane.b32.xlu0 %v11923, 28
  %v11929 = vpop.permute.xlu0 %11928
  %11930 = vrot.lane.b32.xlu0 %v11922, 28
  %v11931 = vpop.permute.xlu0 %11930
  %v11936 = vadd.f32 %v11909, %v11925
  %v11937 = vadd.f32 %v11910, %v11927
  %v11938 = vadd.f32 %v11911, %v11929
  %v11939 = vadd.f32 %v11912, %v11931
  %v11940 = vld [vmem:[#allocation2 + $0x1c8] sm:$0xfe]
  %v11941 = vld [vmem:[#allocation2 + $0x1d0] sm:$0xfe]
  %v11942 = vld [vmem:[#allocation2 + $0x208] sm:$0xff]
  %v11943 = vld [vmem:[#allocation2 + $0x238] sm:$0xff]
  %v11944 = vld [vmem:[#allocation2 + $0x240] sm:$0xff]
  %v11945 = vld [vmem:[#allocation2 + $0x270] sm:$0x3]
  %v11946 = vld [vmem:[#allocation2 + $0x278] sm:$0x3]
  %v11954 = vrot.slane %v11940, 1
  %v11955 = vrot.slane %v11887, 1
  %v11956 = vsel %vm11701, %v11954, %v11955
  %v11957 = vrot.slane %v11941, 1
  %v11958 = vrot.slane %v11942, 1
  %v11959 = vsel %vm11701, %v11957, %v11958
  %v11960 = vrot.slane %v11943, 1
  %v11961 = vsel %vm11701, %v11955, %v11960
  %v11962 = vrot.slane %v11944, 1
  %v11963 = vsel %vm11701, %v11958, %v11962
  %v11964 = vrot.slane %v11945, 1
  %v11965 = vsel %vm11701, %v11960, %v11964
  %v11966 = vrot.slane %v11946, 1
  %v11967 = vsel %vm11701, %v11962, %v11966
  %11968 = vrot.lane.b32.xlu0 %v11956, 9
  %v11969 = vpop.permute.xlu0 %11968
  %11970 = vrot.lane.b32.xlu0 %v11959, 9
  %v11971 = vpop.permute.xlu0 %11970
  %11972 = vrot.lane.b32.xlu0 %v11961, 9
  %v11973 = vpop.permute.xlu0 %11972
  %11974 = vrot.lane.b32.xlu0 %v11963, 9
  %v11975 = vpop.permute.xlu0 %11974
  %11976 = vrot.lane.b32.xlu0 %v11965, 9
  %v11977 = vpop.permute.xlu0 %11976
  %11978 = vrot.lane.b32.xlu0 %v11967, 9
  %v11979 = vpop.permute.xlu0 %11978
  %11980 = vrot.lane.b32.xlu0 %v11964, 9
  %v11981 = vpop.permute.xlu0 %11980
  %11982 = vrot.lane.b32.xlu0 %v11966, 9
  %v11983 = vpop.permute.xlu0 %11982
  %vm11984 = vcmask 72704
  %v11985 = vsel %vm11984, %v11969, %v11971
  %v11986 = vsel %vm11984, %v11973, %v11975
  %v11987 = vsel %vm11984, %v11977, %v11979
  %v11988 = vsel %vm11984, %v11981, %v11983
  %v11993 = vadd.f32 %v11936, %v11985
  %v11994 = vadd.f32 %v11937, %v11986
  %v11995 = vadd.f32 %v11938, %v11987
  %v11996 = vadd.f32 %v11939, %v11988
  %v11997 = vld [vmem:[#allocation2 + $0x1d0] sm:$0xc0]
  %v11998 = vld [vmem:[#allocation2 + $0x278] sm:$0x7f]
  %v12001 = vrot.slane %v11997, 6
  %v12002 = vrot.slane %v11942, 6
  %v12003 = vsel %vm11737, %v12001, %v12002
  %v12004 = vrot.slane %v11944, 6
  %v12005 = vsel %vm11737, %v12002, %v12004
  %v12006 = vrot.slane %v11998, 6
  %v12007 = vsel %vm11737, %v12004, %v12006
  %12008 = vrot.lane.b32.xlu0 %v12003, 118
  %v12009 = vpop.permute.xlu0 %12008
  %12010 = vrot.lane.b32.xlu0 %v12005, 118
  %v12011 = vpop.permute.xlu0 %12010
  %12012 = vrot.lane.b32.xlu0 %v12007, 118
  %v12013 = vpop.permute.xlu0 %12012
  %12014 = vrot.lane.b32.xlu0 %v12006, 118
  %v12015 = vpop.permute.xlu0 %12014
  %v12020 = vadd.f32 %v11993, %v12009
  %v12021 = vadd.f32 %v11994, %v12011
  %v12022 = vadd.f32 %v11995, %v12013
  %v12023 = vadd.f32 %v11996, %v12015
  %v12024 = vld [vmem:[#allocation2 + $0x208] sm:$0xf8]
  %v12025 = vld [vmem:[#allocation2 + $0x278] sm:$0xff]
  %v12026 = vld [vmem:[#allocation2 + $0x2b0] sm:$0xf]
  %v12030 = vrot.slane %v12024, 3
  %v12031 = vrot.slane %v11944, 3
  %v12032 = vsel %vm6197, %v12030, %v12031
  %v12033 = vrot.slane %v12025, 3
  %v12034 = vsel %vm6197, %v12031, %v12033
  %v12035 = vrot.slane %v12026, 3
  %v12036 = vsel %vm6197, %v12033, %v12035
  %12037 = vrot.lane.b32.xlu0 %v12032, 99
  %v12038 = vpop.permute.xlu0 %12037
  %12039 = vrot.lane.b32.xlu0 %v12034, 99
  %v12040 = vpop.permute.xlu0 %12039
  %12041 = vrot.lane.b32.xlu0 %v12036, 99
  %v12042 = vpop.permute.xlu0 %12041
  %12043 = vrot.lane.b32.xlu0 %v12035, 99
  %v12044 = vpop.permute.xlu0 %12043
  %v12049 = vadd.f32 %v12020, %v12038
  %v12050 = vadd.f32 %v12021, %v12040
  %v12051 = vadd.f32 %v12022, %v12042
  %v12052 = vadd.f32 %v12023, %v12044
  %v12053 = vld [vmem:[#allocation2 + $0x2b0] sm:$0xff]
  %v12054 = vld [vmem:[#allocation2 + $0x2e8] sm:$0x1]
  %12057 = vrot.lane.b32.xlu0 %v11944, 80
  %v12058 = vpop.permute.xlu0 %12057
  %12059 = vrot.lane.b32.xlu0 %v12025, 80
  %v12060 = vpop.permute.xlu0 %12059
  %12061 = vrot.lane.b32.xlu0 %v12053, 80
  %v12062 = vpop.permute.xlu0 %12061
  %12063 = vrot.lane.b32.xlu0 %v12054, 80
  %v12064 = vpop.permute.xlu0 %12063
  %v12069 = vadd.f32 %v12049, %v12058
  %v12070 = vadd.f32 %v12050, %v12060
  %v12071 = vadd.f32 %v12051, %v12062
  %v12072 = vadd.f32 %v12052, %v12064
  %v12073 = vld [vmem:[#allocation2 + $0x240] sm:$0xe0]
  %v12074 = vld [vmem:[#allocation2 + $0x2e8] sm:$0x3f]
  %v12077 = vrot.slane %v12073, 5
  %v12078 = vrot.slane %v12025, 5
  %v12079 = vsel %vm11586, %v12077, %v12078
  %v12080 = vrot.slane %v12053, 5
  %v12081 = vsel %vm11586, %v12078, %v12080
  %v12082 = vrot.slane %v12074, 5
  %v12083 = vsel %vm11586, %v12080, %v12082
  %12084 = vrot.lane.b32.xlu0 %v12079, 61
  %v12085 = vpop.permute.xlu0 %12084
  %12086 = vrot.lane.b32.xlu0 %v12081, 61
  %v12087 = vpop.permute.xlu0 %12086
  %12088 = vrot.lane.b32.xlu0 %v12083, 61
  %v12089 = vpop.permute.xlu0 %12088
  %12090 = vrot.lane.b32.xlu0 %v12082, 61
  %v12091 = vpop.permute.xlu0 %12090
  %v12096 = vadd.f32 %v12069, %v12085
  %v12097 = vadd.f32 %v12070, %v12087
  %v12098 = vadd.f32 %v12071, %v12089
  %v12099 = vadd.f32 %v12072, %v12091
  %v12100 = vld [vmem:[#allocation2 + $0x278] sm:$0xfc]
  %v12101 = vld [vmem:[#allocation2 + $0x2e8] sm:$0xff]
  %v12102 = vld [vmem:[#allocation2 + $0x320] sm:$0x7]
  %v12106 = vrot.slane %v12100, 2
  %v12107 = vrot.slane %v12053, 2
  %v12108 = vsel %vm6198, %v12106, %v12107
  %v12109 = vrot.slane %v12101, 2
  %v12110 = vsel %vm6198, %v12107, %v12109
  %v12111 = vrot.slane %v12102, 2
  %v12112 = vsel %vm6198, %v12109, %v12111
  %12113 = vrot.lane.b32.xlu0 %v12108, 42
  %v12114 = vpop.permute.xlu0 %12113
  %12115 = vrot.lane.b32.xlu0 %v12110, 42
  %v12116 = vpop.permute.xlu0 %12115
  %12117 = vrot.lane.b32.xlu0 %v12112, 42
  %v12118 = vpop.permute.xlu0 %12117
  %12119 = vrot.lane.b32.xlu0 %v12111, 42
  %v12120 = vpop.permute.xlu0 %12119
  %v12125 = vadd.f32 %v12096, %v12114
  %v12126 = vadd.f32 %v12097, %v12116
  %v12127 = vadd.f32 %v12098, %v12118
  %v12128 = vadd.f32 %v12099, %v12120
  %v12129 = vld [vmem:[#allocation2 + $0x278] sm:$0x80]
  %v12130 = vld [vmem:[#allocation2 + $0x320] sm:$0xff]
  %v12133 = vrot.slane %v12129, 7
  %v12134 = vrot.slane %v12053, 7
  %v12135 = vsel %vm11643, %v12133, %v12134
  %v12136 = vrot.slane %v12101, 7
  %v12137 = vsel %vm11643, %v12134, %v12136
  %v12138 = vrot.slane %v12130, 7
  %v12139 = vsel %vm11643, %v12136, %v12138
  %12140 = vrot.lane.b32.xlu0 %v12135, 23
  %v12141 = vpop.permute.xlu0 %12140
  %12142 = vrot.lane.b32.xlu0 %v12137, 23
  %v12143 = vpop.permute.xlu0 %12142
  %12144 = vrot.lane.b32.xlu0 %v12139, 23
  %v12145 = vpop.permute.xlu0 %12144
  %12146 = vrot.lane.b32.xlu0 %v12138, 23
  %v12147 = vpop.permute.xlu0 %12146
  %v12152 = vadd.f32 %v12125, %v12141
  %v12153 = vadd.f32 %v12126, %v12143
  %v12154 = vadd.f32 %v12127, %v12145
  %v12155 = vadd.f32 %v12128, %v12147
  %v12156 = vld [vmem:[#allocation2 + $0x2b0] sm:$0xf0]
  %v12157 = vld [vmem:[#allocation2 + $0x2b8] sm:$0xf0]
  %v12158 = vld [vmem:[#allocation2 + $0x2f0] sm:$0xff]
  %v12159 = vld [vmem:[#allocation2 + $0x328] sm:$0xff]
  %v12160 = vld [vmem:[#allocation2 + $0x358] sm:$0x1f]
  %v12161 = vld [vmem:[#allocation2 + $0x360] sm:$0x1f]
  %v12168 = vrot.slane %v12156, 4
  %v12169 = vrot.slane %v12101, 4
  %v12170 = vsel %vm11671, %v12168, %v12169
  %v12171 = vrot.slane %v12157, 4
  %v12172 = vrot.slane %v12158, 4
  %v12173 = vsel %vm11671, %v12171, %v12172
  %v12174 = vrot.slane %v12130, 4
  %v12175 = vsel %vm11671, %v12169, %v12174
  %v12176 = vrot.slane %v12159, 4
  %v12177 = vsel %vm11671, %v12172, %v12176
  %v12178 = vrot.slane %v12160, 4
  %v12179 = vsel %vm11671, %v12174, %v12178
  %v12180 = vrot.slane %v12161, 4
  %v12181 = vsel %vm11671, %v12176, %v12180
  %12182 = vrot.lane.b32.xlu0 %v12170, 4
  %v12183 = vpop.permute.xlu0 %12182
  %12184 = vrot.lane.b32.xlu0 %v12173, 4
  %v12185 = vpop.permute.xlu0 %12184
  %12186 = vrot.lane.b32.xlu0 %v12175, 4
  %v12187 = vpop.permute.xlu0 %12186
  %12188 = vrot.lane.b32.xlu0 %v12177, 4
  %v12189 = vpop.permute.xlu0 %12188
  %12190 = vrot.lane.b32.xlu0 %v12179, 4
  %v12191 = vpop.permute.xlu0 %12190
  %12192 = vrot.lane.b32.xlu0 %v12181, 4
  %v12193 = vpop.permute.xlu0 %12192
  %12194 = vrot.lane.b32.xlu0 %v12178, 4
  %v12195 = vpop.permute.xlu0 %12194
  %12196 = vrot.lane.b32.xlu0 %v12180, 4
  %v12197 = vpop.permute.xlu0 %12196
  %vm12198 = vcmask 31744
  %v12199 = vsel %vm12198, %v12183, %v12185
  %v12200 = vsel %vm12198, %v12187, %v12189
  %v12201 = vsel %vm12198, %v12191, %v12193
  %v12202 = vsel %vm12198, %v12195, %v12197
  %v12207 = vadd.f32 %v12152, %v12199
  %v12208 = vadd.f32 %v12153, %v12200
  %v12209 = vadd.f32 %v12154, %v12201
  %v12210 = vadd.f32 %v12155, %v12202
  %v12211 = vld [vmem:[#allocation2 + $0x2f0] sm:$0xfe]
  %v12212 = vld [vmem:[#allocation2 + $0x360] sm:$0xff]
  %v12213 = vld [vmem:[#allocation2 + $0x398] sm:$0x3]
  %v12217 = vrot.slane %v12211, 1
  %v12218 = vrot.slane %v12159, 1
  %v12219 = vsel %vm11701, %v12217, %v12218
  %v12220 = vrot.slane %v12212, 1
  %v12221 = vsel %vm11701, %v12218, %v12220
  %v12222 = vrot.slane %v12213, 1
  %v12223 = vsel %vm11701, %v12220, %v12222
  %12224 = vrot.lane.b32.xlu0 %v12219, 113
  %v12225 = vpop.permute.xlu0 %12224
  %12226 = vrot.lane.b32.xlu0 %v12221, 113
  %v12227 = vpop.permute.xlu0 %12226
  %12228 = vrot.lane.b32.xlu0 %v12223, 113
  %v12229 = vpop.permute.xlu0 %12228
  %12230 = vrot.lane.b32.xlu0 %v12222, 113
  %v12231 = vpop.permute.xlu0 %12230
  %v12236 = vadd.f32 %v12207, %v12225
  %v12237 = vadd.f32 %v12208, %v12227
  %v12238 = vadd.f32 %v12209, %v12229
  %v12239 = vadd.f32 %v12210, %v12231
  %v12240 = vld [vmem:[#allocation2 + $0x2f0] sm:$0xc0]
  %v12241 = vld [vmem:[#allocation2 + $0x398] sm:$0x7f]
  %v12244 = vrot.slane %v12240, 6
  %v12245 = vrot.slane %v12159, 6
  %v12246 = vsel %vm11737, %v12244, %v12245
  %v12247 = vrot.slane %v12212, 6
  %v12248 = vsel %vm11737, %v12245, %v12247
  %v12249 = vrot.slane %v12241, 6
  %v12250 = vsel %vm11737, %v12247, %v12249
  %12251 = vrot.lane.b32.xlu0 %v12246, 94
  %v12252 = vpop.permute.xlu0 %12251
  %12253 = vrot.lane.b32.xlu0 %v12248, 94
  %v12254 = vpop.permute.xlu0 %12253
  %12255 = vrot.lane.b32.xlu0 %v12250, 94
  %v12256 = vpop.permute.xlu0 %12255
  %12257 = vrot.lane.b32.xlu0 %v12249, 94
  %v12258 = vpop.permute.xlu0 %12257
  %v12263 = vadd.f32 %v12236, %v12252
  %v12264 = vadd.f32 %v12237, %v12254
  %v12265 = vadd.f32 %v12238, %v12256
  %v12266 = vadd.f32 %v12239, %v12258
  %v12267 = vld [vmem:[#allocation2 + $0x328] sm:$0xf8]
  %v12268 = vld [vmem:[#allocation2 + $0x398] sm:$0xff]
  %v12269 = vld [vmem:[#allocation2 + $0x3d0] sm:$0xf]
  %v12273 = vrot.slane %v12267, 3
  %v12274 = vrot.slane %v12212, 3
  %v12275 = vsel %vm6197, %v12273, %v12274
  %v12276 = vrot.slane %v12268, 3
  %v12277 = vsel %vm6197, %v12274, %v12276
  %v12278 = vrot.slane %v12269, 3
  %v12279 = vsel %vm6197, %v12276, %v12278
  %12280 = vrot.lane.b32.xlu0 %v12275, 75
  %v12281 = vpop.permute.xlu0 %12280
  %12282 = vrot.lane.b32.xlu0 %v12277, 75
  %v12283 = vpop.permute.xlu0 %12282
  %12284 = vrot.lane.b32.xlu0 %v12279, 75
  %v12285 = vpop.permute.xlu0 %12284
  %12286 = vrot.lane.b32.xlu0 %v12278, 75
  %v12287 = vpop.permute.xlu0 %12286
  %v12292 = vadd.f32 %v12263, %v12281
  %v12293 = vadd.f32 %v12264, %v12283
  %v12294 = vadd.f32 %v12265, %v12285
  %v12295 = vadd.f32 %v12266, %v12287
  %v12296 = vld [vmem:[#allocation2 + $0x3d0] sm:$0xff]
  %v12297 = vld [vmem:[#allocation2 + $0x408] sm:$0x1]
  %12300 = vrot.lane.b32.xlu0 %v12212, 56
  %v12301 = vpop.permute.xlu0 %12300
  %12302 = vrot.lane.b32.xlu0 %v12268, 56
  %v12303 = vpop.permute.xlu0 %12302
  %12304 = vrot.lane.b32.xlu0 %v12296, 56
  %v12305 = vpop.permute.xlu0 %12304
  %12306 = vrot.lane.b32.xlu0 %v12297, 56
  %v12307 = vpop.permute.xlu0 %12306
  %v12312 = vadd.f32 %v12292, %v12301
  %v12313 = vadd.f32 %v12293, %v12303
  %v12314 = vadd.f32 %v12294, %v12305
  %v12315 = vadd.f32 %v12295, %v12307
  %v12316 = vld [vmem:[#allocation2 + $0x360] sm:$0xe0]
  %v12317 = vld [vmem:[#allocation2 + $0x408] sm:$0x3f]
  %v12320 = vrot.slane %v12316, 5
  %v12321 = vrot.slane %v12268, 5
  %v12322 = vsel %vm11586, %v12320, %v12321
  %v12323 = vrot.slane %v12296, 5
  %v12324 = vsel %vm11586, %v12321, %v12323
  %v12325 = vrot.slane %v12317, 5
  %v12326 = vsel %vm11586, %v12323, %v12325
  %12327 = vrot.lane.b32.xlu0 %v12322, 37
  %v12328 = vpop.permute.xlu0 %12327
  %12329 = vrot.lane.b32.xlu0 %v12324, 37
  %v12330 = vpop.permute.xlu0 %12329
  %12331 = vrot.lane.b32.xlu0 %v12326, 37
  %v12332 = vpop.permute.xlu0 %12331
  %12333 = vrot.lane.b32.xlu0 %v12325, 37
  %v12334 = vpop.permute.xlu0 %12333
  %v12339 = vadd.f32 %v12312, %v12328
  %v12340 = vadd.f32 %v12313, %v12330
  %v12341 = vadd.f32 %v12314, %v12332
  %v12342 = vadd.f32 %v12315, %v12334
  %v12343 = vld [vmem:[#allocation2 + $0x398] sm:$0xfc]
  %v12344 = vld [vmem:[#allocation2 + $0x3a0] sm:$0xfc]
  %v12345 = vld [vmem:[#allocation2 + $0x3d8] sm:$0xff]
  %v12346 = vld [vmem:[#allocation2 + $0x408] sm:$0xff]
  %v12347 = vld [vmem:[#allocation2 + $0x410] sm:$0xff]
  %v12348 = vld [vmem:[#allocation2 + $0x440] sm:$0x7]
  %v12349 = vld [vmem:[#allocation2 + $0x448] sm:$0x7]
  %v12357 = vrot.slane %v12343, 2
  %v12358 = vrot.slane %v12296, 2
  %v12359 = vsel %vm6198, %v12357, %v12358
  %v12360 = vrot.slane %v12344, 2
  %v12361 = vrot.slane %v12345, 2
  %v12362 = vsel %vm6198, %v12360, %v12361
  %v12363 = vrot.slane %v12346, 2
  %v12364 = vsel %vm6198, %v12358, %v12363
  %v12365 = vrot.slane %v12347, 2
  %v12366 = vsel %vm6198, %v12361, %v12365
  %v12367 = vrot.slane %v12348, 2
  %v12368 = vsel %vm6198, %v12363, %v12367
  %v12369 = vrot.slane %v12349, 2
  %v12370 = vsel %vm6198, %v12365, %v12369
  %12371 = vrot.lane.b32.xlu0 %v12359, 18
  %v12372 = vpop.permute.xlu0 %12371
  %12373 = vrot.lane.b32.xlu0 %v12362, 18
  %v12374 = vpop.permute.xlu0 %12373
  %12375 = vrot.lane.b32.xlu0 %v12364, 18
  %v12376 = vpop.permute.xlu0 %12375
  %12377 = vrot.lane.b32.xlu0 %v12366, 18
  %v12378 = vpop.permute.xlu0 %12377
  %12379 = vrot.lane.b32.xlu0 %v12368, 18
  %v12380 = vpop.permute.xlu0 %12379
  %12381 = vrot.lane.b32.xlu0 %v12370, 18
  %v12382 = vpop.permute.xlu0 %12381
  %12383 = vrot.lane.b32.xlu0 %v12367, 18
  %v12384 = vpop.permute.xlu0 %12383
  %12385 = vrot.lane.b32.xlu0 %v12369, 18
  %v12386 = vpop.permute.xlu0 %12385
  %vm12387 = vcmask 146432
  %v12388 = vsel %vm12387, %v12372, %v12374
  %v12389 = vsel %vm12387, %v12376, %v12378
  %v12390 = vsel %vm12387, %v12380, %v12382
  %v12391 = vsel %vm12387, %v12384, %v12386
  %v12396 = vadd.f32 %v12339, %v12388
  %v12397 = vadd.f32 %v12340, %v12389
  %v12398 = vadd.f32 %v12341, %v12390
  %v12399 = vadd.f32 %v12342, %v12391
  %v12400 = vld [vmem:[#allocation2 + $0x3a0] sm:$0x80]
  %v12401 = vld [vmem:[#allocation2 + $0x448] sm:$0xff]
  %v12404 = vrot.slane %v12400, 7
  %v12405 = vrot.slane %v12345, 7
  %v12406 = vsel %vm11643, %v12404, %v12405
  %v12407 = vrot.slane %v12347, 7
  %v12408 = vsel %vm11643, %v12405, %v12407
  %v12409 = vrot.slane %v12401, 7
  %v12410 = vsel %vm11643, %v12407, %v12409
  %12411 = vrot.lane.b32.xlu0 %v12406, 127
  %v12412 = vpop.permute.xlu0 %12411
  %12413 = vrot.lane.b32.xlu0 %v12408, 127
  %v12414 = vpop.permute.xlu0 %12413
  %12415 = vrot.lane.b32.xlu0 %v12410, 127
  %v12416 = vpop.permute.xlu0 %12415
  %12417 = vrot.lane.b32.xlu0 %v12409, 127
  %v12418 = vpop.permute.xlu0 %12417
  %v12423 = vadd.f32 %v12396, %v12412
  %v12424 = vadd.f32 %v12397, %v12414
  %v12425 = vadd.f32 %v12398, %v12416
  %v12426 = vadd.f32 %v12399, %v12418
  %v12427 = vld [vmem:[#allocation2 + $0x3d8] sm:$0xf0]
  %v12428 = vld [vmem:[#allocation2 + $0x480] sm:$0x1f]
  %v12431 = vrot.slane %v12427, 4
  %v12432 = vrot.slane %v12347, 4
  %v12433 = vsel %vm11671, %v12431, %v12432
  %v12434 = vrot.slane %v12401, 4
  %v12435 = vsel %vm11671, %v12432, %v12434
  %v12436 = vrot.slane %v12428, 4
  %v12437 = vsel %vm11671, %v12434, %v12436
  %12438 = vrot.lane.b32.xlu0 %v12433, 108
  %v12439 = vpop.permute.xlu0 %12438
  %12440 = vrot.lane.b32.xlu0 %v12435, 108
  %v12441 = vpop.permute.xlu0 %12440
  %12442 = vrot.lane.b32.xlu0 %v12437, 108
  %v12443 = vpop.permute.xlu0 %12442
  %12444 = vrot.lane.b32.xlu0 %v12436, 108
  %v12445 = vpop.permute.xlu0 %12444
  %v12450 = vadd.f32 %v12423, %v12439
  %v12451 = vadd.f32 %v12424, %v12441
  %v12452 = vadd.f32 %v12425, %v12443
  %v12453 = vadd.f32 %v12426, %v12445
  %v12454 = vld [vmem:[#allocation2 + $0x410] sm:$0xfe]
  %v12455 = vld [vmem:[#allocation2 + $0x480] sm:$0xff]
  %v12456 = vld [vmem:[#allocation2 + $0x4b8] sm:$0x3]
  %v12460 = vrot.slane %v12454, 1
  %v12461 = vrot.slane %v12401, 1
  %v12462 = vsel %vm11701, %v12460, %v12461
  %v12463 = vrot.slane %v12455, 1
  %v12464 = vsel %vm11701, %v12461, %v12463
  %v12465 = vrot.slane %v12456, 1
  %v12466 = vsel %vm11701, %v12463, %v12465
  %12467 = vrot.lane.b32.xlu0 %v12462, 89
  %v12468 = vpop.permute.xlu0 %12467
  %12469 = vrot.lane.b32.xlu0 %v12464, 89
  %v12470 = vpop.permute.xlu0 %12469
  %12471 = vrot.lane.b32.xlu0 %v12466, 89
  %v12472 = vpop.permute.xlu0 %12471
  %12473 = vrot.lane.b32.xlu0 %v12465, 89
  %v12474 = vpop.permute.xlu0 %12473
  %v12479 = vadd.f32 %v12450, %v12468
  %v12480 = vadd.f32 %v12451, %v12470
  %v12481 = vadd.f32 %v12452, %v12472
  %v12482 = vadd.f32 %v12453, %v12474
  %v12483 = vld [vmem:[#allocation2 + $0x410] sm:$0xc0]
  %v12484 = vld [vmem:[#allocation2 + $0x4b8] sm:$0x7f]
  %v12487 = vrot.slane %v12483, 6
  %v12488 = vrot.slane %v12401, 6
  %v12489 = vsel %vm11737, %v12487, %v12488
  %v12490 = vrot.slane %v12455, 6
  %v12491 = vsel %vm11737, %v12488, %v12490
  %v12492 = vrot.slane %v12484, 6
  %v12493 = vsel %vm11737, %v12490, %v12492
  %12494 = vrot.lane.b32.xlu0 %v12489, 70
  %v12495 = vpop.permute.xlu0 %12494
  %12496 = vrot.lane.b32.xlu0 %v12491, 70
  %v12497 = vpop.permute.xlu0 %12496
  %12498 = vrot.lane.b32.xlu0 %v12493, 70
  %v12499 = vpop.permute.xlu0 %12498
  %12500 = vrot.lane.b32.xlu0 %v12492, 70
  %v12501 = vpop.permute.xlu0 %12500
  %v12506 = vadd.f32 %v12479, %v12495
  %v12507 = vadd.f32 %v12480, %v12497
  %v12508 = vadd.f32 %v12481, %v12499
  %v12509 = vadd.f32 %v12482, %v12501
  %v12510 = vld [vmem:[#allocation2 + $0x448] sm:$0xf8]
  %v12511 = vld [vmem:[#allocation2 + $0x4b8] sm:$0xff]
  %v12512 = vld [vmem:[#allocation2 + $0x4f0] sm:$0xf]
  %v12516 = vrot.slane %v12510, 3
  %v12517 = vrot.slane %v12455, 3
  %v12518 = vsel %vm6197, %v12516, %v12517
  %v12519 = vrot.slane %v12511, 3
  %v12520 = vsel %vm6197, %v12517, %v12519
  %v12521 = vrot.slane %v12512, 3
  %v12522 = vsel %vm6197, %v12519, %v12521
  %12523 = vrot.lane.b32.xlu0 %v12518, 51
  %v12524 = vpop.permute.xlu0 %12523
  %12525 = vrot.lane.b32.xlu0 %v12520, 51
  %v12526 = vpop.permute.xlu0 %12525
  %12527 = vrot.lane.b32.xlu0 %v12522, 51
  %v12528 = vpop.permute.xlu0 %12527
  %12529 = vrot.lane.b32.xlu0 %v12521, 51
  %v12530 = vpop.permute.xlu0 %12529
  %v12535 = vadd.f32 %v12506, %v12524
  %v12536 = vadd.f32 %v12507, %v12526
  %v12537 = vadd.f32 %v12508, %v12528
  %v12538 = vadd.f32 %v12509, %v12530
  %v12539 = vld [vmem:[#allocation2 + $0x4f0] sm:$0xff]
  %v12540 = vld [vmem:[#allocation2 + $0x528] sm:$0x1]
  %12543 = vrot.lane.b32.xlu0 %v12455, 32
  %v12544 = vpop.permute.xlu0 %12543
  %12545 = vrot.lane.b32.xlu0 %v12511, 32
  %v12546 = vpop.permute.xlu0 %12545
  %12547 = vrot.lane.b32.xlu0 %v12539, 32
  %v12548 = vpop.permute.xlu0 %12547
  %12549 = vrot.lane.b32.xlu0 %v12540, 32
  %v12550 = vpop.permute.xlu0 %12549
  %v12555 = vadd.f32 %v12535, %v12544
  %v12556 = vadd.f32 %v12536, %v12546
  %v12557 = vadd.f32 %v12537, %v12548
  %v12558 = vadd.f32 %v12538, %v12550
  %v12559 = vld [vmem:[#allocation2 + $0x480] sm:$0xe0]
  %v12560 = vld [vmem:[#allocation2 + $0x488] sm:$0xe0]
  %v12561 = vld [vmem:[#allocation2 + $0x4c0] sm:$0xff]
  %v12562 = vld [vmem:[#allocation2 + $0x4f8] sm:$0xff]
  %v12563 = vld [vmem:[#allocation2 + $0x528] sm:$0x3f]
  %v12564 = vld [vmem:[#allocation2 + $0x530] sm:$0x3f]
  %v12571 = vrot.slane %v12559, 5
  %v12572 = vrot.slane %v12511, 5
  %v12573 = vsel %vm11586, %v12571, %v12572
  %v12574 = vrot.slane %v12560, 5
  %v12575 = vrot.slane %v12561, 5
  %v12576 = vsel %vm11586, %v12574, %v12575
  %v12577 = vrot.slane %v12539, 5
  %v12578 = vsel %vm11586, %v12572, %v12577
  %v12579 = vrot.slane %v12562, 5
  %v12580 = vsel %vm11586, %v12575, %v12579
  %v12581 = vrot.slane %v12563, 5
  %v12582 = vsel %vm11586, %v12577, %v12581
  %v12583 = vrot.slane %v12564, 5
  %v12584 = vsel %vm11586, %v12579, %v12583
  %12585 = vrot.lane.b32.xlu0 %v12573, 13
  %v12586 = vpop.permute.xlu0 %12585
  %12587 = vrot.lane.b32.xlu0 %v12576, 13
  %v12588 = vpop.permute.xlu0 %12587
  %12589 = vrot.lane.b32.xlu0 %v12578, 13
  %v12590 = vpop.permute.xlu0 %12589
  %12591 = vrot.lane.b32.xlu0 %v12580, 13
  %v12592 = vpop.permute.xlu0 %12591
  %12593 = vrot.lane.b32.xlu0 %v12582, 13
  %v12594 = vpop.permute.xlu0 %12593
  %12595 = vrot.lane.b32.xlu0 %v12584, 13
  %v12596 = vpop.permute.xlu0 %12595
  %12597 = vrot.lane.b32.xlu0 %v12581, 13
  %v12598 = vpop.permute.xlu0 %12597
  %12599 = vrot.lane.b32.xlu0 %v12583, 13
  %v12600 = vpop.permute.xlu0 %12599
  %vm12601 = vcmask 105472
  %v12602 = vsel %vm12601, %v12586, %v12588
  %v12603 = vsel %vm12601, %v12590, %v12592
  %v12604 = vsel %vm12601, %v12594, %v12596
  %v12605 = vsel %vm12601, %v12598, %v12600
  %v12610 = vadd.f32 %v12555, %v12602
  %v12611 = vadd.f32 %v12556, %v12603
  %v12612 = vadd.f32 %v12557, %v12604
  %v12613 = vadd.f32 %v12558, %v12605
  %v12614 = vld [vmem:[#allocation2 + $0x4c0] sm:$0xfc]
  %v12615 = vld [vmem:[#allocation2 + $0x530] sm:$0xff]
  %v12616 = vld [vmem:[#allocation2 + $0x568] sm:$0x7]
  %v12620 = vrot.slane %v12614, 2
  %v12621 = vrot.slane %v12562, 2
  %v12622 = vsel %vm6198, %v12620, %v12621
  %v12623 = vrot.slane %v12615, 2
  %v12624 = vsel %vm6198, %v12621, %v12623
  %v12625 = vrot.slane %v12616, 2
  %v12626 = vsel %vm6198, %v12623, %v12625
  %12627 = vrot.lane.b32.xlu0 %v12622, 122
  %v12628 = vpop.permute.xlu0 %12627
  %12629 = vrot.lane.b32.xlu0 %v12624, 122
  %v12630 = vpop.permute.xlu0 %12629
  %12631 = vrot.lane.b32.xlu0 %v12626, 122
  %v12632 = vpop.permute.xlu0 %12631
  %12633 = vrot.lane.b32.xlu0 %v12625, 122
  %v12634 = vpop.permute.xlu0 %12633
  %v12639 = vadd.f32 %v12610, %v12628
  %v12640 = vadd.f32 %v12611, %v12630
  %v12641 = vadd.f32 %v12612, %v12632
  %v12642 = vadd.f32 %v12613, %v12634
  %v12643 = vld [vmem:[#allocation2 + $0x4c0] sm:$0x80]
  %v12644 = vld [vmem:[#allocation2 + $0x568] sm:$0xff]
  %v12647 = vrot.slane %v12643, 7
  %v12648 = vrot.slane %v12562, 7
  %v12649 = vsel %vm11643, %v12647, %v12648
  %v12650 = vrot.slane %v12615, 7
  %v12651 = vsel %vm11643, %v12648, %v12650
  %v12652 = vrot.slane %v12644, 7
  %v12653 = vsel %vm11643, %v12650, %v12652
  %12654 = vrot.lane.b32.xlu0 %v12649, 103
  %v12655 = vpop.permute.xlu0 %12654
  %12656 = vrot.lane.b32.xlu0 %v12651, 103
  %v12657 = vpop.permute.xlu0 %12656
  %12658 = vrot.lane.b32.xlu0 %v12653, 103
  %v12659 = vpop.permute.xlu0 %12658
  %12660 = vrot.lane.b32.xlu0 %v12652, 103
  %v12661 = vpop.permute.xlu0 %12660
  %v12666 = vadd.f32 %v12639, %v12655
  %v12667 = vadd.f32 %v12640, %v12657
  %v12668 = vadd.f32 %v12641, %v12659
  %v12669 = vadd.f32 %v12642, %v12661
  %v12670 = vld [vmem:[#allocation2 + $0x4f8] sm:$0xf0]
  %v12671 = vld [vmem:[#allocation2 + $0x5a0] sm:$0x1f]
  %v12674 = vrot.slane %v12670, 4
  %v12675 = vrot.slane %v12615, 4
  %v12676 = vsel %vm11671, %v12674, %v12675
  %v12677 = vrot.slane %v12644, 4
  %v12678 = vsel %vm11671, %v12675, %v12677
  %v12679 = vrot.slane %v12671, 4
  %v12680 = vsel %vm11671, %v12677, %v12679
  %12681 = vrot.lane.b32.xlu0 %v12676, 84
  %v12682 = vpop.permute.xlu0 %12681
  %12683 = vrot.lane.b32.xlu0 %v12678, 84
  %v12684 = vpop.permute.xlu0 %12683
  %12685 = vrot.lane.b32.xlu0 %v12680, 84
  %v12686 = vpop.permute.xlu0 %12685
  %12687 = vrot.lane.b32.xlu0 %v12679, 84
  %v12688 = vpop.permute.xlu0 %12687
  %v12693 = vadd.f32 %v12666, %v12682
  %v12694 = vadd.f32 %v12667, %v12684
  %v12695 = vadd.f32 %v12668, %v12686
  %v12696 = vadd.f32 %v12669, %v12688
  %v12697 = vld [vmem:[#allocation2 + $0x530] sm:$0xfe]
  %v12698 = vld [vmem:[#allocation2 + $0x5a0] sm:$0xff]
  %v12699 = vld [vmem:[#allocation2 + $0x5d8] sm:$0x3]
  %v12703 = vrot.slane %v12697, 1
  %v12704 = vrot.slane %v12644, 1
  %v12705 = vsel %vm11701, %v12703, %v12704
  %v12706 = vrot.slane %v12698, 1
  %v12707 = vsel %vm11701, %v12704, %v12706
  %v12708 = vrot.slane %v12699, 1
  %v12709 = vsel %vm11701, %v12706, %v12708
  %12710 = vrot.lane.b32.xlu0 %v12705, 65
  %v12711 = vpop.permute.xlu0 %12710
  %12712 = vrot.lane.b32.xlu0 %v12707, 65
  %v12713 = vpop.permute.xlu0 %12712
  %12714 = vrot.lane.b32.xlu0 %v12709, 65
  %v12715 = vpop.permute.xlu0 %12714
  %12716 = vrot.lane.b32.xlu0 %v12708, 65
  %v12717 = vpop.permute.xlu0 %12716
  %v12722 = vadd.f32 %v12693, %v12711
  %v12723 = vadd.f32 %v12694, %v12713
  %v12724 = vadd.f32 %v12695, %v12715
  %v12725 = vadd.f32 %v12696, %v12717
  %v12726 = vld [vmem:[#allocation2 + $0x530] sm:$0xc0]
  %v12727 = vld [vmem:[#allocation2 + $0x5d8] sm:$0x7f]
  %v12730 = vrot.slane %v12726, 6
  %v12731 = vrot.slane %v12644, 6
  %v12732 = vsel %vm11737, %v12730, %v12731
  %v12733 = vrot.slane %v12698, 6
  %v12734 = vsel %vm11737, %v12731, %v12733
  %v12735 = vrot.slane %v12727, 6
  %v12736 = vsel %vm11737, %v12733, %v12735
  %12737 = vrot.lane.b32.xlu0 %v12732, 46
  %v12738 = vpop.permute.xlu0 %12737
  %12739 = vrot.lane.b32.xlu0 %v12734, 46
  %v12740 = vpop.permute.xlu0 %12739
  %12741 = vrot.lane.b32.xlu0 %v12736, 46
  %v12742 = vpop.permute.xlu0 %12741
  %12743 = vrot.lane.b32.xlu0 %v12735, 46
  %v12744 = vpop.permute.xlu0 %12743
  %v12749 = vadd.f32 %v12722, %v12738
  %v12750 = vadd.f32 %v12723, %v12740
  %v12751 = vadd.f32 %v12724, %v12742
  %v12752 = vadd.f32 %v12725, %v12744
  %v12753 = vld [vmem:[#allocation2 + $0x568] sm:$0xf8]
  %v12754 = vld [vmem:[#allocation2 + $0x5d8] sm:$0xff]
  %v12755 = vld [vmem:[#allocation2 + $0x610] sm:$0xf]
  %v12759 = vrot.slane %v12753, 3
  %v12760 = vrot.slane %v12698, 3
  %v12761 = vsel %vm6197, %v12759, %v12760
  %v12762 = vrot.slane %v12754, 3
  %v12763 = vsel %vm6197, %v12760, %v12762
  %v12764 = vrot.slane %v12755, 3
  %v12765 = vsel %vm6197, %v12762, %v12764
  %12766 = vrot.lane.b32.xlu0 %v12761, 27
  %v12767 = vpop.permute.xlu0 %12766
  %12768 = vrot.lane.b32.xlu0 %v12763, 27
  %v12769 = vpop.permute.xlu0 %12768
  %12770 = vrot.lane.b32.xlu0 %v12765, 27
  %v12771 = vpop.permute.xlu0 %12770
  %12772 = vrot.lane.b32.xlu0 %v12764, 27
  %v12773 = vpop.permute.xlu0 %12772
  %v12778 = vadd.f32 %v12749, %v12767
  %v12779 = vadd.f32 %v12750, %v12769
  %v12780 = vadd.f32 %v12751, %v12771
  %v12781 = vadd.f32 %v12752, %v12773
  %v12782 = vld [vmem:[#allocation2 + $0x5a8] sm:$0xff]
  %v12783 = vld [vmem:[#allocation2 + $0x5e0] sm:$0xff]
  %v12784 = vld [vmem:[#allocation2 + $0x610] sm:$0xff]
  %v12785 = vld [vmem:[#allocation2 + $0x618] sm:$0xff]
  %v12786 = vld [vmem:[#allocation2 + $0x648] sm:$0x1]
  %v12787 = vld [vmem:[#allocation2 + $0x650] sm:$0x1]
  %12794 = vrot.lane.b32.xlu0 %v12698, 8
  %v12795 = vpop.permute.xlu0 %12794
  %12796 = vrot.lane.b32.xlu0 %v12782, 8
  %v12797 = vpop.permute.xlu0 %12796
  %12798 = vrot.lane.b32.xlu0 %v12754, 8
  %v12799 = vpop.permute.xlu0 %12798
  %12800 = vrot.lane.b32.xlu0 %v12783, 8
  %v12801 = vpop.permute.xlu0 %12800
  %12802 = vrot.lane.b32.xlu0 %v12784, 8
  %v12803 = vpop.permute.xlu0 %12802
  %12804 = vrot.lane.b32.xlu0 %v12785, 8
  %v12805 = vpop.permute.xlu0 %12804
  %12806 = vrot.lane.b32.xlu0 %v12786, 8
  %v12807 = vpop.permute.xlu0 %12806
  %12808 = vrot.lane.b32.xlu0 %v12787, 8
  %v12809 = vpop.permute.xlu0 %12808
  %vm12810 = vcmask 64512
  %v12811 = vsel %vm12810, %v12795, %v12797
  %v12812 = vsel %vm12810, %v12799, %v12801
  %v12813 = vsel %vm12810, %v12803, %v12805
  %v12814 = vsel %vm12810, %v12807, %v12809
  %v12819 = vadd.f32 %v12778, %v12811
  %v12820 = vadd.f32 %v12779, %v12812
  %v12821 = vadd.f32 %v12780, %v12813
  %v12822 = vadd.f32 %v12781, %v12814
  %v12823 = vld [vmem:[#allocation2 + $0x5a8] sm:$0xe0]
  %v12824 = vld [vmem:[#allocation2 + $0x650] sm:$0x3f]
  %v12827 = vrot.slane %v12823, 5
  %v12828 = vrot.slane %v12783, 5
  %v12829 = vsel %vm11586, %v12827, %v12828
  %v12830 = vrot.slane %v12785, 5
  %v12831 = vsel %vm11586, %v12828, %v12830
  %v12832 = vrot.slane %v12824, 5
  %v12833 = vsel %vm11586, %v12830, %v12832
  %12834 = vrot.lane.b32.xlu0 %v12829, 117
  %v12835 = vpop.permute.xlu0 %12834
  %12836 = vrot.lane.b32.xlu0 %v12831, 117
  %v12837 = vpop.permute.xlu0 %12836
  %12838 = vrot.lane.b32.xlu0 %v12833, 117
  %v12839 = vpop.permute.xlu0 %12838
  %12840 = vrot.lane.b32.xlu0 %v12832, 117
  %v12841 = vpop.permute.xlu0 %12840
  %v12846 = vadd.f32 %v12819, %v12835
  %v12847 = vadd.f32 %v12820, %v12837
  %v12848 = vadd.f32 %v12821, %v12839
  %v12849 = vadd.f32 %v12822, %v12841
  %v12850 = vld [vmem:[#allocation2 + $0x5e0] sm:$0xfc]
  %v12851 = vld [vmem:[#allocation2 + $0x650] sm:$0xff]
  %v12852 = vld [vmem:[#allocation2 + $0x688] sm:$0x7]
  %v12856 = vrot.slane %v12850, 2
  %v12857 = vrot.slane %v12785, 2
  %v12858 = vsel %vm6198, %v12856, %v12857
  %v12859 = vrot.slane %v12851, 2
  %v12860 = vsel %vm6198, %v12857, %v12859
  %v12861 = vrot.slane %v12852, 2
  %v12862 = vsel %vm6198, %v12859, %v12861
  %12863 = vrot.lane.b32.xlu0 %v12858, 98
  %v12864 = vpop.permute.xlu0 %12863
  %12865 = vrot.lane.b32.xlu0 %v12860, 98
  %v12866 = vpop.permute.xlu0 %12865
  %12867 = vrot.lane.b32.xlu0 %v12862, 98
  %v12868 = vpop.permute.xlu0 %12867
  %12869 = vrot.lane.b32.xlu0 %v12861, 98
  %v12870 = vpop.permute.xlu0 %12869
  %v12875 = vadd.f32 %v12846, %v12864
  %v12876 = vadd.f32 %v12847, %v12866
  %v12877 = vadd.f32 %v12848, %v12868
  %v12878 = vadd.f32 %v12849, %v12870
  %v12879 = vld [vmem:[#allocation2 + $0x5e0] sm:$0x80]
  %v12880 = vld [vmem:[#allocation2 + $0x688] sm:$0xff]
  %v12883 = vrot.slane %v12879, 7
  %v12884 = vrot.slane %v12785, 7
  %v12885 = vsel %vm11643, %v12883, %v12884
  %v12886 = vrot.slane %v12851, 7
  %v12887 = vsel %vm11643, %v12884, %v12886
  %v12888 = vrot.slane %v12880, 7
  %v12889 = vsel %vm11643, %v12886, %v12888
  %12890 = vrot.lane.b32.xlu0 %v12885, 79
  %v12891 = vpop.permute.xlu0 %12890
  %12892 = vrot.lane.b32.xlu0 %v12887, 79
  %v12893 = vpop.permute.xlu0 %12892
  %12894 = vrot.lane.b32.xlu0 %v12889, 79
  %v12895 = vpop.permute.xlu0 %12894
  %12896 = vrot.lane.b32.xlu0 %v12888, 79
  %v12897 = vpop.permute.xlu0 %12896
  %v12902 = vadd.f32 %v12875, %v12891
  %v12903 = vadd.f32 %v12876, %v12893
  %v12904 = vadd.f32 %v12877, %v12895
  %v12905 = vadd.f32 %v12878, %v12897
  %v12906 = vld [vmem:[#allocation2 + $0x618] sm:$0xf0]
  %v12907 = vld [vmem:[#allocation2 + $0x6c0] sm:$0x1f]
  %v12910 = vrot.slane %v12906, 4
  %v12911 = vrot.slane %v12851, 4
  %v12912 = vsel %vm11671, %v12910, %v12911
  %v12913 = vrot.slane %v12880, 4
  %v12914 = vsel %vm11671, %v12911, %v12913
  %v12915 = vrot.slane %v12907, 4
  %v12916 = vsel %vm11671, %v12913, %v12915
  %12917 = vrot.lane.b32.xlu0 %v12912, 60
  %v12918 = vpop.permute.xlu0 %12917
  %12919 = vrot.lane.b32.xlu0 %v12914, 60
  %v12920 = vpop.permute.xlu0 %12919
  %12921 = vrot.lane.b32.xlu0 %v12916, 60
  %v12922 = vpop.permute.xlu0 %12921
  %12923 = vrot.lane.b32.xlu0 %v12915, 60
  %v12924 = vpop.permute.xlu0 %12923
  %v12929 = vadd.f32 %v12902, %v12918
  %v12930 = vadd.f32 %v12903, %v12920
  %v12931 = vadd.f32 %v12904, %v12922
  %v12932 = vadd.f32 %v12905, %v12924
  %v12933 = vld [vmem:[%s2] sm:$0x1]
  %v12935 = vlaneseq
  %v12936 = vshrl.u32 %v12935, 7
  %v12937 = vsub.s32 0, %v12936
  %v12938 = vrot.slane %v12933, %v12937
  %v12940 = vadd.f32 %v12929, %v12938
  %v12941 = vadd.f32 %v12930, %v12938
  %v12942 = vadd.f32 %v12931, %v12938
  %v12943 = vadd.f32 %v12932, %v12938
  %v12944 = vxor.u32 %v12940, 2147483648
  %v12945 = vxor.u32 %v12941, 2147483648
  %v12946 = vxor.u32 %v12942, 2147483648
  %v12947 = vxor.u32 %v12943, 2147483648
  %v12948 = vmul.f32 %v12944, 1.442695
  %v12949 = vpow.pop %v12948
  %v12950 = vmul.f32 %v12945, 1.442695
  %v12951 = vpow.pop %v12950
  %v12952 = vmul.f32 %v12946, 1.442695
  %v12953 = vpow.pop %v12952
  %v12954 = vmul.f32 %v12947, 1.442695
  %v12955 = vpow.pop %v12954
  %v12956 = vadd.f32 %v12949, 1.0
  %v12957 = vadd.f32 %v12951, 1.0
  %v12958 = vadd.f32 %v12953, 1.0
  %v12959 = vadd.f32 %v12955, 1.0
  %v12960 = vrcp.pop %v12956
  %v12961 = vmul.f32 1.0, %v12960
  %v12962 = vrcp.pop %v12957
  %v12963 = vmul.f32 1.0, %v12962
  %v12964 = vrcp.pop %v12958
  %v12965 = vmul.f32 1.0, %v12964
  %v12966 = vrcp.pop %v12959
  %v12967 = vmul.f32 1.0, %v12966
  %v12968 = vmul.f32 %v12940, %v12961
  %v12969 = vmul.f32 %v12941, %v12963
  %v12970 = vmul.f32 %v12942, %v12965
  %v12971 = vmul.f32 %v12943, %v12967
  %vm12972 = vcmask 154624
  %12973 = vst.msk [vmem:[%s3] sm:$0xff] %vm12972, %v12968
  %12974 = vst.msk [vmem:[%s3 + $0x8] sm:$0xff] %vm12972, %v12969
  %12975 = vst.msk [vmem:[%s3 + $0x10] sm:$0xff] %vm12972, %v12970
  %vm12976 = vcmask 147456
  %12977 = vst.msk [vmem:[%s3 + $0x18] sm:$0x1] %vm12976, %v12971
  // Predicated region
  $region14: #{model_forward.1} parent=0 // pred_check
    _
  $region15: #{model_forward.1} parent=0 // pred_check_branch
    %12979 = sbr.rel (0) target = $region17
  $region16: #{model_forward.1} parent=0 // pred_region
    _
  $region17: #{model_forward.1} parent=0 // pred_fallthru
    _
  // Predicated region
  $region18: #{model_forward.1} parent=0 // pred_check
    _
  $region19: #{model_forward.1} parent=0 // pred_check_branch
    %12981 = sbr.rel (0) target = $region21
  $region20: #{model_forward.1} parent=0 // pred_region
    _
  $region21: #{model_forward.1} parent=0 // pred_fallthru
    _

</llo_original>
